<compile_context>
chip_gen: v6e
topology: v6e:2x2x1
jax: 0.10.0
libtpu: 0.0.40
codegen_flags: <defaults>
</compile_context>

<pallas_src>
import jax
import jax.numpy as jnp
from jax.experimental import pallas as pl
from jax.experimental.pallas import tpu as pltpu

_BN_EPS = 1e-5
_PAD = 128  # lane-dense width used for the narrow tail layers


# ----------------------------------------------------------------------------
# Fused kernel: whole forward pass, activations resident in VMEM / vregs.
# ----------------------------------------------------------------------------
def _ae_fused_kernel(x_ref, y_ref,
                     w1_ref, b1_ref,
                     w2_ref, b2_ref,
                     w3_ref, b3_ref,
                     w4x_ref, w4h_ref, b4_ref,
                     w5_ref, b5_ref,
                     w6_ref, b6_ref,
                     w7_ref, b7_ref,
                     o_ref):
    def layer(h, w_ref, b_ref, relu):
        acc = jnp.dot(h.astype(jnp.bfloat16), w_ref[...],
                      preferred_element_type=jnp.float32)
        acc = acc + b_ref[...]
        if relu:
            acc = jnp.maximum(acc, 0.0)
        return acc

    # ---- MLP1 : y -> h -----------------------------------------------------
    h = layer(y_ref[...], w1_ref, b1_ref, relu=True)     # 1536 -> 768 (+BN+ReLU)
    h = layer(h,          w2_ref, b2_ref, relu=True)     # 768  -> 768 (+BN+ReLU)
    h = layer(h,          w3_ref, b3_ref, relu=False)    # 768  -> 768

    # ---- concat fused into the first MLP2 layer -----------------------------
    #   cat([x, h], 1) @ W4 + b4  ==  x @ W4[:768] + h @ W4[768:] + b4
    acc = jnp.dot(x_ref[...].astype(jnp.bfloat16), w4x_ref[...],
                  preferred_element_type=jnp.float32)
    acc = acc + jnp.dot(h.astype(jnp.bfloat16), w4h_ref[...],
                        preferred_element_type=jnp.float32)
    h = jnp.maximum(acc + b4_ref[...], 0.0)               # 1536 -> 512 (+BN+ReLU)

    # ---- rest of MLP2 (tail padded to 128 lanes) -----------------------------
    h = layer(h, w5_ref, b5_ref, relu=True)    # 512 -> 128 (+BN+ReLU)
    h = layer(h, w6_ref, b6_ref, relu=True)    # 128 -> 64  (padded to 128)
    h = layer(h, w7_ref, b7_ref, relu=False)   # 64  -> 6   (padded to 128)

    o_ref[...] = h.astype(o_ref.dtype)


# ----------------------------------------------------------------------------
# Wrapper: single pallas_call, whole-array VMEM blocks.
# ----------------------------------------------------------------------------
def ae_forward(params, x, y):
    """x: [B, 768], y: [B, 1536]  ->  [B, 6]  (matches AEModel.forward, eval)."""
    batch = x.shape[0]
    args = (x, y) + tuple(params)
    vmem = pl.BlockSpec(memory_space=pltpu.MemorySpace.VMEM)

    weight_bytes = sum(int(a.size) * a.dtype.itemsize for a in params)
    io_bytes = (int(x.size) + int(y.size)) * 4 + batch * _PAD * 4
    flops = 2 * batch * (1536 * 768 + 768 * 768 + 768 * 768
                         + 1536 * 512 + 512 * 128 + 128 * _PAD + _PAD * _PAD)

    out = pl.pallas_call(
        _ae_fused_kernel,
        out_shape=jax.ShapeDtypeStruct((batch, _PAD), jnp.float32),
        in_specs=[vmem] * len(args),
        out_specs=vmem,
        cost_estimate=pl.CostEstimate(flops=flops, transcendentals=0,
                                      bytes_accessed=weight_bytes + io_bytes),
        compiler_params=pltpu.CompilerParams(
            vmem_limit_bytes=32 * 1024 * 1024),
    )(*args)
    # TODO(synk): if batch grows beyond ~256, add a batch grid axis (parallel)
    # with weight BlockSpecs invariant across it so weights stay VMEM-resident.
    return out[:, :6]


# ----------------------------------------------------------------------------
# Deterministic parameter construction (synthetic; matches __init__ shapes).
# BatchNorm is folded into the linear layers here, weights cast to bf16, the
# concat layer split, and the narrow tail layers zero-padded to 128 lanes.
# ----------------------------------------------------------------------------
def _init_linear(key, fin, fout):
    k_w, k_b = jax.random.split(key)
    bound = 1.0 / (float(fin) ** 0.5)              # PyTorch default uniform init
    w = jax.random.uniform(k_w, (fin, fout), jnp.float32, -bound, bound)
    b = jax.random.uniform(k_b, (fout,), jnp.float32, -bound, bound)
    return w, b


def _fold_bn(w, b, gamma, beta, mean, var):
    scale = gamma / jnp.sqrt(var + _BN_EPS)
    return w * scale[None, :], (b - mean) * scale + beta


def _pad2(w, rows, cols):
    return jnp.pad(w, ((0, rows - w.shape[0]), (0, cols - w.shape[1])))


def _pad1(b, n):
    return jnp.pad(b, (0, n - b.shape[0]))


def init_params(key):
    keys = jax.random.split(key, 7)
    specs = [  # (fin, fout, has_bn) in forward order
        (1536, 768, True),
        (768, 768, True),
        (768, 768, False),
        (1536, 512, True),
        (512, 128, True),
        (128, 64, True),
        (64, 6, False),
    ]
    layers = []
    for k, (fin, fout, has_bn) in zip(keys, specs):
        w, b = _init_linear(k, fin, fout)
        if has_bn:
            # PyTorch eval defaults: gamma=1, beta=0, running_mean=0, running_var=1.
            gamma = jnp.ones((fout,), jnp.float32)
            beta = jnp.zeros((fout,), jnp.float32)
            mean = jnp.zeros((fout,), jnp.float32)
            var = jnp.ones((fout,), jnp.float32)
            w, b = _fold_bn(w, b, gamma, beta, mean, var)
        layers.append((w, b))

    (w1, b1), (w2, b2), (w3, b3), (w4, b4), (w5, b5), (w6, b6), (w7, b7) = layers

    # Split first MLP2 weight for the fused concat: rows 0..767 -> x, 768.. -> h.
    w4x, w4h = w4[:768], w4[768:]

    # Lane-dense padding for the narrow tail layers (zeros -> exact results).
    w6 = _pad2(w6, 128, _PAD)
    b6 = _pad1(b6, _PAD)
    w7 = _pad2(w7, _PAD, _PAD)
    b7 = _pad1(b7, _PAD)

    def W(w):
        return w.astype(jnp.bfloat16)

    def B(b):
        return b.reshape(1, -1).astype(jnp.float32)

    # Flat tuple in kernel argument order.
    return (
        W(w1), B(b1),
        W(w2), B(b2),
        W(w3), B(b3),
        W(w4x), W(w4h), B(b4),
        W(w5), B(b5),
        W(w6), B(b6),
        W(w7), B(b7),
    )


if __name__ == "__main__":
    key = jax.random.PRNGKey(0)
    k_params, k_x, k_y = jax.random.split(key, 3)

    params = init_params(k_params)

    batch = 8
    x = jax.random.normal(k_x, (batch, 768), jnp.float32)
    y = jax.random.normal(k_y, (batch, 1536), jnp.float32)

    out = ae_forward(params, x, y)
    out = jax.block_until_ready(out)

    assert out.shape == (batch, 6), out.shape
    assert out.dtype == jnp.float32
    print("KERNEL_OK")
</pallas_src>

<mosaic_0001>
module attributes {stable_mosaic.version = 11 : i64} {
  func.func @_ae_fused_kernel(%arg0: memref<8x768xf32, #tpu.memory_space<vmem>>, %arg1: memref<8x1536xf32, #tpu.memory_space<vmem>>, %arg2: memref<1536x768xbf16, #tpu.memory_space<vmem>>, %arg3: memref<1x768xf32, #tpu.memory_space<vmem>>, %arg4: memref<768x768xbf16, #tpu.memory_space<vmem>>, %arg5: memref<1x768xf32, #tpu.memory_space<vmem>>, %arg6: memref<768x768xbf16, #tpu.memory_space<vmem>>, %arg7: memref<1x768xf32, #tpu.memory_space<vmem>>, %arg8: memref<768x512xbf16, #tpu.memory_space<vmem>>, %arg9: memref<768x512xbf16, #tpu.memory_space<vmem>>, %arg10: memref<1x512xf32, #tpu.memory_space<vmem>>, %arg11: memref<512x128xbf16, #tpu.memory_space<vmem>>, %arg12: memref<1x128xf32, #tpu.memory_space<vmem>>, %arg13: memref<128x128xbf16, #tpu.memory_space<vmem>>, %arg14: memref<1x128xf32, #tpu.memory_space<vmem>>, %arg15: memref<128x128xbf16, #tpu.memory_space<vmem>>, %arg16: memref<1x128xf32, #tpu.memory_space<vmem>>, %arg17: memref<8x128xf32, #tpu.memory_space<vmem>>) attributes {dimension_semantics = [], scalar_prefetch = 0 : i64, scratch_operands = 0 : i64, tpu.core_type = #tpu.core_type<tc>} {
    %c0 = arith.constant 0 : index
    %c0_0 = arith.constant 0 : index
    %0 = vector.load %arg1[%c0, %c0_0] : memref<8x1536xf32, #tpu.memory_space<vmem>>, vector<8x1536xf32>
    %1 = arith.truncf %0 : vector<8x1536xf32> to vector<8x1536xbf16>
    %c0_1 = arith.constant 0 : index
    %c0_2 = arith.constant 0 : index
    %2 = vector.load %arg2[%c0_1, %c0_2] : memref<1536x768xbf16, #tpu.memory_space<vmem>>, vector<1536x768xbf16>
    %cst = arith.constant dense<0.000000e+00> : vector<8x768xf32>
    %3 = tpu.matmul %1, %2, %cst {dimension_numbers = #tpu.dot_dimension_numbers<[1], [0], [0], [1], [0, 0, 1, 1], [], []>} : vector<8x1536xbf16>, vector<1536x768xbf16>, vector<8x768xf32> -> vector<8x768xf32>
    %c0_3 = arith.constant 0 : index
    %c0_4 = arith.constant 0 : index
    %4 = vector.load %arg3[%c0_3, %c0_4] : memref<1x768xf32, #tpu.memory_space<vmem>>, vector<1x768xf32>
    %5 = vector.broadcast %4 : vector<1x768xf32> to vector<8x768xf32>
    %6 = arith.addf %3, %5 : vector<8x768xf32>
    %cst_5 = arith.constant 0.000000e+00 : f32
    %7 = vector.broadcast %cst_5 : f32 to vector<8x768xf32>
    %8 = arith.maximumf %6, %7 : vector<8x768xf32>
    %9 = arith.truncf %8 : vector<8x768xf32> to vector<8x768xbf16>
    %c0_6 = arith.constant 0 : index
    %c0_7 = arith.constant 0 : index
    %10 = vector.load %arg4[%c0_6, %c0_7] : memref<768x768xbf16, #tpu.memory_space<vmem>>, vector<768x768xbf16>
    %cst_8 = arith.constant dense<0.000000e+00> : vector<8x768xf32>
    %11 = tpu.matmul %9, %10, %cst_8 {dimension_numbers = #tpu.dot_dimension_numbers<[1], [0], [0], [1], [0, 0, 1, 1], [], []>} : vector<8x768xbf16>, vector<768x768xbf16>, vector<8x768xf32> -> vector<8x768xf32>
    %c0_9 = arith.constant 0 : index
    %c0_10 = arith.constant 0 : index
    %12 = vector.load %arg5[%c0_9, %c0_10] : memref<1x768xf32, #tpu.memory_space<vmem>>, vector<1x768xf32>
    %13 = vector.broadcast %12 : vector<1x768xf32> to vector<8x768xf32>
    %14 = arith.addf %11, %13 : vector<8x768xf32>
    %cst_11 = arith.constant 0.000000e+00 : f32
    %15 = vector.broadcast %cst_11 : f32 to vector<8x768xf32>
    %16 = arith.maximumf %14, %15 : vector<8x768xf32>
    %17 = arith.truncf %16 : vector<8x768xf32> to vector<8x768xbf16>
    %c0_12 = arith.constant 0 : index
    %c0_13 = arith.constant 0 : index
    %18 = vector.load %arg6[%c0_12, %c0_13] : memref<768x768xbf16, #tpu.memory_space<vmem>>, vector<768x768xbf16>
    %cst_14 = arith.constant dense<0.000000e+00> : vector<8x768xf32>
    %19 = tpu.matmul %17, %18, %cst_14 {dimension_numbers = #tpu.dot_dimension_numbers<[1], [0], [0], [1], [0, 0, 1, 1], [], []>} : vector<8x768xbf16>, vector<768x768xbf16>, vector<8x768xf32> -> vector<8x768xf32>
    %c0_15 = arith.constant 0 : index
    %c0_16 = arith.constant 0 : index
    %20 = vector.load %arg7[%c0_15, %c0_16] : memref<1x768xf32, #tpu.memory_space<vmem>>, vector<1x768xf32>
    %21 = vector.broadcast %20 : vector<1x768xf32> to vector<8x768xf32>
    %22 = arith.addf %19, %21 : vector<8x768xf32>
    %c0_17 = arith.constant 0 : index
    %c0_18 = arith.constant 0 : index
    %23 = vector.load %arg0[%c0_17, %c0_18] : memref<8x768xf32, #tpu.memory_space<vmem>>, vector<8x768xf32>
    %24 = arith.truncf %23 : vector<8x768xf32> to vector<8x768xbf16>
    %c0_19 = arith.constant 0 : index
    %c0_20 = arith.constant 0 : index
    %25 = vector.load %arg8[%c0_19, %c0_20] : memref<768x512xbf16, #tpu.memory_space<vmem>>, vector<768x512xbf16>
    %cst_21 = arith.constant dense<0.000000e+00> : vector<8x512xf32>
    %26 = tpu.matmul %24, %25, %cst_21 {dimension_numbers = #tpu.dot_dimension_numbers<[1], [0], [0], [1], [0, 0, 1, 1], [], []>} : vector<8x768xbf16>, vector<768x512xbf16>, vector<8x512xf32> -> vector<8x512xf32>
    %27 = arith.truncf %22 : vector<8x768xf32> to vector<8x768xbf16>
    %c0_22 = arith.constant 0 : index
    %c0_23 = arith.constant 0 : index
    %28 = vector.load %arg9[%c0_22, %c0_23] : memref<768x512xbf16, #tpu.memory_space<vmem>>, vector<768x512xbf16>
    %cst_24 = arith.constant dense<0.000000e+00> : vector<8x512xf32>
    %29 = tpu.matmul %27, %28, %cst_24 {dimension_numbers = #tpu.dot_dimension_numbers<[1], [0], [0], [1], [0, 0, 1, 1], [], []>} : vector<8x768xbf16>, vector<768x512xbf16>, vector<8x512xf32> -> vector<8x512xf32>
    %30 = arith.addf %26, %29 : vector<8x512xf32>
    %c0_25 = arith.constant 0 : index
    %c0_26 = arith.constant 0 : index
    %31 = vector.load %arg10[%c0_25, %c0_26] : memref<1x512xf32, #tpu.memory_space<vmem>>, vector<1x512xf32>
    %32 = vector.broadcast %31 : vector<1x512xf32> to vector<8x512xf32>
    %33 = arith.addf %30, %32 : vector<8x512xf32>
    %cst_27 = arith.constant 0.000000e+00 : f32
    %34 = vector.broadcast %cst_27 : f32 to vector<8x512xf32>
    %35 = arith.maximumf %33, %34 : vector<8x512xf32>
    %36 = arith.truncf %35 : vector<8x512xf32> to vector<8x512xbf16>
    %c0_28 = arith.constant 0 : index
    %c0_29 = arith.constant 0 : index
    %37 = vector.load %arg11[%c0_28, %c0_29] : memref<512x128xbf16, #tpu.memory_space<vmem>>, vector<512x128xbf16>
    %cst_30 = arith.constant dense<0.000000e+00> : vector<8x128xf32>
    %38 = tpu.matmul %36, %37, %cst_30 {dimension_numbers = #tpu.dot_dimension_numbers<[1], [0], [0], [1], [0, 0, 1, 1], [], []>} : vector<8x512xbf16>, vector<512x128xbf16>, vector<8x128xf32> -> vector<8x128xf32>
    %c0_31 = arith.constant 0 : index
    %c0_32 = arith.constant 0 : index
    %39 = vector.load %arg12[%c0_31, %c0_32] : memref<1x128xf32, #tpu.memory_space<vmem>>, vector<1x128xf32>
    %40 = vector.broadcast %39 : vector<1x128xf32> to vector<8x128xf32>
    %41 = arith.addf %38, %40 : vector<8x128xf32>
    %cst_33 = arith.constant 0.000000e+00 : f32
    %42 = vector.broadcast %cst_33 : f32 to vector<8x128xf32>
    %43 = arith.maximumf %41, %42 : vector<8x128xf32>
    %44 = arith.truncf %43 : vector<8x128xf32> to vector<8x128xbf16>
    %c0_34 = arith.constant 0 : index
    %c0_35 = arith.constant 0 : index
    %45 = vector.load %arg13[%c0_34, %c0_35] : memref<128x128xbf16, #tpu.memory_space<vmem>>, vector<128x128xbf16>
    %cst_36 = arith.constant dense<0.000000e+00> : vector<8x128xf32>
    %46 = tpu.matmul %44, %45, %cst_36 {dimension_numbers = #tpu.dot_dimension_numbers<[1], [0], [0], [1], [0, 0, 1, 1], [], []>} : vector<8x128xbf16>, vector<128x128xbf16>, vector<8x128xf32> -> vector<8x128xf32>
    %c0_37 = arith.constant 0 : index
    %c0_38 = arith.constant 0 : index
    %47 = vector.load %arg14[%c0_37, %c0_38] : memref<1x128xf32, #tpu.memory_space<vmem>>, vector<1x128xf32>
    %48 = vector.broadcast %47 : vector<1x128xf32> to vector<8x128xf32>
    %49 = arith.addf %46, %48 : vector<8x128xf32>
    %cst_39 = arith.constant 0.000000e+00 : f32
    %50 = vector.broadcast %cst_39 : f32 to vector<8x128xf32>
    %51 = arith.maximumf %49, %50 : vector<8x128xf32>
    %52 = arith.truncf %51 : vector<8x128xf32> to vector<8x128xbf16>
    %c0_40 = arith.constant 0 : index
    %c0_41 = arith.constant 0 : index
    %53 = vector.load %arg15[%c0_40, %c0_41] : memref<128x128xbf16, #tpu.memory_space<vmem>>, vector<128x128xbf16>
    %cst_42 = arith.constant dense<0.000000e+00> : vector<8x128xf32>
    %54 = tpu.matmul %52, %53, %cst_42 {dimension_numbers = #tpu.dot_dimension_numbers<[1], [0], [0], [1], [0, 0, 1, 1], [], []>} : vector<8x128xbf16>, vector<128x128xbf16>, vector<8x128xf32> -> vector<8x128xf32>
    %c0_43 = arith.constant 0 : index
    %c0_44 = arith.constant 0 : index
    %55 = vector.load %arg16[%c0_43, %c0_44] : memref<1x128xf32, #tpu.memory_space<vmem>>, vector<1x128xf32>
    %56 = vector.broadcast %55 : vector<1x128xf32> to vector<8x128xf32>
    %57 = arith.addf %54, %56 : vector<8x128xf32>
    %c0_45 = arith.constant 0 : index
    %c0_46 = arith.constant 0 : index
    %58 = vector.load %arg17[%c0_45, %c0_46] : memref<8x128xf32, #tpu.memory_space<vmem>>, vector<8x128xf32>
    tpu.vector_store %arg17[%c0_45, %c0_46], %57 {strides = array<i32>} : memref<8x128xf32, #tpu.memory_space<vmem>>, vector<8x128xf32>,
    return
  }
}

</mosaic_0001>

<llo_original>
// kernel: tpu_custom_call.1
$region0: #{tpu_custom_call.1}
  #allocation0 [shape = 'u32[]', space=smem, size = 0x4, offset = 0x4, fixed_abs, tag = 'smem constant byte address 0x4 - core index']
  #allocation1 [shape = 'u32[144,128]{1,0:T(1,128)}', space=vmem, size = 0x12000, scoped, tag = 'internal scratch']
  %s0 = inlined_call_operand.hbm [shape: f32[8,768], index: 0, kind: input, shape index: {}]
  %s1 = inlined_call_operand.hbm [shape: f32[8,1536], index: 1, kind: input, shape index: {}]
  %s2 = inlined_call_operand.hbm [shape: bf16[1536,768], index: 2, kind: input, shape index: {}]
  %s3 = inlined_call_operand.hbm [shape: f32[1,768], index: 3, kind: input, shape index: {}]
  %s4 = inlined_call_operand.hbm [shape: bf16[768,768], index: 4, kind: input, shape index: {}]
  %s5 = inlined_call_operand.hbm [shape: f32[1,768], index: 5, kind: input, shape index: {}]
  %s6 = inlined_call_operand.hbm [shape: bf16[768,768], index: 6, kind: input, shape index: {}]
  %s7 = inlined_call_operand.hbm [shape: f32[1,768], index: 7, kind: input, shape index: {}]
  %s8 = inlined_call_operand.hbm [shape: bf16[768,512], index: 8, kind: input, shape index: {}]
  %s9 = inlined_call_operand.hbm [shape: bf16[768,512], index: 9, kind: input, shape index: {}]
  %s10 = inlined_call_operand.hbm [shape: f32[1,512], index: 10, kind: input, shape index: {}]
  %s11 = inlined_call_operand.hbm [shape: bf16[512,128], index: 11, kind: input, shape index: {}]
  %s12 = inlined_call_operand.hbm [shape: f32[1,128], index: 12, kind: input, shape index: {}]
  %s13 = inlined_call_operand.hbm [shape: bf16[128,128], index: 13, kind: input, shape index: {}]
  %s14 = inlined_call_operand.hbm [shape: f32[1,128], index: 14, kind: input, shape index: {}]
  %s15 = inlined_call_operand.hbm [shape: bf16[128,128], index: 15, kind: input, shape index: {}]
  %s16 = inlined_call_operand.hbm [shape: f32[1,128], index: 16, kind: input, shape index: {}]
  %s17 = inlined_call_operand.hbm [shape: f32[8,128], index: 17, kind: output, shape index: {}]
  %s18 = sld [smem:[#allocation0]]
  $region146: #{tpu_custom_call.1} parent=0
    _
  %s20 = ssub.s32 1, %s18
  %s21 = scalar_select 0, %s20, %s18
  $region1: #{tpu_custom_call.1} parent=0
    #allocation2 [shape = 'u8[24576]{0}', space=vmem, size = 0x6000, scoped, tag = 'input window, operand 0, single buffered']
    #allocation3 [shape = 's32[1]{0}', space=sflag, size = 0x4, scoped, tag = 'scoped memory for tpu_custom_call.1']
    #allocation4 [shape = 's32[1]{0}', space=sflag, size = 0x4, scoped, tag = 'scoped memory for tpu_custom_call.1']
    #allocation5 [shape = 'u8[49152]{0}', space=vmem, size = 0xc000, scoped, tag = 'input window, operand 1, single buffered']
    #allocation6 [shape = 's32[1]{0}', space=sflag, size = 0x4, scoped, tag = 'scoped memory for tpu_custom_call.1']
    #allocation7 [shape = 'u8[2359296]{0}', space=vmem, size = 0x240000, scoped, tag = 'input window, operand 2, single buffered']
    #allocation8 [shape = 'u8[3072]{0}', space=vmem, size = 0xc00, scoped, tag = 'input window, operand 3, single buffered']
    #allocation9 [shape = 's32[1]{0}', space=sflag, size = 0x4, scoped, tag = 'scoped memory for tpu_custom_call.1']
    #allocation10 [shape = 'u8[1179648]{0}', space=vmem, size = 0x120000, scoped, tag = 'input window, operand 4, single buffered']
    #allocation11 [shape = 'u8[3072]{0}', space=vmem, size = 0xc00, scoped, tag = 'input window, operand 5, single buffered']
    #allocation12 [shape = 's32[1]{0}', space=sflag, size = 0x4, scoped, tag = 'scoped memory for tpu_custom_call.1']
    #allocation13 [shape = 'u8[1179648]{0}', space=vmem, size = 0x120000, scoped, tag = 'input window, operand 6, single buffered']
    #allocation14 [shape = 'u8[3072]{0}', space=vmem, size = 0xc00, scoped, tag = 'input window, operand 7, single buffered']
    #allocation15 [shape = 's32[1]{0}', space=sflag, size = 0x4, scoped, tag = 'scoped memory for tpu_custom_call.1']
    #allocation16 [shape = 'u8[786432]{0}', space=vmem, size = 0xc0000, scoped, tag = 'input window, operand 8, single buffered']
    #allocation17 [shape = 'u8[786432]{0}', space=vmem, size = 0xc0000, scoped, tag = 'input window, operand 9, single buffered']
    #allocation18 [shape = 's32[1]{0}', space=sflag, size = 0x4, scoped, tag = 'scoped memory for tpu_custom_call.1']
    #allocation19 [shape = 'u8[2048]{0}', space=vmem, size = 0x800, scoped, tag = 'input window, operand 10, single buffered']
    #allocation20 [shape = 'u8[131072]{0}', space=vmem, size = 0x20000, scoped, tag = 'input window, operand 11, single buffered']
    #allocation21 [shape = 's32[1]{0}', space=sflag, size = 0x4, scoped, tag = 'scoped memory for tpu_custom_call.1']
    #allocation22 [shape = 'u8[512]{0}', space=vmem, size = 0x400, scoped, tag = 'input window, operand 12, single buffered']
    #allocation23 [shape = 'u8[32768]{0}', space=vmem, size = 0x8000, scoped, tag = 'input window, operand 13, single buffered']
    #allocation24 [shape = 's32[1]{0}', space=sflag, size = 0x4, scoped, tag = 'scoped memory for tpu_custom_call.1']
    #allocation25 [shape = 'u8[512]{0}', space=vmem, size = 0x400, scoped, tag = 'input window, operand 14, single buffered']
    #allocation26 [shape = 'u8[32768]{0}', space=vmem, size = 0x8000, scoped, tag = 'input window, operand 15, single buffered']
    #allocation27 [shape = 's32[1]{0}', space=sflag, size = 0x4, scoped, tag = 'scoped memory for tpu_custom_call.1']
    #allocation28 [shape = 'u8[512]{0}', space=vmem, size = 0x400, scoped, tag = 'input window, operand 16, single buffered']
    #allocation29 [shape = 'u8[4096]{0}', space=vmem, size = 0x1000, scoped, tag = 'output window, operand 0, single buffered']
    %22 = vsyncpa [#allocation3], 0
    %23 = vsyncpa [#allocation6], 0
    %24 = vsyncpa [#allocation9], 0
    %25 = vsyncpa [#allocation12], 0
    %26 = vsyncpa [#allocation15], 0
    %27 = vsyncpa [#allocation18], 0
    %28 = vsyncpa [#allocation21], 0
    %29 = vsyncpa [#allocation24], 0
    %30 = vsyncpa [#allocation27], 0
    %31 = vsyncpa [#allocation4], 0
    // Predicated region
    $region2: #{tpu_custom_call.1} parent=1 // pred_check
      _
    $region3: #{tpu_custom_call.1} parent=1 // pred_check_branch
      %33 = sbr.rel (0) target = $region5
    $region4: #{tpu_custom_call.1} parent=1 // pred_region
      %s35 = ssub.s32 768, 768
      %36 = vsyncadd [#allocation3], %s35
      %s38 = sshll.u32 [#allocation2], 4
      %s39 = int_to_ptr.vmem [resolvable:$true] %s38
      %41 = dma.hbm_to_vmem [thread:$0]  %s0, 768, %s39, [#allocation3]
    $region5: #{tpu_custom_call.1} parent=1 // pred_fallthru
      _
    // Predicated region
    $region6: #{tpu_custom_call.1} parent=1 // pred_check
      _
    $region7: #{tpu_custom_call.1} parent=1 // pred_check_branch
      %43 = sbr.rel (0) target = $region9
    $region8: #{tpu_custom_call.1} parent=1 // pred_region
      %s45 = ssub.s32 1536, 1536
      %46 = vsyncadd [#allocation6], %s45
      %s48 = sshll.u32 [#allocation5], 4
      %s49 = int_to_ptr.vmem [resolvable:$true] %s48
      %51 = dma.hbm_to_vmem [thread:$0]  %s1, 1536, %s49, [#allocation6]
    $region9: #{tpu_custom_call.1} parent=1 // pred_fallthru
      _
    // Predicated region
    $region10: #{tpu_custom_call.1} parent=1 // pred_check
      _
    $region11: #{tpu_custom_call.1} parent=1 // pred_check_branch
      %53 = sbr.rel (0) target = $region13
    $region12: #{tpu_custom_call.1} parent=1 // pred_region
      %s55 = ssub.s32 73728, 73728
      %56 = vsyncadd [#allocation6], %s55
      %s57 = sshll.u32 [#allocation7], 4
      %s58 = int_to_ptr.vmem [resolvable:$true] %s57
      %63 = dma.hbm_to_vmem [thread:$0]  %s2, 73728, %s58, [#allocation6], 384, 384, 24
    $region13: #{tpu_custom_call.1} parent=1 // pred_fallthru
      _
    // Predicated region
    $region14: #{tpu_custom_call.1} parent=1 // pred_check
      _
    $region15: #{tpu_custom_call.1} parent=1 // pred_check_branch
      %65 = sbr.rel (0) target = $region17
    $region16: #{tpu_custom_call.1} parent=1 // pred_region
      %s67 = ssub.s32 96, 96
      %68 = vsyncadd [#allocation9], %s67
      %s70 = sshll.u32 [#allocation8], 4
      %s71 = int_to_ptr.vmem [resolvable:$true] %s70
      %73 = dma.hbm_to_vmem [thread:$0]  %s3, 96, %s71, [#allocation9]
    $region17: #{tpu_custom_call.1} parent=1 // pred_fallthru
      _
    // Predicated region
    $region18: #{tpu_custom_call.1} parent=1 // pred_check
      _
    $region19: #{tpu_custom_call.1} parent=1 // pred_check_branch
      %75 = sbr.rel (0) target = $region21
    $region20: #{tpu_custom_call.1} parent=1 // pred_region
      %s77 = ssub.s32 36864, 36864
      %78 = vsyncadd [#allocation9], %s77
      %s79 = sshll.u32 [#allocation10], 4
      %s80 = int_to_ptr.vmem [resolvable:$true] %s79
      %85 = dma.hbm_to_vmem [thread:$0]  %s4, 36864, %s80, [#allocation9], 384, 384, 24
    $region21: #{tpu_custom_call.1} parent=1 // pred_fallthru
      _
    // Predicated region
    $region22: #{tpu_custom_call.1} parent=1 // pred_check
      _
    $region23: #{tpu_custom_call.1} parent=1 // pred_check_branch
      %87 = sbr.rel (0) target = $region25
    $region24: #{tpu_custom_call.1} parent=1 // pred_region
      %s89 = ssub.s32 96, 96
      %90 = vsyncadd [#allocation12], %s89
      %s92 = sshll.u32 [#allocation11], 4
      %s93 = int_to_ptr.vmem [resolvable:$true] %s92
      %95 = dma.hbm_to_vmem [thread:$0]  %s5, 96, %s93, [#allocation12]
    $region25: #{tpu_custom_call.1} parent=1 // pred_fallthru
      _
    // Predicated region
    $region26: #{tpu_custom_call.1} parent=1 // pred_check
      _
    $region27: #{tpu_custom_call.1} parent=1 // pred_check_branch
      %97 = sbr.rel (0) target = $region29
    $region28: #{tpu_custom_call.1} parent=1 // pred_region
      %s99 = ssub.s32 36864, 36864
      %100 = vsyncadd [#allocation12], %s99
      %s101 = sshll.u32 [#allocation13], 4
      %s102 = int_to_ptr.vmem [resolvable:$true] %s101
      %107 = dma.hbm_to_vmem [thread:$0]  %s6, 36864, %s102, [#allocation12], 384, 384, 24
    $region29: #{tpu_custom_call.1} parent=1 // pred_fallthru
      _
    // Predicated region
    $region30: #{tpu_custom_call.1} parent=1 // pred_check
      _
    $region31: #{tpu_custom_call.1} parent=1 // pred_check_branch
      %109 = sbr.rel (0) target = $region33
    $region32: #{tpu_custom_call.1} parent=1 // pred_region
      %s111 = ssub.s32 96, 96
      %112 = vsyncadd [#allocation15], %s111
      %s114 = sshll.u32 [#allocation14], 4
      %s115 = int_to_ptr.vmem [resolvable:$true] %s114
      %117 = dma.hbm_to_vmem [thread:$0]  %s7, 96, %s115, [#allocation15]
    $region33: #{tpu_custom_call.1} parent=1 // pred_fallthru
      _
    // Predicated region
    $region34: #{tpu_custom_call.1} parent=1 // pred_check
      _
    $region35: #{tpu_custom_call.1} parent=1 // pred_check_branch
      %119 = sbr.rel (0) target = $region37
    $region36: #{tpu_custom_call.1} parent=1 // pred_region
      %s121 = ssub.s32 24576, 24576
      %122 = vsyncadd [#allocation15], %s121
      %s123 = sshll.u32 [#allocation16], 4
      %s124 = int_to_ptr.vmem [resolvable:$true] %s123
      %129 = dma.hbm_to_vmem [thread:$0]  %s8, 24576, %s124, [#allocation15], 256, 256, 16
    $region37: #{tpu_custom_call.1} parent=1 // pred_fallthru
      _
    // Predicated region
    $region38: #{tpu_custom_call.1} parent=1 // pred_check
      _
    $region39: #{tpu_custom_call.1} parent=1 // pred_check_branch
      %131 = sbr.rel (0) target = $region41
    $region40: #{tpu_custom_call.1} parent=1 // pred_region
      %s133 = ssub.s32 24576, 24576
      %134 = vsyncadd [#allocation18], %s133
      %s135 = sshll.u32 [#allocation17], 4
      %s136 = int_to_ptr.vmem [resolvable:$true] %s135
      %141 = dma.hbm_to_vmem [thread:$0]  %s9, 24576, %s136, [#allocation18], 256, 256, 16
    $region41: #{tpu_custom_call.1} parent=1 // pred_fallthru
      _
    // Predicated region
    $region42: #{tpu_custom_call.1} parent=1 // pred_check
      _
    $region43: #{tpu_custom_call.1} parent=1 // pred_check_branch
      %143 = sbr.rel (0) target = $region45
    $region44: #{tpu_custom_call.1} parent=1 // pred_region
      %s145 = ssub.s32 64, 64
      %146 = vsyncadd [#allocation18], %s145
      %s148 = sshll.u32 [#allocation19], 4
      %s149 = int_to_ptr.vmem [resolvable:$true] %s148
      %151 = dma.hbm_to_vmem [thread:$0]  %s10, 64, %s149, [#allocation18]
    $region45: #{tpu_custom_call.1} parent=1 // pred_fallthru
      _
    // Predicated region
    $region46: #{tpu_custom_call.1} parent=1 // pred_check
      _
    $region47: #{tpu_custom_call.1} parent=1 // pred_check_branch
      %153 = sbr.rel (0) target = $region49
    $region48: #{tpu_custom_call.1} parent=1 // pred_region
      %s155 = ssub.s32 4096, 4096
      %156 = vsyncadd [#allocation21], %s155
      %s157 = sshll.u32 [#allocation20], 4
      %s158 = int_to_ptr.vmem [resolvable:$true] %s157
      %163 = dma.hbm_to_vmem [thread:$0]  %s11, 4096, %s158, [#allocation21], 64, 64, 4
    $region49: #{tpu_custom_call.1} parent=1 // pred_fallthru
      _
    // Predicated region
    $region50: #{tpu_custom_call.1} parent=1 // pred_check
      _
    $region51: #{tpu_custom_call.1} parent=1 // pred_check_branch
      %165 = sbr.rel (0) target = $region53
    $region52: #{tpu_custom_call.1} parent=1 // pred_region
      %s167 = ssub.s32 16, 16
      %168 = vsyncadd [#allocation21], %s167
      %s170 = sshll.u32 [#allocation22], 4
      %s171 = int_to_ptr.vmem [resolvable:$true] %s170
      %173 = dma.hbm_to_vmem [thread:$0]  %s12, 16, %s171, [#allocation21]
    $region53: #{tpu_custom_call.1} parent=1 // pred_fallthru
      _
    // Predicated region
    $region54: #{tpu_custom_call.1} parent=1 // pred_check
      _
    $region55: #{tpu_custom_call.1} parent=1 // pred_check_branch
      %175 = sbr.rel (0) target = $region57
    $region56: #{tpu_custom_call.1} parent=1 // pred_region
      %s177 = ssub.s32 1024, 1024
      %178 = vsyncadd [#allocation24], %s177
      %s179 = sshll.u32 [#allocation23], 4
      %s180 = int_to_ptr.vmem [resolvable:$true] %s179
      %185 = dma.hbm_to_vmem [thread:$0]  %s13, 1024, %s180, [#allocation24], 64, 64, 4
    $region57: #{tpu_custom_call.1} parent=1 // pred_fallthru
      _
    // Predicated region
    $region58: #{tpu_custom_call.1} parent=1 // pred_check
      _
    $region59: #{tpu_custom_call.1} parent=1 // pred_check_branch
      %187 = sbr.rel (0) target = $region61
    $region60: #{tpu_custom_call.1} parent=1 // pred_region
      %s189 = ssub.s32 16, 16
      %190 = vsyncadd [#allocation24], %s189
      %s192 = sshll.u32 [#allocation25], 4
      %s193 = int_to_ptr.vmem [resolvable:$true] %s192
      %195 = dma.hbm_to_vmem [thread:$0]  %s14, 16, %s193, [#allocation24]
    $region61: #{tpu_custom_call.1} parent=1 // pred_fallthru
      _
    // Predicated region
    $region62: #{tpu_custom_call.1} parent=1 // pred_check
      _
    $region63: #{tpu_custom_call.1} parent=1 // pred_check_branch
      %197 = sbr.rel (0) target = $region65
    $region64: #{tpu_custom_call.1} parent=1 // pred_region
      %s199 = ssub.s32 1024, 1024
      %200 = vsyncadd [#allocation27], %s199
      %s201 = sshll.u32 [#allocation26], 4
      %s202 = int_to_ptr.vmem [resolvable:$true] %s201
      %207 = dma.hbm_to_vmem [thread:$0]  %s15, 1024, %s202, [#allocation27], 64, 64, 4
    $region65: #{tpu_custom_call.1} parent=1 // pred_fallthru
      _
    // Predicated region
    $region66: #{tpu_custom_call.1} parent=1 // pred_check
      _
    $region67: #{tpu_custom_call.1} parent=1 // pred_check_branch
      %209 = sbr.rel (0) target = $region69
    $region68: #{tpu_custom_call.1} parent=1 // pred_region
      %s211 = ssub.s32 16, 16
      %212 = vsyncadd [#allocation27], %s211
      %s214 = sshll.u32 [#allocation28], 4
      %s215 = int_to_ptr.vmem [resolvable:$true] %s214
      %217 = dma.hbm_to_vmem [thread:$0]  %s16, 16, %s215, [#allocation27]
    $region69: #{tpu_custom_call.1} parent=1 // pred_fallthru
      _
    // Predicated region
    $region70: #{tpu_custom_call.1} parent=1 // pred_check
      _
    $region71: #{tpu_custom_call.1} parent=1 // pred_check_branch
      %219 = sbr.rel (0) target = $region73
    $region72: #{tpu_custom_call.1} parent=1 // pred_region
      %220 = dma.done [#allocation3], 768
    $region73: #{tpu_custom_call.1} parent=1 // pred_fallthru
      _
    // Predicated region
    $region74: #{tpu_custom_call.1} parent=1 // pred_check
      _
    $region75: #{tpu_custom_call.1} parent=1 // pred_check_branch
      %222 = sbr.rel (0) target = $region77
    $region76: #{tpu_custom_call.1} parent=1 // pred_region
      %223 = dma.done [#allocation6], 1536
    $region77: #{tpu_custom_call.1} parent=1 // pred_fallthru
      _
    // Predicated region
    $region78: #{tpu_custom_call.1} parent=1 // pred_check
      _
    $region79: #{tpu_custom_call.1} parent=1 // pred_check_branch
      %225 = sbr.rel (0) target = $region81
    $region80: #{tpu_custom_call.1} parent=1 // pred_region
      %226 = dma.done [#allocation6], 73728
    $region81: #{tpu_custom_call.1} parent=1 // pred_fallthru
      _
    // Predicated region
    $region82: #{tpu_custom_call.1} parent=1 // pred_check
      _
    $region83: #{tpu_custom_call.1} parent=1 // pred_check_branch
      %228 = sbr.rel (0) target = $region85
    $region84: #{tpu_custom_call.1} parent=1 // pred_region
      %229 = dma.done [#allocation9], 96
    $region85: #{tpu_custom_call.1} parent=1 // pred_fallthru
      _
    // Predicated region
    $region86: #{tpu_custom_call.1} parent=1 // pred_check
      _
    $region87: #{tpu_custom_call.1} parent=1 // pred_check_branch
      %231 = sbr.rel (0) target = $region89
    $region88: #{tpu_custom_call.1} parent=1 // pred_region
      %232 = dma.done [#allocation9], 36864
    $region89: #{tpu_custom_call.1} parent=1 // pred_fallthru
      _
    // Predicated region
    $region90: #{tpu_custom_call.1} parent=1 // pred_check
      _
    $region91: #{tpu_custom_call.1} parent=1 // pred_check_branch
      %234 = sbr.rel (0) target = $region93
    $region92: #{tpu_custom_call.1} parent=1 // pred_region
      %235 = dma.done [#allocation12], 96
    $region93: #{tpu_custom_call.1} parent=1 // pred_fallthru
      _
    // Predicated region
    $region94: #{tpu_custom_call.1} parent=1 // pred_check
      _
    $region95: #{tpu_custom_call.1} parent=1 // pred_check_branch
      %237 = sbr.rel (0) target = $region97
    $region96: #{tpu_custom_call.1} parent=1 // pred_region
      %238 = dma.done [#allocation12], 36864
    $region97: #{tpu_custom_call.1} parent=1 // pred_fallthru
      _
    // Predicated region
    $region98: #{tpu_custom_call.1} parent=1 // pred_check
      _
    $region99: #{tpu_custom_call.1} parent=1 // pred_check_branch
      %240 = sbr.rel (0) target = $region101
    $region100: #{tpu_custom_call.1} parent=1 // pred_region
      %241 = dma.done [#allocation15], 96
    $region101: #{tpu_custom_call.1} parent=1 // pred_fallthru
      _
    // Predicated region
    $region102: #{tpu_custom_call.1} parent=1 // pred_check
      _
    $region103: #{tpu_custom_call.1} parent=1 // pred_check_branch
      %243 = sbr.rel (0) target = $region105
    $region104: #{tpu_custom_call.1} parent=1 // pred_region
      %244 = dma.done [#allocation15], 24576
    $region105: #{tpu_custom_call.1} parent=1 // pred_fallthru
      _
    // Predicated region
    $region106: #{tpu_custom_call.1} parent=1 // pred_check
      _
    $region107: #{tpu_custom_call.1} parent=1 // pred_check_branch
      %246 = sbr.rel (0) target = $region109
    $region108: #{tpu_custom_call.1} parent=1 // pred_region
      %247 = dma.done [#allocation18], 24576
    $region109: #{tpu_custom_call.1} parent=1 // pred_fallthru
      _
    // Predicated region
    $region110: #{tpu_custom_call.1} parent=1 // pred_check
      _
    $region111: #{tpu_custom_call.1} parent=1 // pred_check_branch
      %249 = sbr.rel (0) target = $region113
    $region112: #{tpu_custom_call.1} parent=1 // pred_region
      %250 = dma.done [#allocation18], 64
    $region113: #{tpu_custom_call.1} parent=1 // pred_fallthru
      _
    // Predicated region
    $region114: #{tpu_custom_call.1} parent=1 // pred_check
      _
    $region115: #{tpu_custom_call.1} parent=1 // pred_check_branch
      %252 = sbr.rel (0) target = $region117
    $region116: #{tpu_custom_call.1} parent=1 // pred_region
      %253 = dma.done [#allocation21], 4096
    $region117: #{tpu_custom_call.1} parent=1 // pred_fallthru
      _
    // Predicated region
    $region118: #{tpu_custom_call.1} parent=1 // pred_check
      _
    $region119: #{tpu_custom_call.1} parent=1 // pred_check_branch
      %255 = sbr.rel (0) target = $region121
    $region120: #{tpu_custom_call.1} parent=1 // pred_region
      %256 = dma.done [#allocation21], 16
    $region121: #{tpu_custom_call.1} parent=1 // pred_fallthru
      _
    // Predicated region
    $region122: #{tpu_custom_call.1} parent=1 // pred_check
      _
    $region123: #{tpu_custom_call.1} parent=1 // pred_check_branch
      %258 = sbr.rel (0) target = $region125
    $region124: #{tpu_custom_call.1} parent=1 // pred_region
      %259 = dma.done [#allocation24], 1024
    $region125: #{tpu_custom_call.1} parent=1 // pred_fallthru
      _
    // Predicated region
    $region126: #{tpu_custom_call.1} parent=1 // pred_check
      _
    $region127: #{tpu_custom_call.1} parent=1 // pred_check_branch
      %261 = sbr.rel (0) target = $region129
    $region128: #{tpu_custom_call.1} parent=1 // pred_region
      %262 = dma.done [#allocation24], 16
    $region129: #{tpu_custom_call.1} parent=1 // pred_fallthru
      _
    // Predicated region
    $region130: #{tpu_custom_call.1} parent=1 // pred_check
      _
    $region131: #{tpu_custom_call.1} parent=1 // pred_check_branch
      %264 = sbr.rel (0) target = $region133
    $region132: #{tpu_custom_call.1} parent=1 // pred_region
      %265 = dma.done [#allocation27], 1024
    $region133: #{tpu_custom_call.1} parent=1 // pred_fallthru
      _
    // Predicated region
    $region134: #{tpu_custom_call.1} parent=1 // pred_check
      _
    $region135: #{tpu_custom_call.1} parent=1 // pred_check_branch
      %267 = sbr.rel (0) target = $region137
    $region136: #{tpu_custom_call.1} parent=1 // pred_region
      %268 = dma.done [#allocation27], 16
    $region137: #{tpu_custom_call.1} parent=1 // pred_fallthru
      _
    %v270 = vld [vmem:[#allocation5] sm:$0xff]
    %v271 = vld [vmem:[#allocation5 + $0x8] sm:$0xff]
    %v272 = vld [vmem:[#allocation5 + $0x10] sm:$0xff]
    %v273 = vld [vmem:[#allocation5 + $0x18] sm:$0xff]
    %v274 = vld [vmem:[#allocation5 + $0x20] sm:$0xff]
    %v275 = vld [vmem:[#allocation5 + $0x28] sm:$0xff]
    %v276 = vld [vmem:[#allocation5 + $0x30] sm:$0xff]
    %v277 = vld [vmem:[#allocation5 + $0x38] sm:$0xff]
    %v278 = vld [vmem:[#allocation5 + $0x40] sm:$0xff]
    %v279 = vld [vmem:[#allocation5 + $0x48] sm:$0xff]
    %v280 = vld [vmem:[#allocation5 + $0x50] sm:$0xff]
    %v281 = vld [vmem:[#allocation5 + $0x58] sm:$0xff]
    %v282 = vpack.c.bf16 %v270, %v270
    %v283 = vpack.c.bf16 %v271, %v271
    %v284 = vpack.c.bf16 %v272, %v272
    %v285 = vpack.c.bf16 %v273, %v273
    %v286 = vpack.c.bf16 %v274, %v274
    %v287 = vpack.c.bf16 %v275, %v275
    %v288 = vpack.c.bf16 %v276, %v276
    %v289 = vpack.c.bf16 %v277, %v277
    %v290 = vpack.c.bf16 %v278, %v278
    %v291 = vpack.c.bf16 %v279, %v279
    %v292 = vpack.c.bf16 %v280, %v280
    %v293 = vpack.c.bf16 %v281, %v281
    %v294 = vld [vmem:[#allocation7] sm:$0xff]
    %v295 = vld [vmem:[#allocation7 + $0x8] sm:$0xff]
    %v296 = vld [vmem:[#allocation7 + $0x10] sm:$0xff]
    %v297 = vld [vmem:[#allocation7 + $0x18] sm:$0xff]
    %v298 = vld [vmem:[#allocation7 + $0x20] sm:$0xff]
    %v299 = vld [vmem:[#allocation7 + $0x28] sm:$0xff]
    %v300 = vld [vmem:[#allocation7 + $0x30] sm:$0xff]
    %v301 = vld [vmem:[#allocation7 + $0x38] sm:$0xff]
    %v302 = vld [vmem:[#allocation7 + $0x40] sm:$0xff]
    %v303 = vld [vmem:[#allocation7 + $0x48] sm:$0xff]
    %v304 = vld [vmem:[#allocation7 + $0x50] sm:$0xff]
    %v305 = vld [vmem:[#allocation7 + $0x58] sm:$0xff]
    %v306 = vld [vmem:[#allocation7 + $0x60] sm:$0xff]
    %v307 = vld [vmem:[#allocation7 + $0x68] sm:$0xff]
    %v308 = vld [vmem:[#allocation7 + $0x70] sm:$0xff]
    %v309 = vld [vmem:[#allocation7 + $0x78] sm:$0xff]
    %v310 = vld [vmem:[#allocation7 + $0x80] sm:$0xff]
    %v311 = vld [vmem:[#allocation7 + $0x88] sm:$0xff]
    %v312 = vld [vmem:[#allocation7 + $0x90] sm:$0xff]
    %v313 = vld [vmem:[#allocation7 + $0x98] sm:$0xff]
    %v314 = vld [vmem:[#allocation7 + $0xa0] sm:$0xff]
    %v315 = vld [vmem:[#allocation7 + $0xa8] sm:$0xff]
    %v316 = vld [vmem:[#allocation7 + $0xb0] sm:$0xff]
    %v317 = vld [vmem:[#allocation7 + $0xb8] sm:$0xff]
    %v318 = vld [vmem:[#allocation7 + $0xc0] sm:$0xff]
    %v319 = vld [vmem:[#allocation7 + $0xc8] sm:$0xff]
    %v320 = vld [vmem:[#allocation7 + $0xd0] sm:$0xff]
    %v321 = vld [vmem:[#allocation7 + $0xd8] sm:$0xff]
    %v322 = vld [vmem:[#allocation7 + $0xe0] sm:$0xff]
    %v323 = vld [vmem:[#allocation7 + $0xe8] sm:$0xff]
    %v324 = vld [vmem:[#allocation7 + $0xf0] sm:$0xff]
    %v325 = vld [vmem:[#allocation7 + $0xf8] sm:$0xff]
    %v326 = vld [vmem:[#allocation7 + $0x100] sm:$0xff]
    %v327 = vld [vmem:[#allocation7 + $0x108] sm:$0xff]
    %v328 = vld [vmem:[#allocation7 + $0x110] sm:$0xff]
    %v329 = vld [vmem:[#allocation7 + $0x118] sm:$0xff]
    %v330 = vld [vmem:[#allocation7 + $0x120] sm:$0xff]
    %v331 = vld [vmem:[#allocation7 + $0x128] sm:$0xff]
    %v332 = vld [vmem:[#allocation7 + $0x130] sm:$0xff]
    %v333 = vld [vmem:[#allocation7 + $0x138] sm:$0xff]
    %v334 = vld [vmem:[#allocation7 + $0x140] sm:$0xff]
    %v335 = vld [vmem:[#allocation7 + $0x148] sm:$0xff]
    %v336 = vld [vmem:[#allocation7 + $0x150] sm:$0xff]
    %v337 = vld [vmem:[#allocation7 + $0x158] sm:$0xff]
    %v338 = vld [vmem:[#allocation7 + $0x160] sm:$0xff]
    %v339 = vld [vmem:[#allocation7 + $0x168] sm:$0xff]
    %v340 = vld [vmem:[#allocation7 + $0x170] sm:$0xff]
    %v341 = vld [vmem:[#allocation7 + $0x178] sm:$0xff]
    %v342 = vld [vmem:[#allocation7 + $0x180] sm:$0xff]
    %v343 = vld [vmem:[#allocation7 + $0x188] sm:$0xff]
    %v344 = vld [vmem:[#allocation7 + $0x190] sm:$0xff]
    %v345 = vld [vmem:[#allocation7 + $0x198] sm:$0xff]
    %v346 = vld [vmem:[#allocation7 + $0x1a0] sm:$0xff]
    %v347 = vld [vmem:[#allocation7 + $0x1a8] sm:$0xff]
    %v348 = vld [vmem:[#allocation7 + $0x1b0] sm:$0xff]
    %v349 = vld [vmem:[#allocation7 + $0x1b8] sm:$0xff]
    %v350 = vld [vmem:[#allocation7 + $0x1c0] sm:$0xff]
    %v351 = vld [vmem:[#allocation7 + $0x1c8] sm:$0xff]
    %v352 = vld [vmem:[#allocation7 + $0x1d0] sm:$0xff]
    %v353 = vld [vmem:[#allocation7 + $0x1d8] sm:$0xff]
    %v354 = vld [vmem:[#allocation7 + $0x1e0] sm:$0xff]
    %v355 = vld [vmem:[#allocation7 + $0x1e8] sm:$0xff]
    %v356 = vld [vmem:[#allocation7 + $0x1f0] sm:$0xff]
    %v357 = vld [vmem:[#allocation7 + $0x1f8] sm:$0xff]
    %v358 = vld [vmem:[#allocation7 + $0x200] sm:$0xff]
    %v359 = vld [vmem:[#allocation7 + $0x208] sm:$0xff]
    %v360 = vld [vmem:[#allocation7 + $0x210] sm:$0xff]
    %v361 = vld [vmem:[#allocation7 + $0x218] sm:$0xff]
    %v362 = vld [vmem:[#allocation7 + $0x220] sm:$0xff]
    %v363 = vld [vmem:[#allocation7 + $0x228] sm:$0xff]
    %v364 = vld [vmem:[#allocation7 + $0x230] sm:$0xff]
    %v365 = vld [vmem:[#allocation7 + $0x238] sm:$0xff]
    %v366 = vld [vmem:[#allocation7 + $0x240] sm:$0xff]
    %v367 = vld [vmem:[#allocation7 + $0x248] sm:$0xff]
    %v368 = vld [vmem:[#allocation7 + $0x250] sm:$0xff]
    %v369 = vld [vmem:[#allocation7 + $0x258] sm:$0xff]
    %v370 = vld [vmem:[#allocation7 + $0x260] sm:$0xff]
    %v371 = vld [vmem:[#allocation7 + $0x268] sm:$0xff]
    %v372 = vld [vmem:[#allocation7 + $0x270] sm:$0xff]
    %v373 = vld [vmem:[#allocation7 + $0x278] sm:$0xff]
    %v374 = vld [vmem:[#allocation7 + $0x280] sm:$0xff]
    %v375 = vld [vmem:[#allocation7 + $0x288] sm:$0xff]
    %v376 = vld [vmem:[#allocation7 + $0x290] sm:$0xff]
    %v377 = vld [vmem:[#allocation7 + $0x298] sm:$0xff]
    %v378 = vld [vmem:[#allocation7 + $0x2a0] sm:$0xff]
    %v379 = vld [vmem:[#allocation7 + $0x2a8] sm:$0xff]
    %v380 = vld [vmem:[#allocation7 + $0x2b0] sm:$0xff]
    %v381 = vld [vmem:[#allocation7 + $0x2b8] sm:$0xff]
    %v382 = vld [vmem:[#allocation7 + $0x2c0] sm:$0xff]
    %v383 = vld [vmem:[#allocation7 + $0x2c8] sm:$0xff]
    %v384 = vld [vmem:[#allocation7 + $0x2d0] sm:$0xff]
    %v385 = vld [vmem:[#allocation7 + $0x2d8] sm:$0xff]
    %v386 = vld [vmem:[#allocation7 + $0x2e0] sm:$0xff]
    %v387 = vld [vmem:[#allocation7 + $0x2e8] sm:$0xff]
    %v388 = vld [vmem:[#allocation7 + $0x2f0] sm:$0xff]
    %v389 = vld [vmem:[#allocation7 + $0x2f8] sm:$0xff]
    %v390 = vld [vmem:[#allocation7 + $0x300] sm:$0xff]
    %v391 = vld [vmem:[#allocation7 + $0x308] sm:$0xff]
    %v392 = vld [vmem:[#allocation7 + $0x310] sm:$0xff]
    %v393 = vld [vmem:[#allocation7 + $0x318] sm:$0xff]
    %v394 = vld [vmem:[#allocation7 + $0x320] sm:$0xff]
    %v395 = vld [vmem:[#allocation7 + $0x328] sm:$0xff]
    %v396 = vld [vmem:[#allocation7 + $0x330] sm:$0xff]
    %v397 = vld [vmem:[#allocation7 + $0x338] sm:$0xff]
    %v398 = vld [vmem:[#allocation7 + $0x340] sm:$0xff]
    %v399 = vld [vmem:[#allocation7 + $0x348] sm:$0xff]
    %v400 = vld [vmem:[#allocation7 + $0x350] sm:$0xff]
    %v401 = vld [vmem:[#allocation7 + $0x358] sm:$0xff]
    %v402 = vld [vmem:[#allocation7 + $0x360] sm:$0xff]
    %v403 = vld [vmem:[#allocation7 + $0x368] sm:$0xff]
    %v404 = vld [vmem:[#allocation7 + $0x370] sm:$0xff]
    %v405 = vld [vmem:[#allocation7 + $0x378] sm:$0xff]
    %v406 = vld [vmem:[#allocation7 + $0x380] sm:$0xff]
    %v407 = vld [vmem:[#allocation7 + $0x388] sm:$0xff]
    %v408 = vld [vmem:[#allocation7 + $0x390] sm:$0xff]
    %v409 = vld [vmem:[#allocation7 + $0x398] sm:$0xff]
    %v410 = vld [vmem:[#allocation7 + $0x3a0] sm:$0xff]
    %v411 = vld [vmem:[#allocation7 + $0x3a8] sm:$0xff]
    %v412 = vld [vmem:[#allocation7 + $0x3b0] sm:$0xff]
    %v413 = vld [vmem:[#allocation7 + $0x3b8] sm:$0xff]
    %v414 = vld [vmem:[#allocation7 + $0x3c0] sm:$0xff]
    %v415 = vld [vmem:[#allocation7 + $0x3c8] sm:$0xff]
    %v416 = vld [vmem:[#allocation7 + $0x3d0] sm:$0xff]
    %v417 = vld [vmem:[#allocation7 + $0x3d8] sm:$0xff]
    %v418 = vld [vmem:[#allocation7 + $0x3e0] sm:$0xff]
    %v419 = vld [vmem:[#allocation7 + $0x3e8] sm:$0xff]
    %v420 = vld [vmem:[#allocation7 + $0x3f0] sm:$0xff]
    %v421 = vld [vmem:[#allocation7 + $0x3f8] sm:$0xff]
    %v422 = vld [vmem:[#allocation7 + $0x400] sm:$0xff]
    %v423 = vld [vmem:[#allocation7 + $0x408] sm:$0xff]
    %v424 = vld [vmem:[#allocation7 + $0x410] sm:$0xff]
    %v425 = vld [vmem:[#allocation7 + $0x418] sm:$0xff]
    %v426 = vld [vmem:[#allocation7 + $0x420] sm:$0xff]
    %v427 = vld [vmem:[#allocation7 + $0x428] sm:$0xff]
    %v428 = vld [vmem:[#allocation7 + $0x430] sm:$0xff]
    %v429 = vld [vmem:[#allocation7 + $0x438] sm:$0xff]
    %v430 = vld [vmem:[#allocation7 + $0x440] sm:$0xff]
    %v431 = vld [vmem:[#allocation7 + $0x448] sm:$0xff]
    %v432 = vld [vmem:[#allocation7 + $0x450] sm:$0xff]
    %v433 = vld [vmem:[#allocation7 + $0x458] sm:$0xff]
    %v434 = vld [vmem:[#allocation7 + $0x460] sm:$0xff]
    %v435 = vld [vmem:[#allocation7 + $0x468] sm:$0xff]
    %v436 = vld [vmem:[#allocation7 + $0x470] sm:$0xff]
    %v437 = vld [vmem:[#allocation7 + $0x478] sm:$0xff]
    %v438 = vld [vmem:[#allocation7 + $0x480] sm:$0xff]
    %v439 = vld [vmem:[#allocation7 + $0x488] sm:$0xff]
    %v440 = vld [vmem:[#allocation7 + $0x490] sm:$0xff]
    %v441 = vld [vmem:[#allocation7 + $0x498] sm:$0xff]
    %v442 = vld [vmem:[#allocation7 + $0x4a0] sm:$0xff]
    %v443 = vld [vmem:[#allocation7 + $0x4a8] sm:$0xff]
    %v444 = vld [vmem:[#allocation7 + $0x4b0] sm:$0xff]
    %v445 = vld [vmem:[#allocation7 + $0x4b8] sm:$0xff]
    %v446 = vld [vmem:[#allocation7 + $0x4c0] sm:$0xff]
    %v447 = vld [vmem:[#allocation7 + $0x4c8] sm:$0xff]
    %v448 = vld [vmem:[#allocation7 + $0x4d0] sm:$0xff]
    %v449 = vld [vmem:[#allocation7 + $0x4d8] sm:$0xff]
    %v450 = vld [vmem:[#allocation7 + $0x4e0] sm:$0xff]
    %v451 = vld [vmem:[#allocation7 + $0x4e8] sm:$0xff]
    %v452 = vld [vmem:[#allocation7 + $0x4f0] sm:$0xff]
    %v453 = vld [vmem:[#allocation7 + $0x4f8] sm:$0xff]
    %v454 = vld [vmem:[#allocation7 + $0x500] sm:$0xff]
    %v455 = vld [vmem:[#allocation7 + $0x508] sm:$0xff]
    %v456 = vld [vmem:[#allocation7 + $0x510] sm:$0xff]
    %v457 = vld [vmem:[#allocation7 + $0x518] sm:$0xff]
    %v458 = vld [vmem:[#allocation7 + $0x520] sm:$0xff]
    %v459 = vld [vmem:[#allocation7 + $0x528] sm:$0xff]
    %v460 = vld [vmem:[#allocation7 + $0x530] sm:$0xff]
    %v461 = vld [vmem:[#allocation7 + $0x538] sm:$0xff]
    %v462 = vld [vmem:[#allocation7 + $0x540] sm:$0xff]
    %v463 = vld [vmem:[#allocation7 + $0x548] sm:$0xff]
    %v464 = vld [vmem:[#allocation7 + $0x550] sm:$0xff]
    %v465 = vld [vmem:[#allocation7 + $0x558] sm:$0xff]
    %v466 = vld [vmem:[#allocation7 + $0x560] sm:$0xff]
    %v467 = vld [vmem:[#allocation7 + $0x568] sm:$0xff]
    %v468 = vld [vmem:[#allocation7 + $0x570] sm:$0xff]
    %v469 = vld [vmem:[#allocation7 + $0x578] sm:$0xff]
    %v470 = vld [vmem:[#allocation7 + $0x580] sm:$0xff]
    %v471 = vld [vmem:[#allocation7 + $0x588] sm:$0xff]
    %v472 = vld [vmem:[#allocation7 + $0x590] sm:$0xff]
    %v473 = vld [vmem:[#allocation7 + $0x598] sm:$0xff]
    %v474 = vld [vmem:[#allocation7 + $0x5a0] sm:$0xff]
    %v475 = vld [vmem:[#allocation7 + $0x5a8] sm:$0xff]
    %v476 = vld [vmem:[#allocation7 + $0x5b0] sm:$0xff]
    %v477 = vld [vmem:[#allocation7 + $0x5b8] sm:$0xff]
    %v478 = vld [vmem:[#allocation7 + $0x5c0] sm:$0xff]
    %v479 = vld [vmem:[#allocation7 + $0x5c8] sm:$0xff]
    %v480 = vld [vmem:[#allocation7 + $0x5d0] sm:$0xff]
    %v481 = vld [vmem:[#allocation7 + $0x5d8] sm:$0xff]
    %v482 = vld [vmem:[#allocation7 + $0x5e0] sm:$0xff]
    %v483 = vld [vmem:[#allocation7 + $0x5e8] sm:$0xff]
    %v484 = vld [vmem:[#allocation7 + $0x5f0] sm:$0xff]
    %v485 = vld [vmem:[#allocation7 + $0x5f8] sm:$0xff]
    %v486 = vld [vmem:[#allocation7 + $0x600] sm:$0xff]
    %v487 = vld [vmem:[#allocation7 + $0x608] sm:$0xff]
    %v488 = vld [vmem:[#allocation7 + $0x610] sm:$0xff]
    %v489 = vld [vmem:[#allocation7 + $0x618] sm:$0xff]
    %v490 = vld [vmem:[#allocation7 + $0x620] sm:$0xff]
    %v491 = vld [vmem:[#allocation7 + $0x628] sm:$0xff]
    %v492 = vld [vmem:[#allocation7 + $0x630] sm:$0xff]
    %v493 = vld [vmem:[#allocation7 + $0x638] sm:$0xff]
    %v494 = vld [vmem:[#allocation7 + $0x640] sm:$0xff]
    %v495 = vld [vmem:[#allocation7 + $0x648] sm:$0xff]
    %v496 = vld [vmem:[#allocation7 + $0x650] sm:$0xff]
    %v497 = vld [vmem:[#allocation7 + $0x658] sm:$0xff]
    %v498 = vld [vmem:[#allocation7 + $0x660] sm:$0xff]
    %v499 = vld [vmem:[#allocation7 + $0x668] sm:$0xff]
    %v500 = vld [vmem:[#allocation7 + $0x670] sm:$0xff]
    %v501 = vld [vmem:[#allocation7 + $0x678] sm:$0xff]
    %v502 = vld [vmem:[#allocation7 + $0x680] sm:$0xff]
    %v503 = vld [vmem:[#allocation7 + $0x688] sm:$0xff]
    %v504 = vld [vmem:[#allocation7 + $0x690] sm:$0xff]
    %v505 = vld [vmem:[#allocation7 + $0x698] sm:$0xff]
    %v506 = vld [vmem:[#allocation7 + $0x6a0] sm:$0xff]
    %v507 = vld [vmem:[#allocation7 + $0x6a8] sm:$0xff]
    %v508 = vld [vmem:[#allocation7 + $0x6b0] sm:$0xff]
    %v509 = vld [vmem:[#allocation7 + $0x6b8] sm:$0xff]
    %v510 = vld [vmem:[#allocation7 + $0x6c0] sm:$0xff]
    %v511 = vld [vmem:[#allocation7 + $0x6c8] sm:$0xff]
    %v512 = vld [vmem:[#allocation7 + $0x6d0] sm:$0xff]
    %v513 = vld [vmem:[#allocation7 + $0x6d8] sm:$0xff]
    %v514 = vld [vmem:[#allocation7 + $0x6e0] sm:$0xff]
    %v515 = vld [vmem:[#allocation7 + $0x6e8] sm:$0xff]
    %v516 = vld [vmem:[#allocation7 + $0x6f0] sm:$0xff]
    %v517 = vld [vmem:[#allocation7 + $0x6f8] sm:$0xff]
    %v518 = vld [vmem:[#allocation7 + $0x700] sm:$0xff]
    %v519 = vld [vmem:[#allocation7 + $0x708] sm:$0xff]
    %v520 = vld [vmem:[#allocation7 + $0x710] sm:$0xff]
    %v521 = vld [vmem:[#allocation7 + $0x718] sm:$0xff]
    %v522 = vld [vmem:[#allocation7 + $0x720] sm:$0xff]
    %v523 = vld [vmem:[#allocation7 + $0x728] sm:$0xff]
    %v524 = vld [vmem:[#allocation7 + $0x730] sm:$0xff]
    %v525 = vld [vmem:[#allocation7 + $0x738] sm:$0xff]
    %v526 = vld [vmem:[#allocation7 + $0x740] sm:$0xff]
    %v527 = vld [vmem:[#allocation7 + $0x748] sm:$0xff]
    %v528 = vld [vmem:[#allocation7 + $0x750] sm:$0xff]
    %v529 = vld [vmem:[#allocation7 + $0x758] sm:$0xff]
    %v530 = vld [vmem:[#allocation7 + $0x760] sm:$0xff]
    %v531 = vld [vmem:[#allocation7 + $0x768] sm:$0xff]
    %v532 = vld [vmem:[#allocation7 + $0x770] sm:$0xff]
    %v533 = vld [vmem:[#allocation7 + $0x778] sm:$0xff]
    %v534 = vld [vmem:[#allocation7 + $0x780] sm:$0xff]
    %v535 = vld [vmem:[#allocation7 + $0x788] sm:$0xff]
    %v536 = vld [vmem:[#allocation7 + $0x790] sm:$0xff]
    %v537 = vld [vmem:[#allocation7 + $0x798] sm:$0xff]
    %v538 = vld [vmem:[#allocation7 + $0x7a0] sm:$0xff]
    %v539 = vld [vmem:[#allocation7 + $0x7a8] sm:$0xff]
    %v540 = vld [vmem:[#allocation7 + $0x7b0] sm:$0xff]
    %v541 = vld [vmem:[#allocation7 + $0x7b8] sm:$0xff]
    %v542 = vld [vmem:[#allocation7 + $0x7c0] sm:$0xff]
    %v543 = vld [vmem:[#allocation7 + $0x7c8] sm:$0xff]
    %v544 = vld [vmem:[#allocation7 + $0x7d0] sm:$0xff]
    %v545 = vld [vmem:[#allocation7 + $0x7d8] sm:$0xff]
    %v546 = vld [vmem:[#allocation7 + $0x7e0] sm:$0xff]
    %v547 = vld [vmem:[#allocation7 + $0x7e8] sm:$0xff]
    %v548 = vld [vmem:[#allocation7 + $0x7f0] sm:$0xff]
    %v549 = vld [vmem:[#allocation7 + $0x7f8] sm:$0xff]
    %v550 = vld [vmem:[#allocation7 + $0x800] sm:$0xff]
    %v551 = vld [vmem:[#allocation7 + $0x808] sm:$0xff]
    %v552 = vld [vmem:[#allocation7 + $0x810] sm:$0xff]
    %v553 = vld [vmem:[#allocation7 + $0x818] sm:$0xff]
    %v554 = vld [vmem:[#allocation7 + $0x820] sm:$0xff]
    %v555 = vld [vmem:[#allocation7 + $0x828] sm:$0xff]
    %v556 = vld [vmem:[#allocation7 + $0x830] sm:$0xff]
    %v557 = vld [vmem:[#allocation7 + $0x838] sm:$0xff]
    %v558 = vld [vmem:[#allocation7 + $0x840] sm:$0xff]
    %v559 = vld [vmem:[#allocation7 + $0x848] sm:$0xff]
    %v560 = vld [vmem:[#allocation7 + $0x850] sm:$0xff]
    %v561 = vld [vmem:[#allocation7 + $0x858] sm:$0xff]
    %v562 = vld [vmem:[#allocation7 + $0x860] sm:$0xff]
    %v563 = vld [vmem:[#allocation7 + $0x868] sm:$0xff]
    %v564 = vld [vmem:[#allocation7 + $0x870] sm:$0xff]
    %v565 = vld [vmem:[#allocation7 + $0x878] sm:$0xff]
    %v566 = vld [vmem:[#allocation7 + $0x880] sm:$0xff]
    %v567 = vld [vmem:[#allocation7 + $0x888] sm:$0xff]
    %v568 = vld [vmem:[#allocation7 + $0x890] sm:$0xff]
    %v569 = vld [vmem:[#allocation7 + $0x898] sm:$0xff]
    %v570 = vld [vmem:[#allocation7 + $0x8a0] sm:$0xff]
    %v571 = vld [vmem:[#allocation7 + $0x8a8] sm:$0xff]
    %v572 = vld [vmem:[#allocation7 + $0x8b0] sm:$0xff]
    %v573 = vld [vmem:[#allocation7 + $0x8b8] sm:$0xff]
    %v574 = vld [vmem:[#allocation7 + $0x8c0] sm:$0xff]
    %v575 = vld [vmem:[#allocation7 + $0x8c8] sm:$0xff]
    %v576 = vld [vmem:[#allocation7 + $0x8d0] sm:$0xff]
    %v577 = vld [vmem:[#allocation7 + $0x8d8] sm:$0xff]
    %v578 = vld [vmem:[#allocation7 + $0x8e0] sm:$0xff]
    %v579 = vld [vmem:[#allocation7 + $0x8e8] sm:$0xff]
    %v580 = vld [vmem:[#allocation7 + $0x8f0] sm:$0xff]
    %v581 = vld [vmem:[#allocation7 + $0x8f8] sm:$0xff]
    %v582 = vld [vmem:[#allocation7 + $0x900] sm:$0xff]
    %v583 = vld [vmem:[#allocation7 + $0x908] sm:$0xff]
    %v584 = vld [vmem:[#allocation7 + $0x910] sm:$0xff]
    %v585 = vld [vmem:[#allocation7 + $0x918] sm:$0xff]
    %v586 = vld [vmem:[#allocation7 + $0x920] sm:$0xff]
    %v587 = vld [vmem:[#allocation7 + $0x928] sm:$0xff]
    %v588 = vld [vmem:[#allocation7 + $0x930] sm:$0xff]
    %v589 = vld [vmem:[#allocation7 + $0x938] sm:$0xff]
    %v590 = vld [vmem:[#allocation7 + $0x940] sm:$0xff]
    %v591 = vld [vmem:[#allocation7 + $0x948] sm:$0xff]
    %v592 = vld [vmem:[#allocation7 + $0x950] sm:$0xff]
    %v593 = vld [vmem:[#allocation7 + $0x958] sm:$0xff]
    %v594 = vld [vmem:[#allocation7 + $0x960] sm:$0xff]
    %v595 = vld [vmem:[#allocation7 + $0x968] sm:$0xff]
    %v596 = vld [vmem:[#allocation7 + $0x970] sm:$0xff]
    %v597 = vld [vmem:[#allocation7 + $0x978] sm:$0xff]
    %v598 = vld [vmem:[#allocation7 + $0x980] sm:$0xff]
    %v599 = vld [vmem:[#allocation7 + $0x988] sm:$0xff]
    %v600 = vld [vmem:[#allocation7 + $0x990] sm:$0xff]
    %v601 = vld [vmem:[#allocation7 + $0x998] sm:$0xff]
    %v602 = vld [vmem:[#allocation7 + $0x9a0] sm:$0xff]
    %v603 = vld [vmem:[#allocation7 + $0x9a8] sm:$0xff]
    %v604 = vld [vmem:[#allocation7 + $0x9b0] sm:$0xff]
    %v605 = vld [vmem:[#allocation7 + $0x9b8] sm:$0xff]
    %v606 = vld [vmem:[#allocation7 + $0x9c0] sm:$0xff]
    %v607 = vld [vmem:[#allocation7 + $0x9c8] sm:$0xff]
    %v608 = vld [vmem:[#allocation7 + $0x9d0] sm:$0xff]
    %v609 = vld [vmem:[#allocation7 + $0x9d8] sm:$0xff]
    %v610 = vld [vmem:[#allocation7 + $0x9e0] sm:$0xff]
    %v611 = vld [vmem:[#allocation7 + $0x9e8] sm:$0xff]
    %v612 = vld [vmem:[#allocation7 + $0x9f0] sm:$0xff]
    %v613 = vld [vmem:[#allocation7 + $0x9f8] sm:$0xff]
    %v614 = vld [vmem:[#allocation7 + $0xa00] sm:$0xff]
    %v615 = vld [vmem:[#allocation7 + $0xa08] sm:$0xff]
    %v616 = vld [vmem:[#allocation7 + $0xa10] sm:$0xff]
    %v617 = vld [vmem:[#allocation7 + $0xa18] sm:$0xff]
    %v618 = vld [vmem:[#allocation7 + $0xa20] sm:$0xff]
    %v619 = vld [vmem:[#allocation7 + $0xa28] sm:$0xff]
    %v620 = vld [vmem:[#allocation7 + $0xa30] sm:$0xff]
    %v621 = vld [vmem:[#allocation7 + $0xa38] sm:$0xff]
    %v622 = vld [vmem:[#allocation7 + $0xa40] sm:$0xff]
    %v623 = vld [vmem:[#allocation7 + $0xa48] sm:$0xff]
    %v624 = vld [vmem:[#allocation7 + $0xa50] sm:$0xff]
    %v625 = vld [vmem:[#allocation7 + $0xa58] sm:$0xff]
    %v626 = vld [vmem:[#allocation7 + $0xa60] sm:$0xff]
    %v627 = vld [vmem:[#allocation7 + $0xa68] sm:$0xff]
    %v628 = vld [vmem:[#allocation7 + $0xa70] sm:$0xff]
    %v629 = vld [vmem:[#allocation7 + $0xa78] sm:$0xff]
    %v630 = vld [vmem:[#allocation7 + $0xa80] sm:$0xff]
    %v631 = vld [vmem:[#allocation7 + $0xa88] sm:$0xff]
    %v632 = vld [vmem:[#allocation7 + $0xa90] sm:$0xff]
    %v633 = vld [vmem:[#allocation7 + $0xa98] sm:$0xff]
    %v634 = vld [vmem:[#allocation7 + $0xaa0] sm:$0xff]
    %v635 = vld [vmem:[#allocation7 + $0xaa8] sm:$0xff]
    %v636 = vld [vmem:[#allocation7 + $0xab0] sm:$0xff]
    %v637 = vld [vmem:[#allocation7 + $0xab8] sm:$0xff]
    %v638 = vld [vmem:[#allocation7 + $0xac0] sm:$0xff]
    %v639 = vld [vmem:[#allocation7 + $0xac8] sm:$0xff]
    %v640 = vld [vmem:[#allocation7 + $0xad0] sm:$0xff]
    %v641 = vld [vmem:[#allocation7 + $0xad8] sm:$0xff]
    %v642 = vld [vmem:[#allocation7 + $0xae0] sm:$0xff]
    %v643 = vld [vmem:[#allocation7 + $0xae8] sm:$0xff]
    %v644 = vld [vmem:[#allocation7 + $0xaf0] sm:$0xff]
    %v645 = vld [vmem:[#allocation7 + $0xaf8] sm:$0xff]
    %v646 = vld [vmem:[#allocation7 + $0xb00] sm:$0xff]
    %v647 = vld [vmem:[#allocation7 + $0xb08] sm:$0xff]
    %v648 = vld [vmem:[#allocation7 + $0xb10] sm:$0xff]
    %v649 = vld [vmem:[#allocation7 + $0xb18] sm:$0xff]
    %v650 = vld [vmem:[#allocation7 + $0xb20] sm:$0xff]
    %v651 = vld [vmem:[#allocation7 + $0xb28] sm:$0xff]
    %v652 = vld [vmem:[#allocation7 + $0xb30] sm:$0xff]
    %v653 = vld [vmem:[#allocation7 + $0xb38] sm:$0xff]
    %v654 = vld [vmem:[#allocation7 + $0xb40] sm:$0xff]
    %v655 = vld [vmem:[#allocation7 + $0xb48] sm:$0xff]
    %v656 = vld [vmem:[#allocation7 + $0xb50] sm:$0xff]
    %v657 = vld [vmem:[#allocation7 + $0xb58] sm:$0xff]
    %v658 = vld [vmem:[#allocation7 + $0xb60] sm:$0xff]
    %v659 = vld [vmem:[#allocation7 + $0xb68] sm:$0xff]
    %v660 = vld [vmem:[#allocation7 + $0xb70] sm:$0xff]
    %v661 = vld [vmem:[#allocation7 + $0xb78] sm:$0xff]
    %v662 = vld [vmem:[#allocation7 + $0xb80] sm:$0xff]
    %v663 = vld [vmem:[#allocation7 + $0xb88] sm:$0xff]
    %v664 = vld [vmem:[#allocation7 + $0xb90] sm:$0xff]
    %v665 = vld [vmem:[#allocation7 + $0xb98] sm:$0xff]
    %v666 = vld [vmem:[#allocation7 + $0xba0] sm:$0xff]
    %v667 = vld [vmem:[#allocation7 + $0xba8] sm:$0xff]
    %v668 = vld [vmem:[#allocation7 + $0xbb0] sm:$0xff]
    %v669 = vld [vmem:[#allocation7 + $0xbb8] sm:$0xff]
    %v670 = vld [vmem:[#allocation7 + $0xbc0] sm:$0xff]
    %v671 = vld [vmem:[#allocation7 + $0xbc8] sm:$0xff]
    %v672 = vld [vmem:[#allocation7 + $0xbd0] sm:$0xff]
    %v673 = vld [vmem:[#allocation7 + $0xbd8] sm:$0xff]
    %v674 = vld [vmem:[#allocation7 + $0xbe0] sm:$0xff]
    %v675 = vld [vmem:[#allocation7 + $0xbe8] sm:$0xff]
    %v676 = vld [vmem:[#allocation7 + $0xbf0] sm:$0xff]
    %v677 = vld [vmem:[#allocation7 + $0xbf8] sm:$0xff]
    %v678 = vld [vmem:[#allocation7 + $0xc00] sm:$0xff]
    %v679 = vld [vmem:[#allocation7 + $0xc08] sm:$0xff]
    %v680 = vld [vmem:[#allocation7 + $0xc10] sm:$0xff]
    %v681 = vld [vmem:[#allocation7 + $0xc18] sm:$0xff]
    %v682 = vld [vmem:[#allocation7 + $0xc20] sm:$0xff]
    %v683 = vld [vmem:[#allocation7 + $0xc28] sm:$0xff]
    %v684 = vld [vmem:[#allocation7 + $0xc30] sm:$0xff]
    %v685 = vld [vmem:[#allocation7 + $0xc38] sm:$0xff]
    %v686 = vld [vmem:[#allocation7 + $0xc40] sm:$0xff]
    %v687 = vld [vmem:[#allocation7 + $0xc48] sm:$0xff]
    %v688 = vld [vmem:[#allocation7 + $0xc50] sm:$0xff]
    %v689 = vld [vmem:[#allocation7 + $0xc58] sm:$0xff]
    %v690 = vld [vmem:[#allocation7 + $0xc60] sm:$0xff]
    %v691 = vld [vmem:[#allocation7 + $0xc68] sm:$0xff]
    %v692 = vld [vmem:[#allocation7 + $0xc70] sm:$0xff]
    %v693 = vld [vmem:[#allocation7 + $0xc78] sm:$0xff]
    %v694 = vld [vmem:[#allocation7 + $0xc80] sm:$0xff]
    %v695 = vld [vmem:[#allocation7 + $0xc88] sm:$0xff]
    %v696 = vld [vmem:[#allocation7 + $0xc90] sm:$0xff]
    %v697 = vld [vmem:[#allocation7 + $0xc98] sm:$0xff]
    %v698 = vld [vmem:[#allocation7 + $0xca0] sm:$0xff]
    %v699 = vld [vmem:[#allocation7 + $0xca8] sm:$0xff]
    %v700 = vld [vmem:[#allocation7 + $0xcb0] sm:$0xff]
    %v701 = vld [vmem:[#allocation7 + $0xcb8] sm:$0xff]
    %v702 = vld [vmem:[#allocation7 + $0xcc0] sm:$0xff]
    %v703 = vld [vmem:[#allocation7 + $0xcc8] sm:$0xff]
    %v704 = vld [vmem:[#allocation7 + $0xcd0] sm:$0xff]
    %v705 = vld [vmem:[#allocation7 + $0xcd8] sm:$0xff]
    %v706 = vld [vmem:[#allocation7 + $0xce0] sm:$0xff]
    %v707 = vld [vmem:[#allocation7 + $0xce8] sm:$0xff]
    %v708 = vld [vmem:[#allocation7 + $0xcf0] sm:$0xff]
    %v709 = vld [vmem:[#allocation7 + $0xcf8] sm:$0xff]
    %v710 = vld [vmem:[#allocation7 + $0xd00] sm:$0xff]
    %v711 = vld [vmem:[#allocation7 + $0xd08] sm:$0xff]
    %v712 = vld [vmem:[#allocation7 + $0xd10] sm:$0xff]
    %v713 = vld [vmem:[#allocation7 + $0xd18] sm:$0xff]
    %v714 = vld [vmem:[#allocation7 + $0xd20] sm:$0xff]
    %v715 = vld [vmem:[#allocation7 + $0xd28] sm:$0xff]
    %v716 = vld [vmem:[#allocation7 + $0xd30] sm:$0xff]
    %v717 = vld [vmem:[#allocation7 + $0xd38] sm:$0xff]
    %v718 = vld [vmem:[#allocation7 + $0xd40] sm:$0xff]
    %v719 = vld [vmem:[#allocation7 + $0xd48] sm:$0xff]
    %v720 = vld [vmem:[#allocation7 + $0xd50] sm:$0xff]
    %v721 = vld [vmem:[#allocation7 + $0xd58] sm:$0xff]
    %v722 = vld [vmem:[#allocation7 + $0xd60] sm:$0xff]
    %v723 = vld [vmem:[#allocation7 + $0xd68] sm:$0xff]
    %v724 = vld [vmem:[#allocation7 + $0xd70] sm:$0xff]
    %v725 = vld [vmem:[#allocation7 + $0xd78] sm:$0xff]
    %v726 = vld [vmem:[#allocation7 + $0xd80] sm:$0xff]
    %v727 = vld [vmem:[#allocation7 + $0xd88] sm:$0xff]
    %v728 = vld [vmem:[#allocation7 + $0xd90] sm:$0xff]
    %v729 = vld [vmem:[#allocation7 + $0xd98] sm:$0xff]
    %v730 = vld [vmem:[#allocation7 + $0xda0] sm:$0xff]
    %v731 = vld [vmem:[#allocation7 + $0xda8] sm:$0xff]
    %v732 = vld [vmem:[#allocation7 + $0xdb0] sm:$0xff]
    %v733 = vld [vmem:[#allocation7 + $0xdb8] sm:$0xff]
    %v734 = vld [vmem:[#allocation7 + $0xdc0] sm:$0xff]
    %v735 = vld [vmem:[#allocation7 + $0xdc8] sm:$0xff]
    %v736 = vld [vmem:[#allocation7 + $0xdd0] sm:$0xff]
    %v737 = vld [vmem:[#allocation7 + $0xdd8] sm:$0xff]
    %v738 = vld [vmem:[#allocation7 + $0xde0] sm:$0xff]
    %v739 = vld [vmem:[#allocation7 + $0xde8] sm:$0xff]
    %v740 = vld [vmem:[#allocation7 + $0xdf0] sm:$0xff]
    %v741 = vld [vmem:[#allocation7 + $0xdf8] sm:$0xff]
    %v742 = vld [vmem:[#allocation7 + $0xe00] sm:$0xff]
    %v743 = vld [vmem:[#allocation7 + $0xe08] sm:$0xff]
    %v744 = vld [vmem:[#allocation7 + $0xe10] sm:$0xff]
    %v745 = vld [vmem:[#allocation7 + $0xe18] sm:$0xff]
    %v746 = vld [vmem:[#allocation7 + $0xe20] sm:$0xff]
    %v747 = vld [vmem:[#allocation7 + $0xe28] sm:$0xff]
    %v748 = vld [vmem:[#allocation7 + $0xe30] sm:$0xff]
    %v749 = vld [vmem:[#allocation7 + $0xe38] sm:$0xff]
    %v750 = vld [vmem:[#allocation7 + $0xe40] sm:$0xff]
    %v751 = vld [vmem:[#allocation7 + $0xe48] sm:$0xff]
    %v752 = vld [vmem:[#allocation7 + $0xe50] sm:$0xff]
    %v753 = vld [vmem:[#allocation7 + $0xe58] sm:$0xff]
    %v754 = vld [vmem:[#allocation7 + $0xe60] sm:$0xff]
    %v755 = vld [vmem:[#allocation7 + $0xe68] sm:$0xff]
    %v756 = vld [vmem:[#allocation7 + $0xe70] sm:$0xff]
    %v757 = vld [vmem:[#allocation7 + $0xe78] sm:$0xff]
    %v758 = vld [vmem:[#allocation7 + $0xe80] sm:$0xff]
    %v759 = vld [vmem:[#allocation7 + $0xe88] sm:$0xff]
    %v760 = vld [vmem:[#allocation7 + $0xe90] sm:$0xff]
    %v761 = vld [vmem:[#allocation7 + $0xe98] sm:$0xff]
    %v762 = vld [vmem:[#allocation7 + $0xea0] sm:$0xff]
    %v763 = vld [vmem:[#allocation7 + $0xea8] sm:$0xff]
    %v764 = vld [vmem:[#allocation7 + $0xeb0] sm:$0xff]
    %v765 = vld [vmem:[#allocation7 + $0xeb8] sm:$0xff]
    %v766 = vld [vmem:[#allocation7 + $0xec0] sm:$0xff]
    %v767 = vld [vmem:[#allocation7 + $0xec8] sm:$0xff]
    %v768 = vld [vmem:[#allocation7 + $0xed0] sm:$0xff]
    %v769 = vld [vmem:[#allocation7 + $0xed8] sm:$0xff]
    %v770 = vld [vmem:[#allocation7 + $0xee0] sm:$0xff]
    %v771 = vld [vmem:[#allocation7 + $0xee8] sm:$0xff]
    %v772 = vld [vmem:[#allocation7 + $0xef0] sm:$0xff]
    %v773 = vld [vmem:[#allocation7 + $0xef8] sm:$0xff]
    %v774 = vld [vmem:[#allocation7 + $0xf00] sm:$0xff]
    %v775 = vld [vmem:[#allocation7 + $0xf08] sm:$0xff]
    %v776 = vld [vmem:[#allocation7 + $0xf10] sm:$0xff]
    %v777 = vld [vmem:[#allocation7 + $0xf18] sm:$0xff]
    %v778 = vld [vmem:[#allocation7 + $0xf20] sm:$0xff]
    %v779 = vld [vmem:[#allocation7 + $0xf28] sm:$0xff]
    %v780 = vld [vmem:[#allocation7 + $0xf30] sm:$0xff]
    %v781 = vld [vmem:[#allocation7 + $0xf38] sm:$0xff]
    %v782 = vld [vmem:[#allocation7 + $0xf40] sm:$0xff]
    %v783 = vld [vmem:[#allocation7 + $0xf48] sm:$0xff]
    %v784 = vld [vmem:[#allocation7 + $0xf50] sm:$0xff]
    %v785 = vld [vmem:[#allocation7 + $0xf58] sm:$0xff]
    %v786 = vld [vmem:[#allocation7 + $0xf60] sm:$0xff]
    %v787 = vld [vmem:[#allocation7 + $0xf68] sm:$0xff]
    %v788 = vld [vmem:[#allocation7 + $0xf70] sm:$0xff]
    %v789 = vld [vmem:[#allocation7 + $0xf78] sm:$0xff]
    %v790 = vld [vmem:[#allocation7 + $0xf80] sm:$0xff]
    %v791 = vld [vmem:[#allocation7 + $0xf88] sm:$0xff]
    %v792 = vld [vmem:[#allocation7 + $0xf90] sm:$0xff]
    %v793 = vld [vmem:[#allocation7 + $0xf98] sm:$0xff]
    %v794 = vld [vmem:[#allocation7 + $0xfa0] sm:$0xff]
    %v795 = vld [vmem:[#allocation7 + $0xfa8] sm:$0xff]
    %v796 = vld [vmem:[#allocation7 + $0xfb0] sm:$0xff]
    %v797 = vld [vmem:[#allocation7 + $0xfb8] sm:$0xff]
    %v798 = vld [vmem:[#allocation7 + $0xfc0] sm:$0xff]
    %v799 = vld [vmem:[#allocation7 + $0xfc8] sm:$0xff]
    %v800 = vld [vmem:[#allocation7 + $0xfd0] sm:$0xff]
    %v801 = vld [vmem:[#allocation7 + $0xfd8] sm:$0xff]
    %v802 = vld [vmem:[#allocation7 + $0xfe0] sm:$0xff]
    %v803 = vld [vmem:[#allocation7 + $0xfe8] sm:$0xff]
    %v804 = vld [vmem:[#allocation7 + $0xff0] sm:$0xff]
    %v805 = vld [vmem:[#allocation7 + $0xff8] sm:$0xff]
    %v806 = vld [vmem:[#allocation7 + $0x1000] sm:$0xff]
    %v807 = vld [vmem:[#allocation7 + $0x1008] sm:$0xff]
    %v808 = vld [vmem:[#allocation7 + $0x1010] sm:$0xff]
    %v809 = vld [vmem:[#allocation7 + $0x1018] sm:$0xff]
    %v810 = vld [vmem:[#allocation7 + $0x1020] sm:$0xff]
    %v811 = vld [vmem:[#allocation7 + $0x1028] sm:$0xff]
    %v812 = vld [vmem:[#allocation7 + $0x1030] sm:$0xff]
    %v813 = vld [vmem:[#allocation7 + $0x1038] sm:$0xff]
    %v814 = vld [vmem:[#allocation7 + $0x1040] sm:$0xff]
    %v815 = vld [vmem:[#allocation7 + $0x1048] sm:$0xff]
    %v816 = vld [vmem:[#allocation7 + $0x1050] sm:$0xff]
    %v817 = vld [vmem:[#allocation7 + $0x1058] sm:$0xff]
    %v818 = vld [vmem:[#allocation7 + $0x1060] sm:$0xff]
    %v819 = vld [vmem:[#allocation7 + $0x1068] sm:$0xff]
    %v820 = vld [vmem:[#allocation7 + $0x1070] sm:$0xff]
    %v821 = vld [vmem:[#allocation7 + $0x1078] sm:$0xff]
    %v822 = vld [vmem:[#allocation7 + $0x1080] sm:$0xff]
    %v823 = vld [vmem:[#allocation7 + $0x1088] sm:$0xff]
    %v824 = vld [vmem:[#allocation7 + $0x1090] sm:$0xff]
    %v825 = vld [vmem:[#allocation7 + $0x1098] sm:$0xff]
    %v826 = vld [vmem:[#allocation7 + $0x10a0] sm:$0xff]
    %v827 = vld [vmem:[#allocation7 + $0x10a8] sm:$0xff]
    %v828 = vld [vmem:[#allocation7 + $0x10b0] sm:$0xff]
    %v829 = vld [vmem:[#allocation7 + $0x10b8] sm:$0xff]
    %v830 = vld [vmem:[#allocation7 + $0x10c0] sm:$0xff]
    %v831 = vld [vmem:[#allocation7 + $0x10c8] sm:$0xff]
    %v832 = vld [vmem:[#allocation7 + $0x10d0] sm:$0xff]
    %v833 = vld [vmem:[#allocation7 + $0x10d8] sm:$0xff]
    %v834 = vld [vmem:[#allocation7 + $0x10e0] sm:$0xff]
    %v835 = vld [vmem:[#allocation7 + $0x10e8] sm:$0xff]
    %v836 = vld [vmem:[#allocation7 + $0x10f0] sm:$0xff]
    %v837 = vld [vmem:[#allocation7 + $0x10f8] sm:$0xff]
    %v838 = vld [vmem:[#allocation7 + $0x1100] sm:$0xff]
    %v839 = vld [vmem:[#allocation7 + $0x1108] sm:$0xff]
    %v840 = vld [vmem:[#allocation7 + $0x1110] sm:$0xff]
    %v841 = vld [vmem:[#allocation7 + $0x1118] sm:$0xff]
    %v842 = vld [vmem:[#allocation7 + $0x1120] sm:$0xff]
    %v843 = vld [vmem:[#allocation7 + $0x1128] sm:$0xff]
    %v844 = vld [vmem:[#allocation7 + $0x1130] sm:$0xff]
    %v845 = vld [vmem:[#allocation7 + $0x1138] sm:$0xff]
    %v846 = vld [vmem:[#allocation7 + $0x1140] sm:$0xff]
    %v847 = vld [vmem:[#allocation7 + $0x1148] sm:$0xff]
    %v848 = vld [vmem:[#allocation7 + $0x1150] sm:$0xff]
    %v849 = vld [vmem:[#allocation7 + $0x1158] sm:$0xff]
    %v850 = vld [vmem:[#allocation7 + $0x1160] sm:$0xff]
    %v851 = vld [vmem:[#allocation7 + $0x1168] sm:$0xff]
    %v852 = vld [vmem:[#allocation7 + $0x1170] sm:$0xff]
    %v853 = vld [vmem:[#allocation7 + $0x1178] sm:$0xff]
    %v854 = vld [vmem:[#allocation7 + $0x1180] sm:$0xff]
    %v855 = vld [vmem:[#allocation7 + $0x1188] sm:$0xff]
    %v856 = vld [vmem:[#allocation7 + $0x1190] sm:$0xff]
    %v857 = vld [vmem:[#allocation7 + $0x1198] sm:$0xff]
    %v858 = vld [vmem:[#allocation7 + $0x11a0] sm:$0xff]
    %v859 = vld [vmem:[#allocation7 + $0x11a8] sm:$0xff]
    %v860 = vld [vmem:[#allocation7 + $0x11b0] sm:$0xff]
    %v861 = vld [vmem:[#allocation7 + $0x11b8] sm:$0xff]
    %v862 = vld [vmem:[#allocation7 + $0x11c0] sm:$0xff]
    %v863 = vld [vmem:[#allocation7 + $0x11c8] sm:$0xff]
    %v864 = vld [vmem:[#allocation7 + $0x11d0] sm:$0xff]
    %v865 = vld [vmem:[#allocation7 + $0x11d8] sm:$0xff]
    %v866 = vld [vmem:[#allocation7 + $0x11e0] sm:$0xff]
    %v867 = vld [vmem:[#allocation7 + $0x11e8] sm:$0xff]
    %v868 = vld [vmem:[#allocation7 + $0x11f0] sm:$0xff]
    %v869 = vld [vmem:[#allocation7 + $0x11f8] sm:$0xff]
    %v870 = vld [vmem:[#allocation8] sm:$0x3f]
    %v872 = vlaneseq
    %v873 = vshrl.u32 %v872, 7
    %v874 = vsub.s32 0, %v873
    %v875 = vrot.slane %v870, %v874
    %v876 = vlaneseq
    %v877 = vshrl.u32 %v876, 7
    %v878 = vsub.s32 1, %v877
    %v879 = vrot.slane %v870, %v878
    %v880 = vlaneseq
    %v881 = vshrl.u32 %v880, 7
    %v882 = vsub.s32 2, %v881
    %v883 = vrot.slane %v870, %v882
    %v884 = vlaneseq
    %v885 = vshrl.u32 %v884, 7
    %v886 = vsub.s32 3, %v885
    %v887 = vrot.slane %v870, %v886
    %v888 = vlaneseq
    %v889 = vshrl.u32 %v888, 7
    %v890 = vsub.s32 4, %v889
    %v891 = vrot.slane %v870, %v890
    %v892 = vlaneseq
    %v893 = vshrl.u32 %v892, 7
    %v894 = vsub.s32 5, %v893
    %v895 = vrot.slane %v870, %v894
    %v1478 = vunpack.c.l.b16 %v294
    %v1479 = vunpack.c.h.b16 %v294
    %v1480 = vunpack.c.l.b16 %v295
    %v1481 = vunpack.c.h.b16 %v295
    %v1482 = vunpack.c.l.b16 %v296
    %v1483 = vunpack.c.h.b16 %v296
    %v1484 = vunpack.c.l.b16 %v297
    %v1485 = vunpack.c.h.b16 %v297
    %v1486 = vunpack.c.l.b16 %v298
    %v1487 = vunpack.c.h.b16 %v298
    %v1488 = vunpack.c.l.b16 %v299
    %v1489 = vunpack.c.h.b16 %v299
    %v1490 = vunpack.c.l.b16 %v300
    %v1491 = vunpack.c.h.b16 %v300
    %v1492 = vunpack.c.l.b16 %v301
    %v1493 = vunpack.c.h.b16 %v301
    %v1494 = vunpack.c.l.b16 %v302
    %v1495 = vunpack.c.h.b16 %v302
    %v1496 = vunpack.c.l.b16 %v303
    %v1497 = vunpack.c.h.b16 %v303
    %v1498 = vunpack.c.l.b16 %v304
    %v1499 = vunpack.c.h.b16 %v304
    %v1500 = vunpack.c.l.b16 %v305
    %v1501 = vunpack.c.h.b16 %v305
    %v1502 = vunpack.c.l.b16 %v306
    %v1503 = vunpack.c.h.b16 %v306
    %v1504 = vunpack.c.l.b16 %v307
    %v1505 = vunpack.c.h.b16 %v307
    %v1506 = vunpack.c.l.b16 %v308
    %v1507 = vunpack.c.h.b16 %v308
    %v1508 = vunpack.c.l.b16 %v309
    %v1509 = vunpack.c.h.b16 %v309
    %v1510 = vunpack.c.l.b16 %v310
    %v1511 = vunpack.c.h.b16 %v310
    %v1512 = vunpack.c.l.b16 %v311
    %v1513 = vunpack.c.h.b16 %v311
    %v1514 = vunpack.c.l.b16 %v312
    %v1515 = vunpack.c.h.b16 %v312
    %v1516 = vunpack.c.l.b16 %v313
    %v1517 = vunpack.c.h.b16 %v313
    %v1518 = vunpack.c.l.b16 %v314
    %v1519 = vunpack.c.h.b16 %v314
    %v1520 = vunpack.c.l.b16 %v315
    %v1521 = vunpack.c.h.b16 %v315
    %v1522 = vunpack.c.l.b16 %v316
    %v1523 = vunpack.c.h.b16 %v316
    %v1524 = vunpack.c.l.b16 %v317
    %v1525 = vunpack.c.h.b16 %v317
    %v1526 = vunpack.c.l.b16 %v318
    %v1527 = vunpack.c.h.b16 %v318
    %v1528 = vunpack.c.l.b16 %v319
    %v1529 = vunpack.c.h.b16 %v319
    %v1530 = vunpack.c.l.b16 %v320
    %v1531 = vunpack.c.h.b16 %v320
    %v1532 = vunpack.c.l.b16 %v321
    %v1533 = vunpack.c.h.b16 %v321
    %v1534 = vunpack.c.l.b16 %v322
    %v1535 = vunpack.c.h.b16 %v322
    %v1536 = vunpack.c.l.b16 %v323
    %v1537 = vunpack.c.h.b16 %v323
    %v1538 = vunpack.c.l.b16 %v324
    %v1539 = vunpack.c.h.b16 %v324
    %v1540 = vunpack.c.l.b16 %v325
    %v1541 = vunpack.c.h.b16 %v325
    %v1542 = vunpack.c.l.b16 %v326
    %v1543 = vunpack.c.h.b16 %v326
    %v1544 = vunpack.c.l.b16 %v327
    %v1545 = vunpack.c.h.b16 %v327
    %v1546 = vunpack.c.l.b16 %v328
    %v1547 = vunpack.c.h.b16 %v328
    %v1548 = vunpack.c.l.b16 %v329
    %v1549 = vunpack.c.h.b16 %v329
    %v1550 = vunpack.c.l.b16 %v330
    %v1551 = vunpack.c.h.b16 %v330
    %v1552 = vunpack.c.l.b16 %v331
    %v1553 = vunpack.c.h.b16 %v331
    %v1554 = vunpack.c.l.b16 %v332
    %v1555 = vunpack.c.h.b16 %v332
    %v1556 = vunpack.c.l.b16 %v333
    %v1557 = vunpack.c.h.b16 %v333
    %v1558 = vunpack.c.l.b16 %v334
    %v1559 = vunpack.c.h.b16 %v334
    %v1560 = vunpack.c.l.b16 %v335
    %v1561 = vunpack.c.h.b16 %v335
    %v1562 = vunpack.c.l.b16 %v336
    %v1563 = vunpack.c.h.b16 %v336
    %v1564 = vunpack.c.l.b16 %v337
    %v1565 = vunpack.c.h.b16 %v337
    %v1566 = vunpack.c.l.b16 %v338
    %v1567 = vunpack.c.h.b16 %v338
    %v1568 = vunpack.c.l.b16 %v339
    %v1569 = vunpack.c.h.b16 %v339
    %v1570 = vunpack.c.l.b16 %v340
    %v1571 = vunpack.c.h.b16 %v340
    %v1572 = vunpack.c.l.b16 %v341
    %v1573 = vunpack.c.h.b16 %v341
    %v1574 = vunpack.c.l.b16 %v342
    %v1575 = vunpack.c.h.b16 %v342
    %v1576 = vunpack.c.l.b16 %v343
    %v1577 = vunpack.c.h.b16 %v343
    %v1578 = vunpack.c.l.b16 %v344
    %v1579 = vunpack.c.h.b16 %v344
    %v1580 = vunpack.c.l.b16 %v345
    %v1581 = vunpack.c.h.b16 %v345
    %v1582 = vunpack.c.l.b16 %v346
    %v1583 = vunpack.c.h.b16 %v346
    %v1584 = vunpack.c.l.b16 %v347
    %v1585 = vunpack.c.h.b16 %v347
    %v1586 = vunpack.c.l.b16 %v348
    %v1587 = vunpack.c.h.b16 %v348
    %v1588 = vunpack.c.l.b16 %v349
    %v1589 = vunpack.c.h.b16 %v349
    %v1590 = vunpack.c.l.b16 %v350
    %v1591 = vunpack.c.h.b16 %v350
    %v1592 = vunpack.c.l.b16 %v351
    %v1593 = vunpack.c.h.b16 %v351
    %v1594 = vunpack.c.l.b16 %v352
    %v1595 = vunpack.c.h.b16 %v352
    %v1596 = vunpack.c.l.b16 %v353
    %v1597 = vunpack.c.h.b16 %v353
    %v1598 = vunpack.c.l.b16 %v354
    %v1599 = vunpack.c.h.b16 %v354
    %v1600 = vunpack.c.l.b16 %v355
    %v1601 = vunpack.c.h.b16 %v355
    %v1602 = vunpack.c.l.b16 %v356
    %v1603 = vunpack.c.h.b16 %v356
    %v1604 = vunpack.c.l.b16 %v357
    %v1605 = vunpack.c.h.b16 %v357
    %v1606 = vunpack.c.l.b16 %v358
    %v1607 = vunpack.c.h.b16 %v358
    %v1608 = vunpack.c.l.b16 %v359
    %v1609 = vunpack.c.h.b16 %v359
    %v1610 = vunpack.c.l.b16 %v360
    %v1611 = vunpack.c.h.b16 %v360
    %v1612 = vunpack.c.l.b16 %v361
    %v1613 = vunpack.c.h.b16 %v361
    %v1614 = vunpack.c.l.b16 %v362
    %v1615 = vunpack.c.h.b16 %v362
    %v1616 = vunpack.c.l.b16 %v363
    %v1617 = vunpack.c.h.b16 %v363
    %v1618 = vunpack.c.l.b16 %v364
    %v1619 = vunpack.c.h.b16 %v364
    %v1620 = vunpack.c.l.b16 %v365
    %v1621 = vunpack.c.h.b16 %v365
    %v1622 = vunpack.c.l.b16 %v366
    %v1623 = vunpack.c.h.b16 %v366
    %v1624 = vunpack.c.l.b16 %v367
    %v1625 = vunpack.c.h.b16 %v367
    %v1626 = vunpack.c.l.b16 %v368
    %v1627 = vunpack.c.h.b16 %v368
    %v1628 = vunpack.c.l.b16 %v369
    %v1629 = vunpack.c.h.b16 %v369
    %v1630 = vunpack.c.l.b16 %v370
    %v1631 = vunpack.c.h.b16 %v370
    %v1632 = vunpack.c.l.b16 %v371
    %v1633 = vunpack.c.h.b16 %v371
    %v1634 = vunpack.c.l.b16 %v372
    %v1635 = vunpack.c.h.b16 %v372
    %v1636 = vunpack.c.l.b16 %v373
    %v1637 = vunpack.c.h.b16 %v373
    %v1638 = vunpack.c.l.b16 %v374
    %v1639 = vunpack.c.h.b16 %v374
    %v1640 = vunpack.c.l.b16 %v375
    %v1641 = vunpack.c.h.b16 %v375
    %v1642 = vunpack.c.l.b16 %v376
    %v1643 = vunpack.c.h.b16 %v376
    %v1644 = vunpack.c.l.b16 %v377
    %v1645 = vunpack.c.h.b16 %v377
    %v1646 = vunpack.c.l.b16 %v378
    %v1647 = vunpack.c.h.b16 %v378
    %v1648 = vunpack.c.l.b16 %v379
    %v1649 = vunpack.c.h.b16 %v379
    %v1650 = vunpack.c.l.b16 %v380
    %v1651 = vunpack.c.h.b16 %v380
    %v1652 = vunpack.c.l.b16 %v381
    %v1653 = vunpack.c.h.b16 %v381
    %v1654 = vunpack.c.l.b16 %v382
    %v1655 = vunpack.c.h.b16 %v382
    %v1656 = vunpack.c.l.b16 %v383
    %v1657 = vunpack.c.h.b16 %v383
    %v1658 = vunpack.c.l.b16 %v384
    %v1659 = vunpack.c.h.b16 %v384
    %v1660 = vunpack.c.l.b16 %v385
    %v1661 = vunpack.c.h.b16 %v385
    %v1662 = vunpack.c.l.b16 %v386
    %v1663 = vunpack.c.h.b16 %v386
    %v1664 = vunpack.c.l.b16 %v387
    %v1665 = vunpack.c.h.b16 %v387
    %v1666 = vunpack.c.l.b16 %v388
    %v1667 = vunpack.c.h.b16 %v388
    %v1668 = vunpack.c.l.b16 %v389
    %v1669 = vunpack.c.h.b16 %v389
    %v1670 = vunpack.c.l.b16 %v390
    %v1671 = vunpack.c.h.b16 %v390
    %v1672 = vunpack.c.l.b16 %v391
    %v1673 = vunpack.c.h.b16 %v391
    %v1674 = vunpack.c.l.b16 %v392
    %v1675 = vunpack.c.h.b16 %v392
    %v1676 = vunpack.c.l.b16 %v393
    %v1677 = vunpack.c.h.b16 %v393
    %v1678 = vunpack.c.l.b16 %v394
    %v1679 = vunpack.c.h.b16 %v394
    %v1680 = vunpack.c.l.b16 %v395
    %v1681 = vunpack.c.h.b16 %v395
    %v1682 = vunpack.c.l.b16 %v396
    %v1683 = vunpack.c.h.b16 %v396
    %v1684 = vunpack.c.l.b16 %v397
    %v1685 = vunpack.c.h.b16 %v397
    %v1686 = vunpack.c.l.b16 %v398
    %v1687 = vunpack.c.h.b16 %v398
    %v1688 = vunpack.c.l.b16 %v399
    %v1689 = vunpack.c.h.b16 %v399
    %v1690 = vunpack.c.l.b16 %v400
    %v1691 = vunpack.c.h.b16 %v400
    %v1692 = vunpack.c.l.b16 %v401
    %v1693 = vunpack.c.h.b16 %v401
    %v1694 = vunpack.c.l.b16 %v402
    %v1695 = vunpack.c.h.b16 %v402
    %v1696 = vunpack.c.l.b16 %v403
    %v1697 = vunpack.c.h.b16 %v403
    %v1698 = vunpack.c.l.b16 %v404
    %v1699 = vunpack.c.h.b16 %v404
    %v1700 = vunpack.c.l.b16 %v405
    %v1701 = vunpack.c.h.b16 %v405
    %v1702 = vunpack.c.l.b16 %v406
    %v1703 = vunpack.c.h.b16 %v406
    %v1704 = vunpack.c.l.b16 %v407
    %v1705 = vunpack.c.h.b16 %v407
    %v1706 = vunpack.c.l.b16 %v408
    %v1707 = vunpack.c.h.b16 %v408
    %v1708 = vunpack.c.l.b16 %v409
    %v1709 = vunpack.c.h.b16 %v409
    %v1710 = vunpack.c.l.b16 %v410
    %v1711 = vunpack.c.h.b16 %v410
    %v1712 = vunpack.c.l.b16 %v411
    %v1713 = vunpack.c.h.b16 %v411
    %v1714 = vunpack.c.l.b16 %v412
    %v1715 = vunpack.c.h.b16 %v412
    %v1716 = vunpack.c.l.b16 %v413
    %v1717 = vunpack.c.h.b16 %v413
    %v1718 = vunpack.c.l.b16 %v414
    %v1719 = vunpack.c.h.b16 %v414
    %v1720 = vunpack.c.l.b16 %v415
    %v1721 = vunpack.c.h.b16 %v415
    %v1722 = vunpack.c.l.b16 %v416
    %v1723 = vunpack.c.h.b16 %v416
    %v1724 = vunpack.c.l.b16 %v417
    %v1725 = vunpack.c.h.b16 %v417
    %v1726 = vunpack.c.l.b16 %v418
    %v1727 = vunpack.c.h.b16 %v418
    %v1728 = vunpack.c.l.b16 %v419
    %v1729 = vunpack.c.h.b16 %v419
    %v1730 = vunpack.c.l.b16 %v420
    %v1731 = vunpack.c.h.b16 %v420
    %v1732 = vunpack.c.l.b16 %v421
    %v1733 = vunpack.c.h.b16 %v421
    %v1734 = vunpack.c.l.b16 %v422
    %v1735 = vunpack.c.h.b16 %v422
    %v1736 = vunpack.c.l.b16 %v423
    %v1737 = vunpack.c.h.b16 %v423
    %v1738 = vunpack.c.l.b16 %v424
    %v1739 = vunpack.c.h.b16 %v424
    %v1740 = vunpack.c.l.b16 %v425
    %v1741 = vunpack.c.h.b16 %v425
    %v1742 = vunpack.c.l.b16 %v426
    %v1743 = vunpack.c.h.b16 %v426
    %v1744 = vunpack.c.l.b16 %v427
    %v1745 = vunpack.c.h.b16 %v427
    %v1746 = vunpack.c.l.b16 %v428
    %v1747 = vunpack.c.h.b16 %v428
    %v1748 = vunpack.c.l.b16 %v429
    %v1749 = vunpack.c.h.b16 %v429
    %v1750 = vunpack.c.l.b16 %v430
    %v1751 = vunpack.c.h.b16 %v430
    %v1752 = vunpack.c.l.b16 %v431
    %v1753 = vunpack.c.h.b16 %v431
    %v1754 = vunpack.c.l.b16 %v432
    %v1755 = vunpack.c.h.b16 %v432
    %v1756 = vunpack.c.l.b16 %v433
    %v1757 = vunpack.c.h.b16 %v433
    %v1758 = vunpack.c.l.b16 %v434
    %v1759 = vunpack.c.h.b16 %v434
    %v1760 = vunpack.c.l.b16 %v435
    %v1761 = vunpack.c.h.b16 %v435
    %v1762 = vunpack.c.l.b16 %v436
    %v1763 = vunpack.c.h.b16 %v436
    %v1764 = vunpack.c.l.b16 %v437
    %v1765 = vunpack.c.h.b16 %v437
    %v1766 = vunpack.c.l.b16 %v438
    %v1767 = vunpack.c.h.b16 %v438
    %v1768 = vunpack.c.l.b16 %v439
    %v1769 = vunpack.c.h.b16 %v439
    %v1770 = vunpack.c.l.b16 %v440
    %v1771 = vunpack.c.h.b16 %v440
    %v1772 = vunpack.c.l.b16 %v441
    %v1773 = vunpack.c.h.b16 %v441
    %v1774 = vunpack.c.l.b16 %v442
    %v1775 = vunpack.c.h.b16 %v442
    %v1776 = vunpack.c.l.b16 %v443
    %v1777 = vunpack.c.h.b16 %v443
    %v1778 = vunpack.c.l.b16 %v444
    %v1779 = vunpack.c.h.b16 %v444
    %v1780 = vunpack.c.l.b16 %v445
    %v1781 = vunpack.c.h.b16 %v445
    %v1782 = vunpack.c.l.b16 %v446
    %v1783 = vunpack.c.h.b16 %v446
    %v1784 = vunpack.c.l.b16 %v447
    %v1785 = vunpack.c.h.b16 %v447
    %v1786 = vunpack.c.l.b16 %v448
    %v1787 = vunpack.c.h.b16 %v448
    %v1788 = vunpack.c.l.b16 %v449
    %v1789 = vunpack.c.h.b16 %v449
    %v1790 = vunpack.c.l.b16 %v450
    %v1791 = vunpack.c.h.b16 %v450
    %v1792 = vunpack.c.l.b16 %v451
    %v1793 = vunpack.c.h.b16 %v451
    %v1794 = vunpack.c.l.b16 %v452
    %v1795 = vunpack.c.h.b16 %v452
    %v1796 = vunpack.c.l.b16 %v453
    %v1797 = vunpack.c.h.b16 %v453
    %v1798 = vunpack.c.l.b16 %v454
    %v1799 = vunpack.c.h.b16 %v454
    %v1800 = vunpack.c.l.b16 %v455
    %v1801 = vunpack.c.h.b16 %v455
    %v1802 = vunpack.c.l.b16 %v456
    %v1803 = vunpack.c.h.b16 %v456
    %v1804 = vunpack.c.l.b16 %v457
    %v1805 = vunpack.c.h.b16 %v457
    %v1806 = vunpack.c.l.b16 %v458
    %v1807 = vunpack.c.h.b16 %v458
    %v1808 = vunpack.c.l.b16 %v459
    %v1809 = vunpack.c.h.b16 %v459
    %v1810 = vunpack.c.l.b16 %v460
    %v1811 = vunpack.c.h.b16 %v460
    %v1812 = vunpack.c.l.b16 %v461
    %v1813 = vunpack.c.h.b16 %v461
    %v1814 = vunpack.c.l.b16 %v462
    %v1815 = vunpack.c.h.b16 %v462
    %v1816 = vunpack.c.l.b16 %v463
    %v1817 = vunpack.c.h.b16 %v463
    %v1818 = vunpack.c.l.b16 %v464
    %v1819 = vunpack.c.h.b16 %v464
    %v1820 = vunpack.c.l.b16 %v465
    %v1821 = vunpack.c.h.b16 %v465
    %v1822 = vunpack.c.l.b16 %v466
    %v1823 = vunpack.c.h.b16 %v466
    %v1824 = vunpack.c.l.b16 %v467
    %v1825 = vunpack.c.h.b16 %v467
    %v1826 = vunpack.c.l.b16 %v468
    %v1827 = vunpack.c.h.b16 %v468
    %v1828 = vunpack.c.l.b16 %v469
    %v1829 = vunpack.c.h.b16 %v469
    %v1830 = vunpack.c.l.b16 %v470
    %v1831 = vunpack.c.h.b16 %v470
    %v1832 = vunpack.c.l.b16 %v471
    %v1833 = vunpack.c.h.b16 %v471
    %v1834 = vunpack.c.l.b16 %v472
    %v1835 = vunpack.c.h.b16 %v472
    %v1836 = vunpack.c.l.b16 %v473
    %v1837 = vunpack.c.h.b16 %v473
    %v1838 = vunpack.c.l.b16 %v474
    %v1839 = vunpack.c.h.b16 %v474
    %v1840 = vunpack.c.l.b16 %v475
    %v1841 = vunpack.c.h.b16 %v475
    %v1842 = vunpack.c.l.b16 %v476
    %v1843 = vunpack.c.h.b16 %v476
    %v1844 = vunpack.c.l.b16 %v477
    %v1845 = vunpack.c.h.b16 %v477
    %v1846 = vunpack.c.l.b16 %v478
    %v1847 = vunpack.c.h.b16 %v478
    %v1848 = vunpack.c.l.b16 %v479
    %v1849 = vunpack.c.h.b16 %v479
    %v1850 = vunpack.c.l.b16 %v480
    %v1851 = vunpack.c.h.b16 %v480
    %v1852 = vunpack.c.l.b16 %v481
    %v1853 = vunpack.c.h.b16 %v481
    %v1854 = vunpack.c.l.b16 %v482
    %v1855 = vunpack.c.h.b16 %v482
    %v1856 = vunpack.c.l.b16 %v483
    %v1857 = vunpack.c.h.b16 %v483
    %v1858 = vunpack.c.l.b16 %v484
    %v1859 = vunpack.c.h.b16 %v484
    %v1860 = vunpack.c.l.b16 %v485
    %v1861 = vunpack.c.h.b16 %v485
    %v1862 = vunpack.c.l.b16 %v486
    %v1863 = vunpack.c.h.b16 %v486
    %v1864 = vunpack.c.l.b16 %v487
    %v1865 = vunpack.c.h.b16 %v487
    %v1866 = vunpack.c.l.b16 %v488
    %v1867 = vunpack.c.h.b16 %v488
    %v1868 = vunpack.c.l.b16 %v489
    %v1869 = vunpack.c.h.b16 %v489
    %v1870 = vunpack.c.l.b16 %v490
    %v1871 = vunpack.c.h.b16 %v490
    %v1872 = vunpack.c.l.b16 %v491
    %v1873 = vunpack.c.h.b16 %v491
    %v1874 = vunpack.c.l.b16 %v492
    %v1875 = vunpack.c.h.b16 %v492
    %v1876 = vunpack.c.l.b16 %v493
    %v1877 = vunpack.c.h.b16 %v493
    %v1878 = vunpack.c.l.b16 %v494
    %v1879 = vunpack.c.h.b16 %v494
    %v1880 = vunpack.c.l.b16 %v495
    %v1881 = vunpack.c.h.b16 %v495
    %v1882 = vunpack.c.l.b16 %v496
    %v1883 = vunpack.c.h.b16 %v496
    %v1884 = vunpack.c.l.b16 %v497
    %v1885 = vunpack.c.h.b16 %v497
    %v1886 = vunpack.c.l.b16 %v498
    %v1887 = vunpack.c.h.b16 %v498
    %v1888 = vunpack.c.l.b16 %v499
    %v1889 = vunpack.c.h.b16 %v499
    %v1890 = vunpack.c.l.b16 %v500
    %v1891 = vunpack.c.h.b16 %v500
    %v1892 = vunpack.c.l.b16 %v501
    %v1893 = vunpack.c.h.b16 %v501
    %v1894 = vunpack.c.l.b16 %v502
    %v1895 = vunpack.c.h.b16 %v502
    %v1896 = vunpack.c.l.b16 %v503
    %v1897 = vunpack.c.h.b16 %v503
    %v1898 = vunpack.c.l.b16 %v504
    %v1899 = vunpack.c.h.b16 %v504
    %v1900 = vunpack.c.l.b16 %v505
    %v1901 = vunpack.c.h.b16 %v505
    %v1902 = vunpack.c.l.b16 %v506
    %v1903 = vunpack.c.h.b16 %v506
    %v1904 = vunpack.c.l.b16 %v507
    %v1905 = vunpack.c.h.b16 %v507
    %v1906 = vunpack.c.l.b16 %v508
    %v1907 = vunpack.c.h.b16 %v508
    %v1908 = vunpack.c.l.b16 %v509
    %v1909 = vunpack.c.h.b16 %v509
    %v1910 = vunpack.c.l.b16 %v510
    %v1911 = vunpack.c.h.b16 %v510
    %v1912 = vunpack.c.l.b16 %v511
    %v1913 = vunpack.c.h.b16 %v511
    %v1914 = vunpack.c.l.b16 %v512
    %v1915 = vunpack.c.h.b16 %v512
    %v1916 = vunpack.c.l.b16 %v513
    %v1917 = vunpack.c.h.b16 %v513
    %v1918 = vunpack.c.l.b16 %v514
    %v1919 = vunpack.c.h.b16 %v514
    %v1920 = vunpack.c.l.b16 %v515
    %v1921 = vunpack.c.h.b16 %v515
    %v1922 = vunpack.c.l.b16 %v516
    %v1923 = vunpack.c.h.b16 %v516
    %v1924 = vunpack.c.l.b16 %v517
    %v1925 = vunpack.c.h.b16 %v517
    %v1926 = vunpack.c.l.b16 %v518
    %v1927 = vunpack.c.h.b16 %v518
    %v1928 = vunpack.c.l.b16 %v519
    %v1929 = vunpack.c.h.b16 %v519
    %v1930 = vunpack.c.l.b16 %v520
    %v1931 = vunpack.c.h.b16 %v520
    %v1932 = vunpack.c.l.b16 %v521
    %v1933 = vunpack.c.h.b16 %v521
    %v1934 = vunpack.c.l.b16 %v522
    %v1935 = vunpack.c.h.b16 %v522
    %v1936 = vunpack.c.l.b16 %v523
    %v1937 = vunpack.c.h.b16 %v523
    %v1938 = vunpack.c.l.b16 %v524
    %v1939 = vunpack.c.h.b16 %v524
    %v1940 = vunpack.c.l.b16 %v525
    %v1941 = vunpack.c.h.b16 %v525
    %v1942 = vunpack.c.l.b16 %v526
    %v1943 = vunpack.c.h.b16 %v526
    %v1944 = vunpack.c.l.b16 %v527
    %v1945 = vunpack.c.h.b16 %v527
    %v1946 = vunpack.c.l.b16 %v528
    %v1947 = vunpack.c.h.b16 %v528
    %v1948 = vunpack.c.l.b16 %v529
    %v1949 = vunpack.c.h.b16 %v529
    %v1950 = vunpack.c.l.b16 %v530
    %v1951 = vunpack.c.h.b16 %v530
    %v1952 = vunpack.c.l.b16 %v531
    %v1953 = vunpack.c.h.b16 %v531
    %v1954 = vunpack.c.l.b16 %v532
    %v1955 = vunpack.c.h.b16 %v532
    %v1956 = vunpack.c.l.b16 %v533
    %v1957 = vunpack.c.h.b16 %v533
    %v1958 = vunpack.c.l.b16 %v534
    %v1959 = vunpack.c.h.b16 %v534
    %v1960 = vunpack.c.l.b16 %v535
    %v1961 = vunpack.c.h.b16 %v535
    %v1962 = vunpack.c.l.b16 %v536
    %v1963 = vunpack.c.h.b16 %v536
    %v1964 = vunpack.c.l.b16 %v537
    %v1965 = vunpack.c.h.b16 %v537
    %v1966 = vunpack.c.l.b16 %v538
    %v1967 = vunpack.c.h.b16 %v538
    %v1968 = vunpack.c.l.b16 %v539
    %v1969 = vunpack.c.h.b16 %v539
    %v1970 = vunpack.c.l.b16 %v540
    %v1971 = vunpack.c.h.b16 %v540
    %v1972 = vunpack.c.l.b16 %v541
    %v1973 = vunpack.c.h.b16 %v541
    %v1974 = vunpack.c.l.b16 %v542
    %v1975 = vunpack.c.h.b16 %v542
    %v1976 = vunpack.c.l.b16 %v543
    %v1977 = vunpack.c.h.b16 %v543
    %v1978 = vunpack.c.l.b16 %v544
    %v1979 = vunpack.c.h.b16 %v544
    %v1980 = vunpack.c.l.b16 %v545
    %v1981 = vunpack.c.h.b16 %v545
    %v1982 = vunpack.c.l.b16 %v546
    %v1983 = vunpack.c.h.b16 %v546
    %v1984 = vunpack.c.l.b16 %v547
    %v1985 = vunpack.c.h.b16 %v547
    %v1986 = vunpack.c.l.b16 %v548
    %v1987 = vunpack.c.h.b16 %v548
    %v1988 = vunpack.c.l.b16 %v549
    %v1989 = vunpack.c.h.b16 %v549
    %v1990 = vunpack.c.l.b16 %v550
    %v1991 = vunpack.c.h.b16 %v550
    %v1992 = vunpack.c.l.b16 %v551
    %v1993 = vunpack.c.h.b16 %v551
    %v1994 = vunpack.c.l.b16 %v552
    %v1995 = vunpack.c.h.b16 %v552
    %v1996 = vunpack.c.l.b16 %v553
    %v1997 = vunpack.c.h.b16 %v553
    %v1998 = vunpack.c.l.b16 %v554
    %v1999 = vunpack.c.h.b16 %v554
    %v2000 = vunpack.c.l.b16 %v555
    %v2001 = vunpack.c.h.b16 %v555
    %v2002 = vunpack.c.l.b16 %v556
    %v2003 = vunpack.c.h.b16 %v556
    %v2004 = vunpack.c.l.b16 %v557
    %v2005 = vunpack.c.h.b16 %v557
    %v2006 = vunpack.c.l.b16 %v558
    %v2007 = vunpack.c.h.b16 %v558
    %v2008 = vunpack.c.l.b16 %v559
    %v2009 = vunpack.c.h.b16 %v559
    %v2010 = vunpack.c.l.b16 %v560
    %v2011 = vunpack.c.h.b16 %v560
    %v2012 = vunpack.c.l.b16 %v561
    %v2013 = vunpack.c.h.b16 %v561
    %v2014 = vunpack.c.l.b16 %v562
    %v2015 = vunpack.c.h.b16 %v562
    %v2016 = vunpack.c.l.b16 %v563
    %v2017 = vunpack.c.h.b16 %v563
    %v2018 = vunpack.c.l.b16 %v564
    %v2019 = vunpack.c.h.b16 %v564
    %v2020 = vunpack.c.l.b16 %v565
    %v2021 = vunpack.c.h.b16 %v565
    %v2022 = vunpack.c.l.b16 %v566
    %v2023 = vunpack.c.h.b16 %v566
    %v2024 = vunpack.c.l.b16 %v567
    %v2025 = vunpack.c.h.b16 %v567
    %v2026 = vunpack.c.l.b16 %v568
    %v2027 = vunpack.c.h.b16 %v568
    %v2028 = vunpack.c.l.b16 %v569
    %v2029 = vunpack.c.h.b16 %v569
    %v2030 = vunpack.c.l.b16 %v570
    %v2031 = vunpack.c.h.b16 %v570
    %v2032 = vunpack.c.l.b16 %v571
    %v2033 = vunpack.c.h.b16 %v571
    %v2034 = vunpack.c.l.b16 %v572
    %v2035 = vunpack.c.h.b16 %v572
    %v2036 = vunpack.c.l.b16 %v573
    %v2037 = vunpack.c.h.b16 %v573
    %v2038 = vunpack.c.l.b16 %v574
    %v2039 = vunpack.c.h.b16 %v574
    %v2040 = vunpack.c.l.b16 %v575
    %v2041 = vunpack.c.h.b16 %v575
    %v2042 = vunpack.c.l.b16 %v576
    %v2043 = vunpack.c.h.b16 %v576
    %v2044 = vunpack.c.l.b16 %v577
    %v2045 = vunpack.c.h.b16 %v577
    %v2046 = vunpack.c.l.b16 %v578
    %v2047 = vunpack.c.h.b16 %v578
    %v2048 = vunpack.c.l.b16 %v579
    %v2049 = vunpack.c.h.b16 %v579
    %v2050 = vunpack.c.l.b16 %v580
    %v2051 = vunpack.c.h.b16 %v580
    %v2052 = vunpack.c.l.b16 %v581
    %v2053 = vunpack.c.h.b16 %v581
    %v2054 = vunpack.c.l.b16 %v582
    %v2055 = vunpack.c.h.b16 %v582
    %v2056 = vunpack.c.l.b16 %v583
    %v2057 = vunpack.c.h.b16 %v583
    %v2058 = vunpack.c.l.b16 %v584
    %v2059 = vunpack.c.h.b16 %v584
    %v2060 = vunpack.c.l.b16 %v585
    %v2061 = vunpack.c.h.b16 %v585
    %v2062 = vunpack.c.l.b16 %v586
    %v2063 = vunpack.c.h.b16 %v586
    %v2064 = vunpack.c.l.b16 %v587
    %v2065 = vunpack.c.h.b16 %v587
    %v2066 = vunpack.c.l.b16 %v588
    %v2067 = vunpack.c.h.b16 %v588
    %v2068 = vunpack.c.l.b16 %v589
    %v2069 = vunpack.c.h.b16 %v589
    %v2070 = vunpack.c.l.b16 %v590
    %v2071 = vunpack.c.h.b16 %v590
    %v2072 = vunpack.c.l.b16 %v591
    %v2073 = vunpack.c.h.b16 %v591
    %v2074 = vunpack.c.l.b16 %v592
    %v2075 = vunpack.c.h.b16 %v592
    %v2076 = vunpack.c.l.b16 %v593
    %v2077 = vunpack.c.h.b16 %v593
    %v2078 = vunpack.c.l.b16 %v594
    %v2079 = vunpack.c.h.b16 %v594
    %v2080 = vunpack.c.l.b16 %v595
    %v2081 = vunpack.c.h.b16 %v595
    %v2082 = vunpack.c.l.b16 %v596
    %v2083 = vunpack.c.h.b16 %v596
    %v2084 = vunpack.c.l.b16 %v597
    %v2085 = vunpack.c.h.b16 %v597
    %v2086 = vunpack.c.l.b16 %v598
    %v2087 = vunpack.c.h.b16 %v598
    %v2088 = vunpack.c.l.b16 %v599
    %v2089 = vunpack.c.h.b16 %v599
    %v2090 = vunpack.c.l.b16 %v600
    %v2091 = vunpack.c.h.b16 %v600
    %v2092 = vunpack.c.l.b16 %v601
    %v2093 = vunpack.c.h.b16 %v601
    %v2094 = vunpack.c.l.b16 %v602
    %v2095 = vunpack.c.h.b16 %v602
    %v2096 = vunpack.c.l.b16 %v603
    %v2097 = vunpack.c.h.b16 %v603
    %v2098 = vunpack.c.l.b16 %v604
    %v2099 = vunpack.c.h.b16 %v604
    %v2100 = vunpack.c.l.b16 %v605
    %v2101 = vunpack.c.h.b16 %v605
    %v2102 = vunpack.c.l.b16 %v606
    %v2103 = vunpack.c.h.b16 %v606
    %v2104 = vunpack.c.l.b16 %v607
    %v2105 = vunpack.c.h.b16 %v607
    %v2106 = vunpack.c.l.b16 %v608
    %v2107 = vunpack.c.h.b16 %v608
    %v2108 = vunpack.c.l.b16 %v609
    %v2109 = vunpack.c.h.b16 %v609
    %v2110 = vunpack.c.l.b16 %v610
    %v2111 = vunpack.c.h.b16 %v610
    %v2112 = vunpack.c.l.b16 %v611
    %v2113 = vunpack.c.h.b16 %v611
    %v2114 = vunpack.c.l.b16 %v612
    %v2115 = vunpack.c.h.b16 %v612
    %v2116 = vunpack.c.l.b16 %v613
    %v2117 = vunpack.c.h.b16 %v613
    %v2118 = vunpack.c.l.b16 %v614
    %v2119 = vunpack.c.h.b16 %v614
    %v2120 = vunpack.c.l.b16 %v615
    %v2121 = vunpack.c.h.b16 %v615
    %v2122 = vunpack.c.l.b16 %v616
    %v2123 = vunpack.c.h.b16 %v616
    %v2124 = vunpack.c.l.b16 %v617
    %v2125 = vunpack.c.h.b16 %v617
    %v2126 = vunpack.c.l.b16 %v618
    %v2127 = vunpack.c.h.b16 %v618
    %v2128 = vunpack.c.l.b16 %v619
    %v2129 = vunpack.c.h.b16 %v619
    %v2130 = vunpack.c.l.b16 %v620
    %v2131 = vunpack.c.h.b16 %v620
    %v2132 = vunpack.c.l.b16 %v621
    %v2133 = vunpack.c.h.b16 %v621
    %v2134 = vunpack.c.l.b16 %v622
    %v2135 = vunpack.c.h.b16 %v622
    %v2136 = vunpack.c.l.b16 %v623
    %v2137 = vunpack.c.h.b16 %v623
    %v2138 = vunpack.c.l.b16 %v624
    %v2139 = vunpack.c.h.b16 %v624
    %v2140 = vunpack.c.l.b16 %v625
    %v2141 = vunpack.c.h.b16 %v625
    %v2142 = vunpack.c.l.b16 %v626
    %v2143 = vunpack.c.h.b16 %v626
    %v2144 = vunpack.c.l.b16 %v627
    %v2145 = vunpack.c.h.b16 %v627
    %v2146 = vunpack.c.l.b16 %v628
    %v2147 = vunpack.c.h.b16 %v628
    %v2148 = vunpack.c.l.b16 %v629
    %v2149 = vunpack.c.h.b16 %v629
    %v2150 = vunpack.c.l.b16 %v630
    %v2151 = vunpack.c.h.b16 %v630
    %v2152 = vunpack.c.l.b16 %v631
    %v2153 = vunpack.c.h.b16 %v631
    %v2154 = vunpack.c.l.b16 %v632
    %v2155 = vunpack.c.h.b16 %v632
    %v2156 = vunpack.c.l.b16 %v633
    %v2157 = vunpack.c.h.b16 %v633
    %v2158 = vunpack.c.l.b16 %v634
    %v2159 = vunpack.c.h.b16 %v634
    %v2160 = vunpack.c.l.b16 %v635
    %v2161 = vunpack.c.h.b16 %v635
    %v2162 = vunpack.c.l.b16 %v636
    %v2163 = vunpack.c.h.b16 %v636
    %v2164 = vunpack.c.l.b16 %v637
    %v2165 = vunpack.c.h.b16 %v637
    %v2166 = vunpack.c.l.b16 %v638
    %v2167 = vunpack.c.h.b16 %v638
    %v2168 = vunpack.c.l.b16 %v639
    %v2169 = vunpack.c.h.b16 %v639
    %v2170 = vunpack.c.l.b16 %v640
    %v2171 = vunpack.c.h.b16 %v640
    %v2172 = vunpack.c.l.b16 %v641
    %v2173 = vunpack.c.h.b16 %v641
    %v2174 = vunpack.c.l.b16 %v642
    %v2175 = vunpack.c.h.b16 %v642
    %v2176 = vunpack.c.l.b16 %v643
    %v2177 = vunpack.c.h.b16 %v643
    %v2178 = vunpack.c.l.b16 %v644
    %v2179 = vunpack.c.h.b16 %v644
    %v2180 = vunpack.c.l.b16 %v645
    %v2181 = vunpack.c.h.b16 %v645
    %v2182 = vunpack.c.l.b16 %v646
    %v2183 = vunpack.c.h.b16 %v646
    %v2184 = vunpack.c.l.b16 %v647
    %v2185 = vunpack.c.h.b16 %v647
    %v2186 = vunpack.c.l.b16 %v648
    %v2187 = vunpack.c.h.b16 %v648
    %v2188 = vunpack.c.l.b16 %v649
    %v2189 = vunpack.c.h.b16 %v649
    %v2190 = vunpack.c.l.b16 %v650
    %v2191 = vunpack.c.h.b16 %v650
    %v2192 = vunpack.c.l.b16 %v651
    %v2193 = vunpack.c.h.b16 %v651
    %v2194 = vunpack.c.l.b16 %v652
    %v2195 = vunpack.c.h.b16 %v652
    %v2196 = vunpack.c.l.b16 %v653
    %v2197 = vunpack.c.h.b16 %v653
    %v2198 = vunpack.c.l.b16 %v654
    %v2199 = vunpack.c.h.b16 %v654
    %v2200 = vunpack.c.l.b16 %v655
    %v2201 = vunpack.c.h.b16 %v655
    %v2202 = vunpack.c.l.b16 %v656
    %v2203 = vunpack.c.h.b16 %v656
    %v2204 = vunpack.c.l.b16 %v657
    %v2205 = vunpack.c.h.b16 %v657
    %v2206 = vunpack.c.l.b16 %v658
    %v2207 = vunpack.c.h.b16 %v658
    %v2208 = vunpack.c.l.b16 %v659
    %v2209 = vunpack.c.h.b16 %v659
    %v2210 = vunpack.c.l.b16 %v660
    %v2211 = vunpack.c.h.b16 %v660
    %v2212 = vunpack.c.l.b16 %v661
    %v2213 = vunpack.c.h.b16 %v661
    %v2214 = vunpack.c.l.b16 %v662
    %v2215 = vunpack.c.h.b16 %v662
    %v2216 = vunpack.c.l.b16 %v663
    %v2217 = vunpack.c.h.b16 %v663
    %v2218 = vunpack.c.l.b16 %v664
    %v2219 = vunpack.c.h.b16 %v664
    %v2220 = vunpack.c.l.b16 %v665
    %v2221 = vunpack.c.h.b16 %v665
    %v2222 = vunpack.c.l.b16 %v666
    %v2223 = vunpack.c.h.b16 %v666
    %v2224 = vunpack.c.l.b16 %v667
    %v2225 = vunpack.c.h.b16 %v667
    %v2226 = vunpack.c.l.b16 %v668
    %v2227 = vunpack.c.h.b16 %v668
    %v2228 = vunpack.c.l.b16 %v669
    %v2229 = vunpack.c.h.b16 %v669
    %v2230 = vunpack.c.l.b16 %v670
    %v2231 = vunpack.c.h.b16 %v670
    %v2232 = vunpack.c.l.b16 %v671
    %v2233 = vunpack.c.h.b16 %v671
    %v2234 = vunpack.c.l.b16 %v672
    %v2235 = vunpack.c.h.b16 %v672
    %v2236 = vunpack.c.l.b16 %v673
    %v2237 = vunpack.c.h.b16 %v673
    %v2238 = vunpack.c.l.b16 %v674
    %v2239 = vunpack.c.h.b16 %v674
    %v2240 = vunpack.c.l.b16 %v675
    %v2241 = vunpack.c.h.b16 %v675
    %v2242 = vunpack.c.l.b16 %v676
    %v2243 = vunpack.c.h.b16 %v676
    %v2244 = vunpack.c.l.b16 %v677
    %v2245 = vunpack.c.h.b16 %v677
    %v2246 = vunpack.c.l.b16 %v678
    %v2247 = vunpack.c.h.b16 %v678
    %v2248 = vunpack.c.l.b16 %v679
    %v2249 = vunpack.c.h.b16 %v679
    %v2250 = vunpack.c.l.b16 %v680
    %v2251 = vunpack.c.h.b16 %v680
    %v2252 = vunpack.c.l.b16 %v681
    %v2253 = vunpack.c.h.b16 %v681
    %v2254 = vunpack.c.l.b16 %v682
    %v2255 = vunpack.c.h.b16 %v682
    %v2256 = vunpack.c.l.b16 %v683
    %v2257 = vunpack.c.h.b16 %v683
    %v2258 = vunpack.c.l.b16 %v684
    %v2259 = vunpack.c.h.b16 %v684
    %v2260 = vunpack.c.l.b16 %v685
    %v2261 = vunpack.c.h.b16 %v685
    %v2262 = vunpack.c.l.b16 %v686
    %v2263 = vunpack.c.h.b16 %v686
    %v2264 = vunpack.c.l.b16 %v687
    %v2265 = vunpack.c.h.b16 %v687
    %v2266 = vunpack.c.l.b16 %v688
    %v2267 = vunpack.c.h.b16 %v688
    %v2268 = vunpack.c.l.b16 %v689
    %v2269 = vunpack.c.h.b16 %v689
    %v2270 = vunpack.c.l.b16 %v690
    %v2271 = vunpack.c.h.b16 %v690
    %v2272 = vunpack.c.l.b16 %v691
    %v2273 = vunpack.c.h.b16 %v691
    %v2274 = vunpack.c.l.b16 %v692
    %v2275 = vunpack.c.h.b16 %v692
    %v2276 = vunpack.c.l.b16 %v693
    %v2277 = vunpack.c.h.b16 %v693
    %v2278 = vunpack.c.l.b16 %v694
    %v2279 = vunpack.c.h.b16 %v694
    %v2280 = vunpack.c.l.b16 %v695
    %v2281 = vunpack.c.h.b16 %v695
    %v2282 = vunpack.c.l.b16 %v696
    %v2283 = vunpack.c.h.b16 %v696
    %v2284 = vunpack.c.l.b16 %v697
    %v2285 = vunpack.c.h.b16 %v697
    %v2286 = vunpack.c.l.b16 %v698
    %v2287 = vunpack.c.h.b16 %v698
    %v2288 = vunpack.c.l.b16 %v699
    %v2289 = vunpack.c.h.b16 %v699
    %v2290 = vunpack.c.l.b16 %v700
    %v2291 = vunpack.c.h.b16 %v700
    %v2292 = vunpack.c.l.b16 %v701
    %v2293 = vunpack.c.h.b16 %v701
    %v2294 = vunpack.c.l.b16 %v702
    %v2295 = vunpack.c.h.b16 %v702
    %v2296 = vunpack.c.l.b16 %v703
    %v2297 = vunpack.c.h.b16 %v703
    %v2298 = vunpack.c.l.b16 %v704
    %v2299 = vunpack.c.h.b16 %v704
    %v2300 = vunpack.c.l.b16 %v705
    %v2301 = vunpack.c.h.b16 %v705
    %v2302 = vunpack.c.l.b16 %v706
    %v2303 = vunpack.c.h.b16 %v706
    %v2304 = vunpack.c.l.b16 %v707
    %v2305 = vunpack.c.h.b16 %v707
    %v2306 = vunpack.c.l.b16 %v708
    %v2307 = vunpack.c.h.b16 %v708
    %v2308 = vunpack.c.l.b16 %v709
    %v2309 = vunpack.c.h.b16 %v709
    %v2310 = vunpack.c.l.b16 %v710
    %v2311 = vunpack.c.h.b16 %v710
    %v2312 = vunpack.c.l.b16 %v711
    %v2313 = vunpack.c.h.b16 %v711
    %v2314 = vunpack.c.l.b16 %v712
    %v2315 = vunpack.c.h.b16 %v712
    %v2316 = vunpack.c.l.b16 %v713
    %v2317 = vunpack.c.h.b16 %v713
    %v2318 = vunpack.c.l.b16 %v714
    %v2319 = vunpack.c.h.b16 %v714
    %v2320 = vunpack.c.l.b16 %v715
    %v2321 = vunpack.c.h.b16 %v715
    %v2322 = vunpack.c.l.b16 %v716
    %v2323 = vunpack.c.h.b16 %v716
    %v2324 = vunpack.c.l.b16 %v717
    %v2325 = vunpack.c.h.b16 %v717
    %v2326 = vunpack.c.l.b16 %v718
    %v2327 = vunpack.c.h.b16 %v718
    %v2328 = vunpack.c.l.b16 %v719
    %v2329 = vunpack.c.h.b16 %v719
    %v2330 = vunpack.c.l.b16 %v720
    %v2331 = vunpack.c.h.b16 %v720
    %v2332 = vunpack.c.l.b16 %v721
    %v2333 = vunpack.c.h.b16 %v721
    %v2334 = vunpack.c.l.b16 %v722
    %v2335 = vunpack.c.h.b16 %v722
    %v2336 = vunpack.c.l.b16 %v723
    %v2337 = vunpack.c.h.b16 %v723
    %v2338 = vunpack.c.l.b16 %v724
    %v2339 = vunpack.c.h.b16 %v724
    %v2340 = vunpack.c.l.b16 %v725
    %v2341 = vunpack.c.h.b16 %v725
    %v2342 = vunpack.c.l.b16 %v726
    %v2343 = vunpack.c.h.b16 %v726
    %v2344 = vunpack.c.l.b16 %v727
    %v2345 = vunpack.c.h.b16 %v727
    %v2346 = vunpack.c.l.b16 %v728
    %v2347 = vunpack.c.h.b16 %v728
    %v2348 = vunpack.c.l.b16 %v729
    %v2349 = vunpack.c.h.b16 %v729
    %v2350 = vunpack.c.l.b16 %v730
    %v2351 = vunpack.c.h.b16 %v730
    %v2352 = vunpack.c.l.b16 %v731
    %v2353 = vunpack.c.h.b16 %v731
    %v2354 = vunpack.c.l.b16 %v732
    %v2355 = vunpack.c.h.b16 %v732
    %v2356 = vunpack.c.l.b16 %v733
    %v2357 = vunpack.c.h.b16 %v733
    %v2358 = vunpack.c.l.b16 %v734
    %v2359 = vunpack.c.h.b16 %v734
    %v2360 = vunpack.c.l.b16 %v735
    %v2361 = vunpack.c.h.b16 %v735
    %v2362 = vunpack.c.l.b16 %v736
    %v2363 = vunpack.c.h.b16 %v736
    %v2364 = vunpack.c.l.b16 %v737
    %v2365 = vunpack.c.h.b16 %v737
    %v2366 = vunpack.c.l.b16 %v738
    %v2367 = vunpack.c.h.b16 %v738
    %v2368 = vunpack.c.l.b16 %v739
    %v2369 = vunpack.c.h.b16 %v739
    %v2370 = vunpack.c.l.b16 %v740
    %v2371 = vunpack.c.h.b16 %v740
    %v2372 = vunpack.c.l.b16 %v741
    %v2373 = vunpack.c.h.b16 %v741
    %v2374 = vunpack.c.l.b16 %v742
    %v2375 = vunpack.c.h.b16 %v742
    %v2376 = vunpack.c.l.b16 %v743
    %v2377 = vunpack.c.h.b16 %v743
    %v2378 = vunpack.c.l.b16 %v744
    %v2379 = vunpack.c.h.b16 %v744
    %v2380 = vunpack.c.l.b16 %v745
    %v2381 = vunpack.c.h.b16 %v745
    %v2382 = vunpack.c.l.b16 %v746
    %v2383 = vunpack.c.h.b16 %v746
    %v2384 = vunpack.c.l.b16 %v747
    %v2385 = vunpack.c.h.b16 %v747
    %v2386 = vunpack.c.l.b16 %v748
    %v2387 = vunpack.c.h.b16 %v748
    %v2388 = vunpack.c.l.b16 %v749
    %v2389 = vunpack.c.h.b16 %v749
    %v2390 = vunpack.c.l.b16 %v750
    %v2391 = vunpack.c.h.b16 %v750
    %v2392 = vunpack.c.l.b16 %v751
    %v2393 = vunpack.c.h.b16 %v751
    %v2394 = vunpack.c.l.b16 %v752
    %v2395 = vunpack.c.h.b16 %v752
    %v2396 = vunpack.c.l.b16 %v753
    %v2397 = vunpack.c.h.b16 %v753
    %v2398 = vunpack.c.l.b16 %v754
    %v2399 = vunpack.c.h.b16 %v754
    %v2400 = vunpack.c.l.b16 %v755
    %v2401 = vunpack.c.h.b16 %v755
    %v2402 = vunpack.c.l.b16 %v756
    %v2403 = vunpack.c.h.b16 %v756
    %v2404 = vunpack.c.l.b16 %v757
    %v2405 = vunpack.c.h.b16 %v757
    %v2406 = vunpack.c.l.b16 %v758
    %v2407 = vunpack.c.h.b16 %v758
    %v2408 = vunpack.c.l.b16 %v759
    %v2409 = vunpack.c.h.b16 %v759
    %v2410 = vunpack.c.l.b16 %v760
    %v2411 = vunpack.c.h.b16 %v760
    %v2412 = vunpack.c.l.b16 %v761
    %v2413 = vunpack.c.h.b16 %v761
    %v2414 = vunpack.c.l.b16 %v762
    %v2415 = vunpack.c.h.b16 %v762
    %v2416 = vunpack.c.l.b16 %v763
    %v2417 = vunpack.c.h.b16 %v763
    %v2418 = vunpack.c.l.b16 %v764
    %v2419 = vunpack.c.h.b16 %v764
    %v2420 = vunpack.c.l.b16 %v765
    %v2421 = vunpack.c.h.b16 %v765
    %v2422 = vunpack.c.l.b16 %v766
    %v2423 = vunpack.c.h.b16 %v766
    %v2424 = vunpack.c.l.b16 %v767
    %v2425 = vunpack.c.h.b16 %v767
    %v2426 = vunpack.c.l.b16 %v768
    %v2427 = vunpack.c.h.b16 %v768
    %v2428 = vunpack.c.l.b16 %v769
    %v2429 = vunpack.c.h.b16 %v769
    %v2430 = vunpack.c.l.b16 %v770
    %v2431 = vunpack.c.h.b16 %v770
    %v2432 = vunpack.c.l.b16 %v771
    %v2433 = vunpack.c.h.b16 %v771
    %v2434 = vunpack.c.l.b16 %v772
    %v2435 = vunpack.c.h.b16 %v772
    %v2436 = vunpack.c.l.b16 %v773
    %v2437 = vunpack.c.h.b16 %v773
    %v2438 = vunpack.c.l.b16 %v774
    %v2439 = vunpack.c.h.b16 %v774
    %v2440 = vunpack.c.l.b16 %v775
    %v2441 = vunpack.c.h.b16 %v775
    %v2442 = vunpack.c.l.b16 %v776
    %v2443 = vunpack.c.h.b16 %v776
    %v2444 = vunpack.c.l.b16 %v777
    %v2445 = vunpack.c.h.b16 %v777
    %v2446 = vunpack.c.l.b16 %v778
    %v2447 = vunpack.c.h.b16 %v778
    %v2448 = vunpack.c.l.b16 %v779
    %v2449 = vunpack.c.h.b16 %v779
    %v2450 = vunpack.c.l.b16 %v780
    %v2451 = vunpack.c.h.b16 %v780
    %v2452 = vunpack.c.l.b16 %v781
    %v2453 = vunpack.c.h.b16 %v781
    %v2454 = vunpack.c.l.b16 %v782
    %v2455 = vunpack.c.h.b16 %v782
    %v2456 = vunpack.c.l.b16 %v783
    %v2457 = vunpack.c.h.b16 %v783
    %v2458 = vunpack.c.l.b16 %v784
    %v2459 = vunpack.c.h.b16 %v784
    %v2460 = vunpack.c.l.b16 %v785
    %v2461 = vunpack.c.h.b16 %v785
    %v2462 = vunpack.c.l.b16 %v786
    %v2463 = vunpack.c.h.b16 %v786
    %v2464 = vunpack.c.l.b16 %v787
    %v2465 = vunpack.c.h.b16 %v787
    %v2466 = vunpack.c.l.b16 %v788
    %v2467 = vunpack.c.h.b16 %v788
    %v2468 = vunpack.c.l.b16 %v789
    %v2469 = vunpack.c.h.b16 %v789
    %v2470 = vunpack.c.l.b16 %v790
    %v2471 = vunpack.c.h.b16 %v790
    %v2472 = vunpack.c.l.b16 %v791
    %v2473 = vunpack.c.h.b16 %v791
    %v2474 = vunpack.c.l.b16 %v792
    %v2475 = vunpack.c.h.b16 %v792
    %v2476 = vunpack.c.l.b16 %v793
    %v2477 = vunpack.c.h.b16 %v793
    %v2478 = vunpack.c.l.b16 %v794
    %v2479 = vunpack.c.h.b16 %v794
    %v2480 = vunpack.c.l.b16 %v795
    %v2481 = vunpack.c.h.b16 %v795
    %v2482 = vunpack.c.l.b16 %v796
    %v2483 = vunpack.c.h.b16 %v796
    %v2484 = vunpack.c.l.b16 %v797
    %v2485 = vunpack.c.h.b16 %v797
    %v2486 = vunpack.c.l.b16 %v798
    %v2487 = vunpack.c.h.b16 %v798
    %v2488 = vunpack.c.l.b16 %v799
    %v2489 = vunpack.c.h.b16 %v799
    %v2490 = vunpack.c.l.b16 %v800
    %v2491 = vunpack.c.h.b16 %v800
    %v2492 = vunpack.c.l.b16 %v801
    %v2493 = vunpack.c.h.b16 %v801
    %v2494 = vunpack.c.l.b16 %v802
    %v2495 = vunpack.c.h.b16 %v802
    %v2496 = vunpack.c.l.b16 %v803
    %v2497 = vunpack.c.h.b16 %v803
    %v2498 = vunpack.c.l.b16 %v804
    %v2499 = vunpack.c.h.b16 %v804
    %v2500 = vunpack.c.l.b16 %v805
    %v2501 = vunpack.c.h.b16 %v805
    %v2502 = vunpack.c.l.b16 %v806
    %v2503 = vunpack.c.h.b16 %v806
    %v2504 = vunpack.c.l.b16 %v807
    %v2505 = vunpack.c.h.b16 %v807
    %v2506 = vunpack.c.l.b16 %v808
    %v2507 = vunpack.c.h.b16 %v808
    %v2508 = vunpack.c.l.b16 %v809
    %v2509 = vunpack.c.h.b16 %v809
    %v2510 = vunpack.c.l.b16 %v810
    %v2511 = vunpack.c.h.b16 %v810
    %v2512 = vunpack.c.l.b16 %v811
    %v2513 = vunpack.c.h.b16 %v811
    %v2514 = vunpack.c.l.b16 %v812
    %v2515 = vunpack.c.h.b16 %v812
    %v2516 = vunpack.c.l.b16 %v813
    %v2517 = vunpack.c.h.b16 %v813
    %v2518 = vunpack.c.l.b16 %v814
    %v2519 = vunpack.c.h.b16 %v814
    %v2520 = vunpack.c.l.b16 %v815
    %v2521 = vunpack.c.h.b16 %v815
    %v2522 = vunpack.c.l.b16 %v816
    %v2523 = vunpack.c.h.b16 %v816
    %v2524 = vunpack.c.l.b16 %v817
    %v2525 = vunpack.c.h.b16 %v817
    %v2526 = vunpack.c.l.b16 %v818
    %v2527 = vunpack.c.h.b16 %v818
    %v2528 = vunpack.c.l.b16 %v819
    %v2529 = vunpack.c.h.b16 %v819
    %v2530 = vunpack.c.l.b16 %v820
    %v2531 = vunpack.c.h.b16 %v820
    %v2532 = vunpack.c.l.b16 %v821
    %v2533 = vunpack.c.h.b16 %v821
    %v2534 = vunpack.c.l.b16 %v822
    %v2535 = vunpack.c.h.b16 %v822
    %v2536 = vunpack.c.l.b16 %v823
    %v2537 = vunpack.c.h.b16 %v823
    %v2538 = vunpack.c.l.b16 %v824
    %v2539 = vunpack.c.h.b16 %v824
    %v2540 = vunpack.c.l.b16 %v825
    %v2541 = vunpack.c.h.b16 %v825
    %v2542 = vunpack.c.l.b16 %v826
    %v2543 = vunpack.c.h.b16 %v826
    %v2544 = vunpack.c.l.b16 %v827
    %v2545 = vunpack.c.h.b16 %v827
    %v2546 = vunpack.c.l.b16 %v828
    %v2547 = vunpack.c.h.b16 %v828
    %v2548 = vunpack.c.l.b16 %v829
    %v2549 = vunpack.c.h.b16 %v829
    %v2550 = vunpack.c.l.b16 %v830
    %v2551 = vunpack.c.h.b16 %v830
    %v2552 = vunpack.c.l.b16 %v831
    %v2553 = vunpack.c.h.b16 %v831
    %v2554 = vunpack.c.l.b16 %v832
    %v2555 = vunpack.c.h.b16 %v832
    %v2556 = vunpack.c.l.b16 %v833
    %v2557 = vunpack.c.h.b16 %v833
    %v2558 = vunpack.c.l.b16 %v834
    %v2559 = vunpack.c.h.b16 %v834
    %v2560 = vunpack.c.l.b16 %v835
    %v2561 = vunpack.c.h.b16 %v835
    %v2562 = vunpack.c.l.b16 %v836
    %v2563 = vunpack.c.h.b16 %v836
    %v2564 = vunpack.c.l.b16 %v837
    %v2565 = vunpack.c.h.b16 %v837
    %v2566 = vunpack.c.l.b16 %v838
    %v2567 = vunpack.c.h.b16 %v838
    %v2568 = vunpack.c.l.b16 %v839
    %v2569 = vunpack.c.h.b16 %v839
    %v2570 = vunpack.c.l.b16 %v840
    %v2571 = vunpack.c.h.b16 %v840
    %v2572 = vunpack.c.l.b16 %v841
    %v2573 = vunpack.c.h.b16 %v841
    %v2574 = vunpack.c.l.b16 %v842
    %v2575 = vunpack.c.h.b16 %v842
    %v2576 = vunpack.c.l.b16 %v843
    %v2577 = vunpack.c.h.b16 %v843
    %v2578 = vunpack.c.l.b16 %v844
    %v2579 = vunpack.c.h.b16 %v844
    %v2580 = vunpack.c.l.b16 %v845
    %v2581 = vunpack.c.h.b16 %v845
    %v2582 = vunpack.c.l.b16 %v846
    %v2583 = vunpack.c.h.b16 %v846
    %v2584 = vunpack.c.l.b16 %v847
    %v2585 = vunpack.c.h.b16 %v847
    %v2586 = vunpack.c.l.b16 %v848
    %v2587 = vunpack.c.h.b16 %v848
    %v2588 = vunpack.c.l.b16 %v849
    %v2589 = vunpack.c.h.b16 %v849
    %v2590 = vunpack.c.l.b16 %v850
    %v2591 = vunpack.c.h.b16 %v850
    %v2592 = vunpack.c.l.b16 %v851
    %v2593 = vunpack.c.h.b16 %v851
    %v2594 = vunpack.c.l.b16 %v852
    %v2595 = vunpack.c.h.b16 %v852
    %v2596 = vunpack.c.l.b16 %v853
    %v2597 = vunpack.c.h.b16 %v853
    %v2598 = vunpack.c.l.b16 %v854
    %v2599 = vunpack.c.h.b16 %v854
    %v2600 = vunpack.c.l.b16 %v855
    %v2601 = vunpack.c.h.b16 %v855
    %v2602 = vunpack.c.l.b16 %v856
    %v2603 = vunpack.c.h.b16 %v856
    %v2604 = vunpack.c.l.b16 %v857
    %v2605 = vunpack.c.h.b16 %v857
    %v2606 = vunpack.c.l.b16 %v858
    %v2607 = vunpack.c.h.b16 %v858
    %v2608 = vunpack.c.l.b16 %v859
    %v2609 = vunpack.c.h.b16 %v859
    %v2610 = vunpack.c.l.b16 %v860
    %v2611 = vunpack.c.h.b16 %v860
    %v2612 = vunpack.c.l.b16 %v861
    %v2613 = vunpack.c.h.b16 %v861
    %v2614 = vunpack.c.l.b16 %v862
    %v2615 = vunpack.c.h.b16 %v862
    %v2616 = vunpack.c.l.b16 %v863
    %v2617 = vunpack.c.h.b16 %v863
    %v2618 = vunpack.c.l.b16 %v864
    %v2619 = vunpack.c.h.b16 %v864
    %v2620 = vunpack.c.l.b16 %v865
    %v2621 = vunpack.c.h.b16 %v865
    %v2622 = vunpack.c.l.b16 %v866
    %v2623 = vunpack.c.h.b16 %v866
    %v2624 = vunpack.c.l.b16 %v867
    %v2625 = vunpack.c.h.b16 %v867
    %v2626 = vunpack.c.l.b16 %v868
    %v2627 = vunpack.c.h.b16 %v868
    %v2628 = vunpack.c.l.b16 %v869
    %v2629 = vunpack.c.h.b16 %v869
    %v2630 = vpack.c.b16 %v1484, %v1478
    %v2631 = vpack.c.b16 %v1485, %v1479
    %v2632 = vpack.c.b16 %v1486, %v1480
    %v2633 = vpack.c.b16 %v1487, %v1481
    %v2634 = vpack.c.b16 %v1488, %v1482
    %v2635 = vpack.c.b16 %v1489, %v1483
    %v2636 = vpack.c.b16 %v1496, %v1490
    %v2637 = vpack.c.b16 %v1497, %v1491
    %v2638 = vpack.c.b16 %v1498, %v1492
    %v2639 = vpack.c.b16 %v1499, %v1493
    %v2640 = vpack.c.b16 %v1500, %v1494
    %v2641 = vpack.c.b16 %v1501, %v1495
    %v2642 = vpack.c.b16 %v1508, %v1502
    %v2643 = vpack.c.b16 %v1509, %v1503
    %v2644 = vpack.c.b16 %v1510, %v1504
    %v2645 = vpack.c.b16 %v1511, %v1505
    %v2646 = vpack.c.b16 %v1512, %v1506
    %v2647 = vpack.c.b16 %v1513, %v1507
    %v2648 = vpack.c.b16 %v1520, %v1514
    %v2649 = vpack.c.b16 %v1521, %v1515
    %v2650 = vpack.c.b16 %v1522, %v1516
    %v2651 = vpack.c.b16 %v1523, %v1517
    %v2652 = vpack.c.b16 %v1524, %v1518
    %v2653 = vpack.c.b16 %v1525, %v1519
    %v2654 = vpack.c.b16 %v1532, %v1526
    %v2655 = vpack.c.b16 %v1533, %v1527
    %v2656 = vpack.c.b16 %v1534, %v1528
    %v2657 = vpack.c.b16 %v1535, %v1529
    %v2658 = vpack.c.b16 %v1536, %v1530
    %v2659 = vpack.c.b16 %v1537, %v1531
    %v2660 = vpack.c.b16 %v1544, %v1538
    %v2661 = vpack.c.b16 %v1545, %v1539
    %v2662 = vpack.c.b16 %v1546, %v1540
    %v2663 = vpack.c.b16 %v1547, %v1541
    %v2664 = vpack.c.b16 %v1548, %v1542
    %v2665 = vpack.c.b16 %v1549, %v1543
    %v2666 = vpack.c.b16 %v1556, %v1550
    %v2667 = vpack.c.b16 %v1557, %v1551
    %v2668 = vpack.c.b16 %v1558, %v1552
    %v2669 = vpack.c.b16 %v1559, %v1553
    %v2670 = vpack.c.b16 %v1560, %v1554
    %v2671 = vpack.c.b16 %v1561, %v1555
    %v2672 = vpack.c.b16 %v1568, %v1562
    %v2673 = vpack.c.b16 %v1569, %v1563
    %v2674 = vpack.c.b16 %v1570, %v1564
    %v2675 = vpack.c.b16 %v1571, %v1565
    %v2676 = vpack.c.b16 %v1572, %v1566
    %v2677 = vpack.c.b16 %v1573, %v1567
    %v2678 = vpack.c.b16 %v1580, %v1574
    %v2679 = vpack.c.b16 %v1581, %v1575
    %v2680 = vpack.c.b16 %v1582, %v1576
    %v2681 = vpack.c.b16 %v1583, %v1577
    %v2682 = vpack.c.b16 %v1584, %v1578
    %v2683 = vpack.c.b16 %v1585, %v1579
    %v2684 = vpack.c.b16 %v1592, %v1586
    %v2685 = vpack.c.b16 %v1593, %v1587
    %v2686 = vpack.c.b16 %v1594, %v1588
    %v2687 = vpack.c.b16 %v1595, %v1589
    %v2688 = vpack.c.b16 %v1596, %v1590
    %v2689 = vpack.c.b16 %v1597, %v1591
    %v2690 = vpack.c.b16 %v1604, %v1598
    %v2691 = vpack.c.b16 %v1605, %v1599
    %v2692 = vpack.c.b16 %v1606, %v1600
    %v2693 = vpack.c.b16 %v1607, %v1601
    %v2694 = vpack.c.b16 %v1608, %v1602
    %v2695 = vpack.c.b16 %v1609, %v1603
    %v2696 = vpack.c.b16 %v1616, %v1610
    %v2697 = vpack.c.b16 %v1617, %v1611
    %v2698 = vpack.c.b16 %v1618, %v1612
    %v2699 = vpack.c.b16 %v1619, %v1613
    %v2700 = vpack.c.b16 %v1620, %v1614
    %v2701 = vpack.c.b16 %v1621, %v1615
    %v2702 = vpack.c.b16 %v1628, %v1622
    %v2703 = vpack.c.b16 %v1629, %v1623
    %v2704 = vpack.c.b16 %v1630, %v1624
    %v2705 = vpack.c.b16 %v1631, %v1625
    %v2706 = vpack.c.b16 %v1632, %v1626
    %v2707 = vpack.c.b16 %v1633, %v1627
    %v2708 = vpack.c.b16 %v1640, %v1634
    %v2709 = vpack.c.b16 %v1641, %v1635
    %v2710 = vpack.c.b16 %v1642, %v1636
    %v2711 = vpack.c.b16 %v1643, %v1637
    %v2712 = vpack.c.b16 %v1644, %v1638
    %v2713 = vpack.c.b16 %v1645, %v1639
    %v2714 = vpack.c.b16 %v1652, %v1646
    %v2715 = vpack.c.b16 %v1653, %v1647
    %v2716 = vpack.c.b16 %v1654, %v1648
    %v2717 = vpack.c.b16 %v1655, %v1649
    %v2718 = vpack.c.b16 %v1656, %v1650
    %v2719 = vpack.c.b16 %v1657, %v1651
    %v2720 = vpack.c.b16 %v1664, %v1658
    %v2721 = vpack.c.b16 %v1665, %v1659
    %v2722 = vpack.c.b16 %v1666, %v1660
    %v2723 = vpack.c.b16 %v1667, %v1661
    %v2724 = vpack.c.b16 %v1668, %v1662
    %v2725 = vpack.c.b16 %v1669, %v1663
    %v2726 = vpack.c.b16 %v1676, %v1670
    %v2727 = vpack.c.b16 %v1677, %v1671
    %v2728 = vpack.c.b16 %v1678, %v1672
    %v2729 = vpack.c.b16 %v1679, %v1673
    %v2730 = vpack.c.b16 %v1680, %v1674
    %v2731 = vpack.c.b16 %v1681, %v1675
    %v2732 = vpack.c.b16 %v1688, %v1682
    %v2733 = vpack.c.b16 %v1689, %v1683
    %v2734 = vpack.c.b16 %v1690, %v1684
    %v2735 = vpack.c.b16 %v1691, %v1685
    %v2736 = vpack.c.b16 %v1692, %v1686
    %v2737 = vpack.c.b16 %v1693, %v1687
    %v2738 = vpack.c.b16 %v1700, %v1694
    %v2739 = vpack.c.b16 %v1701, %v1695
    %v2740 = vpack.c.b16 %v1702, %v1696
    %v2741 = vpack.c.b16 %v1703, %v1697
    %v2742 = vpack.c.b16 %v1704, %v1698
    %v2743 = vpack.c.b16 %v1705, %v1699
    %v2744 = vpack.c.b16 %v1712, %v1706
    %v2745 = vpack.c.b16 %v1713, %v1707
    %v2746 = vpack.c.b16 %v1714, %v1708
    %v2747 = vpack.c.b16 %v1715, %v1709
    %v2748 = vpack.c.b16 %v1716, %v1710
    %v2749 = vpack.c.b16 %v1717, %v1711
    %v2750 = vpack.c.b16 %v1724, %v1718
    %v2751 = vpack.c.b16 %v1725, %v1719
    %v2752 = vpack.c.b16 %v1726, %v1720
    %v2753 = vpack.c.b16 %v1727, %v1721
    %v2754 = vpack.c.b16 %v1728, %v1722
    %v2755 = vpack.c.b16 %v1729, %v1723
    %v2756 = vpack.c.b16 %v1736, %v1730
    %v2757 = vpack.c.b16 %v1737, %v1731
    %v2758 = vpack.c.b16 %v1738, %v1732
    %v2759 = vpack.c.b16 %v1739, %v1733
    %v2760 = vpack.c.b16 %v1740, %v1734
    %v2761 = vpack.c.b16 %v1741, %v1735
    %v2762 = vpack.c.b16 %v1748, %v1742
    %v2763 = vpack.c.b16 %v1749, %v1743
    %v2764 = vpack.c.b16 %v1750, %v1744
    %v2765 = vpack.c.b16 %v1751, %v1745
    %v2766 = vpack.c.b16 %v1752, %v1746
    %v2767 = vpack.c.b16 %v1753, %v1747
    %v2768 = vpack.c.b16 %v1760, %v1754
    %v2769 = vpack.c.b16 %v1761, %v1755
    %v2770 = vpack.c.b16 %v1762, %v1756
    %v2771 = vpack.c.b16 %v1763, %v1757
    %v2772 = vpack.c.b16 %v1764, %v1758
    %v2773 = vpack.c.b16 %v1765, %v1759
    %v2774 = vpack.c.b16 %v1772, %v1766
    %v2775 = vpack.c.b16 %v1773, %v1767
    %v2776 = vpack.c.b16 %v1774, %v1768
    %v2777 = vpack.c.b16 %v1775, %v1769
    %v2778 = vpack.c.b16 %v1776, %v1770
    %v2779 = vpack.c.b16 %v1777, %v1771
    %v2780 = vpack.c.b16 %v1784, %v1778
    %v2781 = vpack.c.b16 %v1785, %v1779
    %v2782 = vpack.c.b16 %v1786, %v1780
    %v2783 = vpack.c.b16 %v1787, %v1781
    %v2784 = vpack.c.b16 %v1788, %v1782
    %v2785 = vpack.c.b16 %v1789, %v1783
    %v2786 = vpack.c.b16 %v1796, %v1790
    %v2787 = vpack.c.b16 %v1797, %v1791
    %v2788 = vpack.c.b16 %v1798, %v1792
    %v2789 = vpack.c.b16 %v1799, %v1793
    %v2790 = vpack.c.b16 %v1800, %v1794
    %v2791 = vpack.c.b16 %v1801, %v1795
    %v2792 = vpack.c.b16 %v1808, %v1802
    %v2793 = vpack.c.b16 %v1809, %v1803
    %v2794 = vpack.c.b16 %v1810, %v1804
    %v2795 = vpack.c.b16 %v1811, %v1805
    %v2796 = vpack.c.b16 %v1812, %v1806
    %v2797 = vpack.c.b16 %v1813, %v1807
    %v2798 = vpack.c.b16 %v1820, %v1814
    %v2799 = vpack.c.b16 %v1821, %v1815
    %v2800 = vpack.c.b16 %v1822, %v1816
    %v2801 = vpack.c.b16 %v1823, %v1817
    %v2802 = vpack.c.b16 %v1824, %v1818
    %v2803 = vpack.c.b16 %v1825, %v1819
    %v2804 = vpack.c.b16 %v1832, %v1826
    %v2805 = vpack.c.b16 %v1833, %v1827
    %v2806 = vpack.c.b16 %v1834, %v1828
    %v2807 = vpack.c.b16 %v1835, %v1829
    %v2808 = vpack.c.b16 %v1836, %v1830
    %v2809 = vpack.c.b16 %v1837, %v1831
    %v2810 = vpack.c.b16 %v1844, %v1838
    %v2811 = vpack.c.b16 %v1845, %v1839
    %v2812 = vpack.c.b16 %v1846, %v1840
    %v2813 = vpack.c.b16 %v1847, %v1841
    %v2814 = vpack.c.b16 %v1848, %v1842
    %v2815 = vpack.c.b16 %v1849, %v1843
    %v2816 = vpack.c.b16 %v1856, %v1850
    %v2817 = vpack.c.b16 %v1857, %v1851
    %v2818 = vpack.c.b16 %v1858, %v1852
    %v2819 = vpack.c.b16 %v1859, %v1853
    %v2820 = vpack.c.b16 %v1860, %v1854
    %v2821 = vpack.c.b16 %v1861, %v1855
    %v2822 = vpack.c.b16 %v1868, %v1862
    %v2823 = vpack.c.b16 %v1869, %v1863
    %v2824 = vpack.c.b16 %v1870, %v1864
    %v2825 = vpack.c.b16 %v1871, %v1865
    %v2826 = vpack.c.b16 %v1872, %v1866
    %v2827 = vpack.c.b16 %v1873, %v1867
    %v2828 = vpack.c.b16 %v1880, %v1874
    %v2829 = vpack.c.b16 %v1881, %v1875
    %v2830 = vpack.c.b16 %v1882, %v1876
    %v2831 = vpack.c.b16 %v1883, %v1877
    %v2832 = vpack.c.b16 %v1884, %v1878
    %v2833 = vpack.c.b16 %v1885, %v1879
    %v2834 = vpack.c.b16 %v1892, %v1886
    %v2835 = vpack.c.b16 %v1893, %v1887
    %v2836 = vpack.c.b16 %v1894, %v1888
    %v2837 = vpack.c.b16 %v1895, %v1889
    %v2838 = vpack.c.b16 %v1896, %v1890
    %v2839 = vpack.c.b16 %v1897, %v1891
    %v2840 = vpack.c.b16 %v1904, %v1898
    %v2841 = vpack.c.b16 %v1905, %v1899
    %v2842 = vpack.c.b16 %v1906, %v1900
    %v2843 = vpack.c.b16 %v1907, %v1901
    %v2844 = vpack.c.b16 %v1908, %v1902
    %v2845 = vpack.c.b16 %v1909, %v1903
    %v2846 = vpack.c.b16 %v1916, %v1910
    %v2847 = vpack.c.b16 %v1917, %v1911
    %v2848 = vpack.c.b16 %v1918, %v1912
    %v2849 = vpack.c.b16 %v1919, %v1913
    %v2850 = vpack.c.b16 %v1920, %v1914
    %v2851 = vpack.c.b16 %v1921, %v1915
    %v2852 = vpack.c.b16 %v1928, %v1922
    %v2853 = vpack.c.b16 %v1929, %v1923
    %v2854 = vpack.c.b16 %v1930, %v1924
    %v2855 = vpack.c.b16 %v1931, %v1925
    %v2856 = vpack.c.b16 %v1932, %v1926
    %v2857 = vpack.c.b16 %v1933, %v1927
    %v2858 = vpack.c.b16 %v1940, %v1934
    %v2859 = vpack.c.b16 %v1941, %v1935
    %v2860 = vpack.c.b16 %v1942, %v1936
    %v2861 = vpack.c.b16 %v1943, %v1937
    %v2862 = vpack.c.b16 %v1944, %v1938
    %v2863 = vpack.c.b16 %v1945, %v1939
    %v2864 = vpack.c.b16 %v1952, %v1946
    %v2865 = vpack.c.b16 %v1953, %v1947
    %v2866 = vpack.c.b16 %v1954, %v1948
    %v2867 = vpack.c.b16 %v1955, %v1949
    %v2868 = vpack.c.b16 %v1956, %v1950
    %v2869 = vpack.c.b16 %v1957, %v1951
    %v2870 = vpack.c.b16 %v1964, %v1958
    %v2871 = vpack.c.b16 %v1965, %v1959
    %v2872 = vpack.c.b16 %v1966, %v1960
    %v2873 = vpack.c.b16 %v1967, %v1961
    %v2874 = vpack.c.b16 %v1968, %v1962
    %v2875 = vpack.c.b16 %v1969, %v1963
    %v2876 = vpack.c.b16 %v1976, %v1970
    %v2877 = vpack.c.b16 %v1977, %v1971
    %v2878 = vpack.c.b16 %v1978, %v1972
    %v2879 = vpack.c.b16 %v1979, %v1973
    %v2880 = vpack.c.b16 %v1980, %v1974
    %v2881 = vpack.c.b16 %v1981, %v1975
    %v2882 = vpack.c.b16 %v1988, %v1982
    %v2883 = vpack.c.b16 %v1989, %v1983
    %v2884 = vpack.c.b16 %v1990, %v1984
    %v2885 = vpack.c.b16 %v1991, %v1985
    %v2886 = vpack.c.b16 %v1992, %v1986
    %v2887 = vpack.c.b16 %v1993, %v1987
    %v2888 = vpack.c.b16 %v2000, %v1994
    %v2889 = vpack.c.b16 %v2001, %v1995
    %v2890 = vpack.c.b16 %v2002, %v1996
    %v2891 = vpack.c.b16 %v2003, %v1997
    %v2892 = vpack.c.b16 %v2004, %v1998
    %v2893 = vpack.c.b16 %v2005, %v1999
    %v2894 = vpack.c.b16 %v2012, %v2006
    %v2895 = vpack.c.b16 %v2013, %v2007
    %v2896 = vpack.c.b16 %v2014, %v2008
    %v2897 = vpack.c.b16 %v2015, %v2009
    %v2898 = vpack.c.b16 %v2016, %v2010
    %v2899 = vpack.c.b16 %v2017, %v2011
    %v2900 = vpack.c.b16 %v2024, %v2018
    %v2901 = vpack.c.b16 %v2025, %v2019
    %v2902 = vpack.c.b16 %v2026, %v2020
    %v2903 = vpack.c.b16 %v2027, %v2021
    %v2904 = vpack.c.b16 %v2028, %v2022
    %v2905 = vpack.c.b16 %v2029, %v2023
    %v2906 = vpack.c.b16 %v2036, %v2030
    %v2907 = vpack.c.b16 %v2037, %v2031
    %v2908 = vpack.c.b16 %v2038, %v2032
    %v2909 = vpack.c.b16 %v2039, %v2033
    %v2910 = vpack.c.b16 %v2040, %v2034
    %v2911 = vpack.c.b16 %v2041, %v2035
    %v2912 = vpack.c.b16 %v2048, %v2042
    %v2913 = vpack.c.b16 %v2049, %v2043
    %v2914 = vpack.c.b16 %v2050, %v2044
    %v2915 = vpack.c.b16 %v2051, %v2045
    %v2916 = vpack.c.b16 %v2052, %v2046
    %v2917 = vpack.c.b16 %v2053, %v2047
    %v2918 = vpack.c.b16 %v2060, %v2054
    %v2919 = vpack.c.b16 %v2061, %v2055
    %v2920 = vpack.c.b16 %v2062, %v2056
    %v2921 = vpack.c.b16 %v2063, %v2057
    %v2922 = vpack.c.b16 %v2064, %v2058
    %v2923 = vpack.c.b16 %v2065, %v2059
    %v2924 = vpack.c.b16 %v2072, %v2066
    %v2925 = vpack.c.b16 %v2073, %v2067
    %v2926 = vpack.c.b16 %v2074, %v2068
    %v2927 = vpack.c.b16 %v2075, %v2069
    %v2928 = vpack.c.b16 %v2076, %v2070
    %v2929 = vpack.c.b16 %v2077, %v2071
    %v2930 = vpack.c.b16 %v2084, %v2078
    %v2931 = vpack.c.b16 %v2085, %v2079
    %v2932 = vpack.c.b16 %v2086, %v2080
    %v2933 = vpack.c.b16 %v2087, %v2081
    %v2934 = vpack.c.b16 %v2088, %v2082
    %v2935 = vpack.c.b16 %v2089, %v2083
    %v2936 = vpack.c.b16 %v2096, %v2090
    %v2937 = vpack.c.b16 %v2097, %v2091
    %v2938 = vpack.c.b16 %v2098, %v2092
    %v2939 = vpack.c.b16 %v2099, %v2093
    %v2940 = vpack.c.b16 %v2100, %v2094
    %v2941 = vpack.c.b16 %v2101, %v2095
    %v2942 = vpack.c.b16 %v2108, %v2102
    %v2943 = vpack.c.b16 %v2109, %v2103
    %v2944 = vpack.c.b16 %v2110, %v2104
    %v2945 = vpack.c.b16 %v2111, %v2105
    %v2946 = vpack.c.b16 %v2112, %v2106
    %v2947 = vpack.c.b16 %v2113, %v2107
    %v2948 = vpack.c.b16 %v2120, %v2114
    %v2949 = vpack.c.b16 %v2121, %v2115
    %v2950 = vpack.c.b16 %v2122, %v2116
    %v2951 = vpack.c.b16 %v2123, %v2117
    %v2952 = vpack.c.b16 %v2124, %v2118
    %v2953 = vpack.c.b16 %v2125, %v2119
    %v2954 = vpack.c.b16 %v2132, %v2126
    %v2955 = vpack.c.b16 %v2133, %v2127
    %v2956 = vpack.c.b16 %v2134, %v2128
    %v2957 = vpack.c.b16 %v2135, %v2129
    %v2958 = vpack.c.b16 %v2136, %v2130
    %v2959 = vpack.c.b16 %v2137, %v2131
    %v2960 = vpack.c.b16 %v2144, %v2138
    %v2961 = vpack.c.b16 %v2145, %v2139
    %v2962 = vpack.c.b16 %v2146, %v2140
    %v2963 = vpack.c.b16 %v2147, %v2141
    %v2964 = vpack.c.b16 %v2148, %v2142
    %v2965 = vpack.c.b16 %v2149, %v2143
    %v2966 = vpack.c.b16 %v2156, %v2150
    %v2967 = vpack.c.b16 %v2157, %v2151
    %v2968 = vpack.c.b16 %v2158, %v2152
    %v2969 = vpack.c.b16 %v2159, %v2153
    %v2970 = vpack.c.b16 %v2160, %v2154
    %v2971 = vpack.c.b16 %v2161, %v2155
    %v2972 = vpack.c.b16 %v2168, %v2162
    %v2973 = vpack.c.b16 %v2169, %v2163
    %v2974 = vpack.c.b16 %v2170, %v2164
    %v2975 = vpack.c.b16 %v2171, %v2165
    %v2976 = vpack.c.b16 %v2172, %v2166
    %v2977 = vpack.c.b16 %v2173, %v2167
    %v2978 = vpack.c.b16 %v2180, %v2174
    %v2979 = vpack.c.b16 %v2181, %v2175
    %v2980 = vpack.c.b16 %v2182, %v2176
    %v2981 = vpack.c.b16 %v2183, %v2177
    %v2982 = vpack.c.b16 %v2184, %v2178
    %v2983 = vpack.c.b16 %v2185, %v2179
    %v2984 = vpack.c.b16 %v2192, %v2186
    %v2985 = vpack.c.b16 %v2193, %v2187
    %v2986 = vpack.c.b16 %v2194, %v2188
    %v2987 = vpack.c.b16 %v2195, %v2189
    %v2988 = vpack.c.b16 %v2196, %v2190
    %v2989 = vpack.c.b16 %v2197, %v2191
    %v2990 = vpack.c.b16 %v2204, %v2198
    %v2991 = vpack.c.b16 %v2205, %v2199
    %v2992 = vpack.c.b16 %v2206, %v2200
    %v2993 = vpack.c.b16 %v2207, %v2201
    %v2994 = vpack.c.b16 %v2208, %v2202
    %v2995 = vpack.c.b16 %v2209, %v2203
    %v2996 = vpack.c.b16 %v2216, %v2210
    %v2997 = vpack.c.b16 %v2217, %v2211
    %v2998 = vpack.c.b16 %v2218, %v2212
    %v2999 = vpack.c.b16 %v2219, %v2213
    %v3000 = vpack.c.b16 %v2220, %v2214
    %v3001 = vpack.c.b16 %v2221, %v2215
    %v3002 = vpack.c.b16 %v2228, %v2222
    %v3003 = vpack.c.b16 %v2229, %v2223
    %v3004 = vpack.c.b16 %v2230, %v2224
    %v3005 = vpack.c.b16 %v2231, %v2225
    %v3006 = vpack.c.b16 %v2232, %v2226
    %v3007 = vpack.c.b16 %v2233, %v2227
    %v3008 = vpack.c.b16 %v2240, %v2234
    %v3009 = vpack.c.b16 %v2241, %v2235
    %v3010 = vpack.c.b16 %v2242, %v2236
    %v3011 = vpack.c.b16 %v2243, %v2237
    %v3012 = vpack.c.b16 %v2244, %v2238
    %v3013 = vpack.c.b16 %v2245, %v2239
    %v3014 = vpack.c.b16 %v2252, %v2246
    %v3015 = vpack.c.b16 %v2253, %v2247
    %v3016 = vpack.c.b16 %v2254, %v2248
    %v3017 = vpack.c.b16 %v2255, %v2249
    %v3018 = vpack.c.b16 %v2256, %v2250
    %v3019 = vpack.c.b16 %v2257, %v2251
    %v3020 = vpack.c.b16 %v2264, %v2258
    %v3021 = vpack.c.b16 %v2265, %v2259
    %v3022 = vpack.c.b16 %v2266, %v2260
    %v3023 = vpack.c.b16 %v2267, %v2261
    %v3024 = vpack.c.b16 %v2268, %v2262
    %v3025 = vpack.c.b16 %v2269, %v2263
    %v3026 = vpack.c.b16 %v2276, %v2270
    %v3027 = vpack.c.b16 %v2277, %v2271
    %v3028 = vpack.c.b16 %v2278, %v2272
    %v3029 = vpack.c.b16 %v2279, %v2273
    %v3030 = vpack.c.b16 %v2280, %v2274
    %v3031 = vpack.c.b16 %v2281, %v2275
    %v3032 = vpack.c.b16 %v2288, %v2282
    %v3033 = vpack.c.b16 %v2289, %v2283
    %v3034 = vpack.c.b16 %v2290, %v2284
    %v3035 = vpack.c.b16 %v2291, %v2285
    %v3036 = vpack.c.b16 %v2292, %v2286
    %v3037 = vpack.c.b16 %v2293, %v2287
    %v3038 = vpack.c.b16 %v2300, %v2294
    %v3039 = vpack.c.b16 %v2301, %v2295
    %v3040 = vpack.c.b16 %v2302, %v2296
    %v3041 = vpack.c.b16 %v2303, %v2297
    %v3042 = vpack.c.b16 %v2304, %v2298
    %v3043 = vpack.c.b16 %v2305, %v2299
    %v3044 = vpack.c.b16 %v2312, %v2306
    %v3045 = vpack.c.b16 %v2313, %v2307
    %v3046 = vpack.c.b16 %v2314, %v2308
    %v3047 = vpack.c.b16 %v2315, %v2309
    %v3048 = vpack.c.b16 %v2316, %v2310
    %v3049 = vpack.c.b16 %v2317, %v2311
    %v3050 = vpack.c.b16 %v2324, %v2318
    %v3051 = vpack.c.b16 %v2325, %v2319
    %v3052 = vpack.c.b16 %v2326, %v2320
    %v3053 = vpack.c.b16 %v2327, %v2321
    %v3054 = vpack.c.b16 %v2328, %v2322
    %v3055 = vpack.c.b16 %v2329, %v2323
    %v3056 = vpack.c.b16 %v2336, %v2330
    %v3057 = vpack.c.b16 %v2337, %v2331
    %v3058 = vpack.c.b16 %v2338, %v2332
    %v3059 = vpack.c.b16 %v2339, %v2333
    %v3060 = vpack.c.b16 %v2340, %v2334
    %v3061 = vpack.c.b16 %v2341, %v2335
    %v3062 = vpack.c.b16 %v2348, %v2342
    %v3063 = vpack.c.b16 %v2349, %v2343
    %v3064 = vpack.c.b16 %v2350, %v2344
    %v3065 = vpack.c.b16 %v2351, %v2345
    %v3066 = vpack.c.b16 %v2352, %v2346
    %v3067 = vpack.c.b16 %v2353, %v2347
    %v3068 = vpack.c.b16 %v2360, %v2354
    %v3069 = vpack.c.b16 %v2361, %v2355
    %v3070 = vpack.c.b16 %v2362, %v2356
    %v3071 = vpack.c.b16 %v2363, %v2357
    %v3072 = vpack.c.b16 %v2364, %v2358
    %v3073 = vpack.c.b16 %v2365, %v2359
    %v3074 = vpack.c.b16 %v2372, %v2366
    %v3075 = vpack.c.b16 %v2373, %v2367
    %v3076 = vpack.c.b16 %v2374, %v2368
    %v3077 = vpack.c.b16 %v2375, %v2369
    %v3078 = vpack.c.b16 %v2376, %v2370
    %v3079 = vpack.c.b16 %v2377, %v2371
    %v3080 = vpack.c.b16 %v2384, %v2378
    %v3081 = vpack.c.b16 %v2385, %v2379
    %v3082 = vpack.c.b16 %v2386, %v2380
    %v3083 = vpack.c.b16 %v2387, %v2381
    %v3084 = vpack.c.b16 %v2388, %v2382
    %v3085 = vpack.c.b16 %v2389, %v2383
    %v3086 = vpack.c.b16 %v2396, %v2390
    %v3087 = vpack.c.b16 %v2397, %v2391
    %v3088 = vpack.c.b16 %v2398, %v2392
    %v3089 = vpack.c.b16 %v2399, %v2393
    %v3090 = vpack.c.b16 %v2400, %v2394
    %v3091 = vpack.c.b16 %v2401, %v2395
    %v3092 = vpack.c.b16 %v2408, %v2402
    %v3093 = vpack.c.b16 %v2409, %v2403
    %v3094 = vpack.c.b16 %v2410, %v2404
    %v3095 = vpack.c.b16 %v2411, %v2405
    %v3096 = vpack.c.b16 %v2412, %v2406
    %v3097 = vpack.c.b16 %v2413, %v2407
    %v3098 = vpack.c.b16 %v2420, %v2414
    %v3099 = vpack.c.b16 %v2421, %v2415
    %v3100 = vpack.c.b16 %v2422, %v2416
    %v3101 = vpack.c.b16 %v2423, %v2417
    %v3102 = vpack.c.b16 %v2424, %v2418
    %v3103 = vpack.c.b16 %v2425, %v2419
    %v3104 = vpack.c.b16 %v2432, %v2426
    %v3105 = vpack.c.b16 %v2433, %v2427
    %v3106 = vpack.c.b16 %v2434, %v2428
    %v3107 = vpack.c.b16 %v2435, %v2429
    %v3108 = vpack.c.b16 %v2436, %v2430
    %v3109 = vpack.c.b16 %v2437, %v2431
    %v3110 = vpack.c.b16 %v2444, %v2438
    %v3111 = vpack.c.b16 %v2445, %v2439
    %v3112 = vpack.c.b16 %v2446, %v2440
    %v3113 = vpack.c.b16 %v2447, %v2441
    %v3114 = vpack.c.b16 %v2448, %v2442
    %v3115 = vpack.c.b16 %v2449, %v2443
    %v3116 = vpack.c.b16 %v2456, %v2450
    %v3117 = vpack.c.b16 %v2457, %v2451
    %v3118 = vpack.c.b16 %v2458, %v2452
    %v3119 = vpack.c.b16 %v2459, %v2453
    %v3120 = vpack.c.b16 %v2460, %v2454
    %v3121 = vpack.c.b16 %v2461, %v2455
    %v3122 = vpack.c.b16 %v2468, %v2462
    %v3123 = vpack.c.b16 %v2469, %v2463
    %v3124 = vpack.c.b16 %v2470, %v2464
    %v3125 = vpack.c.b16 %v2471, %v2465
    %v3126 = vpack.c.b16 %v2472, %v2466
    %v3127 = vpack.c.b16 %v2473, %v2467
    %v3128 = vpack.c.b16 %v2480, %v2474
    %v3129 = vpack.c.b16 %v2481, %v2475
    %v3130 = vpack.c.b16 %v2482, %v2476
    %v3131 = vpack.c.b16 %v2483, %v2477
    %v3132 = vpack.c.b16 %v2484, %v2478
    %v3133 = vpack.c.b16 %v2485, %v2479
    %v3134 = vpack.c.b16 %v2492, %v2486
    %v3135 = vpack.c.b16 %v2493, %v2487
    %v3136 = vpack.c.b16 %v2494, %v2488
    %v3137 = vpack.c.b16 %v2495, %v2489
    %v3138 = vpack.c.b16 %v2496, %v2490
    %v3139 = vpack.c.b16 %v2497, %v2491
    %v3140 = vpack.c.b16 %v2504, %v2498
    %v3141 = vpack.c.b16 %v2505, %v2499
    %v3142 = vpack.c.b16 %v2506, %v2500
    %v3143 = vpack.c.b16 %v2507, %v2501
    %v3144 = vpack.c.b16 %v2508, %v2502
    %v3145 = vpack.c.b16 %v2509, %v2503
    %v3146 = vpack.c.b16 %v2516, %v2510
    %v3147 = vpack.c.b16 %v2517, %v2511
    %v3148 = vpack.c.b16 %v2518, %v2512
    %v3149 = vpack.c.b16 %v2519, %v2513
    %v3150 = vpack.c.b16 %v2520, %v2514
    %v3151 = vpack.c.b16 %v2521, %v2515
    %v3152 = vpack.c.b16 %v2528, %v2522
    %v3153 = vpack.c.b16 %v2529, %v2523
    %v3154 = vpack.c.b16 %v2530, %v2524
    %v3155 = vpack.c.b16 %v2531, %v2525
    %v3156 = vpack.c.b16 %v2532, %v2526
    %v3157 = vpack.c.b16 %v2533, %v2527
    %v3158 = vpack.c.b16 %v2540, %v2534
    %v3159 = vpack.c.b16 %v2541, %v2535
    %v3160 = vpack.c.b16 %v2542, %v2536
    %v3161 = vpack.c.b16 %v2543, %v2537
    %v3162 = vpack.c.b16 %v2544, %v2538
    %v3163 = vpack.c.b16 %v2545, %v2539
    %v3164 = vpack.c.b16 %v2552, %v2546
    %v3165 = vpack.c.b16 %v2553, %v2547
    %v3166 = vpack.c.b16 %v2554, %v2548
    %v3167 = vpack.c.b16 %v2555, %v2549
    %v3168 = vpack.c.b16 %v2556, %v2550
    %v3169 = vpack.c.b16 %v2557, %v2551
    %v3170 = vpack.c.b16 %v2564, %v2558
    %v3171 = vpack.c.b16 %v2565, %v2559
    %v3172 = vpack.c.b16 %v2566, %v2560
    %v3173 = vpack.c.b16 %v2567, %v2561
    %v3174 = vpack.c.b16 %v2568, %v2562
    %v3175 = vpack.c.b16 %v2569, %v2563
    %v3176 = vpack.c.b16 %v2576, %v2570
    %v3177 = vpack.c.b16 %v2577, %v2571
    %v3178 = vpack.c.b16 %v2578, %v2572
    %v3179 = vpack.c.b16 %v2579, %v2573
    %v3180 = vpack.c.b16 %v2580, %v2574
    %v3181 = vpack.c.b16 %v2581, %v2575
    %v3182 = vpack.c.b16 %v2588, %v2582
    %v3183 = vpack.c.b16 %v2589, %v2583
    %v3184 = vpack.c.b16 %v2590, %v2584
    %v3185 = vpack.c.b16 %v2591, %v2585
    %v3186 = vpack.c.b16 %v2592, %v2586
    %v3187 = vpack.c.b16 %v2593, %v2587
    %v3188 = vpack.c.b16 %v2600, %v2594
    %v3189 = vpack.c.b16 %v2601, %v2595
    %v3190 = vpack.c.b16 %v2602, %v2596
    %v3191 = vpack.c.b16 %v2603, %v2597
    %v3192 = vpack.c.b16 %v2604, %v2598
    %v3193 = vpack.c.b16 %v2605, %v2599
    %v3194 = vpack.c.b16 %v2612, %v2606
    %v3195 = vpack.c.b16 %v2613, %v2607
    %v3196 = vpack.c.b16 %v2614, %v2608
    %v3197 = vpack.c.b16 %v2615, %v2609
    %v3198 = vpack.c.b16 %v2616, %v2610
    %v3199 = vpack.c.b16 %v2617, %v2611
    %v3200 = vpack.c.b16 %v2624, %v2618
    %v3201 = vpack.c.b16 %v2625, %v2619
    %v3202 = vpack.c.b16 %v2626, %v2620
    %v3203 = vpack.c.b16 %v2627, %v2621
    %v3204 = vpack.c.b16 %v2628, %v2622
    %v3205 = vpack.c.b16 %v2629, %v2623
    %3782 = vmatprep.subr.bf16.mxu0 %v2673
    %3783 = vmatpush1.bf16.msra.mxu0 %v2672
    %3784 = vmatprep.subr.bf16.mxu0 %v2667
    %3785 = vmatpush1.bf16.msra.mxu0 %v2666
    %3786 = vmatprep.subr.bf16.mxu0 %v2661
    %3787 = vmatpush1.bf16.msra.mxu0 %v2660
    %3788 = vmatprep.subr.bf16.mxu0 %v2655
    %3789 = vmatpush1.bf16.msra.mxu0 %v2654
    %3790 = vmatprep.subr.bf16.mxu0 %v2649
    %3791 = vmatpush1.bf16.msra.mxu0 %v2648
    %3792 = vmatprep.subr.bf16.mxu0 %v2643
    %3793 = vmatpush1.bf16.msra.mxu0 %v2642
    %3794 = vmatprep.subr.bf16.mxu0 %v2637
    %3795 = vmatpush1.bf16.msra.mxu0 %v2636
    %3796 = vmatprep.subr.bf16.mxu0 %v2631
    %3797 = vmatpush1.bf16.msra.mxu0 %v2630
    %3798 = vmatprep.subr.bf16.mxu0 %v2721
    %3799 = vmatpush2.bf16.msra.mxu0 %v2720
    %3800 = vmatprep.subr.bf16.mxu0 %v2715
    %3801 = vmatpush2.bf16.msra.mxu0 %v2714
    %3802 = vmatprep.subr.bf16.mxu0 %v2709
    %3803 = vmatpush2.bf16.msra.mxu0 %v2708
    %3804 = vmatprep.subr.bf16.mxu0 %v2703
    %3805 = vmatpush2.bf16.msra.mxu0 %v2702
    %3806 = vmatprep.subr.bf16.mxu0 %v2697
    %3807 = vmatpush2.bf16.msra.mxu0 %v2696
    %3808 = vmatprep.subr.bf16.mxu0 %v2691
    %3809 = vmatpush2.bf16.msra.mxu0 %v2690
    %3810 = vmatprep.subr.bf16.mxu0 %v2685
    %3811 = vmatpush2.bf16.msra.mxu0 %v2684
    %3812 = vmatprep.subr.bf16.mxu0 %v2679
    %3813 = vmatpush2.bf16.msra.mxu0 %v2678
    %3814 = vmatprep.mubr.bf16.mxu0 %v283
    %3815 = vmatmul.mubr.bf16.gmra.mxu0 %v282
    %v3816 = vpop.f32.mrf.mxu0
    %v3817 = vadd.f32 %v875, %v3816
    %v3818 = vpop.f32.mrf.mxu0
    %v3819 = vadd.f32 %v879, %v3818
    %v3820 = vpop.f32.mrf.mxu0
    %v3821 = vpop.f32.mrf.mxu0
    %3822 = vdwg.mxu0
    %3823 = vmatprep.subr.bf16.mxu0 %v2769
    %3824 = vmatpush1.bf16.msra.mxu0 %v2768
    %3825 = vmatprep.subr.bf16.mxu0 %v2763
    %3826 = vmatpush1.bf16.msra.mxu0 %v2762
    %3827 = vmatprep.subr.bf16.mxu0 %v2757
    %3828 = vmatpush1.bf16.msra.mxu0 %v2756
    %3829 = vmatprep.subr.bf16.mxu0 %v2751
    %3830 = vmatpush1.bf16.msra.mxu0 %v2750
    %3831 = vmatprep.subr.bf16.mxu0 %v2745
    %3832 = vmatpush1.bf16.msra.mxu0 %v2744
    %3833 = vmatprep.subr.bf16.mxu0 %v2739
    %3834 = vmatpush1.bf16.msra.mxu0 %v2738
    %3835 = vmatprep.subr.bf16.mxu0 %v2733
    %3836 = vmatpush1.bf16.msra.mxu0 %v2732
    %3837 = vmatprep.subr.bf16.mxu0 %v2727
    %3838 = vmatpush1.bf16.msra.mxu0 %v2726
    %3839 = vmatprep.subr.bf16.mxu0 %v2817
    %3840 = vmatpush2.bf16.msra.mxu0 %v2816
    %3841 = vmatprep.subr.bf16.mxu0 %v2811
    %3842 = vmatpush2.bf16.msra.mxu0 %v2810
    %3843 = vmatprep.subr.bf16.mxu0 %v2805
    %3844 = vmatpush2.bf16.msra.mxu0 %v2804
    %3845 = vmatprep.subr.bf16.mxu0 %v2799
    %3846 = vmatpush2.bf16.msra.mxu0 %v2798
    %3847 = vmatprep.subr.bf16.mxu0 %v2793
    %3848 = vmatpush2.bf16.msra.mxu0 %v2792
    %3849 = vmatprep.subr.bf16.mxu0 %v2787
    %3850 = vmatpush2.bf16.msra.mxu0 %v2786
    %3851 = vmatprep.subr.bf16.mxu0 %v2781
    %3852 = vmatpush2.bf16.msra.mxu0 %v2780
    %3853 = vmatprep.subr.bf16.mxu0 %v2775
    %3854 = vmatpush2.bf16.msra.mxu0 %v2774
    %3855 = vmatprep.mubr.bf16.mxu0 %v285
    %3856 = vmatmul.mubr.bf16.gmra.mxu0 %v284
    %v3857 = vpop.f32.mrf.mxu0
    %v3858 = vadd.f32 %v3817, %v3857
    %v3859 = vpop.f32.mrf.mxu0
    %v3860 = vadd.f32 %v3819, %v3859
    %v3861 = vpop.f32.mrf.mxu0
    %v3862 = vpop.f32.mrf.mxu0
    %3863 = vdwg.mxu0
    %3864 = vmatprep.subr.bf16.mxu0 %v2865
    %3865 = vmatpush1.bf16.msra.mxu0 %v2864
    %3866 = vmatprep.subr.bf16.mxu0 %v2859
    %3867 = vmatpush1.bf16.msra.mxu0 %v2858
    %3868 = vmatprep.subr.bf16.mxu0 %v2853
    %3869 = vmatpush1.bf16.msra.mxu0 %v2852
    %3870 = vmatprep.subr.bf16.mxu0 %v2847
    %3871 = vmatpush1.bf16.msra.mxu0 %v2846
    %3872 = vmatprep.subr.bf16.mxu0 %v2841
    %3873 = vmatpush1.bf16.msra.mxu0 %v2840
    %3874 = vmatprep.subr.bf16.mxu0 %v2835
    %3875 = vmatpush1.bf16.msra.mxu0 %v2834
    %3876 = vmatprep.subr.bf16.mxu0 %v2829
    %3877 = vmatpush1.bf16.msra.mxu0 %v2828
    %3878 = vmatprep.subr.bf16.mxu0 %v2823
    %3879 = vmatpush1.bf16.msra.mxu0 %v2822
    %3880 = vmatprep.subr.bf16.mxu0 %v2913
    %3881 = vmatpush2.bf16.msra.mxu0 %v2912
    %3882 = vmatprep.subr.bf16.mxu0 %v2907
    %3883 = vmatpush2.bf16.msra.mxu0 %v2906
    %3884 = vmatprep.subr.bf16.mxu0 %v2901
    %3885 = vmatpush2.bf16.msra.mxu0 %v2900
    %3886 = vmatprep.subr.bf16.mxu0 %v2895
    %3887 = vmatpush2.bf16.msra.mxu0 %v2894
    %3888 = vmatprep.subr.bf16.mxu0 %v2889
    %3889 = vmatpush2.bf16.msra.mxu0 %v2888
    %3890 = vmatprep.subr.bf16.mxu0 %v2883
    %3891 = vmatpush2.bf16.msra.mxu0 %v2882
    %3892 = vmatprep.subr.bf16.mxu0 %v2877
    %3893 = vmatpush2.bf16.msra.mxu0 %v2876
    %3894 = vmatprep.subr.bf16.mxu0 %v2871
    %3895 = vmatpush2.bf16.msra.mxu0 %v2870
    %3896 = vmatprep.mubr.bf16.mxu0 %v287
    %3897 = vmatmul.mubr.bf16.gmra.mxu0 %v286
    %v3898 = vpop.f32.mrf.mxu0
    %v3899 = vadd.f32 %v3858, %v3898
    %v3900 = vpop.f32.mrf.mxu0
    %v3901 = vadd.f32 %v3860, %v3900
    %v3902 = vpop.f32.mrf.mxu0
    %v3903 = vpop.f32.mrf.mxu0
    %3904 = vdwg.mxu0
    %3905 = vmatprep.subr.bf16.mxu0 %v2961
    %3906 = vmatpush1.bf16.msra.mxu0 %v2960
    %3907 = vmatprep.subr.bf16.mxu0 %v2955
    %3908 = vmatpush1.bf16.msra.mxu0 %v2954
    %3909 = vmatprep.subr.bf16.mxu0 %v2949
    %3910 = vmatpush1.bf16.msra.mxu0 %v2948
    %3911 = vmatprep.subr.bf16.mxu0 %v2943
    %3912 = vmatpush1.bf16.msra.mxu0 %v2942
    %3913 = vmatprep.subr.bf16.mxu0 %v2937
    %3914 = vmatpush1.bf16.msra.mxu0 %v2936
    %3915 = vmatprep.subr.bf16.mxu0 %v2931
    %3916 = vmatpush1.bf16.msra.mxu0 %v2930
    %3917 = vmatprep.subr.bf16.mxu0 %v2925
    %3918 = vmatpush1.bf16.msra.mxu0 %v2924
    %3919 = vmatprep.subr.bf16.mxu0 %v2919
    %3920 = vmatpush1.bf16.msra.mxu0 %v2918
    %3921 = vmatprep.subr.bf16.mxu0 %v3009
    %3922 = vmatpush2.bf16.msra.mxu0 %v3008
    %3923 = vmatprep.subr.bf16.mxu0 %v3003
    %3924 = vmatpush2.bf16.msra.mxu0 %v3002
    %3925 = vmatprep.subr.bf16.mxu0 %v2997
    %3926 = vmatpush2.bf16.msra.mxu0 %v2996
    %3927 = vmatprep.subr.bf16.mxu0 %v2991
    %3928 = vmatpush2.bf16.msra.mxu0 %v2990
    %3929 = vmatprep.subr.bf16.mxu0 %v2985
    %3930 = vmatpush2.bf16.msra.mxu0 %v2984
    %3931 = vmatprep.subr.bf16.mxu0 %v2979
    %3932 = vmatpush2.bf16.msra.mxu0 %v2978
    %3933 = vmatprep.subr.bf16.mxu0 %v2973
    %3934 = vmatpush2.bf16.msra.mxu0 %v2972
    %3935 = vmatprep.subr.bf16.mxu0 %v2967
    %3936 = vmatpush2.bf16.msra.mxu0 %v2966
    %3937 = vmatprep.mubr.bf16.mxu0 %v289
    %3938 = vmatmul.mubr.bf16.gmra.mxu0 %v288
    %v3939 = vpop.f32.mrf.mxu0
    %v3940 = vadd.f32 %v3899, %v3939
    %v3941 = vpop.f32.mrf.mxu0
    %v3942 = vadd.f32 %v3901, %v3941
    %v3943 = vpop.f32.mrf.mxu0
    %v3944 = vpop.f32.mrf.mxu0
    %3945 = vdwg.mxu0
    %3946 = vmatprep.subr.bf16.mxu0 %v3057
    %3947 = vmatpush1.bf16.msra.mxu0 %v3056
    %3948 = vmatprep.subr.bf16.mxu0 %v3051
    %3949 = vmatpush1.bf16.msra.mxu0 %v3050
    %3950 = vmatprep.subr.bf16.mxu0 %v3045
    %3951 = vmatpush1.bf16.msra.mxu0 %v3044
    %3952 = vmatprep.subr.bf16.mxu0 %v3039
    %3953 = vmatpush1.bf16.msra.mxu0 %v3038
    %3954 = vmatprep.subr.bf16.mxu0 %v3033
    %3955 = vmatpush1.bf16.msra.mxu0 %v3032
    %3956 = vmatprep.subr.bf16.mxu0 %v3027
    %3957 = vmatpush1.bf16.msra.mxu0 %v3026
    %3958 = vmatprep.subr.bf16.mxu0 %v3021
    %3959 = vmatpush1.bf16.msra.mxu0 %v3020
    %3960 = vmatprep.subr.bf16.mxu0 %v3015
    %3961 = vmatpush1.bf16.msra.mxu0 %v3014
    %3962 = vmatprep.subr.bf16.mxu0 %v3105
    %3963 = vmatpush2.bf16.msra.mxu0 %v3104
    %3964 = vmatprep.subr.bf16.mxu0 %v3099
    %3965 = vmatpush2.bf16.msra.mxu0 %v3098
    %3966 = vmatprep.subr.bf16.mxu0 %v3093
    %3967 = vmatpush2.bf16.msra.mxu0 %v3092
    %3968 = vmatprep.subr.bf16.mxu0 %v3087
    %3969 = vmatpush2.bf16.msra.mxu0 %v3086
    %3970 = vmatprep.subr.bf16.mxu0 %v3081
    %3971 = vmatpush2.bf16.msra.mxu0 %v3080
    %3972 = vmatprep.subr.bf16.mxu0 %v3075
    %3973 = vmatpush2.bf16.msra.mxu0 %v3074
    %3974 = vmatprep.subr.bf16.mxu0 %v3069
    %3975 = vmatpush2.bf16.msra.mxu0 %v3068
    %3976 = vmatprep.subr.bf16.mxu0 %v3063
    %3977 = vmatpush2.bf16.msra.mxu0 %v3062
    %3978 = vmatprep.mubr.bf16.mxu0 %v291
    %3979 = vmatmul.mubr.bf16.gmra.mxu0 %v290
    %v3980 = vpop.f32.mrf.mxu0
    %v3981 = vadd.f32 %v3940, %v3980
    %v3982 = vpop.f32.mrf.mxu0
    %v3983 = vadd.f32 %v3942, %v3982
    %v3984 = vpop.f32.mrf.mxu0
    %v3985 = vpop.f32.mrf.mxu0
    %3986 = vdwg.mxu0
    %3987 = vmatprep.subr.bf16.mxu0 %v3153
    %3988 = vmatpush1.bf16.msra.mxu0 %v3152
    %3989 = vmatprep.subr.bf16.mxu0 %v3147
    %3990 = vmatpush1.bf16.msra.mxu0 %v3146
    %3991 = vmatprep.subr.bf16.mxu0 %v3141
    %3992 = vmatpush1.bf16.msra.mxu0 %v3140
    %3993 = vmatprep.subr.bf16.mxu0 %v3135
    %3994 = vmatpush1.bf16.msra.mxu0 %v3134
    %3995 = vmatprep.subr.bf16.mxu0 %v3129
    %3996 = vmatpush1.bf16.msra.mxu0 %v3128
    %3997 = vmatprep.subr.bf16.mxu0 %v3123
    %3998 = vmatpush1.bf16.msra.mxu0 %v3122
    %3999 = vmatprep.subr.bf16.mxu0 %v3117
    %4000 = vmatpush1.bf16.msra.mxu0 %v3116
    %4001 = vmatprep.subr.bf16.mxu0 %v3111
    %4002 = vmatpush1.bf16.msra.mxu0 %v3110
    %4003 = vmatprep.subr.bf16.mxu0 %v3201
    %4004 = vmatpush2.bf16.msra.mxu0 %v3200
    %4005 = vmatprep.subr.bf16.mxu0 %v3195
    %4006 = vmatpush2.bf16.msra.mxu0 %v3194
    %4007 = vmatprep.subr.bf16.mxu0 %v3189
    %4008 = vmatpush2.bf16.msra.mxu0 %v3188
    %4009 = vmatprep.subr.bf16.mxu0 %v3183
    %4010 = vmatpush2.bf16.msra.mxu0 %v3182
    %4011 = vmatprep.subr.bf16.mxu0 %v3177
    %4012 = vmatpush2.bf16.msra.mxu0 %v3176
    %4013 = vmatprep.subr.bf16.mxu0 %v3171
    %4014 = vmatpush2.bf16.msra.mxu0 %v3170
    %4015 = vmatprep.subr.bf16.mxu0 %v3165
    %4016 = vmatpush2.bf16.msra.mxu0 %v3164
    %4017 = vmatprep.subr.bf16.mxu0 %v3159
    %4018 = vmatpush2.bf16.msra.mxu0 %v3158
    %4019 = vmatprep.mubr.bf16.mxu0 %v293
    %4020 = vmatmul.mubr.bf16.gmra.mxu0 %v292
    %v4021 = vpop.f32.mrf.mxu0
    %v4022 = vadd.f32 %v3981, %v4021
    %v4023 = vpop.f32.mrf.mxu0
    %v4024 = vadd.f32 %v3983, %v4023
    %v4025 = vpop.f32.mrf.mxu0
    %v4026 = vpop.f32.mrf.mxu0
    %4027 = vdwg.mxu0
    %4028 = vmatprep.subr.bf16.mxu0 %v2675
    %4029 = vmatpush1.bf16.msra.mxu0 %v2674
    %4030 = vmatprep.subr.bf16.mxu0 %v2669
    %4031 = vmatpush1.bf16.msra.mxu0 %v2668
    %4032 = vmatprep.subr.bf16.mxu0 %v2663
    %4033 = vmatpush1.bf16.msra.mxu0 %v2662
    %4034 = vmatprep.subr.bf16.mxu0 %v2657
    %4035 = vmatpush1.bf16.msra.mxu0 %v2656
    %4036 = vmatprep.subr.bf16.mxu0 %v2651
    %4037 = vmatpush1.bf16.msra.mxu0 %v2650
    %4038 = vmatprep.subr.bf16.mxu0 %v2645
    %4039 = vmatpush1.bf16.msra.mxu0 %v2644
    %4040 = vmatprep.subr.bf16.mxu0 %v2639
    %4041 = vmatpush1.bf16.msra.mxu0 %v2638
    %4042 = vmatprep.subr.bf16.mxu0 %v2633
    %4043 = vmatpush1.bf16.msra.mxu0 %v2632
    %4044 = vmatprep.subr.bf16.mxu0 %v2723
    %4045 = vmatpush2.bf16.msra.mxu0 %v2722
    %4046 = vmatprep.subr.bf16.mxu0 %v2717
    %4047 = vmatpush2.bf16.msra.mxu0 %v2716
    %4048 = vmatprep.subr.bf16.mxu0 %v2711
    %4049 = vmatpush2.bf16.msra.mxu0 %v2710
    %4050 = vmatprep.subr.bf16.mxu0 %v2705
    %4051 = vmatpush2.bf16.msra.mxu0 %v2704
    %4052 = vmatprep.subr.bf16.mxu0 %v2699
    %4053 = vmatpush2.bf16.msra.mxu0 %v2698
    %4054 = vmatprep.subr.bf16.mxu0 %v2693
    %4055 = vmatpush2.bf16.msra.mxu0 %v2692
    %4056 = vmatprep.subr.bf16.mxu0 %v2687
    %4057 = vmatpush2.bf16.msra.mxu0 %v2686
    %4058 = vmatprep.subr.bf16.mxu0 %v2681
    %4059 = vmatpush2.bf16.msra.mxu0 %v2680
    %4060 = vmatprep.mubr.bf16.mxu0 %v283
    %4061 = vmatmul.mubr.bf16.gmra.mxu0 %v282
    %v4062 = vpop.f32.mrf.mxu0
    %v4063 = vadd.f32 %v883, %v4062
    %v4064 = vpop.f32.mrf.mxu0
    %v4065 = vadd.f32 %v887, %v4064
    %v4066 = vpop.f32.mrf.mxu0
    %v4067 = vpop.f32.mrf.mxu0
    %4068 = vdwg.mxu0
    %4069 = vmatprep.subr.bf16.mxu0 %v2771
    %4070 = vmatpush1.bf16.msra.mxu0 %v2770
    %4071 = vmatprep.subr.bf16.mxu0 %v2765
    %4072 = vmatpush1.bf16.msra.mxu0 %v2764
    %4073 = vmatprep.subr.bf16.mxu0 %v2759
    %4074 = vmatpush1.bf16.msra.mxu0 %v2758
    %4075 = vmatprep.subr.bf16.mxu0 %v2753
    %4076 = vmatpush1.bf16.msra.mxu0 %v2752
    %4077 = vmatprep.subr.bf16.mxu0 %v2747
    %4078 = vmatpush1.bf16.msra.mxu0 %v2746
    %4079 = vmatprep.subr.bf16.mxu0 %v2741
    %4080 = vmatpush1.bf16.msra.mxu0 %v2740
    %4081 = vmatprep.subr.bf16.mxu0 %v2735
    %4082 = vmatpush1.bf16.msra.mxu0 %v2734
    %4083 = vmatprep.subr.bf16.mxu0 %v2729
    %4084 = vmatpush1.bf16.msra.mxu0 %v2728
    %4085 = vmatprep.subr.bf16.mxu0 %v2819
    %4086 = vmatpush2.bf16.msra.mxu0 %v2818
    %4087 = vmatprep.subr.bf16.mxu0 %v2813
    %4088 = vmatpush2.bf16.msra.mxu0 %v2812
    %4089 = vmatprep.subr.bf16.mxu0 %v2807
    %4090 = vmatpush2.bf16.msra.mxu0 %v2806
    %4091 = vmatprep.subr.bf16.mxu0 %v2801
    %4092 = vmatpush2.bf16.msra.mxu0 %v2800
    %4093 = vmatprep.subr.bf16.mxu0 %v2795
    %4094 = vmatpush2.bf16.msra.mxu0 %v2794
    %4095 = vmatprep.subr.bf16.mxu0 %v2789
    %4096 = vmatpush2.bf16.msra.mxu0 %v2788
    %4097 = vmatprep.subr.bf16.mxu0 %v2783
    %4098 = vmatpush2.bf16.msra.mxu0 %v2782
    %4099 = vmatprep.subr.bf16.mxu0 %v2777
    %4100 = vmatpush2.bf16.msra.mxu0 %v2776
    %4101 = vmatprep.mubr.bf16.mxu0 %v285
    %4102 = vmatmul.mubr.bf16.gmra.mxu0 %v284
    %v4103 = vpop.f32.mrf.mxu0
    %v4104 = vadd.f32 %v4063, %v4103
    %v4105 = vpop.f32.mrf.mxu0
    %v4106 = vadd.f32 %v4065, %v4105
    %v4107 = vpop.f32.mrf.mxu0
    %v4108 = vpop.f32.mrf.mxu0
    %4109 = vdwg.mxu0
    %4110 = vmatprep.subr.bf16.mxu0 %v2867
    %4111 = vmatpush1.bf16.msra.mxu0 %v2866
    %4112 = vmatprep.subr.bf16.mxu0 %v2861
    %4113 = vmatpush1.bf16.msra.mxu0 %v2860
    %4114 = vmatprep.subr.bf16.mxu0 %v2855
    %4115 = vmatpush1.bf16.msra.mxu0 %v2854
    %4116 = vmatprep.subr.bf16.mxu0 %v2849
    %4117 = vmatpush1.bf16.msra.mxu0 %v2848
    %4118 = vmatprep.subr.bf16.mxu0 %v2843
    %4119 = vmatpush1.bf16.msra.mxu0 %v2842
    %4120 = vmatprep.subr.bf16.mxu0 %v2837
    %4121 = vmatpush1.bf16.msra.mxu0 %v2836
    %4122 = vmatprep.subr.bf16.mxu0 %v2831
    %4123 = vmatpush1.bf16.msra.mxu0 %v2830
    %4124 = vmatprep.subr.bf16.mxu0 %v2825
    %4125 = vmatpush1.bf16.msra.mxu0 %v2824
    %4126 = vmatprep.subr.bf16.mxu0 %v2915
    %4127 = vmatpush2.bf16.msra.mxu0 %v2914
    %4128 = vmatprep.subr.bf16.mxu0 %v2909
    %4129 = vmatpush2.bf16.msra.mxu0 %v2908
    %4130 = vmatprep.subr.bf16.mxu0 %v2903
    %4131 = vmatpush2.bf16.msra.mxu0 %v2902
    %4132 = vmatprep.subr.bf16.mxu0 %v2897
    %4133 = vmatpush2.bf16.msra.mxu0 %v2896
    %4134 = vmatprep.subr.bf16.mxu0 %v2891
    %4135 = vmatpush2.bf16.msra.mxu0 %v2890
    %4136 = vmatprep.subr.bf16.mxu0 %v2885
    %4137 = vmatpush2.bf16.msra.mxu0 %v2884
    %4138 = vmatprep.subr.bf16.mxu0 %v2879
    %4139 = vmatpush2.bf16.msra.mxu0 %v2878
    %4140 = vmatprep.subr.bf16.mxu0 %v2873
    %4141 = vmatpush2.bf16.msra.mxu0 %v2872
    %4142 = vmatprep.mubr.bf16.mxu0 %v287
    %4143 = vmatmul.mubr.bf16.gmra.mxu0 %v286
    %v4144 = vpop.f32.mrf.mxu0
    %v4145 = vadd.f32 %v4104, %v4144
    %v4146 = vpop.f32.mrf.mxu0
    %v4147 = vadd.f32 %v4106, %v4146
    %v4148 = vpop.f32.mrf.mxu0
    %v4149 = vpop.f32.mrf.mxu0
    %4150 = vdwg.mxu0
    %4151 = vmatprep.subr.bf16.mxu0 %v2963
    %4152 = vmatpush1.bf16.msra.mxu0 %v2962
    %4153 = vmatprep.subr.bf16.mxu0 %v2957
    %4154 = vmatpush1.bf16.msra.mxu0 %v2956
    %4155 = vmatprep.subr.bf16.mxu0 %v2951
    %4156 = vmatpush1.bf16.msra.mxu0 %v2950
    %4157 = vmatprep.subr.bf16.mxu0 %v2945
    %4158 = vmatpush1.bf16.msra.mxu0 %v2944
    %4159 = vmatprep.subr.bf16.mxu0 %v2939
    %4160 = vmatpush1.bf16.msra.mxu0 %v2938
    %4161 = vmatprep.subr.bf16.mxu0 %v2933
    %4162 = vmatpush1.bf16.msra.mxu0 %v2932
    %4163 = vmatprep.subr.bf16.mxu0 %v2927
    %4164 = vmatpush1.bf16.msra.mxu0 %v2926
    %4165 = vmatprep.subr.bf16.mxu0 %v2921
    %4166 = vmatpush1.bf16.msra.mxu0 %v2920
    %4167 = vmatprep.subr.bf16.mxu0 %v3011
    %4168 = vmatpush2.bf16.msra.mxu0 %v3010
    %4169 = vmatprep.subr.bf16.mxu0 %v3005
    %4170 = vmatpush2.bf16.msra.mxu0 %v3004
    %4171 = vmatprep.subr.bf16.mxu0 %v2999
    %4172 = vmatpush2.bf16.msra.mxu0 %v2998
    %4173 = vmatprep.subr.bf16.mxu0 %v2993
    %4174 = vmatpush2.bf16.msra.mxu0 %v2992
    %4175 = vmatprep.subr.bf16.mxu0 %v2987
    %4176 = vmatpush2.bf16.msra.mxu0 %v2986
    %4177 = vmatprep.subr.bf16.mxu0 %v2981
    %4178 = vmatpush2.bf16.msra.mxu0 %v2980
    %4179 = vmatprep.subr.bf16.mxu0 %v2975
    %4180 = vmatpush2.bf16.msra.mxu0 %v2974
    %4181 = vmatprep.subr.bf16.mxu0 %v2969
    %4182 = vmatpush2.bf16.msra.mxu0 %v2968
    %4183 = vmatprep.mubr.bf16.mxu0 %v289
    %4184 = vmatmul.mubr.bf16.gmra.mxu0 %v288
    %v4185 = vpop.f32.mrf.mxu0
    %v4186 = vadd.f32 %v4145, %v4185
    %v4187 = vpop.f32.mrf.mxu0
    %v4188 = vadd.f32 %v4147, %v4187
    %v4189 = vpop.f32.mrf.mxu0
    %v4190 = vpop.f32.mrf.mxu0
    %4191 = vdwg.mxu0
    %4192 = vmatprep.subr.bf16.mxu0 %v3059
    %4193 = vmatpush1.bf16.msra.mxu0 %v3058
    %4194 = vmatprep.subr.bf16.mxu0 %v3053
    %4195 = vmatpush1.bf16.msra.mxu0 %v3052
    %4196 = vmatprep.subr.bf16.mxu0 %v3047
    %4197 = vmatpush1.bf16.msra.mxu0 %v3046
    %4198 = vmatprep.subr.bf16.mxu0 %v3041
    %4199 = vmatpush1.bf16.msra.mxu0 %v3040
    %4200 = vmatprep.subr.bf16.mxu0 %v3035
    %4201 = vmatpush1.bf16.msra.mxu0 %v3034
    %4202 = vmatprep.subr.bf16.mxu0 %v3029
    %4203 = vmatpush1.bf16.msra.mxu0 %v3028
    %4204 = vmatprep.subr.bf16.mxu0 %v3023
    %4205 = vmatpush1.bf16.msra.mxu0 %v3022
    %4206 = vmatprep.subr.bf16.mxu0 %v3017
    %4207 = vmatpush1.bf16.msra.mxu0 %v3016
    %4208 = vmatprep.subr.bf16.mxu0 %v3107
    %4209 = vmatpush2.bf16.msra.mxu0 %v3106
    %4210 = vmatprep.subr.bf16.mxu0 %v3101
    %4211 = vmatpush2.bf16.msra.mxu0 %v3100
    %4212 = vmatprep.subr.bf16.mxu0 %v3095
    %4213 = vmatpush2.bf16.msra.mxu0 %v3094
    %4214 = vmatprep.subr.bf16.mxu0 %v3089
    %4215 = vmatpush2.bf16.msra.mxu0 %v3088
    %4216 = vmatprep.subr.bf16.mxu0 %v3083
    %4217 = vmatpush2.bf16.msra.mxu0 %v3082
    %4218 = vmatprep.subr.bf16.mxu0 %v3077
    %4219 = vmatpush2.bf16.msra.mxu0 %v3076
    %4220 = vmatprep.subr.bf16.mxu0 %v3071
    %4221 = vmatpush2.bf16.msra.mxu0 %v3070
    %4222 = vmatprep.subr.bf16.mxu0 %v3065
    %4223 = vmatpush2.bf16.msra.mxu0 %v3064
    %4224 = vmatprep.mubr.bf16.mxu0 %v291
    %4225 = vmatmul.mubr.bf16.gmra.mxu0 %v290
    %v4226 = vpop.f32.mrf.mxu0
    %v4227 = vadd.f32 %v4186, %v4226
    %v4228 = vpop.f32.mrf.mxu0
    %v4229 = vadd.f32 %v4188, %v4228
    %v4230 = vpop.f32.mrf.mxu0
    %v4231 = vpop.f32.mrf.mxu0
    %4232 = vdwg.mxu0
    %4233 = vmatprep.subr.bf16.mxu0 %v3155
    %4234 = vmatpush1.bf16.msra.mxu0 %v3154
    %4235 = vmatprep.subr.bf16.mxu0 %v3149
    %4236 = vmatpush1.bf16.msra.mxu0 %v3148
    %4237 = vmatprep.subr.bf16.mxu0 %v3143
    %4238 = vmatpush1.bf16.msra.mxu0 %v3142
    %4239 = vmatprep.subr.bf16.mxu0 %v3137
    %4240 = vmatpush1.bf16.msra.mxu0 %v3136
    %4241 = vmatprep.subr.bf16.mxu0 %v3131
    %4242 = vmatpush1.bf16.msra.mxu0 %v3130
    %4243 = vmatprep.subr.bf16.mxu0 %v3125
    %4244 = vmatpush1.bf16.msra.mxu0 %v3124
    %4245 = vmatprep.subr.bf16.mxu0 %v3119
    %4246 = vmatpush1.bf16.msra.mxu0 %v3118
    %4247 = vmatprep.subr.bf16.mxu0 %v3113
    %4248 = vmatpush1.bf16.msra.mxu0 %v3112
    %4249 = vmatprep.subr.bf16.mxu0 %v3203
    %4250 = vmatpush2.bf16.msra.mxu0 %v3202
    %4251 = vmatprep.subr.bf16.mxu0 %v3197
    %4252 = vmatpush2.bf16.msra.mxu0 %v3196
    %4253 = vmatprep.subr.bf16.mxu0 %v3191
    %4254 = vmatpush2.bf16.msra.mxu0 %v3190
    %4255 = vmatprep.subr.bf16.mxu0 %v3185
    %4256 = vmatpush2.bf16.msra.mxu0 %v3184
    %4257 = vmatprep.subr.bf16.mxu0 %v3179
    %4258 = vmatpush2.bf16.msra.mxu0 %v3178
    %4259 = vmatprep.subr.bf16.mxu0 %v3173
    %4260 = vmatpush2.bf16.msra.mxu0 %v3172
    %4261 = vmatprep.subr.bf16.mxu0 %v3167
    %4262 = vmatpush2.bf16.msra.mxu0 %v3166
    %4263 = vmatprep.subr.bf16.mxu0 %v3161
    %4264 = vmatpush2.bf16.msra.mxu0 %v3160
    %4265 = vmatprep.mubr.bf16.mxu0 %v293
    %4266 = vmatmul.mubr.bf16.gmra.mxu0 %v292
    %v4267 = vpop.f32.mrf.mxu0
    %v4268 = vadd.f32 %v4227, %v4267
    %v4269 = vpop.f32.mrf.mxu0
    %v4270 = vadd.f32 %v4229, %v4269
    %v4271 = vpop.f32.mrf.mxu0
    %v4272 = vpop.f32.mrf.mxu0
    %4273 = vdwg.mxu0
    %4274 = vmatprep.subr.bf16.mxu0 %v2677
    %4275 = vmatpush1.bf16.msra.mxu0 %v2676
    %4276 = vmatprep.subr.bf16.mxu0 %v2671
    %4277 = vmatpush1.bf16.msra.mxu0 %v2670
    %4278 = vmatprep.subr.bf16.mxu0 %v2665
    %4279 = vmatpush1.bf16.msra.mxu0 %v2664
    %4280 = vmatprep.subr.bf16.mxu0 %v2659
    %4281 = vmatpush1.bf16.msra.mxu0 %v2658
    %4282 = vmatprep.subr.bf16.mxu0 %v2653
    %4283 = vmatpush1.bf16.msra.mxu0 %v2652
    %4284 = vmatprep.subr.bf16.mxu0 %v2647
    %4285 = vmatpush1.bf16.msra.mxu0 %v2646
    %4286 = vmatprep.subr.bf16.mxu0 %v2641
    %4287 = vmatpush1.bf16.msra.mxu0 %v2640
    %4288 = vmatprep.subr.bf16.mxu0 %v2635
    %4289 = vmatpush1.bf16.msra.mxu0 %v2634
    %4290 = vmatprep.subr.bf16.mxu0 %v2725
    %4291 = vmatpush2.bf16.msra.mxu0 %v2724
    %4292 = vmatprep.subr.bf16.mxu0 %v2719
    %4293 = vmatpush2.bf16.msra.mxu0 %v2718
    %4294 = vmatprep.subr.bf16.mxu0 %v2713
    %4295 = vmatpush2.bf16.msra.mxu0 %v2712
    %4296 = vmatprep.subr.bf16.mxu0 %v2707
    %4297 = vmatpush2.bf16.msra.mxu0 %v2706
    %4298 = vmatprep.subr.bf16.mxu0 %v2701
    %4299 = vmatpush2.bf16.msra.mxu0 %v2700
    %4300 = vmatprep.subr.bf16.mxu0 %v2695
    %4301 = vmatpush2.bf16.msra.mxu0 %v2694
    %4302 = vmatprep.subr.bf16.mxu0 %v2689
    %4303 = vmatpush2.bf16.msra.mxu0 %v2688
    %4304 = vmatprep.subr.bf16.mxu0 %v2683
    %4305 = vmatpush2.bf16.msra.mxu0 %v2682
    %4306 = vmatprep.mubr.bf16.mxu0 %v283
    %4307 = vmatmul.mubr.bf16.gmra.mxu0 %v282
    %v4308 = vpop.f32.mrf.mxu0
    %v4309 = vadd.f32 %v891, %v4308
    %v4310 = vpop.f32.mrf.mxu0
    %v4311 = vadd.f32 %v895, %v4310
    %v4312 = vpop.f32.mrf.mxu0
    %v4313 = vpop.f32.mrf.mxu0
    %4314 = vdwg.mxu0
    %4315 = vmatprep.subr.bf16.mxu0 %v2773
    %4316 = vmatpush1.bf16.msra.mxu0 %v2772
    %4317 = vmatprep.subr.bf16.mxu0 %v2767
    %4318 = vmatpush1.bf16.msra.mxu0 %v2766
    %4319 = vmatprep.subr.bf16.mxu0 %v2761
    %4320 = vmatpush1.bf16.msra.mxu0 %v2760
    %4321 = vmatprep.subr.bf16.mxu0 %v2755
    %4322 = vmatpush1.bf16.msra.mxu0 %v2754
    %4323 = vmatprep.subr.bf16.mxu0 %v2749
    %4324 = vmatpush1.bf16.msra.mxu0 %v2748
    %4325 = vmatprep.subr.bf16.mxu0 %v2743
    %4326 = vmatpush1.bf16.msra.mxu0 %v2742
    %4327 = vmatprep.subr.bf16.mxu0 %v2737
    %4328 = vmatpush1.bf16.msra.mxu0 %v2736
    %4329 = vmatprep.subr.bf16.mxu0 %v2731
    %4330 = vmatpush1.bf16.msra.mxu0 %v2730
    %4331 = vmatprep.subr.bf16.mxu0 %v2821
    %4332 = vmatpush2.bf16.msra.mxu0 %v2820
    %4333 = vmatprep.subr.bf16.mxu0 %v2815
    %4334 = vmatpush2.bf16.msra.mxu0 %v2814
    %4335 = vmatprep.subr.bf16.mxu0 %v2809
    %4336 = vmatpush2.bf16.msra.mxu0 %v2808
    %4337 = vmatprep.subr.bf16.mxu0 %v2803
    %4338 = vmatpush2.bf16.msra.mxu0 %v2802
    %4339 = vmatprep.subr.bf16.mxu0 %v2797
    %4340 = vmatpush2.bf16.msra.mxu0 %v2796
    %4341 = vmatprep.subr.bf16.mxu0 %v2791
    %4342 = vmatpush2.bf16.msra.mxu0 %v2790
    %4343 = vmatprep.subr.bf16.mxu0 %v2785
    %4344 = vmatpush2.bf16.msra.mxu0 %v2784
    %4345 = vmatprep.subr.bf16.mxu0 %v2779
    %4346 = vmatpush2.bf16.msra.mxu0 %v2778
    %4347 = vmatprep.mubr.bf16.mxu0 %v285
    %4348 = vmatmul.mubr.bf16.gmra.mxu0 %v284
    %v4349 = vpop.f32.mrf.mxu0
    %v4350 = vadd.f32 %v4309, %v4349
    %v4351 = vpop.f32.mrf.mxu0
    %v4352 = vadd.f32 %v4311, %v4351
    %v4353 = vpop.f32.mrf.mxu0
    %v4354 = vpop.f32.mrf.mxu0
    %4355 = vdwg.mxu0
    %4356 = vmatprep.subr.bf16.mxu0 %v2869
    %4357 = vmatpush1.bf16.msra.mxu0 %v2868
    %4358 = vmatprep.subr.bf16.mxu0 %v2863
    %4359 = vmatpush1.bf16.msra.mxu0 %v2862
    %4360 = vmatprep.subr.bf16.mxu0 %v2857
    %4361 = vmatpush1.bf16.msra.mxu0 %v2856
    %4362 = vmatprep.subr.bf16.mxu0 %v2851
    %4363 = vmatpush1.bf16.msra.mxu0 %v2850
    %4364 = vmatprep.subr.bf16.mxu0 %v2845
    %4365 = vmatpush1.bf16.msra.mxu0 %v2844
    %4366 = vmatprep.subr.bf16.mxu0 %v2839
    %4367 = vmatpush1.bf16.msra.mxu0 %v2838
    %4368 = vmatprep.subr.bf16.mxu0 %v2833
    %4369 = vmatpush1.bf16.msra.mxu0 %v2832
    %4370 = vmatprep.subr.bf16.mxu0 %v2827
    %4371 = vmatpush1.bf16.msra.mxu0 %v2826
    %4372 = vmatprep.subr.bf16.mxu0 %v2917
    %4373 = vmatpush2.bf16.msra.mxu0 %v2916
    %4374 = vmatprep.subr.bf16.mxu0 %v2911
    %4375 = vmatpush2.bf16.msra.mxu0 %v2910
    %4376 = vmatprep.subr.bf16.mxu0 %v2905
    %4377 = vmatpush2.bf16.msra.mxu0 %v2904
    %4378 = vmatprep.subr.bf16.mxu0 %v2899
    %4379 = vmatpush2.bf16.msra.mxu0 %v2898
    %4380 = vmatprep.subr.bf16.mxu0 %v2893
    %4381 = vmatpush2.bf16.msra.mxu0 %v2892
    %4382 = vmatprep.subr.bf16.mxu0 %v2887
    %4383 = vmatpush2.bf16.msra.mxu0 %v2886
    %4384 = vmatprep.subr.bf16.mxu0 %v2881
    %4385 = vmatpush2.bf16.msra.mxu0 %v2880
    %4386 = vmatprep.subr.bf16.mxu0 %v2875
    %4387 = vmatpush2.bf16.msra.mxu0 %v2874
    %4388 = vmatprep.mubr.bf16.mxu0 %v287
    %4389 = vmatmul.mubr.bf16.gmra.mxu0 %v286
    %v4390 = vpop.f32.mrf.mxu0
    %v4391 = vadd.f32 %v4350, %v4390
    %v4392 = vpop.f32.mrf.mxu0
    %v4393 = vadd.f32 %v4352, %v4392
    %v4394 = vpop.f32.mrf.mxu0
    %v4395 = vpop.f32.mrf.mxu0
    %4396 = vdwg.mxu0
    %4397 = vmatprep.subr.bf16.mxu0 %v2965
    %4398 = vmatpush1.bf16.msra.mxu0 %v2964
    %4399 = vmatprep.subr.bf16.mxu0 %v2959
    %4400 = vmatpush1.bf16.msra.mxu0 %v2958
    %4401 = vmatprep.subr.bf16.mxu0 %v2953
    %4402 = vmatpush1.bf16.msra.mxu0 %v2952
    %4403 = vmatprep.subr.bf16.mxu0 %v2947
    %4404 = vmatpush1.bf16.msra.mxu0 %v2946
    %4405 = vmatprep.subr.bf16.mxu0 %v2941
    %4406 = vmatpush1.bf16.msra.mxu0 %v2940
    %4407 = vmatprep.subr.bf16.mxu0 %v2935
    %4408 = vmatpush1.bf16.msra.mxu0 %v2934
    %4409 = vmatprep.subr.bf16.mxu0 %v2929
    %4410 = vmatpush1.bf16.msra.mxu0 %v2928
    %4411 = vmatprep.subr.bf16.mxu0 %v2923
    %4412 = vmatpush1.bf16.msra.mxu0 %v2922
    %4413 = vmatprep.subr.bf16.mxu0 %v3013
    %4414 = vmatpush2.bf16.msra.mxu0 %v3012
    %4415 = vmatprep.subr.bf16.mxu0 %v3007
    %4416 = vmatpush2.bf16.msra.mxu0 %v3006
    %4417 = vmatprep.subr.bf16.mxu0 %v3001
    %4418 = vmatpush2.bf16.msra.mxu0 %v3000
    %4419 = vmatprep.subr.bf16.mxu0 %v2995
    %4420 = vmatpush2.bf16.msra.mxu0 %v2994
    %4421 = vmatprep.subr.bf16.mxu0 %v2989
    %4422 = vmatpush2.bf16.msra.mxu0 %v2988
    %4423 = vmatprep.subr.bf16.mxu0 %v2983
    %4424 = vmatpush2.bf16.msra.mxu0 %v2982
    %4425 = vmatprep.subr.bf16.mxu0 %v2977
    %4426 = vmatpush2.bf16.msra.mxu0 %v2976
    %4427 = vmatprep.subr.bf16.mxu0 %v2971
    %4428 = vmatpush2.bf16.msra.mxu0 %v2970
    %4429 = vmatprep.mubr.bf16.mxu0 %v289
    %4430 = vmatmul.mubr.bf16.gmra.mxu0 %v288
    %v4431 = vpop.f32.mrf.mxu0
    %v4432 = vadd.f32 %v4391, %v4431
    %v4433 = vpop.f32.mrf.mxu0
    %v4434 = vadd.f32 %v4393, %v4433
    %v4435 = vpop.f32.mrf.mxu0
    %v4436 = vpop.f32.mrf.mxu0
    %4437 = vdwg.mxu0
    %4438 = vmatprep.subr.bf16.mxu0 %v3061
    %4439 = vmatpush1.bf16.msra.mxu0 %v3060
    %4440 = vmatprep.subr.bf16.mxu0 %v3055
    %4441 = vmatpush1.bf16.msra.mxu0 %v3054
    %4442 = vmatprep.subr.bf16.mxu0 %v3049
    %4443 = vmatpush1.bf16.msra.mxu0 %v3048
    %4444 = vmatprep.subr.bf16.mxu0 %v3043
    %4445 = vmatpush1.bf16.msra.mxu0 %v3042
    %4446 = vmatprep.subr.bf16.mxu0 %v3037
    %4447 = vmatpush1.bf16.msra.mxu0 %v3036
    %4448 = vmatprep.subr.bf16.mxu0 %v3031
    %4449 = vmatpush1.bf16.msra.mxu0 %v3030
    %4450 = vmatprep.subr.bf16.mxu0 %v3025
    %4451 = vmatpush1.bf16.msra.mxu0 %v3024
    %4452 = vmatprep.subr.bf16.mxu0 %v3019
    %4453 = vmatpush1.bf16.msra.mxu0 %v3018
    %4454 = vmatprep.subr.bf16.mxu0 %v3109
    %4455 = vmatpush2.bf16.msra.mxu0 %v3108
    %4456 = vmatprep.subr.bf16.mxu0 %v3103
    %4457 = vmatpush2.bf16.msra.mxu0 %v3102
    %4458 = vmatprep.subr.bf16.mxu0 %v3097
    %4459 = vmatpush2.bf16.msra.mxu0 %v3096
    %4460 = vmatprep.subr.bf16.mxu0 %v3091
    %4461 = vmatpush2.bf16.msra.mxu0 %v3090
    %4462 = vmatprep.subr.bf16.mxu0 %v3085
    %4463 = vmatpush2.bf16.msra.mxu0 %v3084
    %4464 = vmatprep.subr.bf16.mxu0 %v3079
    %4465 = vmatpush2.bf16.msra.mxu0 %v3078
    %4466 = vmatprep.subr.bf16.mxu0 %v3073
    %4467 = vmatpush2.bf16.msra.mxu0 %v3072
    %4468 = vmatprep.subr.bf16.mxu0 %v3067
    %4469 = vmatpush2.bf16.msra.mxu0 %v3066
    %4470 = vmatprep.mubr.bf16.mxu0 %v291
    %4471 = vmatmul.mubr.bf16.gmra.mxu0 %v290
    %v4472 = vpop.f32.mrf.mxu0
    %v4473 = vadd.f32 %v4432, %v4472
    %v4474 = vpop.f32.mrf.mxu0
    %v4475 = vadd.f32 %v4434, %v4474
    %v4476 = vpop.f32.mrf.mxu0
    %v4477 = vpop.f32.mrf.mxu0
    %4478 = vdwg.mxu0
    %4479 = vmatprep.subr.bf16.mxu0 %v3157
    %4480 = vmatpush1.bf16.msra.mxu0 %v3156
    %4481 = vmatprep.subr.bf16.mxu0 %v3151
    %4482 = vmatpush1.bf16.msra.mxu0 %v3150
    %4483 = vmatprep.subr.bf16.mxu0 %v3145
    %4484 = vmatpush1.bf16.msra.mxu0 %v3144
    %4485 = vmatprep.subr.bf16.mxu0 %v3139
    %4486 = vmatpush1.bf16.msra.mxu0 %v3138
    %4487 = vmatprep.subr.bf16.mxu0 %v3133
    %4488 = vmatpush1.bf16.msra.mxu0 %v3132
    %4489 = vmatprep.subr.bf16.mxu0 %v3127
    %4490 = vmatpush1.bf16.msra.mxu0 %v3126
    %4491 = vmatprep.subr.bf16.mxu0 %v3121
    %4492 = vmatpush1.bf16.msra.mxu0 %v3120
    %4493 = vmatprep.subr.bf16.mxu0 %v3115
    %4494 = vmatpush1.bf16.msra.mxu0 %v3114
    %4495 = vmatprep.subr.bf16.mxu0 %v3205
    %4496 = vmatpush2.bf16.msra.mxu0 %v3204
    %4497 = vmatprep.subr.bf16.mxu0 %v3199
    %4498 = vmatpush2.bf16.msra.mxu0 %v3198
    %4499 = vmatprep.subr.bf16.mxu0 %v3193
    %4500 = vmatpush2.bf16.msra.mxu0 %v3192
    %4501 = vmatprep.subr.bf16.mxu0 %v3187
    %4502 = vmatpush2.bf16.msra.mxu0 %v3186
    %4503 = vmatprep.subr.bf16.mxu0 %v3181
    %4504 = vmatpush2.bf16.msra.mxu0 %v3180
    %4505 = vmatprep.subr.bf16.mxu0 %v3175
    %4506 = vmatpush2.bf16.msra.mxu0 %v3174
    %4507 = vmatprep.subr.bf16.mxu0 %v3169
    %4508 = vmatpush2.bf16.msra.mxu0 %v3168
    %4509 = vmatprep.subr.bf16.mxu0 %v3163
    %4510 = vmatpush2.bf16.msra.mxu0 %v3162
    %4511 = vmatprep.mubr.bf16.mxu0 %v293
    %4512 = vmatmul.mubr.bf16.gmra.mxu0 %v292
    %v4513 = vpop.f32.mrf.mxu0
    %v4514 = vadd.f32 %v4473, %v4513
    %v4515 = vpop.f32.mrf.mxu0
    %v4516 = vadd.f32 %v4475, %v4515
    %v4517 = vpop.f32.mrf.mxu0
    %v4518 = vpop.f32.mrf.mxu0
    %4519 = vdwg.mxu0
    %v4520 = vmax.f32 %v4022, 0.0
    %v4521 = vmax.f32 %v4024, 0.0
    %v4522 = vmax.f32 %v4268, 0.0
    %v4523 = vmax.f32 %v4270, 0.0
    %v4524 = vmax.f32 %v4514, 0.0
    %v4525 = vmax.f32 %v4516, 0.0
    %v4526 = vpack.c.bf16 %v4520, %v4520
    %v4527 = vpack.c.bf16 %v4521, %v4521
    %v4528 = vpack.c.bf16 %v4522, %v4522
    %v4529 = vpack.c.bf16 %v4523, %v4523
    %v4530 = vpack.c.bf16 %v4524, %v4524
    %v4531 = vpack.c.bf16 %v4525, %v4525
    %v4532 = vld [vmem:[#allocation10] sm:$0xff]
    %v4533 = vld [vmem:[#allocation10 + $0x8] sm:$0xff]
    %v4534 = vld [vmem:[#allocation10 + $0x10] sm:$0xff]
    %v4535 = vld [vmem:[#allocation10 + $0x18] sm:$0xff]
    %v4536 = vld [vmem:[#allocation10 + $0x20] sm:$0xff]
    %v4537 = vld [vmem:[#allocation10 + $0x28] sm:$0xff]
    %v4538 = vld [vmem:[#allocation10 + $0x30] sm:$0xff]
    %v4539 = vld [vmem:[#allocation10 + $0x38] sm:$0xff]
    %v4540 = vld [vmem:[#allocation10 + $0x40] sm:$0xff]
    %v4541 = vld [vmem:[#allocation10 + $0x48] sm:$0xff]
    %v4542 = vld [vmem:[#allocation10 + $0x50] sm:$0xff]
    %v4543 = vld [vmem:[#allocation10 + $0x58] sm:$0xff]
    %v4544 = vld [vmem:[#allocation10 + $0x60] sm:$0xff]
    %v4545 = vld [vmem:[#allocation10 + $0x68] sm:$0xff]
    %v4546 = vld [vmem:[#allocation10 + $0x70] sm:$0xff]
    %v4547 = vld [vmem:[#allocation10 + $0x78] sm:$0xff]
    %v4548 = vld [vmem:[#allocation10 + $0x80] sm:$0xff]
    %v4549 = vld [vmem:[#allocation10 + $0x88] sm:$0xff]
    %v4550 = vld [vmem:[#allocation10 + $0x90] sm:$0xff]
    %v4551 = vld [vmem:[#allocation10 + $0x98] sm:$0xff]
    %v4552 = vld [vmem:[#allocation10 + $0xa0] sm:$0xff]
    %v4553 = vld [vmem:[#allocation10 + $0xa8] sm:$0xff]
    %v4554 = vld [vmem:[#allocation10 + $0xb0] sm:$0xff]
    %v4555 = vld [vmem:[#allocation10 + $0xb8] sm:$0xff]
    %v4556 = vld [vmem:[#allocation10 + $0xc0] sm:$0xff]
    %v4557 = vld [vmem:[#allocation10 + $0xc8] sm:$0xff]
    %v4558 = vld [vmem:[#allocation10 + $0xd0] sm:$0xff]
    %v4559 = vld [vmem:[#allocation10 + $0xd8] sm:$0xff]
    %v4560 = vld [vmem:[#allocation10 + $0xe0] sm:$0xff]
    %v4561 = vld [vmem:[#allocation10 + $0xe8] sm:$0xff]
    %v4562 = vld [vmem:[#allocation10 + $0xf0] sm:$0xff]
    %v4563 = vld [vmem:[#allocation10 + $0xf8] sm:$0xff]
    %v4564 = vld [vmem:[#allocation10 + $0x100] sm:$0xff]
    %v4565 = vld [vmem:[#allocation10 + $0x108] sm:$0xff]
    %v4566 = vld [vmem:[#allocation10 + $0x110] sm:$0xff]
    %v4567 = vld [vmem:[#allocation10 + $0x118] sm:$0xff]
    %v4568 = vld [vmem:[#allocation10 + $0x120] sm:$0xff]
    %v4569 = vld [vmem:[#allocation10 + $0x128] sm:$0xff]
    %v4570 = vld [vmem:[#allocation10 + $0x130] sm:$0xff]
    %v4571 = vld [vmem:[#allocation10 + $0x138] sm:$0xff]
    %v4572 = vld [vmem:[#allocation10 + $0x140] sm:$0xff]
    %v4573 = vld [vmem:[#allocation10 + $0x148] sm:$0xff]
    %v4574 = vld [vmem:[#allocation10 + $0x150] sm:$0xff]
    %v4575 = vld [vmem:[#allocation10 + $0x158] sm:$0xff]
    %v4576 = vld [vmem:[#allocation10 + $0x160] sm:$0xff]
    %v4577 = vld [vmem:[#allocation10 + $0x168] sm:$0xff]
    %v4578 = vld [vmem:[#allocation10 + $0x170] sm:$0xff]
    %v4579 = vld [vmem:[#allocation10 + $0x178] sm:$0xff]
    %v4580 = vld [vmem:[#allocation10 + $0x180] sm:$0xff]
    %v4581 = vld [vmem:[#allocation10 + $0x188] sm:$0xff]
    %v4582 = vld [vmem:[#allocation10 + $0x190] sm:$0xff]
    %v4583 = vld [vmem:[#allocation10 + $0x198] sm:$0xff]
    %v4584 = vld [vmem:[#allocation10 + $0x1a0] sm:$0xff]
    %v4585 = vld [vmem:[#allocation10 + $0x1a8] sm:$0xff]
    %v4586 = vld [vmem:[#allocation10 + $0x1b0] sm:$0xff]
    %v4587 = vld [vmem:[#allocation10 + $0x1b8] sm:$0xff]
    %v4588 = vld [vmem:[#allocation10 + $0x1c0] sm:$0xff]
    %v4589 = vld [vmem:[#allocation10 + $0x1c8] sm:$0xff]
    %v4590 = vld [vmem:[#allocation10 + $0x1d0] sm:$0xff]
    %v4591 = vld [vmem:[#allocation10 + $0x1d8] sm:$0xff]
    %v4592 = vld [vmem:[#allocation10 + $0x1e0] sm:$0xff]
    %v4593 = vld [vmem:[#allocation10 + $0x1e8] sm:$0xff]
    %v4594 = vld [vmem:[#allocation10 + $0x1f0] sm:$0xff]
    %v4595 = vld [vmem:[#allocation10 + $0x1f8] sm:$0xff]
    %v4596 = vld [vmem:[#allocation10 + $0x200] sm:$0xff]
    %v4597 = vld [vmem:[#allocation10 + $0x208] sm:$0xff]
    %v4598 = vld [vmem:[#allocation10 + $0x210] sm:$0xff]
    %v4599 = vld [vmem:[#allocation10 + $0x218] sm:$0xff]
    %v4600 = vld [vmem:[#allocation10 + $0x220] sm:$0xff]
    %v4601 = vld [vmem:[#allocation10 + $0x228] sm:$0xff]
    %v4602 = vld [vmem:[#allocation10 + $0x230] sm:$0xff]
    %v4603 = vld [vmem:[#allocation10 + $0x238] sm:$0xff]
    %v4604 = vld [vmem:[#allocation10 + $0x240] sm:$0xff]
    %v4605 = vld [vmem:[#allocation10 + $0x248] sm:$0xff]
    %v4606 = vld [vmem:[#allocation10 + $0x250] sm:$0xff]
    %v4607 = vld [vmem:[#allocation10 + $0x258] sm:$0xff]
    %v4608 = vld [vmem:[#allocation10 + $0x260] sm:$0xff]
    %v4609 = vld [vmem:[#allocation10 + $0x268] sm:$0xff]
    %v4610 = vld [vmem:[#allocation10 + $0x270] sm:$0xff]
    %v4611 = vld [vmem:[#allocation10 + $0x278] sm:$0xff]
    %v4612 = vld [vmem:[#allocation10 + $0x280] sm:$0xff]
    %v4613 = vld [vmem:[#allocation10 + $0x288] sm:$0xff]
    %v4614 = vld [vmem:[#allocation10 + $0x290] sm:$0xff]
    %v4615 = vld [vmem:[#allocation10 + $0x298] sm:$0xff]
    %v4616 = vld [vmem:[#allocation10 + $0x2a0] sm:$0xff]
    %v4617 = vld [vmem:[#allocation10 + $0x2a8] sm:$0xff]
    %v4618 = vld [vmem:[#allocation10 + $0x2b0] sm:$0xff]
    %v4619 = vld [vmem:[#allocation10 + $0x2b8] sm:$0xff]
    %v4620 = vld [vmem:[#allocation10 + $0x2c0] sm:$0xff]
    %v4621 = vld [vmem:[#allocation10 + $0x2c8] sm:$0xff]
    %v4622 = vld [vmem:[#allocation10 + $0x2d0] sm:$0xff]
    %v4623 = vld [vmem:[#allocation10 + $0x2d8] sm:$0xff]
    %v4624 = vld [vmem:[#allocation10 + $0x2e0] sm:$0xff]
    %v4625 = vld [vmem:[#allocation10 + $0x2e8] sm:$0xff]
    %v4626 = vld [vmem:[#allocation10 + $0x2f0] sm:$0xff]
    %v4627 = vld [vmem:[#allocation10 + $0x2f8] sm:$0xff]
    %v4628 = vld [vmem:[#allocation10 + $0x300] sm:$0xff]
    %v4629 = vld [vmem:[#allocation10 + $0x308] sm:$0xff]
    %v4630 = vld [vmem:[#allocation10 + $0x310] sm:$0xff]
    %v4631 = vld [vmem:[#allocation10 + $0x318] sm:$0xff]
    %v4632 = vld [vmem:[#allocation10 + $0x320] sm:$0xff]
    %v4633 = vld [vmem:[#allocation10 + $0x328] sm:$0xff]
    %v4634 = vld [vmem:[#allocation10 + $0x330] sm:$0xff]
    %v4635 = vld [vmem:[#allocation10 + $0x338] sm:$0xff]
    %v4636 = vld [vmem:[#allocation10 + $0x340] sm:$0xff]
    %v4637 = vld [vmem:[#allocation10 + $0x348] sm:$0xff]
    %v4638 = vld [vmem:[#allocation10 + $0x350] sm:$0xff]
    %v4639 = vld [vmem:[#allocation10 + $0x358] sm:$0xff]
    %v4640 = vld [vmem:[#allocation10 + $0x360] sm:$0xff]
    %v4641 = vld [vmem:[#allocation10 + $0x368] sm:$0xff]
    %v4642 = vld [vmem:[#allocation10 + $0x370] sm:$0xff]
    %v4643 = vld [vmem:[#allocation10 + $0x378] sm:$0xff]
    %v4644 = vld [vmem:[#allocation10 + $0x380] sm:$0xff]
    %v4645 = vld [vmem:[#allocation10 + $0x388] sm:$0xff]
    %v4646 = vld [vmem:[#allocation10 + $0x390] sm:$0xff]
    %v4647 = vld [vmem:[#allocation10 + $0x398] sm:$0xff]
    %v4648 = vld [vmem:[#allocation10 + $0x3a0] sm:$0xff]
    %v4649 = vld [vmem:[#allocation10 + $0x3a8] sm:$0xff]
    %v4650 = vld [vmem:[#allocation10 + $0x3b0] sm:$0xff]
    %v4651 = vld [vmem:[#allocation10 + $0x3b8] sm:$0xff]
    %v4652 = vld [vmem:[#allocation10 + $0x3c0] sm:$0xff]
    %v4653 = vld [vmem:[#allocation10 + $0x3c8] sm:$0xff]
    %v4654 = vld [vmem:[#allocation10 + $0x3d0] sm:$0xff]
    %v4655 = vld [vmem:[#allocation10 + $0x3d8] sm:$0xff]
    %v4656 = vld [vmem:[#allocation10 + $0x3e0] sm:$0xff]
    %v4657 = vld [vmem:[#allocation10 + $0x3e8] sm:$0xff]
    %v4658 = vld [vmem:[#allocation10 + $0x3f0] sm:$0xff]
    %v4659 = vld [vmem:[#allocation10 + $0x3f8] sm:$0xff]
    %v4660 = vld [vmem:[#allocation10 + $0x400] sm:$0xff]
    %v4661 = vld [vmem:[#allocation10 + $0x408] sm:$0xff]
    %v4662 = vld [vmem:[#allocation10 + $0x410] sm:$0xff]
    %v4663 = vld [vmem:[#allocation10 + $0x418] sm:$0xff]
    %v4664 = vld [vmem:[#allocation10 + $0x420] sm:$0xff]
    %v4665 = vld [vmem:[#allocation10 + $0x428] sm:$0xff]
    %v4666 = vld [vmem:[#allocation10 + $0x430] sm:$0xff]
    %v4667 = vld [vmem:[#allocation10 + $0x438] sm:$0xff]
    %v4668 = vld [vmem:[#allocation10 + $0x440] sm:$0xff]
    %v4669 = vld [vmem:[#allocation10 + $0x448] sm:$0xff]
    %v4670 = vld [vmem:[#allocation10 + $0x450] sm:$0xff]
    %v4671 = vld [vmem:[#allocation10 + $0x458] sm:$0xff]
    %v4672 = vld [vmem:[#allocation10 + $0x460] sm:$0xff]
    %v4673 = vld [vmem:[#allocation10 + $0x468] sm:$0xff]
    %v4674 = vld [vmem:[#allocation10 + $0x470] sm:$0xff]
    %v4675 = vld [vmem:[#allocation10 + $0x478] sm:$0xff]
    %v4676 = vld [vmem:[#allocation10 + $0x480] sm:$0xff]
    %v4677 = vld [vmem:[#allocation10 + $0x488] sm:$0xff]
    %v4678 = vld [vmem:[#allocation10 + $0x490] sm:$0xff]
    %v4679 = vld [vmem:[#allocation10 + $0x498] sm:$0xff]
    %v4680 = vld [vmem:[#allocation10 + $0x4a0] sm:$0xff]
    %v4681 = vld [vmem:[#allocation10 + $0x4a8] sm:$0xff]
    %v4682 = vld [vmem:[#allocation10 + $0x4b0] sm:$0xff]
    %v4683 = vld [vmem:[#allocation10 + $0x4b8] sm:$0xff]
    %v4684 = vld [vmem:[#allocation10 + $0x4c0] sm:$0xff]
    %v4685 = vld [vmem:[#allocation10 + $0x4c8] sm:$0xff]
    %v4686 = vld [vmem:[#allocation10 + $0x4d0] sm:$0xff]
    %v4687 = vld [vmem:[#allocation10 + $0x4d8] sm:$0xff]
    %v4688 = vld [vmem:[#allocation10 + $0x4e0] sm:$0xff]
    %v4689 = vld [vmem:[#allocation10 + $0x4e8] sm:$0xff]
    %v4690 = vld [vmem:[#allocation10 + $0x4f0] sm:$0xff]
    %v4691 = vld [vmem:[#allocation10 + $0x4f8] sm:$0xff]
    %v4692 = vld [vmem:[#allocation10 + $0x500] sm:$0xff]
    %v4693 = vld [vmem:[#allocation10 + $0x508] sm:$0xff]
    %v4694 = vld [vmem:[#allocation10 + $0x510] sm:$0xff]
    %v4695 = vld [vmem:[#allocation10 + $0x518] sm:$0xff]
    %v4696 = vld [vmem:[#allocation10 + $0x520] sm:$0xff]
    %v4697 = vld [vmem:[#allocation10 + $0x528] sm:$0xff]
    %v4698 = vld [vmem:[#allocation10 + $0x530] sm:$0xff]
    %v4699 = vld [vmem:[#allocation10 + $0x538] sm:$0xff]
    %v4700 = vld [vmem:[#allocation10 + $0x540] sm:$0xff]
    %v4701 = vld [vmem:[#allocation10 + $0x548] sm:$0xff]
    %v4702 = vld [vmem:[#allocation10 + $0x550] sm:$0xff]
    %v4703 = vld [vmem:[#allocation10 + $0x558] sm:$0xff]
    %v4704 = vld [vmem:[#allocation10 + $0x560] sm:$0xff]
    %v4705 = vld [vmem:[#allocation10 + $0x568] sm:$0xff]
    %v4706 = vld [vmem:[#allocation10 + $0x570] sm:$0xff]
    %v4707 = vld [vmem:[#allocation10 + $0x578] sm:$0xff]
    %v4708 = vld [vmem:[#allocation10 + $0x580] sm:$0xff]
    %v4709 = vld [vmem:[#allocation10 + $0x588] sm:$0xff]
    %v4710 = vld [vmem:[#allocation10 + $0x590] sm:$0xff]
    %v4711 = vld [vmem:[#allocation10 + $0x598] sm:$0xff]
    %v4712 = vld [vmem:[#allocation10 + $0x5a0] sm:$0xff]
    %v4713 = vld [vmem:[#allocation10 + $0x5a8] sm:$0xff]
    %v4714 = vld [vmem:[#allocation10 + $0x5b0] sm:$0xff]
    %v4715 = vld [vmem:[#allocation10 + $0x5b8] sm:$0xff]
    %v4716 = vld [vmem:[#allocation10 + $0x5c0] sm:$0xff]
    %v4717 = vld [vmem:[#allocation10 + $0x5c8] sm:$0xff]
    %v4718 = vld [vmem:[#allocation10 + $0x5d0] sm:$0xff]
    %v4719 = vld [vmem:[#allocation10 + $0x5d8] sm:$0xff]
    %v4720 = vld [vmem:[#allocation10 + $0x5e0] sm:$0xff]
    %v4721 = vld [vmem:[#allocation10 + $0x5e8] sm:$0xff]
    %v4722 = vld [vmem:[#allocation10 + $0x5f0] sm:$0xff]
    %v4723 = vld [vmem:[#allocation10 + $0x5f8] sm:$0xff]
    %v4724 = vld [vmem:[#allocation10 + $0x600] sm:$0xff]
    %v4725 = vld [vmem:[#allocation10 + $0x608] sm:$0xff]
    %v4726 = vld [vmem:[#allocation10 + $0x610] sm:$0xff]
    %v4727 = vld [vmem:[#allocation10 + $0x618] sm:$0xff]
    %v4728 = vld [vmem:[#allocation10 + $0x620] sm:$0xff]
    %v4729 = vld [vmem:[#allocation10 + $0x628] sm:$0xff]
    %v4730 = vld [vmem:[#allocation10 + $0x630] sm:$0xff]
    %v4731 = vld [vmem:[#allocation10 + $0x638] sm:$0xff]
    %v4732 = vld [vmem:[#allocation10 + $0x640] sm:$0xff]
    %v4733 = vld [vmem:[#allocation10 + $0x648] sm:$0xff]
    %v4734 = vld [vmem:[#allocation10 + $0x650] sm:$0xff]
    %v4735 = vld [vmem:[#allocation10 + $0x658] sm:$0xff]
    %v4736 = vld [vmem:[#allocation10 + $0x660] sm:$0xff]
    %v4737 = vld [vmem:[#allocation10 + $0x668] sm:$0xff]
    %v4738 = vld [vmem:[#allocation10 + $0x670] sm:$0xff]
    %v4739 = vld [vmem:[#allocation10 + $0x678] sm:$0xff]
    %v4740 = vld [vmem:[#allocation10 + $0x680] sm:$0xff]
    %v4741 = vld [vmem:[#allocation10 + $0x688] sm:$0xff]
    %v4742 = vld [vmem:[#allocation10 + $0x690] sm:$0xff]
    %v4743 = vld [vmem:[#allocation10 + $0x698] sm:$0xff]
    %v4744 = vld [vmem:[#allocation10 + $0x6a0] sm:$0xff]
    %v4745 = vld [vmem:[#allocation10 + $0x6a8] sm:$0xff]
    %v4746 = vld [vmem:[#allocation10 + $0x6b0] sm:$0xff]
    %v4747 = vld [vmem:[#allocation10 + $0x6b8] sm:$0xff]
    %v4748 = vld [vmem:[#allocation10 + $0x6c0] sm:$0xff]
    %v4749 = vld [vmem:[#allocation10 + $0x6c8] sm:$0xff]
    %v4750 = vld [vmem:[#allocation10 + $0x6d0] sm:$0xff]
    %v4751 = vld [vmem:[#allocation10 + $0x6d8] sm:$0xff]
    %v4752 = vld [vmem:[#allocation10 + $0x6e0] sm:$0xff]
    %v4753 = vld [vmem:[#allocation10 + $0x6e8] sm:$0xff]
    %v4754 = vld [vmem:[#allocation10 + $0x6f0] sm:$0xff]
    %v4755 = vld [vmem:[#allocation10 + $0x6f8] sm:$0xff]
    %v4756 = vld [vmem:[#allocation10 + $0x700] sm:$0xff]
    %v4757 = vld [vmem:[#allocation10 + $0x708] sm:$0xff]
    %v4758 = vld [vmem:[#allocation10 + $0x710] sm:$0xff]
    %v4759 = vld [vmem:[#allocation10 + $0x718] sm:$0xff]
    %v4760 = vld [vmem:[#allocation10 + $0x720] sm:$0xff]
    %v4761 = vld [vmem:[#allocation10 + $0x728] sm:$0xff]
    %v4762 = vld [vmem:[#allocation10 + $0x730] sm:$0xff]
    %v4763 = vld [vmem:[#allocation10 + $0x738] sm:$0xff]
    %v4764 = vld [vmem:[#allocation10 + $0x740] sm:$0xff]
    %v4765 = vld [vmem:[#allocation10 + $0x748] sm:$0xff]
    %v4766 = vld [vmem:[#allocation10 + $0x750] sm:$0xff]
    %v4767 = vld [vmem:[#allocation10 + $0x758] sm:$0xff]
    %v4768 = vld [vmem:[#allocation10 + $0x760] sm:$0xff]
    %v4769 = vld [vmem:[#allocation10 + $0x768] sm:$0xff]
    %v4770 = vld [vmem:[#allocation10 + $0x770] sm:$0xff]
    %v4771 = vld [vmem:[#allocation10 + $0x778] sm:$0xff]
    %v4772 = vld [vmem:[#allocation10 + $0x780] sm:$0xff]
    %v4773 = vld [vmem:[#allocation10 + $0x788] sm:$0xff]
    %v4774 = vld [vmem:[#allocation10 + $0x790] sm:$0xff]
    %v4775 = vld [vmem:[#allocation10 + $0x798] sm:$0xff]
    %v4776 = vld [vmem:[#allocation10 + $0x7a0] sm:$0xff]
    %v4777 = vld [vmem:[#allocation10 + $0x7a8] sm:$0xff]
    %v4778 = vld [vmem:[#allocation10 + $0x7b0] sm:$0xff]
    %v4779 = vld [vmem:[#allocation10 + $0x7b8] sm:$0xff]
    %v4780 = vld [vmem:[#allocation10 + $0x7c0] sm:$0xff]
    %v4781 = vld [vmem:[#allocation10 + $0x7c8] sm:$0xff]
    %v4782 = vld [vmem:[#allocation10 + $0x7d0] sm:$0xff]
    %v4783 = vld [vmem:[#allocation10 + $0x7d8] sm:$0xff]
    %v4784 = vld [vmem:[#allocation10 + $0x7e0] sm:$0xff]
    %v4785 = vld [vmem:[#allocation10 + $0x7e8] sm:$0xff]
    %v4786 = vld [vmem:[#allocation10 + $0x7f0] sm:$0xff]
    %v4787 = vld [vmem:[#allocation10 + $0x7f8] sm:$0xff]
    %v4788 = vld [vmem:[#allocation10 + $0x800] sm:$0xff]
    %v4789 = vld [vmem:[#allocation10 + $0x808] sm:$0xff]
    %v4790 = vld [vmem:[#allocation10 + $0x810] sm:$0xff]
    %v4791 = vld [vmem:[#allocation10 + $0x818] sm:$0xff]
    %v4792 = vld [vmem:[#allocation10 + $0x820] sm:$0xff]
    %v4793 = vld [vmem:[#allocation10 + $0x828] sm:$0xff]
    %v4794 = vld [vmem:[#allocation10 + $0x830] sm:$0xff]
    %v4795 = vld [vmem:[#allocation10 + $0x838] sm:$0xff]
    %v4796 = vld [vmem:[#allocation10 + $0x840] sm:$0xff]
    %v4797 = vld [vmem:[#allocation10 + $0x848] sm:$0xff]
    %v4798 = vld [vmem:[#allocation10 + $0x850] sm:$0xff]
    %v4799 = vld [vmem:[#allocation10 + $0x858] sm:$0xff]
    %v4800 = vld [vmem:[#allocation10 + $0x860] sm:$0xff]
    %v4801 = vld [vmem:[#allocation10 + $0x868] sm:$0xff]
    %v4802 = vld [vmem:[#allocation10 + $0x870] sm:$0xff]
    %v4803 = vld [vmem:[#allocation10 + $0x878] sm:$0xff]
    %v4804 = vld [vmem:[#allocation10 + $0x880] sm:$0xff]
    %v4805 = vld [vmem:[#allocation10 + $0x888] sm:$0xff]
    %v4806 = vld [vmem:[#allocation10 + $0x890] sm:$0xff]
    %v4807 = vld [vmem:[#allocation10 + $0x898] sm:$0xff]
    %v4808 = vld [vmem:[#allocation10 + $0x8a0] sm:$0xff]
    %v4809 = vld [vmem:[#allocation10 + $0x8a8] sm:$0xff]
    %v4810 = vld [vmem:[#allocation10 + $0x8b0] sm:$0xff]
    %v4811 = vld [vmem:[#allocation10 + $0x8b8] sm:$0xff]
    %v4812 = vld [vmem:[#allocation10 + $0x8c0] sm:$0xff]
    %v4813 = vld [vmem:[#allocation10 + $0x8c8] sm:$0xff]
    %v4814 = vld [vmem:[#allocation10 + $0x8d0] sm:$0xff]
    %v4815 = vld [vmem:[#allocation10 + $0x8d8] sm:$0xff]
    %v4816 = vld [vmem:[#allocation10 + $0x8e0] sm:$0xff]
    %v4817 = vld [vmem:[#allocation10 + $0x8e8] sm:$0xff]
    %v4818 = vld [vmem:[#allocation10 + $0x8f0] sm:$0xff]
    %v4819 = vld [vmem:[#allocation10 + $0x8f8] sm:$0xff]
    %v4820 = vld [vmem:[#allocation11] sm:$0x3f]
    %v4822 = vlaneseq
    %v4823 = vshrl.u32 %v4822, 7
    %v4824 = vsub.s32 0, %v4823
    %v4825 = vrot.slane %v4820, %v4824
    %v4826 = vlaneseq
    %v4827 = vshrl.u32 %v4826, 7
    %v4828 = vsub.s32 1, %v4827
    %v4829 = vrot.slane %v4820, %v4828
    %v4830 = vlaneseq
    %v4831 = vshrl.u32 %v4830, 7
    %v4832 = vsub.s32 2, %v4831
    %v4833 = vrot.slane %v4820, %v4832
    %v4834 = vlaneseq
    %v4835 = vshrl.u32 %v4834, 7
    %v4836 = vsub.s32 3, %v4835
    %v4837 = vrot.slane %v4820, %v4836
    %v4838 = vlaneseq
    %v4839 = vshrl.u32 %v4838, 7
    %v4840 = vsub.s32 4, %v4839
    %v4841 = vrot.slane %v4820, %v4840
    %v4842 = vlaneseq
    %v4843 = vshrl.u32 %v4842, 7
    %v4844 = vsub.s32 5, %v4843
    %v4845 = vrot.slane %v4820, %v4844
    %v5140 = vunpack.c.l.b16 %v4532
    %v5141 = vunpack.c.h.b16 %v4532
    %v5142 = vunpack.c.l.b16 %v4533
    %v5143 = vunpack.c.h.b16 %v4533
    %v5144 = vunpack.c.l.b16 %v4534
    %v5145 = vunpack.c.h.b16 %v4534
    %v5146 = vunpack.c.l.b16 %v4535
    %v5147 = vunpack.c.h.b16 %v4535
    %v5148 = vunpack.c.l.b16 %v4536
    %v5149 = vunpack.c.h.b16 %v4536
    %v5150 = vunpack.c.l.b16 %v4537
    %v5151 = vunpack.c.h.b16 %v4537
    %v5152 = vunpack.c.l.b16 %v4538
    %v5153 = vunpack.c.h.b16 %v4538
    %v5154 = vunpack.c.l.b16 %v4539
    %v5155 = vunpack.c.h.b16 %v4539
    %v5156 = vunpack.c.l.b16 %v4540
    %v5157 = vunpack.c.h.b16 %v4540
    %v5158 = vunpack.c.l.b16 %v4541
    %v5159 = vunpack.c.h.b16 %v4541
    %v5160 = vunpack.c.l.b16 %v4542
    %v5161 = vunpack.c.h.b16 %v4542
    %v5162 = vunpack.c.l.b16 %v4543
    %v5163 = vunpack.c.h.b16 %v4543
    %v5164 = vunpack.c.l.b16 %v4544
    %v5165 = vunpack.c.h.b16 %v4544
    %v5166 = vunpack.c.l.b16 %v4545
    %v5167 = vunpack.c.h.b16 %v4545
    %v5168 = vunpack.c.l.b16 %v4546
    %v5169 = vunpack.c.h.b16 %v4546
    %v5170 = vunpack.c.l.b16 %v4547
    %v5171 = vunpack.c.h.b16 %v4547
    %v5172 = vunpack.c.l.b16 %v4548
    %v5173 = vunpack.c.h.b16 %v4548
    %v5174 = vunpack.c.l.b16 %v4549
    %v5175 = vunpack.c.h.b16 %v4549
    %v5176 = vunpack.c.l.b16 %v4550
    %v5177 = vunpack.c.h.b16 %v4550
    %v5178 = vunpack.c.l.b16 %v4551
    %v5179 = vunpack.c.h.b16 %v4551
    %v5180 = vunpack.c.l.b16 %v4552
    %v5181 = vunpack.c.h.b16 %v4552
    %v5182 = vunpack.c.l.b16 %v4553
    %v5183 = vunpack.c.h.b16 %v4553
    %v5184 = vunpack.c.l.b16 %v4554
    %v5185 = vunpack.c.h.b16 %v4554
    %v5186 = vunpack.c.l.b16 %v4555
    %v5187 = vunpack.c.h.b16 %v4555
    %v5188 = vunpack.c.l.b16 %v4556
    %v5189 = vunpack.c.h.b16 %v4556
    %v5190 = vunpack.c.l.b16 %v4557
    %v5191 = vunpack.c.h.b16 %v4557
    %v5192 = vunpack.c.l.b16 %v4558
    %v5193 = vunpack.c.h.b16 %v4558
    %v5194 = vunpack.c.l.b16 %v4559
    %v5195 = vunpack.c.h.b16 %v4559
    %v5196 = vunpack.c.l.b16 %v4560
    %v5197 = vunpack.c.h.b16 %v4560
    %v5198 = vunpack.c.l.b16 %v4561
    %v5199 = vunpack.c.h.b16 %v4561
    %v5200 = vunpack.c.l.b16 %v4562
    %v5201 = vunpack.c.h.b16 %v4562
    %v5202 = vunpack.c.l.b16 %v4563
    %v5203 = vunpack.c.h.b16 %v4563
    %v5204 = vunpack.c.l.b16 %v4564
    %v5205 = vunpack.c.h.b16 %v4564
    %v5206 = vunpack.c.l.b16 %v4565
    %v5207 = vunpack.c.h.b16 %v4565
    %v5208 = vunpack.c.l.b16 %v4566
    %v5209 = vunpack.c.h.b16 %v4566
    %v5210 = vunpack.c.l.b16 %v4567
    %v5211 = vunpack.c.h.b16 %v4567
    %v5212 = vunpack.c.l.b16 %v4568
    %v5213 = vunpack.c.h.b16 %v4568
    %v5214 = vunpack.c.l.b16 %v4569
    %v5215 = vunpack.c.h.b16 %v4569
    %v5216 = vunpack.c.l.b16 %v4570
    %v5217 = vunpack.c.h.b16 %v4570
    %v5218 = vunpack.c.l.b16 %v4571
    %v5219 = vunpack.c.h.b16 %v4571
    %v5220 = vunpack.c.l.b16 %v4572
    %v5221 = vunpack.c.h.b16 %v4572
    %v5222 = vunpack.c.l.b16 %v4573
    %v5223 = vunpack.c.h.b16 %v4573
    %v5224 = vunpack.c.l.b16 %v4574
    %v5225 = vunpack.c.h.b16 %v4574
    %v5226 = vunpack.c.l.b16 %v4575
    %v5227 = vunpack.c.h.b16 %v4575
    %v5228 = vunpack.c.l.b16 %v4576
    %v5229 = vunpack.c.h.b16 %v4576
    %v5230 = vunpack.c.l.b16 %v4577
    %v5231 = vunpack.c.h.b16 %v4577
    %v5232 = vunpack.c.l.b16 %v4578
    %v5233 = vunpack.c.h.b16 %v4578
    %v5234 = vunpack.c.l.b16 %v4579
    %v5235 = vunpack.c.h.b16 %v4579
    %v5236 = vunpack.c.l.b16 %v4580
    %v5237 = vunpack.c.h.b16 %v4580
    %v5238 = vunpack.c.l.b16 %v4581
    %v5239 = vunpack.c.h.b16 %v4581
    %v5240 = vunpack.c.l.b16 %v4582
    %v5241 = vunpack.c.h.b16 %v4582
    %v5242 = vunpack.c.l.b16 %v4583
    %v5243 = vunpack.c.h.b16 %v4583
    %v5244 = vunpack.c.l.b16 %v4584
    %v5245 = vunpack.c.h.b16 %v4584
    %v5246 = vunpack.c.l.b16 %v4585
    %v5247 = vunpack.c.h.b16 %v4585
    %v5248 = vunpack.c.l.b16 %v4586
    %v5249 = vunpack.c.h.b16 %v4586
    %v5250 = vunpack.c.l.b16 %v4587
    %v5251 = vunpack.c.h.b16 %v4587
    %v5252 = vunpack.c.l.b16 %v4588
    %v5253 = vunpack.c.h.b16 %v4588
    %v5254 = vunpack.c.l.b16 %v4589
    %v5255 = vunpack.c.h.b16 %v4589
    %v5256 = vunpack.c.l.b16 %v4590
    %v5257 = vunpack.c.h.b16 %v4590
    %v5258 = vunpack.c.l.b16 %v4591
    %v5259 = vunpack.c.h.b16 %v4591
    %v5260 = vunpack.c.l.b16 %v4592
    %v5261 = vunpack.c.h.b16 %v4592
    %v5262 = vunpack.c.l.b16 %v4593
    %v5263 = vunpack.c.h.b16 %v4593
    %v5264 = vunpack.c.l.b16 %v4594
    %v5265 = vunpack.c.h.b16 %v4594
    %v5266 = vunpack.c.l.b16 %v4595
    %v5267 = vunpack.c.h.b16 %v4595
    %v5268 = vunpack.c.l.b16 %v4596
    %v5269 = vunpack.c.h.b16 %v4596
    %v5270 = vunpack.c.l.b16 %v4597
    %v5271 = vunpack.c.h.b16 %v4597
    %v5272 = vunpack.c.l.b16 %v4598
    %v5273 = vunpack.c.h.b16 %v4598
    %v5274 = vunpack.c.l.b16 %v4599
    %v5275 = vunpack.c.h.b16 %v4599
    %v5276 = vunpack.c.l.b16 %v4600
    %v5277 = vunpack.c.h.b16 %v4600
    %v5278 = vunpack.c.l.b16 %v4601
    %v5279 = vunpack.c.h.b16 %v4601
    %v5280 = vunpack.c.l.b16 %v4602
    %v5281 = vunpack.c.h.b16 %v4602
    %v5282 = vunpack.c.l.b16 %v4603
    %v5283 = vunpack.c.h.b16 %v4603
    %v5284 = vunpack.c.l.b16 %v4604
    %v5285 = vunpack.c.h.b16 %v4604
    %v5286 = vunpack.c.l.b16 %v4605
    %v5287 = vunpack.c.h.b16 %v4605
    %v5288 = vunpack.c.l.b16 %v4606
    %v5289 = vunpack.c.h.b16 %v4606
    %v5290 = vunpack.c.l.b16 %v4607
    %v5291 = vunpack.c.h.b16 %v4607
    %v5292 = vunpack.c.l.b16 %v4608
    %v5293 = vunpack.c.h.b16 %v4608
    %v5294 = vunpack.c.l.b16 %v4609
    %v5295 = vunpack.c.h.b16 %v4609
    %v5296 = vunpack.c.l.b16 %v4610
    %v5297 = vunpack.c.h.b16 %v4610
    %v5298 = vunpack.c.l.b16 %v4611
    %v5299 = vunpack.c.h.b16 %v4611
    %v5300 = vunpack.c.l.b16 %v4612
    %v5301 = vunpack.c.h.b16 %v4612
    %v5302 = vunpack.c.l.b16 %v4613
    %v5303 = vunpack.c.h.b16 %v4613
    %v5304 = vunpack.c.l.b16 %v4614
    %v5305 = vunpack.c.h.b16 %v4614
    %v5306 = vunpack.c.l.b16 %v4615
    %v5307 = vunpack.c.h.b16 %v4615
    %v5308 = vunpack.c.l.b16 %v4616
    %v5309 = vunpack.c.h.b16 %v4616
    %v5310 = vunpack.c.l.b16 %v4617
    %v5311 = vunpack.c.h.b16 %v4617
    %v5312 = vunpack.c.l.b16 %v4618
    %v5313 = vunpack.c.h.b16 %v4618
    %v5314 = vunpack.c.l.b16 %v4619
    %v5315 = vunpack.c.h.b16 %v4619
    %v5316 = vunpack.c.l.b16 %v4620
    %v5317 = vunpack.c.h.b16 %v4620
    %v5318 = vunpack.c.l.b16 %v4621
    %v5319 = vunpack.c.h.b16 %v4621
    %v5320 = vunpack.c.l.b16 %v4622
    %v5321 = vunpack.c.h.b16 %v4622
    %v5322 = vunpack.c.l.b16 %v4623
    %v5323 = vunpack.c.h.b16 %v4623
    %v5324 = vunpack.c.l.b16 %v4624
    %v5325 = vunpack.c.h.b16 %v4624
    %v5326 = vunpack.c.l.b16 %v4625
    %v5327 = vunpack.c.h.b16 %v4625
    %v5328 = vunpack.c.l.b16 %v4626
    %v5329 = vunpack.c.h.b16 %v4626
    %v5330 = vunpack.c.l.b16 %v4627
    %v5331 = vunpack.c.h.b16 %v4627
    %v5332 = vunpack.c.l.b16 %v4628
    %v5333 = vunpack.c.h.b16 %v4628
    %v5334 = vunpack.c.l.b16 %v4629
    %v5335 = vunpack.c.h.b16 %v4629
    %v5336 = vunpack.c.l.b16 %v4630
    %v5337 = vunpack.c.h.b16 %v4630
    %v5338 = vunpack.c.l.b16 %v4631
    %v5339 = vunpack.c.h.b16 %v4631
    %v5340 = vunpack.c.l.b16 %v4632
    %v5341 = vunpack.c.h.b16 %v4632
    %v5342 = vunpack.c.l.b16 %v4633
    %v5343 = vunpack.c.h.b16 %v4633
    %v5344 = vunpack.c.l.b16 %v4634
    %v5345 = vunpack.c.h.b16 %v4634
    %v5346 = vunpack.c.l.b16 %v4635
    %v5347 = vunpack.c.h.b16 %v4635
    %v5348 = vunpack.c.l.b16 %v4636
    %v5349 = vunpack.c.h.b16 %v4636
    %v5350 = vunpack.c.l.b16 %v4637
    %v5351 = vunpack.c.h.b16 %v4637
    %v5352 = vunpack.c.l.b16 %v4638
    %v5353 = vunpack.c.h.b16 %v4638
    %v5354 = vunpack.c.l.b16 %v4639
    %v5355 = vunpack.c.h.b16 %v4639
    %v5356 = vunpack.c.l.b16 %v4640
    %v5357 = vunpack.c.h.b16 %v4640
    %v5358 = vunpack.c.l.b16 %v4641
    %v5359 = vunpack.c.h.b16 %v4641
    %v5360 = vunpack.c.l.b16 %v4642
    %v5361 = vunpack.c.h.b16 %v4642
    %v5362 = vunpack.c.l.b16 %v4643
    %v5363 = vunpack.c.h.b16 %v4643
    %v5364 = vunpack.c.l.b16 %v4644
    %v5365 = vunpack.c.h.b16 %v4644
    %v5366 = vunpack.c.l.b16 %v4645
    %v5367 = vunpack.c.h.b16 %v4645
    %v5368 = vunpack.c.l.b16 %v4646
    %v5369 = vunpack.c.h.b16 %v4646
    %v5370 = vunpack.c.l.b16 %v4647
    %v5371 = vunpack.c.h.b16 %v4647
    %v5372 = vunpack.c.l.b16 %v4648
    %v5373 = vunpack.c.h.b16 %v4648
    %v5374 = vunpack.c.l.b16 %v4649
    %v5375 = vunpack.c.h.b16 %v4649
    %v5376 = vunpack.c.l.b16 %v4650
    %v5377 = vunpack.c.h.b16 %v4650
    %v5378 = vunpack.c.l.b16 %v4651
    %v5379 = vunpack.c.h.b16 %v4651
    %v5380 = vunpack.c.l.b16 %v4652
    %v5381 = vunpack.c.h.b16 %v4652
    %v5382 = vunpack.c.l.b16 %v4653
    %v5383 = vunpack.c.h.b16 %v4653
    %v5384 = vunpack.c.l.b16 %v4654
    %v5385 = vunpack.c.h.b16 %v4654
    %v5386 = vunpack.c.l.b16 %v4655
    %v5387 = vunpack.c.h.b16 %v4655
    %v5388 = vunpack.c.l.b16 %v4656
    %v5389 = vunpack.c.h.b16 %v4656
    %v5390 = vunpack.c.l.b16 %v4657
    %v5391 = vunpack.c.h.b16 %v4657
    %v5392 = vunpack.c.l.b16 %v4658
    %v5393 = vunpack.c.h.b16 %v4658
    %v5394 = vunpack.c.l.b16 %v4659
    %v5395 = vunpack.c.h.b16 %v4659
    %v5396 = vunpack.c.l.b16 %v4660
    %v5397 = vunpack.c.h.b16 %v4660
    %v5398 = vunpack.c.l.b16 %v4661
    %v5399 = vunpack.c.h.b16 %v4661
    %v5400 = vunpack.c.l.b16 %v4662
    %v5401 = vunpack.c.h.b16 %v4662
    %v5402 = vunpack.c.l.b16 %v4663
    %v5403 = vunpack.c.h.b16 %v4663
    %v5404 = vunpack.c.l.b16 %v4664
    %v5405 = vunpack.c.h.b16 %v4664
    %v5406 = vunpack.c.l.b16 %v4665
    %v5407 = vunpack.c.h.b16 %v4665
    %v5408 = vunpack.c.l.b16 %v4666
    %v5409 = vunpack.c.h.b16 %v4666
    %v5410 = vunpack.c.l.b16 %v4667
    %v5411 = vunpack.c.h.b16 %v4667
    %v5412 = vunpack.c.l.b16 %v4668
    %v5413 = vunpack.c.h.b16 %v4668
    %v5414 = vunpack.c.l.b16 %v4669
    %v5415 = vunpack.c.h.b16 %v4669
    %v5416 = vunpack.c.l.b16 %v4670
    %v5417 = vunpack.c.h.b16 %v4670
    %v5418 = vunpack.c.l.b16 %v4671
    %v5419 = vunpack.c.h.b16 %v4671
    %v5420 = vunpack.c.l.b16 %v4672
    %v5421 = vunpack.c.h.b16 %v4672
    %v5422 = vunpack.c.l.b16 %v4673
    %v5423 = vunpack.c.h.b16 %v4673
    %v5424 = vunpack.c.l.b16 %v4674
    %v5425 = vunpack.c.h.b16 %v4674
    %v5426 = vunpack.c.l.b16 %v4675
    %v5427 = vunpack.c.h.b16 %v4675
    %v5428 = vunpack.c.l.b16 %v4676
    %v5429 = vunpack.c.h.b16 %v4676
    %v5430 = vunpack.c.l.b16 %v4677
    %v5431 = vunpack.c.h.b16 %v4677
    %v5432 = vunpack.c.l.b16 %v4678
    %v5433 = vunpack.c.h.b16 %v4678
    %v5434 = vunpack.c.l.b16 %v4679
    %v5435 = vunpack.c.h.b16 %v4679
    %v5436 = vunpack.c.l.b16 %v4680
    %v5437 = vunpack.c.h.b16 %v4680
    %v5438 = vunpack.c.l.b16 %v4681
    %v5439 = vunpack.c.h.b16 %v4681
    %v5440 = vunpack.c.l.b16 %v4682
    %v5441 = vunpack.c.h.b16 %v4682
    %v5442 = vunpack.c.l.b16 %v4683
    %v5443 = vunpack.c.h.b16 %v4683
    %v5444 = vunpack.c.l.b16 %v4684
    %v5445 = vunpack.c.h.b16 %v4684
    %v5446 = vunpack.c.l.b16 %v4685
    %v5447 = vunpack.c.h.b16 %v4685
    %v5448 = vunpack.c.l.b16 %v4686
    %v5449 = vunpack.c.h.b16 %v4686
    %v5450 = vunpack.c.l.b16 %v4687
    %v5451 = vunpack.c.h.b16 %v4687
    %v5452 = vunpack.c.l.b16 %v4688
    %v5453 = vunpack.c.h.b16 %v4688
    %v5454 = vunpack.c.l.b16 %v4689
    %v5455 = vunpack.c.h.b16 %v4689
    %v5456 = vunpack.c.l.b16 %v4690
    %v5457 = vunpack.c.h.b16 %v4690
    %v5458 = vunpack.c.l.b16 %v4691
    %v5459 = vunpack.c.h.b16 %v4691
    %v5460 = vunpack.c.l.b16 %v4692
    %v5461 = vunpack.c.h.b16 %v4692
    %v5462 = vunpack.c.l.b16 %v4693
    %v5463 = vunpack.c.h.b16 %v4693
    %v5464 = vunpack.c.l.b16 %v4694
    %v5465 = vunpack.c.h.b16 %v4694
    %v5466 = vunpack.c.l.b16 %v4695
    %v5467 = vunpack.c.h.b16 %v4695
    %v5468 = vunpack.c.l.b16 %v4696
    %v5469 = vunpack.c.h.b16 %v4696
    %v5470 = vunpack.c.l.b16 %v4697
    %v5471 = vunpack.c.h.b16 %v4697
    %v5472 = vunpack.c.l.b16 %v4698
    %v5473 = vunpack.c.h.b16 %v4698
    %v5474 = vunpack.c.l.b16 %v4699
    %v5475 = vunpack.c.h.b16 %v4699
    %v5476 = vunpack.c.l.b16 %v4700
    %v5477 = vunpack.c.h.b16 %v4700
    %v5478 = vunpack.c.l.b16 %v4701
    %v5479 = vunpack.c.h.b16 %v4701
    %v5480 = vunpack.c.l.b16 %v4702
    %v5481 = vunpack.c.h.b16 %v4702
    %v5482 = vunpack.c.l.b16 %v4703
    %v5483 = vunpack.c.h.b16 %v4703
    %v5484 = vunpack.c.l.b16 %v4704
    %v5485 = vunpack.c.h.b16 %v4704
    %v5486 = vunpack.c.l.b16 %v4705
    %v5487 = vunpack.c.h.b16 %v4705
    %v5488 = vunpack.c.l.b16 %v4706
    %v5489 = vunpack.c.h.b16 %v4706
    %v5490 = vunpack.c.l.b16 %v4707
    %v5491 = vunpack.c.h.b16 %v4707
    %v5492 = vunpack.c.l.b16 %v4708
    %v5493 = vunpack.c.h.b16 %v4708
    %v5494 = vunpack.c.l.b16 %v4709
    %v5495 = vunpack.c.h.b16 %v4709
    %v5496 = vunpack.c.l.b16 %v4710
    %v5497 = vunpack.c.h.b16 %v4710
    %v5498 = vunpack.c.l.b16 %v4711
    %v5499 = vunpack.c.h.b16 %v4711
    %v5500 = vunpack.c.l.b16 %v4712
    %v5501 = vunpack.c.h.b16 %v4712
    %v5502 = vunpack.c.l.b16 %v4713
    %v5503 = vunpack.c.h.b16 %v4713
    %v5504 = vunpack.c.l.b16 %v4714
    %v5505 = vunpack.c.h.b16 %v4714
    %v5506 = vunpack.c.l.b16 %v4715
    %v5507 = vunpack.c.h.b16 %v4715
    %v5508 = vunpack.c.l.b16 %v4716
    %v5509 = vunpack.c.h.b16 %v4716
    %v5510 = vunpack.c.l.b16 %v4717
    %v5511 = vunpack.c.h.b16 %v4717
    %v5512 = vunpack.c.l.b16 %v4718
    %v5513 = vunpack.c.h.b16 %v4718
    %v5514 = vunpack.c.l.b16 %v4719
    %v5515 = vunpack.c.h.b16 %v4719
    %v5516 = vunpack.c.l.b16 %v4720
    %v5517 = vunpack.c.h.b16 %v4720
    %v5518 = vunpack.c.l.b16 %v4721
    %v5519 = vunpack.c.h.b16 %v4721
    %v5520 = vunpack.c.l.b16 %v4722
    %v5521 = vunpack.c.h.b16 %v4722
    %v5522 = vunpack.c.l.b16 %v4723
    %v5523 = vunpack.c.h.b16 %v4723
    %v5524 = vunpack.c.l.b16 %v4724
    %v5525 = vunpack.c.h.b16 %v4724
    %v5526 = vunpack.c.l.b16 %v4725
    %v5527 = vunpack.c.h.b16 %v4725
    %v5528 = vunpack.c.l.b16 %v4726
    %v5529 = vunpack.c.h.b16 %v4726
    %v5530 = vunpack.c.l.b16 %v4727
    %v5531 = vunpack.c.h.b16 %v4727
    %v5532 = vunpack.c.l.b16 %v4728
    %v5533 = vunpack.c.h.b16 %v4728
    %v5534 = vunpack.c.l.b16 %v4729
    %v5535 = vunpack.c.h.b16 %v4729
    %v5536 = vunpack.c.l.b16 %v4730
    %v5537 = vunpack.c.h.b16 %v4730
    %v5538 = vunpack.c.l.b16 %v4731
    %v5539 = vunpack.c.h.b16 %v4731
    %v5540 = vunpack.c.l.b16 %v4732
    %v5541 = vunpack.c.h.b16 %v4732
    %v5542 = vunpack.c.l.b16 %v4733
    %v5543 = vunpack.c.h.b16 %v4733
    %v5544 = vunpack.c.l.b16 %v4734
    %v5545 = vunpack.c.h.b16 %v4734
    %v5546 = vunpack.c.l.b16 %v4735
    %v5547 = vunpack.c.h.b16 %v4735
    %v5548 = vunpack.c.l.b16 %v4736
    %v5549 = vunpack.c.h.b16 %v4736
    %v5550 = vunpack.c.l.b16 %v4737
    %v5551 = vunpack.c.h.b16 %v4737
    %v5552 = vunpack.c.l.b16 %v4738
    %v5553 = vunpack.c.h.b16 %v4738
    %v5554 = vunpack.c.l.b16 %v4739
    %v5555 = vunpack.c.h.b16 %v4739
    %v5556 = vunpack.c.l.b16 %v4740
    %v5557 = vunpack.c.h.b16 %v4740
    %v5558 = vunpack.c.l.b16 %v4741
    %v5559 = vunpack.c.h.b16 %v4741
    %v5560 = vunpack.c.l.b16 %v4742
    %v5561 = vunpack.c.h.b16 %v4742
    %v5562 = vunpack.c.l.b16 %v4743
    %v5563 = vunpack.c.h.b16 %v4743
    %v5564 = vunpack.c.l.b16 %v4744
    %v5565 = vunpack.c.h.b16 %v4744
    %v5566 = vunpack.c.l.b16 %v4745
    %v5567 = vunpack.c.h.b16 %v4745
    %v5568 = vunpack.c.l.b16 %v4746
    %v5569 = vunpack.c.h.b16 %v4746
    %v5570 = vunpack.c.l.b16 %v4747
    %v5571 = vunpack.c.h.b16 %v4747
    %v5572 = vunpack.c.l.b16 %v4748
    %v5573 = vunpack.c.h.b16 %v4748
    %v5574 = vunpack.c.l.b16 %v4749
    %v5575 = vunpack.c.h.b16 %v4749
    %v5576 = vunpack.c.l.b16 %v4750
    %v5577 = vunpack.c.h.b16 %v4750
    %v5578 = vunpack.c.l.b16 %v4751
    %v5579 = vunpack.c.h.b16 %v4751
    %v5580 = vunpack.c.l.b16 %v4752
    %v5581 = vunpack.c.h.b16 %v4752
    %v5582 = vunpack.c.l.b16 %v4753
    %v5583 = vunpack.c.h.b16 %v4753
    %v5584 = vunpack.c.l.b16 %v4754
    %v5585 = vunpack.c.h.b16 %v4754
    %v5586 = vunpack.c.l.b16 %v4755
    %v5587 = vunpack.c.h.b16 %v4755
    %v5588 = vunpack.c.l.b16 %v4756
    %v5589 = vunpack.c.h.b16 %v4756
    %v5590 = vunpack.c.l.b16 %v4757
    %v5591 = vunpack.c.h.b16 %v4757
    %v5592 = vunpack.c.l.b16 %v4758
    %v5593 = vunpack.c.h.b16 %v4758
    %v5594 = vunpack.c.l.b16 %v4759
    %v5595 = vunpack.c.h.b16 %v4759
    %v5596 = vunpack.c.l.b16 %v4760
    %v5597 = vunpack.c.h.b16 %v4760
    %v5598 = vunpack.c.l.b16 %v4761
    %v5599 = vunpack.c.h.b16 %v4761
    %v5600 = vunpack.c.l.b16 %v4762
    %v5601 = vunpack.c.h.b16 %v4762
    %v5602 = vunpack.c.l.b16 %v4763
    %v5603 = vunpack.c.h.b16 %v4763
    %v5604 = vunpack.c.l.b16 %v4764
    %v5605 = vunpack.c.h.b16 %v4764
    %v5606 = vunpack.c.l.b16 %v4765
    %v5607 = vunpack.c.h.b16 %v4765
    %v5608 = vunpack.c.l.b16 %v4766
    %v5609 = vunpack.c.h.b16 %v4766
    %v5610 = vunpack.c.l.b16 %v4767
    %v5611 = vunpack.c.h.b16 %v4767
    %v5612 = vunpack.c.l.b16 %v4768
    %v5613 = vunpack.c.h.b16 %v4768
    %v5614 = vunpack.c.l.b16 %v4769
    %v5615 = vunpack.c.h.b16 %v4769
    %v5616 = vunpack.c.l.b16 %v4770
    %v5617 = vunpack.c.h.b16 %v4770
    %v5618 = vunpack.c.l.b16 %v4771
    %v5619 = vunpack.c.h.b16 %v4771
    %v5620 = vunpack.c.l.b16 %v4772
    %v5621 = vunpack.c.h.b16 %v4772
    %v5622 = vunpack.c.l.b16 %v4773
    %v5623 = vunpack.c.h.b16 %v4773
    %v5624 = vunpack.c.l.b16 %v4774
    %v5625 = vunpack.c.h.b16 %v4774
    %v5626 = vunpack.c.l.b16 %v4775
    %v5627 = vunpack.c.h.b16 %v4775
    %v5628 = vunpack.c.l.b16 %v4776
    %v5629 = vunpack.c.h.b16 %v4776
    %v5630 = vunpack.c.l.b16 %v4777
    %v5631 = vunpack.c.h.b16 %v4777
    %v5632 = vunpack.c.l.b16 %v4778
    %v5633 = vunpack.c.h.b16 %v4778
    %v5634 = vunpack.c.l.b16 %v4779
    %v5635 = vunpack.c.h.b16 %v4779
    %v5636 = vunpack.c.l.b16 %v4780
    %v5637 = vunpack.c.h.b16 %v4780
    %v5638 = vunpack.c.l.b16 %v4781
    %v5639 = vunpack.c.h.b16 %v4781
    %v5640 = vunpack.c.l.b16 %v4782
    %v5641 = vunpack.c.h.b16 %v4782
    %v5642 = vunpack.c.l.b16 %v4783
    %v5643 = vunpack.c.h.b16 %v4783
    %v5644 = vunpack.c.l.b16 %v4784
    %v5645 = vunpack.c.h.b16 %v4784
    %v5646 = vunpack.c.l.b16 %v4785
    %v5647 = vunpack.c.h.b16 %v4785
    %v5648 = vunpack.c.l.b16 %v4786
    %v5649 = vunpack.c.h.b16 %v4786
    %v5650 = vunpack.c.l.b16 %v4787
    %v5651 = vunpack.c.h.b16 %v4787
    %v5652 = vunpack.c.l.b16 %v4788
    %v5653 = vunpack.c.h.b16 %v4788
    %v5654 = vunpack.c.l.b16 %v4789
    %v5655 = vunpack.c.h.b16 %v4789
    %v5656 = vunpack.c.l.b16 %v4790
    %v5657 = vunpack.c.h.b16 %v4790
    %v5658 = vunpack.c.l.b16 %v4791
    %v5659 = vunpack.c.h.b16 %v4791
    %v5660 = vunpack.c.l.b16 %v4792
    %v5661 = vunpack.c.h.b16 %v4792
    %v5662 = vunpack.c.l.b16 %v4793
    %v5663 = vunpack.c.h.b16 %v4793
    %v5664 = vunpack.c.l.b16 %v4794
    %v5665 = vunpack.c.h.b16 %v4794
    %v5666 = vunpack.c.l.b16 %v4795
    %v5667 = vunpack.c.h.b16 %v4795
    %v5668 = vunpack.c.l.b16 %v4796
    %v5669 = vunpack.c.h.b16 %v4796
    %v5670 = vunpack.c.l.b16 %v4797
    %v5671 = vunpack.c.h.b16 %v4797
    %v5672 = vunpack.c.l.b16 %v4798
    %v5673 = vunpack.c.h.b16 %v4798
    %v5674 = vunpack.c.l.b16 %v4799
    %v5675 = vunpack.c.h.b16 %v4799
    %v5676 = vunpack.c.l.b16 %v4800
    %v5677 = vunpack.c.h.b16 %v4800
    %v5678 = vunpack.c.l.b16 %v4801
    %v5679 = vunpack.c.h.b16 %v4801
    %v5680 = vunpack.c.l.b16 %v4802
    %v5681 = vunpack.c.h.b16 %v4802
    %v5682 = vunpack.c.l.b16 %v4803
    %v5683 = vunpack.c.h.b16 %v4803
    %v5684 = vunpack.c.l.b16 %v4804
    %v5685 = vunpack.c.h.b16 %v4804
    %v5686 = vunpack.c.l.b16 %v4805
    %v5687 = vunpack.c.h.b16 %v4805
    %v5688 = vunpack.c.l.b16 %v4806
    %v5689 = vunpack.c.h.b16 %v4806
    %v5690 = vunpack.c.l.b16 %v4807
    %v5691 = vunpack.c.h.b16 %v4807
    %v5692 = vunpack.c.l.b16 %v4808
    %v5693 = vunpack.c.h.b16 %v4808
    %v5694 = vunpack.c.l.b16 %v4809
    %v5695 = vunpack.c.h.b16 %v4809
    %v5696 = vunpack.c.l.b16 %v4810
    %v5697 = vunpack.c.h.b16 %v4810
    %v5698 = vunpack.c.l.b16 %v4811
    %v5699 = vunpack.c.h.b16 %v4811
    %v5700 = vunpack.c.l.b16 %v4812
    %v5701 = vunpack.c.h.b16 %v4812
    %v5702 = vunpack.c.l.b16 %v4813
    %v5703 = vunpack.c.h.b16 %v4813
    %v5704 = vunpack.c.l.b16 %v4814
    %v5705 = vunpack.c.h.b16 %v4814
    %v5706 = vunpack.c.l.b16 %v4815
    %v5707 = vunpack.c.h.b16 %v4815
    %v5708 = vunpack.c.l.b16 %v4816
    %v5709 = vunpack.c.h.b16 %v4816
    %v5710 = vunpack.c.l.b16 %v4817
    %v5711 = vunpack.c.h.b16 %v4817
    %v5712 = vunpack.c.l.b16 %v4818
    %v5713 = vunpack.c.h.b16 %v4818
    %v5714 = vunpack.c.l.b16 %v4819
    %v5715 = vunpack.c.h.b16 %v4819
    %v5716 = vpack.c.b16 %v5146, %v5140
    %v5717 = vpack.c.b16 %v5147, %v5141
    %v5718 = vpack.c.b16 %v5148, %v5142
    %v5719 = vpack.c.b16 %v5149, %v5143
    %v5720 = vpack.c.b16 %v5150, %v5144
    %v5721 = vpack.c.b16 %v5151, %v5145
    %v5722 = vpack.c.b16 %v5158, %v5152
    %v5723 = vpack.c.b16 %v5159, %v5153
    %v5724 = vpack.c.b16 %v5160, %v5154
    %v5725 = vpack.c.b16 %v5161, %v5155
    %v5726 = vpack.c.b16 %v5162, %v5156
    %v5727 = vpack.c.b16 %v5163, %v5157
    %v5728 = vpack.c.b16 %v5170, %v5164
    %v5729 = vpack.c.b16 %v5171, %v5165
    %v5730 = vpack.c.b16 %v5172, %v5166
    %v5731 = vpack.c.b16 %v5173, %v5167
    %v5732 = vpack.c.b16 %v5174, %v5168
    %v5733 = vpack.c.b16 %v5175, %v5169
    %v5734 = vpack.c.b16 %v5182, %v5176
    %v5735 = vpack.c.b16 %v5183, %v5177
    %v5736 = vpack.c.b16 %v5184, %v5178
    %v5737 = vpack.c.b16 %v5185, %v5179
    %v5738 = vpack.c.b16 %v5186, %v5180
    %v5739 = vpack.c.b16 %v5187, %v5181
    %v5740 = vpack.c.b16 %v5194, %v5188
    %v5741 = vpack.c.b16 %v5195, %v5189
    %v5742 = vpack.c.b16 %v5196, %v5190
    %v5743 = vpack.c.b16 %v5197, %v5191
    %v5744 = vpack.c.b16 %v5198, %v5192
    %v5745 = vpack.c.b16 %v5199, %v5193
    %v5746 = vpack.c.b16 %v5206, %v5200
    %v5747 = vpack.c.b16 %v5207, %v5201
    %v5748 = vpack.c.b16 %v5208, %v5202
    %v5749 = vpack.c.b16 %v5209, %v5203
    %v5750 = vpack.c.b16 %v5210, %v5204
    %v5751 = vpack.c.b16 %v5211, %v5205
    %v5752 = vpack.c.b16 %v5218, %v5212
    %v5753 = vpack.c.b16 %v5219, %v5213
    %v5754 = vpack.c.b16 %v5220, %v5214
    %v5755 = vpack.c.b16 %v5221, %v5215
    %v5756 = vpack.c.b16 %v5222, %v5216
    %v5757 = vpack.c.b16 %v5223, %v5217
    %v5758 = vpack.c.b16 %v5230, %v5224
    %v5759 = vpack.c.b16 %v5231, %v5225
    %v5760 = vpack.c.b16 %v5232, %v5226
    %v5761 = vpack.c.b16 %v5233, %v5227
    %v5762 = vpack.c.b16 %v5234, %v5228
    %v5763 = vpack.c.b16 %v5235, %v5229
    %v5764 = vpack.c.b16 %v5242, %v5236
    %v5765 = vpack.c.b16 %v5243, %v5237
    %v5766 = vpack.c.b16 %v5244, %v5238
    %v5767 = vpack.c.b16 %v5245, %v5239
    %v5768 = vpack.c.b16 %v5246, %v5240
    %v5769 = vpack.c.b16 %v5247, %v5241
    %v5770 = vpack.c.b16 %v5254, %v5248
    %v5771 = vpack.c.b16 %v5255, %v5249
    %v5772 = vpack.c.b16 %v5256, %v5250
    %v5773 = vpack.c.b16 %v5257, %v5251
    %v5774 = vpack.c.b16 %v5258, %v5252
    %v5775 = vpack.c.b16 %v5259, %v5253
    %v5776 = vpack.c.b16 %v5266, %v5260
    %v5777 = vpack.c.b16 %v5267, %v5261
    %v5778 = vpack.c.b16 %v5268, %v5262
    %v5779 = vpack.c.b16 %v5269, %v5263
    %v5780 = vpack.c.b16 %v5270, %v5264
    %v5781 = vpack.c.b16 %v5271, %v5265
    %v5782 = vpack.c.b16 %v5278, %v5272
    %v5783 = vpack.c.b16 %v5279, %v5273
    %v5784 = vpack.c.b16 %v5280, %v5274
    %v5785 = vpack.c.b16 %v5281, %v5275
    %v5786 = vpack.c.b16 %v5282, %v5276
    %v5787 = vpack.c.b16 %v5283, %v5277
    %v5788 = vpack.c.b16 %v5290, %v5284
    %v5789 = vpack.c.b16 %v5291, %v5285
    %v5790 = vpack.c.b16 %v5292, %v5286
    %v5791 = vpack.c.b16 %v5293, %v5287
    %v5792 = vpack.c.b16 %v5294, %v5288
    %v5793 = vpack.c.b16 %v5295, %v5289
    %v5794 = vpack.c.b16 %v5302, %v5296
    %v5795 = vpack.c.b16 %v5303, %v5297
    %v5796 = vpack.c.b16 %v5304, %v5298
    %v5797 = vpack.c.b16 %v5305, %v5299
    %v5798 = vpack.c.b16 %v5306, %v5300
    %v5799 = vpack.c.b16 %v5307, %v5301
    %v5800 = vpack.c.b16 %v5314, %v5308
    %v5801 = vpack.c.b16 %v5315, %v5309
    %v5802 = vpack.c.b16 %v5316, %v5310
    %v5803 = vpack.c.b16 %v5317, %v5311
    %v5804 = vpack.c.b16 %v5318, %v5312
    %v5805 = vpack.c.b16 %v5319, %v5313
    %v5806 = vpack.c.b16 %v5326, %v5320
    %v5807 = vpack.c.b16 %v5327, %v5321
    %v5808 = vpack.c.b16 %v5328, %v5322
    %v5809 = vpack.c.b16 %v5329, %v5323
    %v5810 = vpack.c.b16 %v5330, %v5324
    %v5811 = vpack.c.b16 %v5331, %v5325
    %v5812 = vpack.c.b16 %v5338, %v5332
    %v5813 = vpack.c.b16 %v5339, %v5333
    %v5814 = vpack.c.b16 %v5340, %v5334
    %v5815 = vpack.c.b16 %v5341, %v5335
    %v5816 = vpack.c.b16 %v5342, %v5336
    %v5817 = vpack.c.b16 %v5343, %v5337
    %v5818 = vpack.c.b16 %v5350, %v5344
    %v5819 = vpack.c.b16 %v5351, %v5345
    %v5820 = vpack.c.b16 %v5352, %v5346
    %v5821 = vpack.c.b16 %v5353, %v5347
    %v5822 = vpack.c.b16 %v5354, %v5348
    %v5823 = vpack.c.b16 %v5355, %v5349
    %v5824 = vpack.c.b16 %v5362, %v5356
    %v5825 = vpack.c.b16 %v5363, %v5357
    %v5826 = vpack.c.b16 %v5364, %v5358
    %v5827 = vpack.c.b16 %v5365, %v5359
    %v5828 = vpack.c.b16 %v5366, %v5360
    %v5829 = vpack.c.b16 %v5367, %v5361
    %v5830 = vpack.c.b16 %v5374, %v5368
    %v5831 = vpack.c.b16 %v5375, %v5369
    %v5832 = vpack.c.b16 %v5376, %v5370
    %v5833 = vpack.c.b16 %v5377, %v5371
    %v5834 = vpack.c.b16 %v5378, %v5372
    %v5835 = vpack.c.b16 %v5379, %v5373
    %v5836 = vpack.c.b16 %v5386, %v5380
    %v5837 = vpack.c.b16 %v5387, %v5381
    %v5838 = vpack.c.b16 %v5388, %v5382
    %v5839 = vpack.c.b16 %v5389, %v5383
    %v5840 = vpack.c.b16 %v5390, %v5384
    %v5841 = vpack.c.b16 %v5391, %v5385
    %v5842 = vpack.c.b16 %v5398, %v5392
    %v5843 = vpack.c.b16 %v5399, %v5393
    %v5844 = vpack.c.b16 %v5400, %v5394
    %v5845 = vpack.c.b16 %v5401, %v5395
    %v5846 = vpack.c.b16 %v5402, %v5396
    %v5847 = vpack.c.b16 %v5403, %v5397
    %v5848 = vpack.c.b16 %v5410, %v5404
    %v5849 = vpack.c.b16 %v5411, %v5405
    %v5850 = vpack.c.b16 %v5412, %v5406
    %v5851 = vpack.c.b16 %v5413, %v5407
    %v5852 = vpack.c.b16 %v5414, %v5408
    %v5853 = vpack.c.b16 %v5415, %v5409
    %v5854 = vpack.c.b16 %v5422, %v5416
    %v5855 = vpack.c.b16 %v5423, %v5417
    %v5856 = vpack.c.b16 %v5424, %v5418
    %v5857 = vpack.c.b16 %v5425, %v5419
    %v5858 = vpack.c.b16 %v5426, %v5420
    %v5859 = vpack.c.b16 %v5427, %v5421
    %v5860 = vpack.c.b16 %v5434, %v5428
    %v5861 = vpack.c.b16 %v5435, %v5429
    %v5862 = vpack.c.b16 %v5436, %v5430
    %v5863 = vpack.c.b16 %v5437, %v5431
    %v5864 = vpack.c.b16 %v5438, %v5432
    %v5865 = vpack.c.b16 %v5439, %v5433
    %v5866 = vpack.c.b16 %v5446, %v5440
    %v5867 = vpack.c.b16 %v5447, %v5441
    %v5868 = vpack.c.b16 %v5448, %v5442
    %v5869 = vpack.c.b16 %v5449, %v5443
    %v5870 = vpack.c.b16 %v5450, %v5444
    %v5871 = vpack.c.b16 %v5451, %v5445
    %v5872 = vpack.c.b16 %v5458, %v5452
    %v5873 = vpack.c.b16 %v5459, %v5453
    %v5874 = vpack.c.b16 %v5460, %v5454
    %v5875 = vpack.c.b16 %v5461, %v5455
    %v5876 = vpack.c.b16 %v5462, %v5456
    %v5877 = vpack.c.b16 %v5463, %v5457
    %v5878 = vpack.c.b16 %v5470, %v5464
    %v5879 = vpack.c.b16 %v5471, %v5465
    %v5880 = vpack.c.b16 %v5472, %v5466
    %v5881 = vpack.c.b16 %v5473, %v5467
    %v5882 = vpack.c.b16 %v5474, %v5468
    %v5883 = vpack.c.b16 %v5475, %v5469
    %v5884 = vpack.c.b16 %v5482, %v5476
    %v5885 = vpack.c.b16 %v5483, %v5477
    %v5886 = vpack.c.b16 %v5484, %v5478
    %v5887 = vpack.c.b16 %v5485, %v5479
    %v5888 = vpack.c.b16 %v5486, %v5480
    %v5889 = vpack.c.b16 %v5487, %v5481
    %v5890 = vpack.c.b16 %v5494, %v5488
    %v5891 = vpack.c.b16 %v5495, %v5489
    %v5892 = vpack.c.b16 %v5496, %v5490
    %v5893 = vpack.c.b16 %v5497, %v5491
    %v5894 = vpack.c.b16 %v5498, %v5492
    %v5895 = vpack.c.b16 %v5499, %v5493
    %v5896 = vpack.c.b16 %v5506, %v5500
    %v5897 = vpack.c.b16 %v5507, %v5501
    %v5898 = vpack.c.b16 %v5508, %v5502
    %v5899 = vpack.c.b16 %v5509, %v5503
    %v5900 = vpack.c.b16 %v5510, %v5504
    %v5901 = vpack.c.b16 %v5511, %v5505
    %v5902 = vpack.c.b16 %v5518, %v5512
    %v5903 = vpack.c.b16 %v5519, %v5513
    %v5904 = vpack.c.b16 %v5520, %v5514
    %v5905 = vpack.c.b16 %v5521, %v5515
    %v5906 = vpack.c.b16 %v5522, %v5516
    %v5907 = vpack.c.b16 %v5523, %v5517
    %v5908 = vpack.c.b16 %v5530, %v5524
    %v5909 = vpack.c.b16 %v5531, %v5525
    %v5910 = vpack.c.b16 %v5532, %v5526
    %v5911 = vpack.c.b16 %v5533, %v5527
    %v5912 = vpack.c.b16 %v5534, %v5528
    %v5913 = vpack.c.b16 %v5535, %v5529
    %v5914 = vpack.c.b16 %v5542, %v5536
    %v5915 = vpack.c.b16 %v5543, %v5537
    %v5916 = vpack.c.b16 %v5544, %v5538
    %v5917 = vpack.c.b16 %v5545, %v5539
    %v5918 = vpack.c.b16 %v5546, %v5540
    %v5919 = vpack.c.b16 %v5547, %v5541
    %v5920 = vpack.c.b16 %v5554, %v5548
    %v5921 = vpack.c.b16 %v5555, %v5549
    %v5922 = vpack.c.b16 %v5556, %v5550
    %v5923 = vpack.c.b16 %v5557, %v5551
    %v5924 = vpack.c.b16 %v5558, %v5552
    %v5925 = vpack.c.b16 %v5559, %v5553
    %v5926 = vpack.c.b16 %v5566, %v5560
    %v5927 = vpack.c.b16 %v5567, %v5561
    %v5928 = vpack.c.b16 %v5568, %v5562
    %v5929 = vpack.c.b16 %v5569, %v5563
    %v5930 = vpack.c.b16 %v5570, %v5564
    %v5931 = vpack.c.b16 %v5571, %v5565
    %v5932 = vpack.c.b16 %v5578, %v5572
    %v5933 = vpack.c.b16 %v5579, %v5573
    %v5934 = vpack.c.b16 %v5580, %v5574
    %v5935 = vpack.c.b16 %v5581, %v5575
    %v5936 = vpack.c.b16 %v5582, %v5576
    %v5937 = vpack.c.b16 %v5583, %v5577
    %v5938 = vpack.c.b16 %v5590, %v5584
    %v5939 = vpack.c.b16 %v5591, %v5585
    %v5940 = vpack.c.b16 %v5592, %v5586
    %v5941 = vpack.c.b16 %v5593, %v5587
    %v5942 = vpack.c.b16 %v5594, %v5588
    %v5943 = vpack.c.b16 %v5595, %v5589
    %v5944 = vpack.c.b16 %v5602, %v5596
    %v5945 = vpack.c.b16 %v5603, %v5597
    %v5946 = vpack.c.b16 %v5604, %v5598
    %v5947 = vpack.c.b16 %v5605, %v5599
    %v5948 = vpack.c.b16 %v5606, %v5600
    %v5949 = vpack.c.b16 %v5607, %v5601
    %v5950 = vpack.c.b16 %v5614, %v5608
    %v5951 = vpack.c.b16 %v5615, %v5609
    %v5952 = vpack.c.b16 %v5616, %v5610
    %v5953 = vpack.c.b16 %v5617, %v5611
    %v5954 = vpack.c.b16 %v5618, %v5612
    %v5955 = vpack.c.b16 %v5619, %v5613
    %v5956 = vpack.c.b16 %v5626, %v5620
    %v5957 = vpack.c.b16 %v5627, %v5621
    %v5958 = vpack.c.b16 %v5628, %v5622
    %v5959 = vpack.c.b16 %v5629, %v5623
    %v5960 = vpack.c.b16 %v5630, %v5624
    %v5961 = vpack.c.b16 %v5631, %v5625
    %v5962 = vpack.c.b16 %v5638, %v5632
    %v5963 = vpack.c.b16 %v5639, %v5633
    %v5964 = vpack.c.b16 %v5640, %v5634
    %v5965 = vpack.c.b16 %v5641, %v5635
    %v5966 = vpack.c.b16 %v5642, %v5636
    %v5967 = vpack.c.b16 %v5643, %v5637
    %v5968 = vpack.c.b16 %v5650, %v5644
    %v5969 = vpack.c.b16 %v5651, %v5645
    %v5970 = vpack.c.b16 %v5652, %v5646
    %v5971 = vpack.c.b16 %v5653, %v5647
    %v5972 = vpack.c.b16 %v5654, %v5648
    %v5973 = vpack.c.b16 %v5655, %v5649
    %v5974 = vpack.c.b16 %v5662, %v5656
    %v5975 = vpack.c.b16 %v5663, %v5657
    %v5976 = vpack.c.b16 %v5664, %v5658
    %v5977 = vpack.c.b16 %v5665, %v5659
    %v5978 = vpack.c.b16 %v5666, %v5660
    %v5979 = vpack.c.b16 %v5667, %v5661
    %v5980 = vpack.c.b16 %v5674, %v5668
    %v5981 = vpack.c.b16 %v5675, %v5669
    %v5982 = vpack.c.b16 %v5676, %v5670
    %v5983 = vpack.c.b16 %v5677, %v5671
    %v5984 = vpack.c.b16 %v5678, %v5672
    %v5985 = vpack.c.b16 %v5679, %v5673
    %v5986 = vpack.c.b16 %v5686, %v5680
    %v5987 = vpack.c.b16 %v5687, %v5681
    %v5988 = vpack.c.b16 %v5688, %v5682
    %v5989 = vpack.c.b16 %v5689, %v5683
    %v5990 = vpack.c.b16 %v5690, %v5684
    %v5991 = vpack.c.b16 %v5691, %v5685
    %v5992 = vpack.c.b16 %v5698, %v5692
    %v5993 = vpack.c.b16 %v5699, %v5693
    %v5994 = vpack.c.b16 %v5700, %v5694
    %v5995 = vpack.c.b16 %v5701, %v5695
    %v5996 = vpack.c.b16 %v5702, %v5696
    %v5997 = vpack.c.b16 %v5703, %v5697
    %v5998 = vpack.c.b16 %v5710, %v5704
    %v5999 = vpack.c.b16 %v5711, %v5705
    %v6000 = vpack.c.b16 %v5712, %v5706
    %v6001 = vpack.c.b16 %v5713, %v5707
    %v6002 = vpack.c.b16 %v5714, %v5708
    %v6003 = vpack.c.b16 %v5715, %v5709
    %6292 = vmatprep.subr.bf16.mxu0 %v5759
    %6293 = vmatpush1.bf16.msra.mxu0 %v5758
    %6294 = vmatprep.subr.bf16.mxu0 %v5753
    %6295 = vmatpush1.bf16.msra.mxu0 %v5752
    %6296 = vmatprep.subr.bf16.mxu0 %v5747
    %6297 = vmatpush1.bf16.msra.mxu0 %v5746
    %6298 = vmatprep.subr.bf16.mxu0 %v5741
    %6299 = vmatpush1.bf16.msra.mxu0 %v5740
    %6300 = vmatprep.subr.bf16.mxu0 %v5735
    %6301 = vmatpush1.bf16.msra.mxu0 %v5734
    %6302 = vmatprep.subr.bf16.mxu0 %v5729
    %6303 = vmatpush1.bf16.msra.mxu0 %v5728
    %6304 = vmatprep.subr.bf16.mxu0 %v5723
    %6305 = vmatpush1.bf16.msra.mxu0 %v5722
    %6306 = vmatprep.subr.bf16.mxu0 %v5717
    %6307 = vmatpush1.bf16.msra.mxu0 %v5716
    %6308 = vmatprep.subr.bf16.mxu0 %v5807
    %6309 = vmatpush2.bf16.msra.mxu0 %v5806
    %6310 = vmatprep.subr.bf16.mxu0 %v5801
    %6311 = vmatpush2.bf16.msra.mxu0 %v5800
    %6312 = vmatprep.subr.bf16.mxu0 %v5795
    %6313 = vmatpush2.bf16.msra.mxu0 %v5794
    %6314 = vmatprep.subr.bf16.mxu0 %v5789
    %6315 = vmatpush2.bf16.msra.mxu0 %v5788
    %6316 = vmatprep.subr.bf16.mxu0 %v5783
    %6317 = vmatpush2.bf16.msra.mxu0 %v5782
    %6318 = vmatprep.subr.bf16.mxu0 %v5777
    %6319 = vmatpush2.bf16.msra.mxu0 %v5776
    %6320 = vmatprep.subr.bf16.mxu0 %v5771
    %6321 = vmatpush2.bf16.msra.mxu0 %v5770
    %6322 = vmatprep.subr.bf16.mxu0 %v5765
    %6323 = vmatpush2.bf16.msra.mxu0 %v5764
    %6324 = vmatprep.mubr.bf16.mxu0 %v4527
    %6325 = vmatmul.mubr.bf16.gmra.mxu0 %v4526
    %v6326 = vpop.f32.mrf.mxu0
    %v6327 = vadd.f32 %v4825, %v6326
    %v6328 = vpop.f32.mrf.mxu0
    %v6329 = vadd.f32 %v4829, %v6328
    %v6330 = vpop.f32.mrf.mxu0
    %v6331 = vpop.f32.mrf.mxu0
    %6332 = vdwg.mxu0
    %6333 = vmatprep.subr.bf16.mxu0 %v5855
    %6334 = vmatpush1.bf16.msra.mxu0 %v5854
    %6335 = vmatprep.subr.bf16.mxu0 %v5849
    %6336 = vmatpush1.bf16.msra.mxu0 %v5848
    %6337 = vmatprep.subr.bf16.mxu0 %v5843
    %6338 = vmatpush1.bf16.msra.mxu0 %v5842
    %6339 = vmatprep.subr.bf16.mxu0 %v5837
    %6340 = vmatpush1.bf16.msra.mxu0 %v5836
    %6341 = vmatprep.subr.bf16.mxu0 %v5831
    %6342 = vmatpush1.bf16.msra.mxu0 %v5830
    %6343 = vmatprep.subr.bf16.mxu0 %v5825
    %6344 = vmatpush1.bf16.msra.mxu0 %v5824
    %6345 = vmatprep.subr.bf16.mxu0 %v5819
    %6346 = vmatpush1.bf16.msra.mxu0 %v5818
    %6347 = vmatprep.subr.bf16.mxu0 %v5813
    %6348 = vmatpush1.bf16.msra.mxu0 %v5812
    %6349 = vmatprep.subr.bf16.mxu0 %v5903
    %6350 = vmatpush2.bf16.msra.mxu0 %v5902
    %6351 = vmatprep.subr.bf16.mxu0 %v5897
    %6352 = vmatpush2.bf16.msra.mxu0 %v5896
    %6353 = vmatprep.subr.bf16.mxu0 %v5891
    %6354 = vmatpush2.bf16.msra.mxu0 %v5890
    %6355 = vmatprep.subr.bf16.mxu0 %v5885
    %6356 = vmatpush2.bf16.msra.mxu0 %v5884
    %6357 = vmatprep.subr.bf16.mxu0 %v5879
    %6358 = vmatpush2.bf16.msra.mxu0 %v5878
    %6359 = vmatprep.subr.bf16.mxu0 %v5873
    %6360 = vmatpush2.bf16.msra.mxu0 %v5872
    %6361 = vmatprep.subr.bf16.mxu0 %v5867
    %6362 = vmatpush2.bf16.msra.mxu0 %v5866
    %6363 = vmatprep.subr.bf16.mxu0 %v5861
    %6364 = vmatpush2.bf16.msra.mxu0 %v5860
    %6365 = vmatprep.mubr.bf16.mxu0 %v4529
    %6366 = vmatmul.mubr.bf16.gmra.mxu0 %v4528
    %v6367 = vpop.f32.mrf.mxu0
    %v6368 = vadd.f32 %v6327, %v6367
    %v6369 = vpop.f32.mrf.mxu0
    %v6370 = vadd.f32 %v6329, %v6369
    %v6371 = vpop.f32.mrf.mxu0
    %v6372 = vpop.f32.mrf.mxu0
    %6373 = vdwg.mxu0
    %6374 = vmatprep.subr.bf16.mxu0 %v5951
    %6375 = vmatpush1.bf16.msra.mxu0 %v5950
    %6376 = vmatprep.subr.bf16.mxu0 %v5945
    %6377 = vmatpush1.bf16.msra.mxu0 %v5944
    %6378 = vmatprep.subr.bf16.mxu0 %v5939
    %6379 = vmatpush1.bf16.msra.mxu0 %v5938
    %6380 = vmatprep.subr.bf16.mxu0 %v5933
    %6381 = vmatpush1.bf16.msra.mxu0 %v5932
    %6382 = vmatprep.subr.bf16.mxu0 %v5927
    %6383 = vmatpush1.bf16.msra.mxu0 %v5926
    %6384 = vmatprep.subr.bf16.mxu0 %v5921
    %6385 = vmatpush1.bf16.msra.mxu0 %v5920
    %6386 = vmatprep.subr.bf16.mxu0 %v5915
    %6387 = vmatpush1.bf16.msra.mxu0 %v5914
    %6388 = vmatprep.subr.bf16.mxu0 %v5909
    %6389 = vmatpush1.bf16.msra.mxu0 %v5908
    %6390 = vmatprep.subr.bf16.mxu0 %v5999
    %6391 = vmatpush2.bf16.msra.mxu0 %v5998
    %6392 = vmatprep.subr.bf16.mxu0 %v5993
    %6393 = vmatpush2.bf16.msra.mxu0 %v5992
    %6394 = vmatprep.subr.bf16.mxu0 %v5987
    %6395 = vmatpush2.bf16.msra.mxu0 %v5986
    %6396 = vmatprep.subr.bf16.mxu0 %v5981
    %6397 = vmatpush2.bf16.msra.mxu0 %v5980
    %6398 = vmatprep.subr.bf16.mxu0 %v5975
    %6399 = vmatpush2.bf16.msra.mxu0 %v5974
    %6400 = vmatprep.subr.bf16.mxu0 %v5969
    %6401 = vmatpush2.bf16.msra.mxu0 %v5968
    %6402 = vmatprep.subr.bf16.mxu0 %v5963
    %6403 = vmatpush2.bf16.msra.mxu0 %v5962
    %6404 = vmatprep.subr.bf16.mxu0 %v5957
    %6405 = vmatpush2.bf16.msra.mxu0 %v5956
    %6406 = vmatprep.mubr.bf16.mxu0 %v4531
    %6407 = vmatmul.mubr.bf16.gmra.mxu0 %v4530
    %v6408 = vpop.f32.mrf.mxu0
    %v6409 = vadd.f32 %v6368, %v6408
    %v6410 = vpop.f32.mrf.mxu0
    %v6411 = vadd.f32 %v6370, %v6410
    %v6412 = vpop.f32.mrf.mxu0
    %v6413 = vpop.f32.mrf.mxu0
    %6414 = vdwg.mxu0
    %6415 = vmatprep.subr.bf16.mxu0 %v5761
    %6416 = vmatpush1.bf16.msra.mxu0 %v5760
    %6417 = vmatprep.subr.bf16.mxu0 %v5755
    %6418 = vmatpush1.bf16.msra.mxu0 %v5754
    %6419 = vmatprep.subr.bf16.mxu0 %v5749
    %6420 = vmatpush1.bf16.msra.mxu0 %v5748
    %6421 = vmatprep.subr.bf16.mxu0 %v5743
    %6422 = vmatpush1.bf16.msra.mxu0 %v5742
    %6423 = vmatprep.subr.bf16.mxu0 %v5737
    %6424 = vmatpush1.bf16.msra.mxu0 %v5736
    %6425 = vmatprep.subr.bf16.mxu0 %v5731
    %6426 = vmatpush1.bf16.msra.mxu0 %v5730
    %6427 = vmatprep.subr.bf16.mxu0 %v5725
    %6428 = vmatpush1.bf16.msra.mxu0 %v5724
    %6429 = vmatprep.subr.bf16.mxu0 %v5719
    %6430 = vmatpush1.bf16.msra.mxu0 %v5718
    %6431 = vmatprep.subr.bf16.mxu0 %v5809
    %6432 = vmatpush2.bf16.msra.mxu0 %v5808
    %6433 = vmatprep.subr.bf16.mxu0 %v5803
    %6434 = vmatpush2.bf16.msra.mxu0 %v5802
    %6435 = vmatprep.subr.bf16.mxu0 %v5797
    %6436 = vmatpush2.bf16.msra.mxu0 %v5796
    %6437 = vmatprep.subr.bf16.mxu0 %v5791
    %6438 = vmatpush2.bf16.msra.mxu0 %v5790
    %6439 = vmatprep.subr.bf16.mxu0 %v5785
    %6440 = vmatpush2.bf16.msra.mxu0 %v5784
    %6441 = vmatprep.subr.bf16.mxu0 %v5779
    %6442 = vmatpush2.bf16.msra.mxu0 %v5778
    %6443 = vmatprep.subr.bf16.mxu0 %v5773
    %6444 = vmatpush2.bf16.msra.mxu0 %v5772
    %6445 = vmatprep.subr.bf16.mxu0 %v5767
    %6446 = vmatpush2.bf16.msra.mxu0 %v5766
    %6447 = vmatprep.mubr.bf16.mxu0 %v4527
    %6448 = vmatmul.mubr.bf16.gmra.mxu0 %v4526
    %v6449 = vpop.f32.mrf.mxu0
    %v6450 = vadd.f32 %v4833, %v6449
    %v6451 = vpop.f32.mrf.mxu0
    %v6452 = vadd.f32 %v4837, %v6451
    %v6453 = vpop.f32.mrf.mxu0
    %v6454 = vpop.f32.mrf.mxu0
    %6455 = vdwg.mxu0
    %6456 = vmatprep.subr.bf16.mxu0 %v5857
    %6457 = vmatpush1.bf16.msra.mxu0 %v5856
    %6458 = vmatprep.subr.bf16.mxu0 %v5851
    %6459 = vmatpush1.bf16.msra.mxu0 %v5850
    %6460 = vmatprep.subr.bf16.mxu0 %v5845
    %6461 = vmatpush1.bf16.msra.mxu0 %v5844
    %6462 = vmatprep.subr.bf16.mxu0 %v5839
    %6463 = vmatpush1.bf16.msra.mxu0 %v5838
    %6464 = vmatprep.subr.bf16.mxu0 %v5833
    %6465 = vmatpush1.bf16.msra.mxu0 %v5832
    %6466 = vmatprep.subr.bf16.mxu0 %v5827
    %6467 = vmatpush1.bf16.msra.mxu0 %v5826
    %6468 = vmatprep.subr.bf16.mxu0 %v5821
    %6469 = vmatpush1.bf16.msra.mxu0 %v5820
    %6470 = vmatprep.subr.bf16.mxu0 %v5815
    %6471 = vmatpush1.bf16.msra.mxu0 %v5814
    %6472 = vmatprep.subr.bf16.mxu0 %v5905
    %6473 = vmatpush2.bf16.msra.mxu0 %v5904
    %6474 = vmatprep.subr.bf16.mxu0 %v5899
    %6475 = vmatpush2.bf16.msra.mxu0 %v5898
    %6476 = vmatprep.subr.bf16.mxu0 %v5893
    %6477 = vmatpush2.bf16.msra.mxu0 %v5892
    %6478 = vmatprep.subr.bf16.mxu0 %v5887
    %6479 = vmatpush2.bf16.msra.mxu0 %v5886
    %6480 = vmatprep.subr.bf16.mxu0 %v5881
    %6481 = vmatpush2.bf16.msra.mxu0 %v5880
    %6482 = vmatprep.subr.bf16.mxu0 %v5875
    %6483 = vmatpush2.bf16.msra.mxu0 %v5874
    %6484 = vmatprep.subr.bf16.mxu0 %v5869
    %6485 = vmatpush2.bf16.msra.mxu0 %v5868
    %6486 = vmatprep.subr.bf16.mxu0 %v5863
    %6487 = vmatpush2.bf16.msra.mxu0 %v5862
    %6488 = vmatprep.mubr.bf16.mxu0 %v4529
    %6489 = vmatmul.mubr.bf16.gmra.mxu0 %v4528
    %v6490 = vpop.f32.mrf.mxu0
    %v6491 = vadd.f32 %v6450, %v6490
    %v6492 = vpop.f32.mrf.mxu0
    %v6493 = vadd.f32 %v6452, %v6492
    %v6494 = vpop.f32.mrf.mxu0
    %v6495 = vpop.f32.mrf.mxu0
    %6496 = vdwg.mxu0
    %6497 = vmatprep.subr.bf16.mxu0 %v5953
    %6498 = vmatpush1.bf16.msra.mxu0 %v5952
    %6499 = vmatprep.subr.bf16.mxu0 %v5947
    %6500 = vmatpush1.bf16.msra.mxu0 %v5946
    %6501 = vmatprep.subr.bf16.mxu0 %v5941
    %6502 = vmatpush1.bf16.msra.mxu0 %v5940
    %6503 = vmatprep.subr.bf16.mxu0 %v5935
    %6504 = vmatpush1.bf16.msra.mxu0 %v5934
    %6505 = vmatprep.subr.bf16.mxu0 %v5929
    %6506 = vmatpush1.bf16.msra.mxu0 %v5928
    %6507 = vmatprep.subr.bf16.mxu0 %v5923
    %6508 = vmatpush1.bf16.msra.mxu0 %v5922
    %6509 = vmatprep.subr.bf16.mxu0 %v5917
    %6510 = vmatpush1.bf16.msra.mxu0 %v5916
    %6511 = vmatprep.subr.bf16.mxu0 %v5911
    %6512 = vmatpush1.bf16.msra.mxu0 %v5910
    %6513 = vmatprep.subr.bf16.mxu0 %v6001
    %6514 = vmatpush2.bf16.msra.mxu0 %v6000
    %6515 = vmatprep.subr.bf16.mxu0 %v5995
    %6516 = vmatpush2.bf16.msra.mxu0 %v5994
    %6517 = vmatprep.subr.bf16.mxu0 %v5989
    %6518 = vmatpush2.bf16.msra.mxu0 %v5988
    %6519 = vmatprep.subr.bf16.mxu0 %v5983
    %6520 = vmatpush2.bf16.msra.mxu0 %v5982
    %6521 = vmatprep.subr.bf16.mxu0 %v5977
    %6522 = vmatpush2.bf16.msra.mxu0 %v5976
    %6523 = vmatprep.subr.bf16.mxu0 %v5971
    %6524 = vmatpush2.bf16.msra.mxu0 %v5970
    %6525 = vmatprep.subr.bf16.mxu0 %v5965
    %6526 = vmatpush2.bf16.msra.mxu0 %v5964
    %6527 = vmatprep.subr.bf16.mxu0 %v5959
    %6528 = vmatpush2.bf16.msra.mxu0 %v5958
    %6529 = vmatprep.mubr.bf16.mxu0 %v4531
    %6530 = vmatmul.mubr.bf16.gmra.mxu0 %v4530
    %v6531 = vpop.f32.mrf.mxu0
    %v6532 = vadd.f32 %v6491, %v6531
    %v6533 = vpop.f32.mrf.mxu0
    %v6534 = vadd.f32 %v6493, %v6533
    %v6535 = vpop.f32.mrf.mxu0
    %v6536 = vpop.f32.mrf.mxu0
    %6537 = vdwg.mxu0
    %6538 = vmatprep.subr.bf16.mxu0 %v5763
    %6539 = vmatpush1.bf16.msra.mxu0 %v5762
    %6540 = vmatprep.subr.bf16.mxu0 %v5757
    %6541 = vmatpush1.bf16.msra.mxu0 %v5756
    %6542 = vmatprep.subr.bf16.mxu0 %v5751
    %6543 = vmatpush1.bf16.msra.mxu0 %v5750
    %6544 = vmatprep.subr.bf16.mxu0 %v5745
    %6545 = vmatpush1.bf16.msra.mxu0 %v5744
    %6546 = vmatprep.subr.bf16.mxu0 %v5739
    %6547 = vmatpush1.bf16.msra.mxu0 %v5738
    %6548 = vmatprep.subr.bf16.mxu0 %v5733
    %6549 = vmatpush1.bf16.msra.mxu0 %v5732
    %6550 = vmatprep.subr.bf16.mxu0 %v5727
    %6551 = vmatpush1.bf16.msra.mxu0 %v5726
    %6552 = vmatprep.subr.bf16.mxu0 %v5721
    %6553 = vmatpush1.bf16.msra.mxu0 %v5720
    %6554 = vmatprep.subr.bf16.mxu0 %v5811
    %6555 = vmatpush2.bf16.msra.mxu0 %v5810
    %6556 = vmatprep.subr.bf16.mxu0 %v5805
    %6557 = vmatpush2.bf16.msra.mxu0 %v5804
    %6558 = vmatprep.subr.bf16.mxu0 %v5799
    %6559 = vmatpush2.bf16.msra.mxu0 %v5798
    %6560 = vmatprep.subr.bf16.mxu0 %v5793
    %6561 = vmatpush2.bf16.msra.mxu0 %v5792
    %6562 = vmatprep.subr.bf16.mxu0 %v5787
    %6563 = vmatpush2.bf16.msra.mxu0 %v5786
    %6564 = vmatprep.subr.bf16.mxu0 %v5781
    %6565 = vmatpush2.bf16.msra.mxu0 %v5780
    %6566 = vmatprep.subr.bf16.mxu0 %v5775
    %6567 = vmatpush2.bf16.msra.mxu0 %v5774
    %6568 = vmatprep.subr.bf16.mxu0 %v5769
    %6569 = vmatpush2.bf16.msra.mxu0 %v5768
    %6570 = vmatprep.mubr.bf16.mxu0 %v4527
    %6571 = vmatmul.mubr.bf16.gmra.mxu0 %v4526
    %v6572 = vpop.f32.mrf.mxu0
    %v6573 = vadd.f32 %v4841, %v6572
    %v6574 = vpop.f32.mrf.mxu0
    %v6575 = vadd.f32 %v4845, %v6574
    %v6576 = vpop.f32.mrf.mxu0
    %v6577 = vpop.f32.mrf.mxu0
    %6578 = vdwg.mxu0
    %6579 = vmatprep.subr.bf16.mxu0 %v5859
    %6580 = vmatpush1.bf16.msra.mxu0 %v5858
    %6581 = vmatprep.subr.bf16.mxu0 %v5853
    %6582 = vmatpush1.bf16.msra.mxu0 %v5852
    %6583 = vmatprep.subr.bf16.mxu0 %v5847
    %6584 = vmatpush1.bf16.msra.mxu0 %v5846
    %6585 = vmatprep.subr.bf16.mxu0 %v5841
    %6586 = vmatpush1.bf16.msra.mxu0 %v5840
    %6587 = vmatprep.subr.bf16.mxu0 %v5835
    %6588 = vmatpush1.bf16.msra.mxu0 %v5834
    %6589 = vmatprep.subr.bf16.mxu0 %v5829
    %6590 = vmatpush1.bf16.msra.mxu0 %v5828
    %6591 = vmatprep.subr.bf16.mxu0 %v5823
    %6592 = vmatpush1.bf16.msra.mxu0 %v5822
    %6593 = vmatprep.subr.bf16.mxu0 %v5817
    %6594 = vmatpush1.bf16.msra.mxu0 %v5816
    %6595 = vmatprep.subr.bf16.mxu0 %v5907
    %6596 = vmatpush2.bf16.msra.mxu0 %v5906
    %6597 = vmatprep.subr.bf16.mxu0 %v5901
    %6598 = vmatpush2.bf16.msra.mxu0 %v5900
    %6599 = vmatprep.subr.bf16.mxu0 %v5895
    %6600 = vmatpush2.bf16.msra.mxu0 %v5894
    %6601 = vmatprep.subr.bf16.mxu0 %v5889
    %6602 = vmatpush2.bf16.msra.mxu0 %v5888
    %6603 = vmatprep.subr.bf16.mxu0 %v5883
    %6604 = vmatpush2.bf16.msra.mxu0 %v5882
    %6605 = vmatprep.subr.bf16.mxu0 %v5877
    %6606 = vmatpush2.bf16.msra.mxu0 %v5876
    %6607 = vmatprep.subr.bf16.mxu0 %v5871
    %6608 = vmatpush2.bf16.msra.mxu0 %v5870
    %6609 = vmatprep.subr.bf16.mxu0 %v5865
    %6610 = vmatpush2.bf16.msra.mxu0 %v5864
    %6611 = vmatprep.mubr.bf16.mxu0 %v4529
    %6612 = vmatmul.mubr.bf16.gmra.mxu0 %v4528
    %v6613 = vpop.f32.mrf.mxu0
    %v6614 = vadd.f32 %v6573, %v6613
    %v6615 = vpop.f32.mrf.mxu0
    %v6616 = vadd.f32 %v6575, %v6615
    %v6617 = vpop.f32.mrf.mxu0
    %v6618 = vpop.f32.mrf.mxu0
    %6619 = vdwg.mxu0
    %6620 = vmatprep.subr.bf16.mxu0 %v5955
    %6621 = vmatpush1.bf16.msra.mxu0 %v5954
    %6622 = vmatprep.subr.bf16.mxu0 %v5949
    %6623 = vmatpush1.bf16.msra.mxu0 %v5948
    %6624 = vmatprep.subr.bf16.mxu0 %v5943
    %6625 = vmatpush1.bf16.msra.mxu0 %v5942
    %6626 = vmatprep.subr.bf16.mxu0 %v5937
    %6627 = vmatpush1.bf16.msra.mxu0 %v5936
    %6628 = vmatprep.subr.bf16.mxu0 %v5931
    %6629 = vmatpush1.bf16.msra.mxu0 %v5930
    %6630 = vmatprep.subr.bf16.mxu0 %v5925
    %6631 = vmatpush1.bf16.msra.mxu0 %v5924
    %6632 = vmatprep.subr.bf16.mxu0 %v5919
    %6633 = vmatpush1.bf16.msra.mxu0 %v5918
    %6634 = vmatprep.subr.bf16.mxu0 %v5913
    %6635 = vmatpush1.bf16.msra.mxu0 %v5912
    %6636 = vmatprep.subr.bf16.mxu0 %v6003
    %6637 = vmatpush2.bf16.msra.mxu0 %v6002
    %6638 = vmatprep.subr.bf16.mxu0 %v5997
    %6639 = vmatpush2.bf16.msra.mxu0 %v5996
    %6640 = vmatprep.subr.bf16.mxu0 %v5991
    %6641 = vmatpush2.bf16.msra.mxu0 %v5990
    %6642 = vmatprep.subr.bf16.mxu0 %v5985
    %6643 = vmatpush2.bf16.msra.mxu0 %v5984
    %6644 = vmatprep.subr.bf16.mxu0 %v5979
    %6645 = vmatpush2.bf16.msra.mxu0 %v5978
    %6646 = vmatprep.subr.bf16.mxu0 %v5973
    %6647 = vmatpush2.bf16.msra.mxu0 %v5972
    %6648 = vmatprep.subr.bf16.mxu0 %v5967
    %6649 = vmatpush2.bf16.msra.mxu0 %v5966
    %6650 = vmatprep.subr.bf16.mxu0 %v5961
    %6651 = vmatpush2.bf16.msra.mxu0 %v5960
    %6652 = vmatprep.mubr.bf16.mxu0 %v4531
    %6653 = vmatmul.mubr.bf16.gmra.mxu0 %v4530
    %v6654 = vpop.f32.mrf.mxu0
    %v6655 = vadd.f32 %v6614, %v6654
    %v6656 = vpop.f32.mrf.mxu0
    %v6657 = vadd.f32 %v6616, %v6656
    %v6658 = vpop.f32.mrf.mxu0
    %v6659 = vpop.f32.mrf.mxu0
    %6660 = vdwg.mxu0
    %v6661 = vmax.f32 %v6409, 0.0
    %v6662 = vmax.f32 %v6411, 0.0
    %v6663 = vmax.f32 %v6532, 0.0
    %v6664 = vmax.f32 %v6534, 0.0
    %v6665 = vmax.f32 %v6655, 0.0
    %v6666 = vmax.f32 %v6657, 0.0
    %v6667 = vpack.c.bf16 %v6661, %v6661
    %v6668 = vpack.c.bf16 %v6662, %v6662
    %v6669 = vpack.c.bf16 %v6663, %v6663
    %v6670 = vpack.c.bf16 %v6664, %v6664
    %v6671 = vpack.c.bf16 %v6665, %v6665
    %v6672 = vpack.c.bf16 %v6666, %v6666
    %v6673 = vld [vmem:[#allocation13] sm:$0xff]
    %v6674 = vld [vmem:[#allocation13 + $0x8] sm:$0xff]
    %v6675 = vld [vmem:[#allocation13 + $0x10] sm:$0xff]
    %v6676 = vld [vmem:[#allocation13 + $0x18] sm:$0xff]
    %v6677 = vld [vmem:[#allocation13 + $0x20] sm:$0xff]
    %v6678 = vld [vmem:[#allocation13 + $0x28] sm:$0xff]
    %v6679 = vld [vmem:[#allocation13 + $0x30] sm:$0xff]
    %v6680 = vld [vmem:[#allocation13 + $0x38] sm:$0xff]
    %v6681 = vld [vmem:[#allocation13 + $0x40] sm:$0xff]
    %v6682 = vld [vmem:[#allocation13 + $0x48] sm:$0xff]
    %v6683 = vld [vmem:[#allocation13 + $0x50] sm:$0xff]
    %v6684 = vld [vmem:[#allocation13 + $0x58] sm:$0xff]
    %v6685 = vld [vmem:[#allocation13 + $0x60] sm:$0xff]
    %v6686 = vld [vmem:[#allocation13 + $0x68] sm:$0xff]
    %v6687 = vld [vmem:[#allocation13 + $0x70] sm:$0xff]
    %v6688 = vld [vmem:[#allocation13 + $0x78] sm:$0xff]
    %v6689 = vld [vmem:[#allocation13 + $0x80] sm:$0xff]
    %v6690 = vld [vmem:[#allocation13 + $0x88] sm:$0xff]
    %v6691 = vld [vmem:[#allocation13 + $0x90] sm:$0xff]
    %v6692 = vld [vmem:[#allocation13 + $0x98] sm:$0xff]
    %v6693 = vld [vmem:[#allocation13 + $0xa0] sm:$0xff]
    %v6694 = vld [vmem:[#allocation13 + $0xa8] sm:$0xff]
    %v6695 = vld [vmem:[#allocation13 + $0xb0] sm:$0xff]
    %v6696 = vld [vmem:[#allocation13 + $0xb8] sm:$0xff]
    %v6697 = vld [vmem:[#allocation13 + $0xc0] sm:$0xff]
    %v6698 = vld [vmem:[#allocation13 + $0xc8] sm:$0xff]
    %v6699 = vld [vmem:[#allocation13 + $0xd0] sm:$0xff]
    %v6700 = vld [vmem:[#allocation13 + $0xd8] sm:$0xff]
    %v6701 = vld [vmem:[#allocation13 + $0xe0] sm:$0xff]
    %v6702 = vld [vmem:[#allocation13 + $0xe8] sm:$0xff]
    %v6703 = vld [vmem:[#allocation13 + $0xf0] sm:$0xff]
    %v6704 = vld [vmem:[#allocation13 + $0xf8] sm:$0xff]
    %v6705 = vld [vmem:[#allocation13 + $0x100] sm:$0xff]
    %v6706 = vld [vmem:[#allocation13 + $0x108] sm:$0xff]
    %v6707 = vld [vmem:[#allocation13 + $0x110] sm:$0xff]
    %v6708 = vld [vmem:[#allocation13 + $0x118] sm:$0xff]
    %v6709 = vld [vmem:[#allocation13 + $0x120] sm:$0xff]
    %v6710 = vld [vmem:[#allocation13 + $0x128] sm:$0xff]
    %v6711 = vld [vmem:[#allocation13 + $0x130] sm:$0xff]
    %v6712 = vld [vmem:[#allocation13 + $0x138] sm:$0xff]
    %v6713 = vld [vmem:[#allocation13 + $0x140] sm:$0xff]
    %v6714 = vld [vmem:[#allocation13 + $0x148] sm:$0xff]
    %v6715 = vld [vmem:[#allocation13 + $0x150] sm:$0xff]
    %v6716 = vld [vmem:[#allocation13 + $0x158] sm:$0xff]
    %v6717 = vld [vmem:[#allocation13 + $0x160] sm:$0xff]
    %v6718 = vld [vmem:[#allocation13 + $0x168] sm:$0xff]
    %v6719 = vld [vmem:[#allocation13 + $0x170] sm:$0xff]
    %v6720 = vld [vmem:[#allocation13 + $0x178] sm:$0xff]
    %v6721 = vld [vmem:[#allocation13 + $0x180] sm:$0xff]
    %v6722 = vld [vmem:[#allocation13 + $0x188] sm:$0xff]
    %v6723 = vld [vmem:[#allocation13 + $0x190] sm:$0xff]
    %v6724 = vld [vmem:[#allocation13 + $0x198] sm:$0xff]
    %v6725 = vld [vmem:[#allocation13 + $0x1a0] sm:$0xff]
    %v6726 = vld [vmem:[#allocation13 + $0x1a8] sm:$0xff]
    %v6727 = vld [vmem:[#allocation13 + $0x1b0] sm:$0xff]
    %v6728 = vld [vmem:[#allocation13 + $0x1b8] sm:$0xff]
    %v6729 = vld [vmem:[#allocation13 + $0x1c0] sm:$0xff]
    %v6730 = vld [vmem:[#allocation13 + $0x1c8] sm:$0xff]
    %v6731 = vld [vmem:[#allocation13 + $0x1d0] sm:$0xff]
    %v6732 = vld [vmem:[#allocation13 + $0x1d8] sm:$0xff]
    %v6733 = vld [vmem:[#allocation13 + $0x1e0] sm:$0xff]
    %v6734 = vld [vmem:[#allocation13 + $0x1e8] sm:$0xff]
    %v6735 = vld [vmem:[#allocation13 + $0x1f0] sm:$0xff]
    %v6736 = vld [vmem:[#allocation13 + $0x1f8] sm:$0xff]
    %v6737 = vld [vmem:[#allocation13 + $0x200] sm:$0xff]
    %v6738 = vld [vmem:[#allocation13 + $0x208] sm:$0xff]
    %v6739 = vld [vmem:[#allocation13 + $0x210] sm:$0xff]
    %v6740 = vld [vmem:[#allocation13 + $0x218] sm:$0xff]
    %v6741 = vld [vmem:[#allocation13 + $0x220] sm:$0xff]
    %v6742 = vld [vmem:[#allocation13 + $0x228] sm:$0xff]
    %v6743 = vld [vmem:[#allocation13 + $0x230] sm:$0xff]
    %v6744 = vld [vmem:[#allocation13 + $0x238] sm:$0xff]
    %v6745 = vld [vmem:[#allocation13 + $0x240] sm:$0xff]
    %v6746 = vld [vmem:[#allocation13 + $0x248] sm:$0xff]
    %v6747 = vld [vmem:[#allocation13 + $0x250] sm:$0xff]
    %v6748 = vld [vmem:[#allocation13 + $0x258] sm:$0xff]
    %v6749 = vld [vmem:[#allocation13 + $0x260] sm:$0xff]
    %v6750 = vld [vmem:[#allocation13 + $0x268] sm:$0xff]
    %v6751 = vld [vmem:[#allocation13 + $0x270] sm:$0xff]
    %v6752 = vld [vmem:[#allocation13 + $0x278] sm:$0xff]
    %v6753 = vld [vmem:[#allocation13 + $0x280] sm:$0xff]
    %v6754 = vld [vmem:[#allocation13 + $0x288] sm:$0xff]
    %v6755 = vld [vmem:[#allocation13 + $0x290] sm:$0xff]
    %v6756 = vld [vmem:[#allocation13 + $0x298] sm:$0xff]
    %v6757 = vld [vmem:[#allocation13 + $0x2a0] sm:$0xff]
    %v6758 = vld [vmem:[#allocation13 + $0x2a8] sm:$0xff]
    %v6759 = vld [vmem:[#allocation13 + $0x2b0] sm:$0xff]
    %v6760 = vld [vmem:[#allocation13 + $0x2b8] sm:$0xff]
    %v6761 = vld [vmem:[#allocation13 + $0x2c0] sm:$0xff]
    %v6762 = vld [vmem:[#allocation13 + $0x2c8] sm:$0xff]
    %v6763 = vld [vmem:[#allocation13 + $0x2d0] sm:$0xff]
    %v6764 = vld [vmem:[#allocation13 + $0x2d8] sm:$0xff]
    %v6765 = vld [vmem:[#allocation13 + $0x2e0] sm:$0xff]
    %v6766 = vld [vmem:[#allocation13 + $0x2e8] sm:$0xff]
    %v6767 = vld [vmem:[#allocation13 + $0x2f0] sm:$0xff]
    %v6768 = vld [vmem:[#allocation13 + $0x2f8] sm:$0xff]
    %v6769 = vld [vmem:[#allocation13 + $0x300] sm:$0xff]
    %v6770 = vld [vmem:[#allocation13 + $0x308] sm:$0xff]
    %v6771 = vld [vmem:[#allocation13 + $0x310] sm:$0xff]
    %v6772 = vld [vmem:[#allocation13 + $0x318] sm:$0xff]
    %v6773 = vld [vmem:[#allocation13 + $0x320] sm:$0xff]
    %v6774 = vld [vmem:[#allocation13 + $0x328] sm:$0xff]
    %v6775 = vld [vmem:[#allocation13 + $0x330] sm:$0xff]
    %v6776 = vld [vmem:[#allocation13 + $0x338] sm:$0xff]
    %v6777 = vld [vmem:[#allocation13 + $0x340] sm:$0xff]
    %v6778 = vld [vmem:[#allocation13 + $0x348] sm:$0xff]
    %v6779 = vld [vmem:[#allocation13 + $0x350] sm:$0xff]
    %v6780 = vld [vmem:[#allocation13 + $0x358] sm:$0xff]
    %v6781 = vld [vmem:[#allocation13 + $0x360] sm:$0xff]
    %v6782 = vld [vmem:[#allocation13 + $0x368] sm:$0xff]
    %v6783 = vld [vmem:[#allocation13 + $0x370] sm:$0xff]
    %v6784 = vld [vmem:[#allocation13 + $0x378] sm:$0xff]
    %v6785 = vld [vmem:[#allocation13 + $0x380] sm:$0xff]
    %v6786 = vld [vmem:[#allocation13 + $0x388] sm:$0xff]
    %v6787 = vld [vmem:[#allocation13 + $0x390] sm:$0xff]
    %v6788 = vld [vmem:[#allocation13 + $0x398] sm:$0xff]
    %v6789 = vld [vmem:[#allocation13 + $0x3a0] sm:$0xff]
    %v6790 = vld [vmem:[#allocation13 + $0x3a8] sm:$0xff]
    %v6791 = vld [vmem:[#allocation13 + $0x3b0] sm:$0xff]
    %v6792 = vld [vmem:[#allocation13 + $0x3b8] sm:$0xff]
    %v6793 = vld [vmem:[#allocation13 + $0x3c0] sm:$0xff]
    %v6794 = vld [vmem:[#allocation13 + $0x3c8] sm:$0xff]
    %v6795 = vld [vmem:[#allocation13 + $0x3d0] sm:$0xff]
    %v6796 = vld [vmem:[#allocation13 + $0x3d8] sm:$0xff]
    %v6797 = vld [vmem:[#allocation13 + $0x3e0] sm:$0xff]
    %v6798 = vld [vmem:[#allocation13 + $0x3e8] sm:$0xff]
    %v6799 = vld [vmem:[#allocation13 + $0x3f0] sm:$0xff]
    %v6800 = vld [vmem:[#allocation13 + $0x3f8] sm:$0xff]
    %v6801 = vld [vmem:[#allocation13 + $0x400] sm:$0xff]
    %v6802 = vld [vmem:[#allocation13 + $0x408] sm:$0xff]
    %v6803 = vld [vmem:[#allocation13 + $0x410] sm:$0xff]
    %v6804 = vld [vmem:[#allocation13 + $0x418] sm:$0xff]
    %v6805 = vld [vmem:[#allocation13 + $0x420] sm:$0xff]
    %v6806 = vld [vmem:[#allocation13 + $0x428] sm:$0xff]
    %v6807 = vld [vmem:[#allocation13 + $0x430] sm:$0xff]
    %v6808 = vld [vmem:[#allocation13 + $0x438] sm:$0xff]
    %v6809 = vld [vmem:[#allocation13 + $0x440] sm:$0xff]
    %v6810 = vld [vmem:[#allocation13 + $0x448] sm:$0xff]
    %v6811 = vld [vmem:[#allocation13 + $0x450] sm:$0xff]
    %v6812 = vld [vmem:[#allocation13 + $0x458] sm:$0xff]
    %v6813 = vld [vmem:[#allocation13 + $0x460] sm:$0xff]
    %v6814 = vld [vmem:[#allocation13 + $0x468] sm:$0xff]
    %v6815 = vld [vmem:[#allocation13 + $0x470] sm:$0xff]
    %v6816 = vld [vmem:[#allocation13 + $0x478] sm:$0xff]
    %v6817 = vld [vmem:[#allocation13 + $0x480] sm:$0xff]
    %v6818 = vld [vmem:[#allocation13 + $0x488] sm:$0xff]
    %v6819 = vld [vmem:[#allocation13 + $0x490] sm:$0xff]
    %v6820 = vld [vmem:[#allocation13 + $0x498] sm:$0xff]
    %v6821 = vld [vmem:[#allocation13 + $0x4a0] sm:$0xff]
    %v6822 = vld [vmem:[#allocation13 + $0x4a8] sm:$0xff]
    %v6823 = vld [vmem:[#allocation13 + $0x4b0] sm:$0xff]
    %v6824 = vld [vmem:[#allocation13 + $0x4b8] sm:$0xff]
    %v6825 = vld [vmem:[#allocation13 + $0x4c0] sm:$0xff]
    %v6826 = vld [vmem:[#allocation13 + $0x4c8] sm:$0xff]
    %v6827 = vld [vmem:[#allocation13 + $0x4d0] sm:$0xff]
    %v6828 = vld [vmem:[#allocation13 + $0x4d8] sm:$0xff]
    %v6829 = vld [vmem:[#allocation13 + $0x4e0] sm:$0xff]
    %v6830 = vld [vmem:[#allocation13 + $0x4e8] sm:$0xff]
    %v6831 = vld [vmem:[#allocation13 + $0x4f0] sm:$0xff]
    %v6832 = vld [vmem:[#allocation13 + $0x4f8] sm:$0xff]
    %v6833 = vld [vmem:[#allocation13 + $0x500] sm:$0xff]
    %v6834 = vld [vmem:[#allocation13 + $0x508] sm:$0xff]
    %v6835 = vld [vmem:[#allocation13 + $0x510] sm:$0xff]
    %v6836 = vld [vmem:[#allocation13 + $0x518] sm:$0xff]
    %v6837 = vld [vmem:[#allocation13 + $0x520] sm:$0xff]
    %v6838 = vld [vmem:[#allocation13 + $0x528] sm:$0xff]
    %v6839 = vld [vmem:[#allocation13 + $0x530] sm:$0xff]
    %v6840 = vld [vmem:[#allocation13 + $0x538] sm:$0xff]
    %v6841 = vld [vmem:[#allocation13 + $0x540] sm:$0xff]
    %v6842 = vld [vmem:[#allocation13 + $0x548] sm:$0xff]
    %v6843 = vld [vmem:[#allocation13 + $0x550] sm:$0xff]
    %v6844 = vld [vmem:[#allocation13 + $0x558] sm:$0xff]
    %v6845 = vld [vmem:[#allocation13 + $0x560] sm:$0xff]
    %v6846 = vld [vmem:[#allocation13 + $0x568] sm:$0xff]
    %v6847 = vld [vmem:[#allocation13 + $0x570] sm:$0xff]
    %v6848 = vld [vmem:[#allocation13 + $0x578] sm:$0xff]
    %v6849 = vld [vmem:[#allocation13 + $0x580] sm:$0xff]
    %v6850 = vld [vmem:[#allocation13 + $0x588] sm:$0xff]
    %v6851 = vld [vmem:[#allocation13 + $0x590] sm:$0xff]
    %v6852 = vld [vmem:[#allocation13 + $0x598] sm:$0xff]
    %v6853 = vld [vmem:[#allocation13 + $0x5a0] sm:$0xff]
    %v6854 = vld [vmem:[#allocation13 + $0x5a8] sm:$0xff]
    %v6855 = vld [vmem:[#allocation13 + $0x5b0] sm:$0xff]
    %v6856 = vld [vmem:[#allocation13 + $0x5b8] sm:$0xff]
    %v6857 = vld [vmem:[#allocation13 + $0x5c0] sm:$0xff]
    %v6858 = vld [vmem:[#allocation13 + $0x5c8] sm:$0xff]
    %v6859 = vld [vmem:[#allocation13 + $0x5d0] sm:$0xff]
    %v6860 = vld [vmem:[#allocation13 + $0x5d8] sm:$0xff]
    %v6861 = vld [vmem:[#allocation13 + $0x5e0] sm:$0xff]
    %v6862 = vld [vmem:[#allocation13 + $0x5e8] sm:$0xff]
    %v6863 = vld [vmem:[#allocation13 + $0x5f0] sm:$0xff]
    %v6864 = vld [vmem:[#allocation13 + $0x5f8] sm:$0xff]
    %v6865 = vld [vmem:[#allocation13 + $0x600] sm:$0xff]
    %v6866 = vld [vmem:[#allocation13 + $0x608] sm:$0xff]
    %v6867 = vld [vmem:[#allocation13 + $0x610] sm:$0xff]
    %v6868 = vld [vmem:[#allocation13 + $0x618] sm:$0xff]
    %v6869 = vld [vmem:[#allocation13 + $0x620] sm:$0xff]
    %v6870 = vld [vmem:[#allocation13 + $0x628] sm:$0xff]
    %v6871 = vld [vmem:[#allocation13 + $0x630] sm:$0xff]
    %v6872 = vld [vmem:[#allocation13 + $0x638] sm:$0xff]
    %v6873 = vld [vmem:[#allocation13 + $0x640] sm:$0xff]
    %v6874 = vld [vmem:[#allocation13 + $0x648] sm:$0xff]
    %v6875 = vld [vmem:[#allocation13 + $0x650] sm:$0xff]
    %v6876 = vld [vmem:[#allocation13 + $0x658] sm:$0xff]
    %v6877 = vld [vmem:[#allocation13 + $0x660] sm:$0xff]
    %v6878 = vld [vmem:[#allocation13 + $0x668] sm:$0xff]
    %v6879 = vld [vmem:[#allocation13 + $0x670] sm:$0xff]
    %v6880 = vld [vmem:[#allocation13 + $0x678] sm:$0xff]
    %v6881 = vld [vmem:[#allocation13 + $0x680] sm:$0xff]
    %v6882 = vld [vmem:[#allocation13 + $0x688] sm:$0xff]
    %v6883 = vld [vmem:[#allocation13 + $0x690] sm:$0xff]
    %v6884 = vld [vmem:[#allocation13 + $0x698] sm:$0xff]
    %v6885 = vld [vmem:[#allocation13 + $0x6a0] sm:$0xff]
    %v6886 = vld [vmem:[#allocation13 + $0x6a8] sm:$0xff]
    %v6887 = vld [vmem:[#allocation13 + $0x6b0] sm:$0xff]
    %v6888 = vld [vmem:[#allocation13 + $0x6b8] sm:$0xff]
    %v6889 = vld [vmem:[#allocation13 + $0x6c0] sm:$0xff]
    %v6890 = vld [vmem:[#allocation13 + $0x6c8] sm:$0xff]
    %v6891 = vld [vmem:[#allocation13 + $0x6d0] sm:$0xff]
    %v6892 = vld [vmem:[#allocation13 + $0x6d8] sm:$0xff]
    %v6893 = vld [vmem:[#allocation13 + $0x6e0] sm:$0xff]
    %v6894 = vld [vmem:[#allocation13 + $0x6e8] sm:$0xff]
    %v6895 = vld [vmem:[#allocation13 + $0x6f0] sm:$0xff]
    %v6896 = vld [vmem:[#allocation13 + $0x6f8] sm:$0xff]
    %v6897 = vld [vmem:[#allocation13 + $0x700] sm:$0xff]
    %v6898 = vld [vmem:[#allocation13 + $0x708] sm:$0xff]
    %v6899 = vld [vmem:[#allocation13 + $0x710] sm:$0xff]
    %v6900 = vld [vmem:[#allocation13 + $0x718] sm:$0xff]
    %v6901 = vld [vmem:[#allocation13 + $0x720] sm:$0xff]
    %v6902 = vld [vmem:[#allocation13 + $0x728] sm:$0xff]
    %v6903 = vld [vmem:[#allocation13 + $0x730] sm:$0xff]
    %v6904 = vld [vmem:[#allocation13 + $0x738] sm:$0xff]
    %v6905 = vld [vmem:[#allocation13 + $0x740] sm:$0xff]
    %v6906 = vld [vmem:[#allocation13 + $0x748] sm:$0xff]
    %v6907 = vld [vmem:[#allocation13 + $0x750] sm:$0xff]
    %v6908 = vld [vmem:[#allocation13 + $0x758] sm:$0xff]
    %v6909 = vld [vmem:[#allocation13 + $0x760] sm:$0xff]
    %v6910 = vld [vmem:[#allocation13 + $0x768] sm:$0xff]
    %v6911 = vld [vmem:[#allocation13 + $0x770] sm:$0xff]
    %v6912 = vld [vmem:[#allocation13 + $0x778] sm:$0xff]
    %v6913 = vld [vmem:[#allocation13 + $0x780] sm:$0xff]
    %v6914 = vld [vmem:[#allocation13 + $0x788] sm:$0xff]
    %v6915 = vld [vmem:[#allocation13 + $0x790] sm:$0xff]
    %v6916 = vld [vmem:[#allocation13 + $0x798] sm:$0xff]
    %v6917 = vld [vmem:[#allocation13 + $0x7a0] sm:$0xff]
    %v6918 = vld [vmem:[#allocation13 + $0x7a8] sm:$0xff]
    %v6919 = vld [vmem:[#allocation13 + $0x7b0] sm:$0xff]
    %v6920 = vld [vmem:[#allocation13 + $0x7b8] sm:$0xff]
    %v6921 = vld [vmem:[#allocation13 + $0x7c0] sm:$0xff]
    %v6922 = vld [vmem:[#allocation13 + $0x7c8] sm:$0xff]
    %v6923 = vld [vmem:[#allocation13 + $0x7d0] sm:$0xff]
    %v6924 = vld [vmem:[#allocation13 + $0x7d8] sm:$0xff]
    %v6925 = vld [vmem:[#allocation13 + $0x7e0] sm:$0xff]
    %v6926 = vld [vmem:[#allocation13 + $0x7e8] sm:$0xff]
    %v6927 = vld [vmem:[#allocation13 + $0x7f0] sm:$0xff]
    %v6928 = vld [vmem:[#allocation13 + $0x7f8] sm:$0xff]
    %v6929 = vld [vmem:[#allocation13 + $0x800] sm:$0xff]
    %v6930 = vld [vmem:[#allocation13 + $0x808] sm:$0xff]
    %v6931 = vld [vmem:[#allocation13 + $0x810] sm:$0xff]
    %v6932 = vld [vmem:[#allocation13 + $0x818] sm:$0xff]
    %v6933 = vld [vmem:[#allocation13 + $0x820] sm:$0xff]
    %v6934 = vld [vmem:[#allocation13 + $0x828] sm:$0xff]
    %v6935 = vld [vmem:[#allocation13 + $0x830] sm:$0xff]
    %v6936 = vld [vmem:[#allocation13 + $0x838] sm:$0xff]
    %v6937 = vld [vmem:[#allocation13 + $0x840] sm:$0xff]
    %v6938 = vld [vmem:[#allocation13 + $0x848] sm:$0xff]
    %v6939 = vld [vmem:[#allocation13 + $0x850] sm:$0xff]
    %v6940 = vld [vmem:[#allocation13 + $0x858] sm:$0xff]
    %v6941 = vld [vmem:[#allocation13 + $0x860] sm:$0xff]
    %v6942 = vld [vmem:[#allocation13 + $0x868] sm:$0xff]
    %v6943 = vld [vmem:[#allocation13 + $0x870] sm:$0xff]
    %v6944 = vld [vmem:[#allocation13 + $0x878] sm:$0xff]
    %v6945 = vld [vmem:[#allocation13 + $0x880] sm:$0xff]
    %v6946 = vld [vmem:[#allocation13 + $0x888] sm:$0xff]
    %v6947 = vld [vmem:[#allocation13 + $0x890] sm:$0xff]
    %v6948 = vld [vmem:[#allocation13 + $0x898] sm:$0xff]
    %v6949 = vld [vmem:[#allocation13 + $0x8a0] sm:$0xff]
    %v6950 = vld [vmem:[#allocation13 + $0x8a8] sm:$0xff]
    %v6951 = vld [vmem:[#allocation13 + $0x8b0] sm:$0xff]
    %v6952 = vld [vmem:[#allocation13 + $0x8b8] sm:$0xff]
    %v6953 = vld [vmem:[#allocation13 + $0x8c0] sm:$0xff]
    %v6954 = vld [vmem:[#allocation13 + $0x8c8] sm:$0xff]
    %v6955 = vld [vmem:[#allocation13 + $0x8d0] sm:$0xff]
    %v6956 = vld [vmem:[#allocation13 + $0x8d8] sm:$0xff]
    %v6957 = vld [vmem:[#allocation13 + $0x8e0] sm:$0xff]
    %v6958 = vld [vmem:[#allocation13 + $0x8e8] sm:$0xff]
    %v6959 = vld [vmem:[#allocation13 + $0x8f0] sm:$0xff]
    %v6960 = vld [vmem:[#allocation13 + $0x8f8] sm:$0xff]
    %v6961 = vld [vmem:[#allocation14] sm:$0x3f]
    %v6963 = vlaneseq
    %v6964 = vshrl.u32 %v6963, 7
    %v6965 = vsub.s32 0, %v6964
    %v6966 = vrot.slane %v6961, %v6965
    %v6967 = vlaneseq
    %v6968 = vshrl.u32 %v6967, 7
    %v6969 = vsub.s32 1, %v6968
    %v6970 = vrot.slane %v6961, %v6969
    %v6971 = vlaneseq
    %v6972 = vshrl.u32 %v6971, 7
    %v6973 = vsub.s32 2, %v6972
    %v6974 = vrot.slane %v6961, %v6973
    %v6975 = vlaneseq
    %v6976 = vshrl.u32 %v6975, 7
    %v6977 = vsub.s32 3, %v6976
    %v6978 = vrot.slane %v6961, %v6977
    %v6979 = vlaneseq
    %v6980 = vshrl.u32 %v6979, 7
    %v6981 = vsub.s32 4, %v6980
    %v6982 = vrot.slane %v6961, %v6981
    %v6983 = vlaneseq
    %v6984 = vshrl.u32 %v6983, 7
    %v6985 = vsub.s32 5, %v6984
    %v6986 = vrot.slane %v6961, %v6985
    %v7281 = vunpack.c.l.b16 %v6673
    %v7282 = vunpack.c.h.b16 %v6673
    %v7283 = vunpack.c.l.b16 %v6674
    %v7284 = vunpack.c.h.b16 %v6674
    %v7285 = vunpack.c.l.b16 %v6675
    %v7286 = vunpack.c.h.b16 %v6675
    %v7287 = vunpack.c.l.b16 %v6676
    %v7288 = vunpack.c.h.b16 %v6676
    %v7289 = vunpack.c.l.b16 %v6677
    %v7290 = vunpack.c.h.b16 %v6677
    %v7291 = vunpack.c.l.b16 %v6678
    %v7292 = vunpack.c.h.b16 %v6678
    %v7293 = vunpack.c.l.b16 %v6679
    %v7294 = vunpack.c.h.b16 %v6679
    %v7295 = vunpack.c.l.b16 %v6680
    %v7296 = vunpack.c.h.b16 %v6680
    %v7297 = vunpack.c.l.b16 %v6681
    %v7298 = vunpack.c.h.b16 %v6681
    %v7299 = vunpack.c.l.b16 %v6682
    %v7300 = vunpack.c.h.b16 %v6682
    %v7301 = vunpack.c.l.b16 %v6683
    %v7302 = vunpack.c.h.b16 %v6683
    %v7303 = vunpack.c.l.b16 %v6684
    %v7304 = vunpack.c.h.b16 %v6684
    %v7305 = vunpack.c.l.b16 %v6685
    %v7306 = vunpack.c.h.b16 %v6685
    %v7307 = vunpack.c.l.b16 %v6686
    %v7308 = vunpack.c.h.b16 %v6686
    %v7309 = vunpack.c.l.b16 %v6687
    %v7310 = vunpack.c.h.b16 %v6687
    %v7311 = vunpack.c.l.b16 %v6688
    %v7312 = vunpack.c.h.b16 %v6688
    %v7313 = vunpack.c.l.b16 %v6689
    %v7314 = vunpack.c.h.b16 %v6689
    %v7315 = vunpack.c.l.b16 %v6690
    %v7316 = vunpack.c.h.b16 %v6690
    %v7317 = vunpack.c.l.b16 %v6691
    %v7318 = vunpack.c.h.b16 %v6691
    %v7319 = vunpack.c.l.b16 %v6692
    %v7320 = vunpack.c.h.b16 %v6692
    %v7321 = vunpack.c.l.b16 %v6693
    %v7322 = vunpack.c.h.b16 %v6693
    %v7323 = vunpack.c.l.b16 %v6694
    %v7324 = vunpack.c.h.b16 %v6694
    %v7325 = vunpack.c.l.b16 %v6695
    %v7326 = vunpack.c.h.b16 %v6695
    %v7327 = vunpack.c.l.b16 %v6696
    %v7328 = vunpack.c.h.b16 %v6696
    %v7329 = vunpack.c.l.b16 %v6697
    %v7330 = vunpack.c.h.b16 %v6697
    %v7331 = vunpack.c.l.b16 %v6698
    %v7332 = vunpack.c.h.b16 %v6698
    %v7333 = vunpack.c.l.b16 %v6699
    %v7334 = vunpack.c.h.b16 %v6699
    %v7335 = vunpack.c.l.b16 %v6700
    %v7336 = vunpack.c.h.b16 %v6700
    %v7337 = vunpack.c.l.b16 %v6701
    %v7338 = vunpack.c.h.b16 %v6701
    %v7339 = vunpack.c.l.b16 %v6702
    %v7340 = vunpack.c.h.b16 %v6702
    %v7341 = vunpack.c.l.b16 %v6703
    %v7342 = vunpack.c.h.b16 %v6703
    %v7343 = vunpack.c.l.b16 %v6704
    %v7344 = vunpack.c.h.b16 %v6704
    %v7345 = vunpack.c.l.b16 %v6705
    %v7346 = vunpack.c.h.b16 %v6705
    %v7347 = vunpack.c.l.b16 %v6706
    %v7348 = vunpack.c.h.b16 %v6706
    %v7349 = vunpack.c.l.b16 %v6707
    %v7350 = vunpack.c.h.b16 %v6707
    %v7351 = vunpack.c.l.b16 %v6708
    %v7352 = vunpack.c.h.b16 %v6708
    %v7353 = vunpack.c.l.b16 %v6709
    %v7354 = vunpack.c.h.b16 %v6709
    %v7355 = vunpack.c.l.b16 %v6710
    %v7356 = vunpack.c.h.b16 %v6710
    %v7357 = vunpack.c.l.b16 %v6711
    %v7358 = vunpack.c.h.b16 %v6711
    %v7359 = vunpack.c.l.b16 %v6712
    %v7360 = vunpack.c.h.b16 %v6712
    %v7361 = vunpack.c.l.b16 %v6713
    %v7362 = vunpack.c.h.b16 %v6713
    %v7363 = vunpack.c.l.b16 %v6714
    %v7364 = vunpack.c.h.b16 %v6714
    %v7365 = vunpack.c.l.b16 %v6715
    %v7366 = vunpack.c.h.b16 %v6715
    %v7367 = vunpack.c.l.b16 %v6716
    %v7368 = vunpack.c.h.b16 %v6716
    %v7369 = vunpack.c.l.b16 %v6717
    %v7370 = vunpack.c.h.b16 %v6717
    %v7371 = vunpack.c.l.b16 %v6718
    %v7372 = vunpack.c.h.b16 %v6718
    %v7373 = vunpack.c.l.b16 %v6719
    %v7374 = vunpack.c.h.b16 %v6719
    %v7375 = vunpack.c.l.b16 %v6720
    %v7376 = vunpack.c.h.b16 %v6720
    %v7377 = vunpack.c.l.b16 %v6721
    %v7378 = vunpack.c.h.b16 %v6721
    %v7379 = vunpack.c.l.b16 %v6722
    %v7380 = vunpack.c.h.b16 %v6722
    %v7381 = vunpack.c.l.b16 %v6723
    %v7382 = vunpack.c.h.b16 %v6723
    %v7383 = vunpack.c.l.b16 %v6724
    %v7384 = vunpack.c.h.b16 %v6724
    %v7385 = vunpack.c.l.b16 %v6725
    %v7386 = vunpack.c.h.b16 %v6725
    %v7387 = vunpack.c.l.b16 %v6726
    %v7388 = vunpack.c.h.b16 %v6726
    %v7389 = vunpack.c.l.b16 %v6727
    %v7390 = vunpack.c.h.b16 %v6727
    %v7391 = vunpack.c.l.b16 %v6728
    %v7392 = vunpack.c.h.b16 %v6728
    %v7393 = vunpack.c.l.b16 %v6729
    %v7394 = vunpack.c.h.b16 %v6729
    %v7395 = vunpack.c.l.b16 %v6730
    %v7396 = vunpack.c.h.b16 %v6730
    %v7397 = vunpack.c.l.b16 %v6731
    %v7398 = vunpack.c.h.b16 %v6731
    %v7399 = vunpack.c.l.b16 %v6732
    %v7400 = vunpack.c.h.b16 %v6732
    %v7401 = vunpack.c.l.b16 %v6733
    %v7402 = vunpack.c.h.b16 %v6733
    %v7403 = vunpack.c.l.b16 %v6734
    %v7404 = vunpack.c.h.b16 %v6734
    %v7405 = vunpack.c.l.b16 %v6735
    %v7406 = vunpack.c.h.b16 %v6735
    %v7407 = vunpack.c.l.b16 %v6736
    %v7408 = vunpack.c.h.b16 %v6736
    %v7409 = vunpack.c.l.b16 %v6737
    %v7410 = vunpack.c.h.b16 %v6737
    %v7411 = vunpack.c.l.b16 %v6738
    %v7412 = vunpack.c.h.b16 %v6738
    %v7413 = vunpack.c.l.b16 %v6739
    %v7414 = vunpack.c.h.b16 %v6739
    %v7415 = vunpack.c.l.b16 %v6740
    %v7416 = vunpack.c.h.b16 %v6740
    %v7417 = vunpack.c.l.b16 %v6741
    %v7418 = vunpack.c.h.b16 %v6741
    %v7419 = vunpack.c.l.b16 %v6742
    %v7420 = vunpack.c.h.b16 %v6742
    %v7421 = vunpack.c.l.b16 %v6743
    %v7422 = vunpack.c.h.b16 %v6743
    %v7423 = vunpack.c.l.b16 %v6744
    %v7424 = vunpack.c.h.b16 %v6744
    %v7425 = vunpack.c.l.b16 %v6745
    %v7426 = vunpack.c.h.b16 %v6745
    %v7427 = vunpack.c.l.b16 %v6746
    %v7428 = vunpack.c.h.b16 %v6746
    %v7429 = vunpack.c.l.b16 %v6747
    %v7430 = vunpack.c.h.b16 %v6747
    %v7431 = vunpack.c.l.b16 %v6748
    %v7432 = vunpack.c.h.b16 %v6748
    %v7433 = vunpack.c.l.b16 %v6749
    %v7434 = vunpack.c.h.b16 %v6749
    %v7435 = vunpack.c.l.b16 %v6750
    %v7436 = vunpack.c.h.b16 %v6750
    %v7437 = vunpack.c.l.b16 %v6751
    %v7438 = vunpack.c.h.b16 %v6751
    %v7439 = vunpack.c.l.b16 %v6752
    %v7440 = vunpack.c.h.b16 %v6752
    %v7441 = vunpack.c.l.b16 %v6753
    %v7442 = vunpack.c.h.b16 %v6753
    %v7443 = vunpack.c.l.b16 %v6754
    %v7444 = vunpack.c.h.b16 %v6754
    %v7445 = vunpack.c.l.b16 %v6755
    %v7446 = vunpack.c.h.b16 %v6755
    %v7447 = vunpack.c.l.b16 %v6756
    %v7448 = vunpack.c.h.b16 %v6756
    %v7449 = vunpack.c.l.b16 %v6757
    %v7450 = vunpack.c.h.b16 %v6757
    %v7451 = vunpack.c.l.b16 %v6758
    %v7452 = vunpack.c.h.b16 %v6758
    %v7453 = vunpack.c.l.b16 %v6759
    %v7454 = vunpack.c.h.b16 %v6759
    %v7455 = vunpack.c.l.b16 %v6760
    %v7456 = vunpack.c.h.b16 %v6760
    %v7457 = vunpack.c.l.b16 %v6761
    %v7458 = vunpack.c.h.b16 %v6761
    %v7459 = vunpack.c.l.b16 %v6762
    %v7460 = vunpack.c.h.b16 %v6762
    %v7461 = vunpack.c.l.b16 %v6763
    %v7462 = vunpack.c.h.b16 %v6763
    %v7463 = vunpack.c.l.b16 %v6764
    %v7464 = vunpack.c.h.b16 %v6764
    %v7465 = vunpack.c.l.b16 %v6765
    %v7466 = vunpack.c.h.b16 %v6765
    %v7467 = vunpack.c.l.b16 %v6766
    %v7468 = vunpack.c.h.b16 %v6766
    %v7469 = vunpack.c.l.b16 %v6767
    %v7470 = vunpack.c.h.b16 %v6767
    %v7471 = vunpack.c.l.b16 %v6768
    %v7472 = vunpack.c.h.b16 %v6768
    %v7473 = vunpack.c.l.b16 %v6769
    %v7474 = vunpack.c.h.b16 %v6769
    %v7475 = vunpack.c.l.b16 %v6770
    %v7476 = vunpack.c.h.b16 %v6770
    %v7477 = vunpack.c.l.b16 %v6771
    %v7478 = vunpack.c.h.b16 %v6771
    %v7479 = vunpack.c.l.b16 %v6772
    %v7480 = vunpack.c.h.b16 %v6772
    %v7481 = vunpack.c.l.b16 %v6773
    %v7482 = vunpack.c.h.b16 %v6773
    %v7483 = vunpack.c.l.b16 %v6774
    %v7484 = vunpack.c.h.b16 %v6774
    %v7485 = vunpack.c.l.b16 %v6775
    %v7486 = vunpack.c.h.b16 %v6775
    %v7487 = vunpack.c.l.b16 %v6776
    %v7488 = vunpack.c.h.b16 %v6776
    %v7489 = vunpack.c.l.b16 %v6777
    %v7490 = vunpack.c.h.b16 %v6777
    %v7491 = vunpack.c.l.b16 %v6778
    %v7492 = vunpack.c.h.b16 %v6778
    %v7493 = vunpack.c.l.b16 %v6779
    %v7494 = vunpack.c.h.b16 %v6779
    %v7495 = vunpack.c.l.b16 %v6780
    %v7496 = vunpack.c.h.b16 %v6780
    %v7497 = vunpack.c.l.b16 %v6781
    %v7498 = vunpack.c.h.b16 %v6781
    %v7499 = vunpack.c.l.b16 %v6782
    %v7500 = vunpack.c.h.b16 %v6782
    %v7501 = vunpack.c.l.b16 %v6783
    %v7502 = vunpack.c.h.b16 %v6783
    %v7503 = vunpack.c.l.b16 %v6784
    %v7504 = vunpack.c.h.b16 %v6784
    %v7505 = vunpack.c.l.b16 %v6785
    %v7506 = vunpack.c.h.b16 %v6785
    %v7507 = vunpack.c.l.b16 %v6786
    %v7508 = vunpack.c.h.b16 %v6786
    %v7509 = vunpack.c.l.b16 %v6787
    %v7510 = vunpack.c.h.b16 %v6787
    %v7511 = vunpack.c.l.b16 %v6788
    %v7512 = vunpack.c.h.b16 %v6788
    %v7513 = vunpack.c.l.b16 %v6789
    %v7514 = vunpack.c.h.b16 %v6789
    %v7515 = vunpack.c.l.b16 %v6790
    %v7516 = vunpack.c.h.b16 %v6790
    %v7517 = vunpack.c.l.b16 %v6791
    %v7518 = vunpack.c.h.b16 %v6791
    %v7519 = vunpack.c.l.b16 %v6792
    %v7520 = vunpack.c.h.b16 %v6792
    %v7521 = vunpack.c.l.b16 %v6793
    %v7522 = vunpack.c.h.b16 %v6793
    %v7523 = vunpack.c.l.b16 %v6794
    %v7524 = vunpack.c.h.b16 %v6794
    %v7525 = vunpack.c.l.b16 %v6795
    %v7526 = vunpack.c.h.b16 %v6795
    %v7527 = vunpack.c.l.b16 %v6796
    %v7528 = vunpack.c.h.b16 %v6796
    %v7529 = vunpack.c.l.b16 %v6797
    %v7530 = vunpack.c.h.b16 %v6797
    %v7531 = vunpack.c.l.b16 %v6798
    %v7532 = vunpack.c.h.b16 %v6798
    %v7533 = vunpack.c.l.b16 %v6799
    %v7534 = vunpack.c.h.b16 %v6799
    %v7535 = vunpack.c.l.b16 %v6800
    %v7536 = vunpack.c.h.b16 %v6800
    %v7537 = vunpack.c.l.b16 %v6801
    %v7538 = vunpack.c.h.b16 %v6801
    %v7539 = vunpack.c.l.b16 %v6802
    %v7540 = vunpack.c.h.b16 %v6802
    %v7541 = vunpack.c.l.b16 %v6803
    %v7542 = vunpack.c.h.b16 %v6803
    %v7543 = vunpack.c.l.b16 %v6804
    %v7544 = vunpack.c.h.b16 %v6804
    %v7545 = vunpack.c.l.b16 %v6805
    %v7546 = vunpack.c.h.b16 %v6805
    %v7547 = vunpack.c.l.b16 %v6806
    %v7548 = vunpack.c.h.b16 %v6806
    %v7549 = vunpack.c.l.b16 %v6807
    %v7550 = vunpack.c.h.b16 %v6807
    %v7551 = vunpack.c.l.b16 %v6808
    %v7552 = vunpack.c.h.b16 %v6808
    %v7553 = vunpack.c.l.b16 %v6809
    %v7554 = vunpack.c.h.b16 %v6809
    %v7555 = vunpack.c.l.b16 %v6810
    %v7556 = vunpack.c.h.b16 %v6810
    %v7557 = vunpack.c.l.b16 %v6811
    %v7558 = vunpack.c.h.b16 %v6811
    %v7559 = vunpack.c.l.b16 %v6812
    %v7560 = vunpack.c.h.b16 %v6812
    %v7561 = vunpack.c.l.b16 %v6813
    %v7562 = vunpack.c.h.b16 %v6813
    %v7563 = vunpack.c.l.b16 %v6814
    %v7564 = vunpack.c.h.b16 %v6814
    %v7565 = vunpack.c.l.b16 %v6815
    %v7566 = vunpack.c.h.b16 %v6815
    %v7567 = vunpack.c.l.b16 %v6816
    %v7568 = vunpack.c.h.b16 %v6816
    %v7569 = vunpack.c.l.b16 %v6817
    %v7570 = vunpack.c.h.b16 %v6817
    %v7571 = vunpack.c.l.b16 %v6818
    %v7572 = vunpack.c.h.b16 %v6818
    %v7573 = vunpack.c.l.b16 %v6819
    %v7574 = vunpack.c.h.b16 %v6819
    %v7575 = vunpack.c.l.b16 %v6820
    %v7576 = vunpack.c.h.b16 %v6820
    %v7577 = vunpack.c.l.b16 %v6821
    %v7578 = vunpack.c.h.b16 %v6821
    %v7579 = vunpack.c.l.b16 %v6822
    %v7580 = vunpack.c.h.b16 %v6822
    %v7581 = vunpack.c.l.b16 %v6823
    %v7582 = vunpack.c.h.b16 %v6823
    %v7583 = vunpack.c.l.b16 %v6824
    %v7584 = vunpack.c.h.b16 %v6824
    %v7585 = vunpack.c.l.b16 %v6825
    %v7586 = vunpack.c.h.b16 %v6825
    %v7587 = vunpack.c.l.b16 %v6826
    %v7588 = vunpack.c.h.b16 %v6826
    %v7589 = vunpack.c.l.b16 %v6827
    %v7590 = vunpack.c.h.b16 %v6827
    %v7591 = vunpack.c.l.b16 %v6828
    %v7592 = vunpack.c.h.b16 %v6828
    %v7593 = vunpack.c.l.b16 %v6829
    %v7594 = vunpack.c.h.b16 %v6829
    %v7595 = vunpack.c.l.b16 %v6830
    %v7596 = vunpack.c.h.b16 %v6830
    %v7597 = vunpack.c.l.b16 %v6831
    %v7598 = vunpack.c.h.b16 %v6831
    %v7599 = vunpack.c.l.b16 %v6832
    %v7600 = vunpack.c.h.b16 %v6832
    %v7601 = vunpack.c.l.b16 %v6833
    %v7602 = vunpack.c.h.b16 %v6833
    %v7603 = vunpack.c.l.b16 %v6834
    %v7604 = vunpack.c.h.b16 %v6834
    %v7605 = vunpack.c.l.b16 %v6835
    %v7606 = vunpack.c.h.b16 %v6835
    %v7607 = vunpack.c.l.b16 %v6836
    %v7608 = vunpack.c.h.b16 %v6836
    %v7609 = vunpack.c.l.b16 %v6837
    %v7610 = vunpack.c.h.b16 %v6837
    %v7611 = vunpack.c.l.b16 %v6838
    %v7612 = vunpack.c.h.b16 %v6838
    %v7613 = vunpack.c.l.b16 %v6839
    %v7614 = vunpack.c.h.b16 %v6839
    %v7615 = vunpack.c.l.b16 %v6840
    %v7616 = vunpack.c.h.b16 %v6840
    %v7617 = vunpack.c.l.b16 %v6841
    %v7618 = vunpack.c.h.b16 %v6841
    %v7619 = vunpack.c.l.b16 %v6842
    %v7620 = vunpack.c.h.b16 %v6842
    %v7621 = vunpack.c.l.b16 %v6843
    %v7622 = vunpack.c.h.b16 %v6843
    %v7623 = vunpack.c.l.b16 %v6844
    %v7624 = vunpack.c.h.b16 %v6844
    %v7625 = vunpack.c.l.b16 %v6845
    %v7626 = vunpack.c.h.b16 %v6845
    %v7627 = vunpack.c.l.b16 %v6846
    %v7628 = vunpack.c.h.b16 %v6846
    %v7629 = vunpack.c.l.b16 %v6847
    %v7630 = vunpack.c.h.b16 %v6847
    %v7631 = vunpack.c.l.b16 %v6848
    %v7632 = vunpack.c.h.b16 %v6848
    %v7633 = vunpack.c.l.b16 %v6849
    %v7634 = vunpack.c.h.b16 %v6849
    %v7635 = vunpack.c.l.b16 %v6850
    %v7636 = vunpack.c.h.b16 %v6850
    %v7637 = vunpack.c.l.b16 %v6851
    %v7638 = vunpack.c.h.b16 %v6851
    %v7639 = vunpack.c.l.b16 %v6852
    %v7640 = vunpack.c.h.b16 %v6852
    %v7641 = vunpack.c.l.b16 %v6853
    %v7642 = vunpack.c.h.b16 %v6853
    %v7643 = vunpack.c.l.b16 %v6854
    %v7644 = vunpack.c.h.b16 %v6854
    %v7645 = vunpack.c.l.b16 %v6855
    %v7646 = vunpack.c.h.b16 %v6855
    %v7647 = vunpack.c.l.b16 %v6856
    %v7648 = vunpack.c.h.b16 %v6856
    %v7649 = vunpack.c.l.b16 %v6857
    %v7650 = vunpack.c.h.b16 %v6857
    %v7651 = vunpack.c.l.b16 %v6858
    %v7652 = vunpack.c.h.b16 %v6858
    %v7653 = vunpack.c.l.b16 %v6859
    %v7654 = vunpack.c.h.b16 %v6859
    %v7655 = vunpack.c.l.b16 %v6860
    %v7656 = vunpack.c.h.b16 %v6860
    %v7657 = vunpack.c.l.b16 %v6861
    %v7658 = vunpack.c.h.b16 %v6861
    %v7659 = vunpack.c.l.b16 %v6862
    %v7660 = vunpack.c.h.b16 %v6862
    %v7661 = vunpack.c.l.b16 %v6863
    %v7662 = vunpack.c.h.b16 %v6863
    %v7663 = vunpack.c.l.b16 %v6864
    %v7664 = vunpack.c.h.b16 %v6864
    %v7665 = vunpack.c.l.b16 %v6865
    %v7666 = vunpack.c.h.b16 %v6865
    %v7667 = vunpack.c.l.b16 %v6866
    %v7668 = vunpack.c.h.b16 %v6866
    %v7669 = vunpack.c.l.b16 %v6867
    %v7670 = vunpack.c.h.b16 %v6867
    %v7671 = vunpack.c.l.b16 %v6868
    %v7672 = vunpack.c.h.b16 %v6868
    %v7673 = vunpack.c.l.b16 %v6869
    %v7674 = vunpack.c.h.b16 %v6869
    %v7675 = vunpack.c.l.b16 %v6870
    %v7676 = vunpack.c.h.b16 %v6870
    %v7677 = vunpack.c.l.b16 %v6871
    %v7678 = vunpack.c.h.b16 %v6871
    %v7679 = vunpack.c.l.b16 %v6872
    %v7680 = vunpack.c.h.b16 %v6872
    %v7681 = vunpack.c.l.b16 %v6873
    %v7682 = vunpack.c.h.b16 %v6873
    %v7683 = vunpack.c.l.b16 %v6874
    %v7684 = vunpack.c.h.b16 %v6874
    %v7685 = vunpack.c.l.b16 %v6875
    %v7686 = vunpack.c.h.b16 %v6875
    %v7687 = vunpack.c.l.b16 %v6876
    %v7688 = vunpack.c.h.b16 %v6876
    %v7689 = vunpack.c.l.b16 %v6877
    %v7690 = vunpack.c.h.b16 %v6877
    %v7691 = vunpack.c.l.b16 %v6878
    %v7692 = vunpack.c.h.b16 %v6878
    %v7693 = vunpack.c.l.b16 %v6879
    %v7694 = vunpack.c.h.b16 %v6879
    %v7695 = vunpack.c.l.b16 %v6880
    %v7696 = vunpack.c.h.b16 %v6880
    %v7697 = vunpack.c.l.b16 %v6881
    %v7698 = vunpack.c.h.b16 %v6881
    %v7699 = vunpack.c.l.b16 %v6882
    %v7700 = vunpack.c.h.b16 %v6882
    %v7701 = vunpack.c.l.b16 %v6883
    %v7702 = vunpack.c.h.b16 %v6883
    %v7703 = vunpack.c.l.b16 %v6884
    %v7704 = vunpack.c.h.b16 %v6884
    %v7705 = vunpack.c.l.b16 %v6885
    %v7706 = vunpack.c.h.b16 %v6885
    %v7707 = vunpack.c.l.b16 %v6886
    %v7708 = vunpack.c.h.b16 %v6886
    %v7709 = vunpack.c.l.b16 %v6887
    %v7710 = vunpack.c.h.b16 %v6887
    %v7711 = vunpack.c.l.b16 %v6888
    %v7712 = vunpack.c.h.b16 %v6888
    %v7713 = vunpack.c.l.b16 %v6889
    %v7714 = vunpack.c.h.b16 %v6889
    %v7715 = vunpack.c.l.b16 %v6890
    %v7716 = vunpack.c.h.b16 %v6890
    %v7717 = vunpack.c.l.b16 %v6891
    %v7718 = vunpack.c.h.b16 %v6891
    %v7719 = vunpack.c.l.b16 %v6892
    %v7720 = vunpack.c.h.b16 %v6892
    %v7721 = vunpack.c.l.b16 %v6893
    %v7722 = vunpack.c.h.b16 %v6893
    %v7723 = vunpack.c.l.b16 %v6894
    %v7724 = vunpack.c.h.b16 %v6894
    %v7725 = vunpack.c.l.b16 %v6895
    %v7726 = vunpack.c.h.b16 %v6895
    %v7727 = vunpack.c.l.b16 %v6896
    %v7728 = vunpack.c.h.b16 %v6896
    %v7729 = vunpack.c.l.b16 %v6897
    %v7730 = vunpack.c.h.b16 %v6897
    %v7731 = vunpack.c.l.b16 %v6898
    %v7732 = vunpack.c.h.b16 %v6898
    %v7733 = vunpack.c.l.b16 %v6899
    %v7734 = vunpack.c.h.b16 %v6899
    %v7735 = vunpack.c.l.b16 %v6900
    %v7736 = vunpack.c.h.b16 %v6900
    %v7737 = vunpack.c.l.b16 %v6901
    %v7738 = vunpack.c.h.b16 %v6901
    %v7739 = vunpack.c.l.b16 %v6902
    %v7740 = vunpack.c.h.b16 %v6902
    %v7741 = vunpack.c.l.b16 %v6903
    %v7742 = vunpack.c.h.b16 %v6903
    %v7743 = vunpack.c.l.b16 %v6904
    %v7744 = vunpack.c.h.b16 %v6904
    %v7745 = vunpack.c.l.b16 %v6905
    %v7746 = vunpack.c.h.b16 %v6905
    %v7747 = vunpack.c.l.b16 %v6906
    %v7748 = vunpack.c.h.b16 %v6906
    %v7749 = vunpack.c.l.b16 %v6907
    %v7750 = vunpack.c.h.b16 %v6907
    %v7751 = vunpack.c.l.b16 %v6908
    %v7752 = vunpack.c.h.b16 %v6908
    %v7753 = vunpack.c.l.b16 %v6909
    %v7754 = vunpack.c.h.b16 %v6909
    %v7755 = vunpack.c.l.b16 %v6910
    %v7756 = vunpack.c.h.b16 %v6910
    %v7757 = vunpack.c.l.b16 %v6911
    %v7758 = vunpack.c.h.b16 %v6911
    %v7759 = vunpack.c.l.b16 %v6912
    %v7760 = vunpack.c.h.b16 %v6912
    %v7761 = vunpack.c.l.b16 %v6913
    %v7762 = vunpack.c.h.b16 %v6913
    %v7763 = vunpack.c.l.b16 %v6914
    %v7764 = vunpack.c.h.b16 %v6914
    %v7765 = vunpack.c.l.b16 %v6915
    %v7766 = vunpack.c.h.b16 %v6915
    %v7767 = vunpack.c.l.b16 %v6916
    %v7768 = vunpack.c.h.b16 %v6916
    %v7769 = vunpack.c.l.b16 %v6917
    %v7770 = vunpack.c.h.b16 %v6917
    %v7771 = vunpack.c.l.b16 %v6918
    %v7772 = vunpack.c.h.b16 %v6918
    %v7773 = vunpack.c.l.b16 %v6919
    %v7774 = vunpack.c.h.b16 %v6919
    %v7775 = vunpack.c.l.b16 %v6920
    %v7776 = vunpack.c.h.b16 %v6920
    %v7777 = vunpack.c.l.b16 %v6921
    %v7778 = vunpack.c.h.b16 %v6921
    %v7779 = vunpack.c.l.b16 %v6922
    %v7780 = vunpack.c.h.b16 %v6922
    %v7781 = vunpack.c.l.b16 %v6923
    %v7782 = vunpack.c.h.b16 %v6923
    %v7783 = vunpack.c.l.b16 %v6924
    %v7784 = vunpack.c.h.b16 %v6924
    %v7785 = vunpack.c.l.b16 %v6925
    %v7786 = vunpack.c.h.b16 %v6925
    %v7787 = vunpack.c.l.b16 %v6926
    %v7788 = vunpack.c.h.b16 %v6926
    %v7789 = vunpack.c.l.b16 %v6927
    %v7790 = vunpack.c.h.b16 %v6927
    %v7791 = vunpack.c.l.b16 %v6928
    %v7792 = vunpack.c.h.b16 %v6928
    %v7793 = vunpack.c.l.b16 %v6929
    %v7794 = vunpack.c.h.b16 %v6929
    %v7795 = vunpack.c.l.b16 %v6930
    %v7796 = vunpack.c.h.b16 %v6930
    %v7797 = vunpack.c.l.b16 %v6931
    %v7798 = vunpack.c.h.b16 %v6931
    %v7799 = vunpack.c.l.b16 %v6932
    %v7800 = vunpack.c.h.b16 %v6932
    %v7801 = vunpack.c.l.b16 %v6933
    %v7802 = vunpack.c.h.b16 %v6933
    %v7803 = vunpack.c.l.b16 %v6934
    %v7804 = vunpack.c.h.b16 %v6934
    %v7805 = vunpack.c.l.b16 %v6935
    %v7806 = vunpack.c.h.b16 %v6935
    %v7807 = vunpack.c.l.b16 %v6936
    %v7808 = vunpack.c.h.b16 %v6936
    %v7809 = vunpack.c.l.b16 %v6937
    %v7810 = vunpack.c.h.b16 %v6937
    %v7811 = vunpack.c.l.b16 %v6938
    %v7812 = vunpack.c.h.b16 %v6938
    %v7813 = vunpack.c.l.b16 %v6939
    %v7814 = vunpack.c.h.b16 %v6939
    %v7815 = vunpack.c.l.b16 %v6940
    %v7816 = vunpack.c.h.b16 %v6940
    %v7817 = vunpack.c.l.b16 %v6941
    %v7818 = vunpack.c.h.b16 %v6941
    %v7819 = vunpack.c.l.b16 %v6942
    %v7820 = vunpack.c.h.b16 %v6942
    %v7821 = vunpack.c.l.b16 %v6943
    %v7822 = vunpack.c.h.b16 %v6943
    %v7823 = vunpack.c.l.b16 %v6944
    %v7824 = vunpack.c.h.b16 %v6944
    %v7825 = vunpack.c.l.b16 %v6945
    %v7826 = vunpack.c.h.b16 %v6945
    %v7827 = vunpack.c.l.b16 %v6946
    %v7828 = vunpack.c.h.b16 %v6946
    %v7829 = vunpack.c.l.b16 %v6947
    %v7830 = vunpack.c.h.b16 %v6947
    %v7831 = vunpack.c.l.b16 %v6948
    %v7832 = vunpack.c.h.b16 %v6948
    %v7833 = vunpack.c.l.b16 %v6949
    %v7834 = vunpack.c.h.b16 %v6949
    %v7835 = vunpack.c.l.b16 %v6950
    %v7836 = vunpack.c.h.b16 %v6950
    %v7837 = vunpack.c.l.b16 %v6951
    %v7838 = vunpack.c.h.b16 %v6951
    %v7839 = vunpack.c.l.b16 %v6952
    %v7840 = vunpack.c.h.b16 %v6952
    %v7841 = vunpack.c.l.b16 %v6953
    %v7842 = vunpack.c.h.b16 %v6953
    %v7843 = vunpack.c.l.b16 %v6954
    %v7844 = vunpack.c.h.b16 %v6954
    %v7845 = vunpack.c.l.b16 %v6955
    %v7846 = vunpack.c.h.b16 %v6955
    %v7847 = vunpack.c.l.b16 %v6956
    %v7848 = vunpack.c.h.b16 %v6956
    %v7849 = vunpack.c.l.b16 %v6957
    %v7850 = vunpack.c.h.b16 %v6957
    %v7851 = vunpack.c.l.b16 %v6958
    %v7852 = vunpack.c.h.b16 %v6958
    %v7853 = vunpack.c.l.b16 %v6959
    %v7854 = vunpack.c.h.b16 %v6959
    %v7855 = vunpack.c.l.b16 %v6960
    %v7856 = vunpack.c.h.b16 %v6960
    %v7857 = vpack.c.b16 %v7287, %v7281
    %v7858 = vpack.c.b16 %v7288, %v7282
    %v7859 = vpack.c.b16 %v7289, %v7283
    %v7860 = vpack.c.b16 %v7290, %v7284
    %v7861 = vpack.c.b16 %v7291, %v7285
    %v7862 = vpack.c.b16 %v7292, %v7286
    %v7863 = vpack.c.b16 %v7299, %v7293
    %v7864 = vpack.c.b16 %v7300, %v7294
    %v7865 = vpack.c.b16 %v7301, %v7295
    %v7866 = vpack.c.b16 %v7302, %v7296
    %v7867 = vpack.c.b16 %v7303, %v7297
    %v7868 = vpack.c.b16 %v7304, %v7298
    %v7869 = vpack.c.b16 %v7311, %v7305
    %v7870 = vpack.c.b16 %v7312, %v7306
    %v7871 = vpack.c.b16 %v7313, %v7307
    %v7872 = vpack.c.b16 %v7314, %v7308
    %v7873 = vpack.c.b16 %v7315, %v7309
    %v7874 = vpack.c.b16 %v7316, %v7310
    %v7875 = vpack.c.b16 %v7323, %v7317
    %v7876 = vpack.c.b16 %v7324, %v7318
    %v7877 = vpack.c.b16 %v7325, %v7319
    %v7878 = vpack.c.b16 %v7326, %v7320
    %v7879 = vpack.c.b16 %v7327, %v7321
    %v7880 = vpack.c.b16 %v7328, %v7322
    %v7881 = vpack.c.b16 %v7335, %v7329
    %v7882 = vpack.c.b16 %v7336, %v7330
    %v7883 = vpack.c.b16 %v7337, %v7331
    %v7884 = vpack.c.b16 %v7338, %v7332
    %v7885 = vpack.c.b16 %v7339, %v7333
    %v7886 = vpack.c.b16 %v7340, %v7334
    %v7887 = vpack.c.b16 %v7347, %v7341
    %v7888 = vpack.c.b16 %v7348, %v7342
    %v7889 = vpack.c.b16 %v7349, %v7343
    %v7890 = vpack.c.b16 %v7350, %v7344
    %v7891 = vpack.c.b16 %v7351, %v7345
    %v7892 = vpack.c.b16 %v7352, %v7346
    %v7893 = vpack.c.b16 %v7359, %v7353
    %v7894 = vpack.c.b16 %v7360, %v7354
    %v7895 = vpack.c.b16 %v7361, %v7355
    %v7896 = vpack.c.b16 %v7362, %v7356
    %v7897 = vpack.c.b16 %v7363, %v7357
    %v7898 = vpack.c.b16 %v7364, %v7358
    %v7899 = vpack.c.b16 %v7371, %v7365
    %v7900 = vpack.c.b16 %v7372, %v7366
    %v7901 = vpack.c.b16 %v7373, %v7367
    %v7902 = vpack.c.b16 %v7374, %v7368
    %v7903 = vpack.c.b16 %v7375, %v7369
    %v7904 = vpack.c.b16 %v7376, %v7370
    %v7905 = vpack.c.b16 %v7383, %v7377
    %v7906 = vpack.c.b16 %v7384, %v7378
    %v7907 = vpack.c.b16 %v7385, %v7379
    %v7908 = vpack.c.b16 %v7386, %v7380
    %v7909 = vpack.c.b16 %v7387, %v7381
    %v7910 = vpack.c.b16 %v7388, %v7382
    %v7911 = vpack.c.b16 %v7395, %v7389
    %v7912 = vpack.c.b16 %v7396, %v7390
    %v7913 = vpack.c.b16 %v7397, %v7391
    %v7914 = vpack.c.b16 %v7398, %v7392
    %v7915 = vpack.c.b16 %v7399, %v7393
    %v7916 = vpack.c.b16 %v7400, %v7394
    %v7917 = vpack.c.b16 %v7407, %v7401
    %v7918 = vpack.c.b16 %v7408, %v7402
    %v7919 = vpack.c.b16 %v7409, %v7403
    %v7920 = vpack.c.b16 %v7410, %v7404
    %v7921 = vpack.c.b16 %v7411, %v7405
    %v7922 = vpack.c.b16 %v7412, %v7406
    %v7923 = vpack.c.b16 %v7419, %v7413
    %v7924 = vpack.c.b16 %v7420, %v7414
    %v7925 = vpack.c.b16 %v7421, %v7415
    %v7926 = vpack.c.b16 %v7422, %v7416
    %v7927 = vpack.c.b16 %v7423, %v7417
    %v7928 = vpack.c.b16 %v7424, %v7418
    %v7929 = vpack.c.b16 %v7431, %v7425
    %v7930 = vpack.c.b16 %v7432, %v7426
    %v7931 = vpack.c.b16 %v7433, %v7427
    %v7932 = vpack.c.b16 %v7434, %v7428
    %v7933 = vpack.c.b16 %v7435, %v7429
    %v7934 = vpack.c.b16 %v7436, %v7430
    %v7935 = vpack.c.b16 %v7443, %v7437
    %v7936 = vpack.c.b16 %v7444, %v7438
    %v7937 = vpack.c.b16 %v7445, %v7439
    %v7938 = vpack.c.b16 %v7446, %v7440
    %v7939 = vpack.c.b16 %v7447, %v7441
    %v7940 = vpack.c.b16 %v7448, %v7442
    %v7941 = vpack.c.b16 %v7455, %v7449
    %v7942 = vpack.c.b16 %v7456, %v7450
    %v7943 = vpack.c.b16 %v7457, %v7451
    %v7944 = vpack.c.b16 %v7458, %v7452
    %v7945 = vpack.c.b16 %v7459, %v7453
    %v7946 = vpack.c.b16 %v7460, %v7454
    %v7947 = vpack.c.b16 %v7467, %v7461
    %v7948 = vpack.c.b16 %v7468, %v7462
    %v7949 = vpack.c.b16 %v7469, %v7463
    %v7950 = vpack.c.b16 %v7470, %v7464
    %v7951 = vpack.c.b16 %v7471, %v7465
    %v7952 = vpack.c.b16 %v7472, %v7466
    %v7953 = vpack.c.b16 %v7479, %v7473
    %v7954 = vpack.c.b16 %v7480, %v7474
    %v7955 = vpack.c.b16 %v7481, %v7475
    %v7956 = vpack.c.b16 %v7482, %v7476
    %v7957 = vpack.c.b16 %v7483, %v7477
    %v7958 = vpack.c.b16 %v7484, %v7478
    %v7959 = vpack.c.b16 %v7491, %v7485
    %v7960 = vpack.c.b16 %v7492, %v7486
    %v7961 = vpack.c.b16 %v7493, %v7487
    %v7962 = vpack.c.b16 %v7494, %v7488
    %v7963 = vpack.c.b16 %v7495, %v7489
    %v7964 = vpack.c.b16 %v7496, %v7490
    %v7965 = vpack.c.b16 %v7503, %v7497
    %v7966 = vpack.c.b16 %v7504, %v7498
    %v7967 = vpack.c.b16 %v7505, %v7499
    %v7968 = vpack.c.b16 %v7506, %v7500
    %v7969 = vpack.c.b16 %v7507, %v7501
    %v7970 = vpack.c.b16 %v7508, %v7502
    %v7971 = vpack.c.b16 %v7515, %v7509
    %v7972 = vpack.c.b16 %v7516, %v7510
    %v7973 = vpack.c.b16 %v7517, %v7511
    %v7974 = vpack.c.b16 %v7518, %v7512
    %v7975 = vpack.c.b16 %v7519, %v7513
    %v7976 = vpack.c.b16 %v7520, %v7514
    %v7977 = vpack.c.b16 %v7527, %v7521
    %v7978 = vpack.c.b16 %v7528, %v7522
    %v7979 = vpack.c.b16 %v7529, %v7523
    %v7980 = vpack.c.b16 %v7530, %v7524
    %v7981 = vpack.c.b16 %v7531, %v7525
    %v7982 = vpack.c.b16 %v7532, %v7526
    %v7983 = vpack.c.b16 %v7539, %v7533
    %v7984 = vpack.c.b16 %v7540, %v7534
    %v7985 = vpack.c.b16 %v7541, %v7535
    %v7986 = vpack.c.b16 %v7542, %v7536
    %v7987 = vpack.c.b16 %v7543, %v7537
    %v7988 = vpack.c.b16 %v7544, %v7538
    %v7989 = vpack.c.b16 %v7551, %v7545
    %v7990 = vpack.c.b16 %v7552, %v7546
    %v7991 = vpack.c.b16 %v7553, %v7547
    %v7992 = vpack.c.b16 %v7554, %v7548
    %v7993 = vpack.c.b16 %v7555, %v7549
    %v7994 = vpack.c.b16 %v7556, %v7550
    %v7995 = vpack.c.b16 %v7563, %v7557
    %v7996 = vpack.c.b16 %v7564, %v7558
    %v7997 = vpack.c.b16 %v7565, %v7559
    %v7998 = vpack.c.b16 %v7566, %v7560
    %v7999 = vpack.c.b16 %v7567, %v7561
    %v8000 = vpack.c.b16 %v7568, %v7562
    %v8001 = vpack.c.b16 %v7575, %v7569
    %v8002 = vpack.c.b16 %v7576, %v7570
    %v8003 = vpack.c.b16 %v7577, %v7571
    %v8004 = vpack.c.b16 %v7578, %v7572
    %v8005 = vpack.c.b16 %v7579, %v7573
    %v8006 = vpack.c.b16 %v7580, %v7574
    %v8007 = vpack.c.b16 %v7587, %v7581
    %v8008 = vpack.c.b16 %v7588, %v7582
    %v8009 = vpack.c.b16 %v7589, %v7583
    %v8010 = vpack.c.b16 %v7590, %v7584
    %v8011 = vpack.c.b16 %v7591, %v7585
    %v8012 = vpack.c.b16 %v7592, %v7586
    %v8013 = vpack.c.b16 %v7599, %v7593
    %v8014 = vpack.c.b16 %v7600, %v7594
    %v8015 = vpack.c.b16 %v7601, %v7595
    %v8016 = vpack.c.b16 %v7602, %v7596
    %v8017 = vpack.c.b16 %v7603, %v7597
    %v8018 = vpack.c.b16 %v7604, %v7598
    %v8019 = vpack.c.b16 %v7611, %v7605
    %v8020 = vpack.c.b16 %v7612, %v7606
    %v8021 = vpack.c.b16 %v7613, %v7607
    %v8022 = vpack.c.b16 %v7614, %v7608
    %v8023 = vpack.c.b16 %v7615, %v7609
    %v8024 = vpack.c.b16 %v7616, %v7610
    %v8025 = vpack.c.b16 %v7623, %v7617
    %v8026 = vpack.c.b16 %v7624, %v7618
    %v8027 = vpack.c.b16 %v7625, %v7619
    %v8028 = vpack.c.b16 %v7626, %v7620
    %v8029 = vpack.c.b16 %v7627, %v7621
    %v8030 = vpack.c.b16 %v7628, %v7622
    %v8031 = vpack.c.b16 %v7635, %v7629
    %v8032 = vpack.c.b16 %v7636, %v7630
    %v8033 = vpack.c.b16 %v7637, %v7631
    %v8034 = vpack.c.b16 %v7638, %v7632
    %v8035 = vpack.c.b16 %v7639, %v7633
    %v8036 = vpack.c.b16 %v7640, %v7634
    %v8037 = vpack.c.b16 %v7647, %v7641
    %v8038 = vpack.c.b16 %v7648, %v7642
    %v8039 = vpack.c.b16 %v7649, %v7643
    %v8040 = vpack.c.b16 %v7650, %v7644
    %v8041 = vpack.c.b16 %v7651, %v7645
    %v8042 = vpack.c.b16 %v7652, %v7646
    %v8043 = vpack.c.b16 %v7659, %v7653
    %v8044 = vpack.c.b16 %v7660, %v7654
    %v8045 = vpack.c.b16 %v7661, %v7655
    %v8046 = vpack.c.b16 %v7662, %v7656
    %v8047 = vpack.c.b16 %v7663, %v7657
    %v8048 = vpack.c.b16 %v7664, %v7658
    %v8049 = vpack.c.b16 %v7671, %v7665
    %v8050 = vpack.c.b16 %v7672, %v7666
    %v8051 = vpack.c.b16 %v7673, %v7667
    %v8052 = vpack.c.b16 %v7674, %v7668
    %v8053 = vpack.c.b16 %v7675, %v7669
    %v8054 = vpack.c.b16 %v7676, %v7670
    %v8055 = vpack.c.b16 %v7683, %v7677
    %v8056 = vpack.c.b16 %v7684, %v7678
    %v8057 = vpack.c.b16 %v7685, %v7679
    %v8058 = vpack.c.b16 %v7686, %v7680
    %v8059 = vpack.c.b16 %v7687, %v7681
    %v8060 = vpack.c.b16 %v7688, %v7682
    %v8061 = vpack.c.b16 %v7695, %v7689
    %v8062 = vpack.c.b16 %v7696, %v7690
    %v8063 = vpack.c.b16 %v7697, %v7691
    %v8064 = vpack.c.b16 %v7698, %v7692
    %v8065 = vpack.c.b16 %v7699, %v7693
    %v8066 = vpack.c.b16 %v7700, %v7694
    %v8067 = vpack.c.b16 %v7707, %v7701
    %v8068 = vpack.c.b16 %v7708, %v7702
    %v8069 = vpack.c.b16 %v7709, %v7703
    %v8070 = vpack.c.b16 %v7710, %v7704
    %v8071 = vpack.c.b16 %v7711, %v7705
    %v8072 = vpack.c.b16 %v7712, %v7706
    %v8073 = vpack.c.b16 %v7719, %v7713
    %v8074 = vpack.c.b16 %v7720, %v7714
    %v8075 = vpack.c.b16 %v7721, %v7715
    %v8076 = vpack.c.b16 %v7722, %v7716
    %v8077 = vpack.c.b16 %v7723, %v7717
    %v8078 = vpack.c.b16 %v7724, %v7718
    %v8079 = vpack.c.b16 %v7731, %v7725
    %v8080 = vpack.c.b16 %v7732, %v7726
    %v8081 = vpack.c.b16 %v7733, %v7727
    %v8082 = vpack.c.b16 %v7734, %v7728
    %v8083 = vpack.c.b16 %v7735, %v7729
    %v8084 = vpack.c.b16 %v7736, %v7730
    %v8085 = vpack.c.b16 %v7743, %v7737
    %v8086 = vpack.c.b16 %v7744, %v7738
    %v8087 = vpack.c.b16 %v7745, %v7739
    %v8088 = vpack.c.b16 %v7746, %v7740
    %v8089 = vpack.c.b16 %v7747, %v7741
    %v8090 = vpack.c.b16 %v7748, %v7742
    %v8091 = vpack.c.b16 %v7755, %v7749
    %v8092 = vpack.c.b16 %v7756, %v7750
    %v8093 = vpack.c.b16 %v7757, %v7751
    %v8094 = vpack.c.b16 %v7758, %v7752
    %v8095 = vpack.c.b16 %v7759, %v7753
    %v8096 = vpack.c.b16 %v7760, %v7754
    %v8097 = vpack.c.b16 %v7767, %v7761
    %v8098 = vpack.c.b16 %v7768, %v7762
    %v8099 = vpack.c.b16 %v7769, %v7763
    %v8100 = vpack.c.b16 %v7770, %v7764
    %v8101 = vpack.c.b16 %v7771, %v7765
    %v8102 = vpack.c.b16 %v7772, %v7766
    %v8103 = vpack.c.b16 %v7779, %v7773
    %v8104 = vpack.c.b16 %v7780, %v7774
    %v8105 = vpack.c.b16 %v7781, %v7775
    %v8106 = vpack.c.b16 %v7782, %v7776
    %v8107 = vpack.c.b16 %v7783, %v7777
    %v8108 = vpack.c.b16 %v7784, %v7778
    %v8109 = vpack.c.b16 %v7791, %v7785
    %v8110 = vpack.c.b16 %v7792, %v7786
    %v8111 = vpack.c.b16 %v7793, %v7787
    %v8112 = vpack.c.b16 %v7794, %v7788
    %v8113 = vpack.c.b16 %v7795, %v7789
    %v8114 = vpack.c.b16 %v7796, %v7790
    %v8115 = vpack.c.b16 %v7803, %v7797
    %v8116 = vpack.c.b16 %v7804, %v7798
    %v8117 = vpack.c.b16 %v7805, %v7799
    %v8118 = vpack.c.b16 %v7806, %v7800
    %v8119 = vpack.c.b16 %v7807, %v7801
    %v8120 = vpack.c.b16 %v7808, %v7802
    %v8121 = vpack.c.b16 %v7815, %v7809
    %v8122 = vpack.c.b16 %v7816, %v7810
    %v8123 = vpack.c.b16 %v7817, %v7811
    %v8124 = vpack.c.b16 %v7818, %v7812
    %v8125 = vpack.c.b16 %v7819, %v7813
    %v8126 = vpack.c.b16 %v7820, %v7814
    %v8127 = vpack.c.b16 %v7827, %v7821
    %v8128 = vpack.c.b16 %v7828, %v7822
    %v8129 = vpack.c.b16 %v7829, %v7823
    %v8130 = vpack.c.b16 %v7830, %v7824
    %v8131 = vpack.c.b16 %v7831, %v7825
    %v8132 = vpack.c.b16 %v7832, %v7826
    %v8133 = vpack.c.b16 %v7839, %v7833
    %v8134 = vpack.c.b16 %v7840, %v7834
    %v8135 = vpack.c.b16 %v7841, %v7835
    %v8136 = vpack.c.b16 %v7842, %v7836
    %v8137 = vpack.c.b16 %v7843, %v7837
    %v8138 = vpack.c.b16 %v7844, %v7838
    %v8139 = vpack.c.b16 %v7851, %v7845
    %v8140 = vpack.c.b16 %v7852, %v7846
    %v8141 = vpack.c.b16 %v7853, %v7847
    %v8142 = vpack.c.b16 %v7854, %v7848
    %v8143 = vpack.c.b16 %v7855, %v7849
    %v8144 = vpack.c.b16 %v7856, %v7850
    %8433 = vmatprep.subr.bf16.mxu0 %v7900
    %8434 = vmatpush1.bf16.msra.mxu0 %v7899
    %8435 = vmatprep.subr.bf16.mxu0 %v7894
    %8436 = vmatpush1.bf16.msra.mxu0 %v7893
    %8437 = vmatprep.subr.bf16.mxu0 %v7888
    %8438 = vmatpush1.bf16.msra.mxu0 %v7887
    %8439 = vmatprep.subr.bf16.mxu0 %v7882
    %8440 = vmatpush1.bf16.msra.mxu0 %v7881
    %8441 = vmatprep.subr.bf16.mxu0 %v7876
    %8442 = vmatpush1.bf16.msra.mxu0 %v7875
    %8443 = vmatprep.subr.bf16.mxu0 %v7870
    %8444 = vmatpush1.bf16.msra.mxu0 %v7869
    %8445 = vmatprep.subr.bf16.mxu0 %v7864
    %8446 = vmatpush1.bf16.msra.mxu0 %v7863
    %8447 = vmatprep.subr.bf16.mxu0 %v7858
    %8448 = vmatpush1.bf16.msra.mxu0 %v7857
    %8449 = vmatprep.subr.bf16.mxu0 %v7948
    %8450 = vmatpush2.bf16.msra.mxu0 %v7947
    %8451 = vmatprep.subr.bf16.mxu0 %v7942
    %8452 = vmatpush2.bf16.msra.mxu0 %v7941
    %8453 = vmatprep.subr.bf16.mxu0 %v7936
    %8454 = vmatpush2.bf16.msra.mxu0 %v7935
    %8455 = vmatprep.subr.bf16.mxu0 %v7930
    %8456 = vmatpush2.bf16.msra.mxu0 %v7929
    %8457 = vmatprep.subr.bf16.mxu0 %v7924
    %8458 = vmatpush2.bf16.msra.mxu0 %v7923
    %8459 = vmatprep.subr.bf16.mxu0 %v7918
    %8460 = vmatpush2.bf16.msra.mxu0 %v7917
    %8461 = vmatprep.subr.bf16.mxu0 %v7912
    %8462 = vmatpush2.bf16.msra.mxu0 %v7911
    %8463 = vmatprep.subr.bf16.mxu0 %v7906
    %8464 = vmatpush2.bf16.msra.mxu0 %v7905
    %8465 = vmatprep.mubr.bf16.mxu0 %v6668
    %8466 = vmatmul.mubr.bf16.gmra.mxu0 %v6667
    %v8467 = vpop.f32.mrf.mxu0
    %v8468 = vadd.f32 %v6966, %v8467
    %v8469 = vpop.f32.mrf.mxu0
    %v8470 = vadd.f32 %v6970, %v8469
    %v8471 = vpop.f32.mrf.mxu0
    %v8472 = vpop.f32.mrf.mxu0
    %8473 = vdwg.mxu0
    %8474 = vmatprep.subr.bf16.mxu0 %v7996
    %8475 = vmatpush1.bf16.msra.mxu0 %v7995
    %8476 = vmatprep.subr.bf16.mxu0 %v7990
    %8477 = vmatpush1.bf16.msra.mxu0 %v7989
    %8478 = vmatprep.subr.bf16.mxu0 %v7984
    %8479 = vmatpush1.bf16.msra.mxu0 %v7983
    %8480 = vmatprep.subr.bf16.mxu0 %v7978
    %8481 = vmatpush1.bf16.msra.mxu0 %v7977
    %8482 = vmatprep.subr.bf16.mxu0 %v7972
    %8483 = vmatpush1.bf16.msra.mxu0 %v7971
    %8484 = vmatprep.subr.bf16.mxu0 %v7966
    %8485 = vmatpush1.bf16.msra.mxu0 %v7965
    %8486 = vmatprep.subr.bf16.mxu0 %v7960
    %8487 = vmatpush1.bf16.msra.mxu0 %v7959
    %8488 = vmatprep.subr.bf16.mxu0 %v7954
    %8489 = vmatpush1.bf16.msra.mxu0 %v7953
    %8490 = vmatprep.subr.bf16.mxu0 %v8044
    %8491 = vmatpush2.bf16.msra.mxu0 %v8043
    %8492 = vmatprep.subr.bf16.mxu0 %v8038
    %8493 = vmatpush2.bf16.msra.mxu0 %v8037
    %8494 = vmatprep.subr.bf16.mxu0 %v8032
    %8495 = vmatpush2.bf16.msra.mxu0 %v8031
    %8496 = vmatprep.subr.bf16.mxu0 %v8026
    %8497 = vmatpush2.bf16.msra.mxu0 %v8025
    %8498 = vmatprep.subr.bf16.mxu0 %v8020
    %8499 = vmatpush2.bf16.msra.mxu0 %v8019
    %8500 = vmatprep.subr.bf16.mxu0 %v8014
    %8501 = vmatpush2.bf16.msra.mxu0 %v8013
    %8502 = vmatprep.subr.bf16.mxu0 %v8008
    %8503 = vmatpush2.bf16.msra.mxu0 %v8007
    %8504 = vmatprep.subr.bf16.mxu0 %v8002
    %8505 = vmatpush2.bf16.msra.mxu0 %v8001
    %8506 = vmatprep.mubr.bf16.mxu0 %v6670
    %8507 = vmatmul.mubr.bf16.gmra.mxu0 %v6669
    %v8508 = vpop.f32.mrf.mxu0
    %v8509 = vadd.f32 %v8468, %v8508
    %v8510 = vpop.f32.mrf.mxu0
    %v8511 = vadd.f32 %v8470, %v8510
    %v8512 = vpop.f32.mrf.mxu0
    %v8513 = vpop.f32.mrf.mxu0
    %8514 = vdwg.mxu0
    %8515 = vmatprep.subr.bf16.mxu0 %v8092
    %8516 = vmatpush1.bf16.msra.mxu0 %v8091
    %8517 = vmatprep.subr.bf16.mxu0 %v8086
    %8518 = vmatpush1.bf16.msra.mxu0 %v8085
    %8519 = vmatprep.subr.bf16.mxu0 %v8080
    %8520 = vmatpush1.bf16.msra.mxu0 %v8079
    %8521 = vmatprep.subr.bf16.mxu0 %v8074
    %8522 = vmatpush1.bf16.msra.mxu0 %v8073
    %8523 = vmatprep.subr.bf16.mxu0 %v8068
    %8524 = vmatpush1.bf16.msra.mxu0 %v8067
    %8525 = vmatprep.subr.bf16.mxu0 %v8062
    %8526 = vmatpush1.bf16.msra.mxu0 %v8061
    %8527 = vmatprep.subr.bf16.mxu0 %v8056
    %8528 = vmatpush1.bf16.msra.mxu0 %v8055
    %8529 = vmatprep.subr.bf16.mxu0 %v8050
    %8530 = vmatpush1.bf16.msra.mxu0 %v8049
    %8531 = vmatprep.subr.bf16.mxu0 %v8140
    %8532 = vmatpush2.bf16.msra.mxu0 %v8139
    %8533 = vmatprep.subr.bf16.mxu0 %v8134
    %8534 = vmatpush2.bf16.msra.mxu0 %v8133
    %8535 = vmatprep.subr.bf16.mxu0 %v8128
    %8536 = vmatpush2.bf16.msra.mxu0 %v8127
    %8537 = vmatprep.subr.bf16.mxu0 %v8122
    %8538 = vmatpush2.bf16.msra.mxu0 %v8121
    %8539 = vmatprep.subr.bf16.mxu0 %v8116
    %8540 = vmatpush2.bf16.msra.mxu0 %v8115
    %8541 = vmatprep.subr.bf16.mxu0 %v8110
    %8542 = vmatpush2.bf16.msra.mxu0 %v8109
    %8543 = vmatprep.subr.bf16.mxu0 %v8104
    %8544 = vmatpush2.bf16.msra.mxu0 %v8103
    %8545 = vmatprep.subr.bf16.mxu0 %v8098
    %8546 = vmatpush2.bf16.msra.mxu0 %v8097
    %8547 = vmatprep.mubr.bf16.mxu0 %v6672
    %8548 = vmatmul.mubr.bf16.gmra.mxu0 %v6671
    %v8549 = vpop.f32.mrf.mxu0
    %v8550 = vadd.f32 %v8509, %v8549
    %v8551 = vpop.f32.mrf.mxu0
    %v8552 = vadd.f32 %v8511, %v8551
    %v8553 = vpop.f32.mrf.mxu0
    %v8554 = vpop.f32.mrf.mxu0
    %8555 = vdwg.mxu0
    %8556 = vmatprep.subr.bf16.mxu0 %v7902
    %8557 = vmatpush1.bf16.msra.mxu0 %v7901
    %8558 = vmatprep.subr.bf16.mxu0 %v7896
    %8559 = vmatpush1.bf16.msra.mxu0 %v7895
    %8560 = vmatprep.subr.bf16.mxu0 %v7890
    %8561 = vmatpush1.bf16.msra.mxu0 %v7889
    %8562 = vmatprep.subr.bf16.mxu0 %v7884
    %8563 = vmatpush1.bf16.msra.mxu0 %v7883
    %8564 = vmatprep.subr.bf16.mxu0 %v7878
    %8565 = vmatpush1.bf16.msra.mxu0 %v7877
    %8566 = vmatprep.subr.bf16.mxu0 %v7872
    %8567 = vmatpush1.bf16.msra.mxu0 %v7871
    %8568 = vmatprep.subr.bf16.mxu0 %v7866
    %8569 = vmatpush1.bf16.msra.mxu0 %v7865
    %8570 = vmatprep.subr.bf16.mxu0 %v7860
    %8571 = vmatpush1.bf16.msra.mxu0 %v7859
    %8572 = vmatprep.subr.bf16.mxu0 %v7950
    %8573 = vmatpush2.bf16.msra.mxu0 %v7949
    %8574 = vmatprep.subr.bf16.mxu0 %v7944
    %8575 = vmatpush2.bf16.msra.mxu0 %v7943
    %8576 = vmatprep.subr.bf16.mxu0 %v7938
    %8577 = vmatpush2.bf16.msra.mxu0 %v7937
    %8578 = vmatprep.subr.bf16.mxu0 %v7932
    %8579 = vmatpush2.bf16.msra.mxu0 %v7931
    %8580 = vmatprep.subr.bf16.mxu0 %v7926
    %8581 = vmatpush2.bf16.msra.mxu0 %v7925
    %8582 = vmatprep.subr.bf16.mxu0 %v7920
    %8583 = vmatpush2.bf16.msra.mxu0 %v7919
    %8584 = vmatprep.subr.bf16.mxu0 %v7914
    %8585 = vmatpush2.bf16.msra.mxu0 %v7913
    %8586 = vmatprep.subr.bf16.mxu0 %v7908
    %8587 = vmatpush2.bf16.msra.mxu0 %v7907
    %8588 = vmatprep.mubr.bf16.mxu0 %v6668
    %8589 = vmatmul.mubr.bf16.gmra.mxu0 %v6667
    %v8590 = vpop.f32.mrf.mxu0
    %v8591 = vadd.f32 %v6974, %v8590
    %v8592 = vpop.f32.mrf.mxu0
    %v8593 = vadd.f32 %v6978, %v8592
    %v8594 = vpop.f32.mrf.mxu0
    %v8595 = vpop.f32.mrf.mxu0
    %8596 = vdwg.mxu0
    %8597 = vmatprep.subr.bf16.mxu0 %v7998
    %8598 = vmatpush1.bf16.msra.mxu0 %v7997
    %8599 = vmatprep.subr.bf16.mxu0 %v7992
    %8600 = vmatpush1.bf16.msra.mxu0 %v7991
    %8601 = vmatprep.subr.bf16.mxu0 %v7986
    %8602 = vmatpush1.bf16.msra.mxu0 %v7985
    %8603 = vmatprep.subr.bf16.mxu0 %v7980
    %8604 = vmatpush1.bf16.msra.mxu0 %v7979
    %8605 = vmatprep.subr.bf16.mxu0 %v7974
    %8606 = vmatpush1.bf16.msra.mxu0 %v7973
    %8607 = vmatprep.subr.bf16.mxu0 %v7968
    %8608 = vmatpush1.bf16.msra.mxu0 %v7967
    %8609 = vmatprep.subr.bf16.mxu0 %v7962
    %8610 = vmatpush1.bf16.msra.mxu0 %v7961
    %8611 = vmatprep.subr.bf16.mxu0 %v7956
    %8612 = vmatpush1.bf16.msra.mxu0 %v7955
    %8613 = vmatprep.subr.bf16.mxu0 %v8046
    %8614 = vmatpush2.bf16.msra.mxu0 %v8045
    %8615 = vmatprep.subr.bf16.mxu0 %v8040
    %8616 = vmatpush2.bf16.msra.mxu0 %v8039
    %8617 = vmatprep.subr.bf16.mxu0 %v8034
    %8618 = vmatpush2.bf16.msra.mxu0 %v8033
    %8619 = vmatprep.subr.bf16.mxu0 %v8028
    %8620 = vmatpush2.bf16.msra.mxu0 %v8027
    %8621 = vmatprep.subr.bf16.mxu0 %v8022
    %8622 = vmatpush2.bf16.msra.mxu0 %v8021
    %8623 = vmatprep.subr.bf16.mxu0 %v8016
    %8624 = vmatpush2.bf16.msra.mxu0 %v8015
    %8625 = vmatprep.subr.bf16.mxu0 %v8010
    %8626 = vmatpush2.bf16.msra.mxu0 %v8009
    %8627 = vmatprep.subr.bf16.mxu0 %v8004
    %8628 = vmatpush2.bf16.msra.mxu0 %v8003
    %8629 = vmatprep.mubr.bf16.mxu0 %v6670
    %8630 = vmatmul.mubr.bf16.gmra.mxu0 %v6669
    %v8631 = vpop.f32.mrf.mxu0
    %v8632 = vadd.f32 %v8591, %v8631
    %v8633 = vpop.f32.mrf.mxu0
    %v8634 = vadd.f32 %v8593, %v8633
    %v8635 = vpop.f32.mrf.mxu0
    %v8636 = vpop.f32.mrf.mxu0
    %8637 = vdwg.mxu0
    %8638 = vmatprep.subr.bf16.mxu0 %v8094
    %8639 = vmatpush1.bf16.msra.mxu0 %v8093
    %8640 = vmatprep.subr.bf16.mxu0 %v8088
    %8641 = vmatpush1.bf16.msra.mxu0 %v8087
    %8642 = vmatprep.subr.bf16.mxu0 %v8082
    %8643 = vmatpush1.bf16.msra.mxu0 %v8081
    %8644 = vmatprep.subr.bf16.mxu0 %v8076
    %8645 = vmatpush1.bf16.msra.mxu0 %v8075
    %8646 = vmatprep.subr.bf16.mxu0 %v8070
    %8647 = vmatpush1.bf16.msra.mxu0 %v8069
    %8648 = vmatprep.subr.bf16.mxu0 %v8064
    %8649 = vmatpush1.bf16.msra.mxu0 %v8063
    %8650 = vmatprep.subr.bf16.mxu0 %v8058
    %8651 = vmatpush1.bf16.msra.mxu0 %v8057
    %8652 = vmatprep.subr.bf16.mxu0 %v8052
    %8653 = vmatpush1.bf16.msra.mxu0 %v8051
    %8654 = vmatprep.subr.bf16.mxu0 %v8142
    %8655 = vmatpush2.bf16.msra.mxu0 %v8141
    %8656 = vmatprep.subr.bf16.mxu0 %v8136
    %8657 = vmatpush2.bf16.msra.mxu0 %v8135
    %8658 = vmatprep.subr.bf16.mxu0 %v8130
    %8659 = vmatpush2.bf16.msra.mxu0 %v8129
    %8660 = vmatprep.subr.bf16.mxu0 %v8124
    %8661 = vmatpush2.bf16.msra.mxu0 %v8123
    %8662 = vmatprep.subr.bf16.mxu0 %v8118
    %8663 = vmatpush2.bf16.msra.mxu0 %v8117
    %8664 = vmatprep.subr.bf16.mxu0 %v8112
    %8665 = vmatpush2.bf16.msra.mxu0 %v8111
    %8666 = vmatprep.subr.bf16.mxu0 %v8106
    %8667 = vmatpush2.bf16.msra.mxu0 %v8105
    %8668 = vmatprep.subr.bf16.mxu0 %v8100
    %8669 = vmatpush2.bf16.msra.mxu0 %v8099
    %8670 = vmatprep.mubr.bf16.mxu0 %v6672
    %8671 = vmatmul.mubr.bf16.gmra.mxu0 %v6671
    %v8672 = vpop.f32.mrf.mxu0
    %v8673 = vadd.f32 %v8632, %v8672
    %v8674 = vpop.f32.mrf.mxu0
    %v8675 = vadd.f32 %v8634, %v8674
    %v8676 = vpop.f32.mrf.mxu0
    %v8677 = vpop.f32.mrf.mxu0
    %8678 = vdwg.mxu0
    %8679 = vmatprep.subr.bf16.mxu0 %v7904
    %8680 = vmatpush1.bf16.msra.mxu0 %v7903
    %8681 = vmatprep.subr.bf16.mxu0 %v7898
    %8682 = vmatpush1.bf16.msra.mxu0 %v7897
    %8683 = vmatprep.subr.bf16.mxu0 %v7892
    %8684 = vmatpush1.bf16.msra.mxu0 %v7891
    %8685 = vmatprep.subr.bf16.mxu0 %v7886
    %8686 = vmatpush1.bf16.msra.mxu0 %v7885
    %8687 = vmatprep.subr.bf16.mxu0 %v7880
    %8688 = vmatpush1.bf16.msra.mxu0 %v7879
    %8689 = vmatprep.subr.bf16.mxu0 %v7874
    %8690 = vmatpush1.bf16.msra.mxu0 %v7873
    %8691 = vmatprep.subr.bf16.mxu0 %v7868
    %8692 = vmatpush1.bf16.msra.mxu0 %v7867
    %8693 = vmatprep.subr.bf16.mxu0 %v7862
    %8694 = vmatpush1.bf16.msra.mxu0 %v7861
    %8695 = vmatprep.subr.bf16.mxu0 %v7952
    %8696 = vmatpush2.bf16.msra.mxu0 %v7951
    %8697 = vmatprep.subr.bf16.mxu0 %v7946
    %8698 = vmatpush2.bf16.msra.mxu0 %v7945
    %8699 = vmatprep.subr.bf16.mxu0 %v7940
    %8700 = vmatpush2.bf16.msra.mxu0 %v7939
    %8701 = vmatprep.subr.bf16.mxu0 %v7934
    %8702 = vmatpush2.bf16.msra.mxu0 %v7933
    %8703 = vmatprep.subr.bf16.mxu0 %v7928
    %8704 = vmatpush2.bf16.msra.mxu0 %v7927
    %8705 = vmatprep.subr.bf16.mxu0 %v7922
    %8706 = vmatpush2.bf16.msra.mxu0 %v7921
    %8707 = vmatprep.subr.bf16.mxu0 %v7916
    %8708 = vmatpush2.bf16.msra.mxu0 %v7915
    %8709 = vmatprep.subr.bf16.mxu0 %v7910
    %8710 = vmatpush2.bf16.msra.mxu0 %v7909
    %8711 = vmatprep.mubr.bf16.mxu0 %v6668
    %8712 = vmatmul.mubr.bf16.gmra.mxu0 %v6667
    %v8713 = vpop.f32.mrf.mxu0
    %v8714 = vadd.f32 %v6982, %v8713
    %v8715 = vpop.f32.mrf.mxu0
    %v8716 = vadd.f32 %v6986, %v8715
    %v8717 = vpop.f32.mrf.mxu0
    %v8718 = vpop.f32.mrf.mxu0
    %8719 = vdwg.mxu0
    %8720 = vmatprep.subr.bf16.mxu0 %v8000
    %8721 = vmatpush1.bf16.msra.mxu0 %v7999
    %8722 = vmatprep.subr.bf16.mxu0 %v7994
    %8723 = vmatpush1.bf16.msra.mxu0 %v7993
    %8724 = vmatprep.subr.bf16.mxu0 %v7988
    %8725 = vmatpush1.bf16.msra.mxu0 %v7987
    %8726 = vmatprep.subr.bf16.mxu0 %v7982
    %8727 = vmatpush1.bf16.msra.mxu0 %v7981
    %8728 = vmatprep.subr.bf16.mxu0 %v7976
    %8729 = vmatpush1.bf16.msra.mxu0 %v7975
    %8730 = vmatprep.subr.bf16.mxu0 %v7970
    %8731 = vmatpush1.bf16.msra.mxu0 %v7969
    %8732 = vmatprep.subr.bf16.mxu0 %v7964
    %8733 = vmatpush1.bf16.msra.mxu0 %v7963
    %8734 = vmatprep.subr.bf16.mxu0 %v7958
    %8735 = vmatpush1.bf16.msra.mxu0 %v7957
    %8736 = vmatprep.subr.bf16.mxu0 %v8048
    %8737 = vmatpush2.bf16.msra.mxu0 %v8047
    %8738 = vmatprep.subr.bf16.mxu0 %v8042
    %8739 = vmatpush2.bf16.msra.mxu0 %v8041
    %8740 = vmatprep.subr.bf16.mxu0 %v8036
    %8741 = vmatpush2.bf16.msra.mxu0 %v8035
    %8742 = vmatprep.subr.bf16.mxu0 %v8030
    %8743 = vmatpush2.bf16.msra.mxu0 %v8029
    %8744 = vmatprep.subr.bf16.mxu0 %v8024
    %8745 = vmatpush2.bf16.msra.mxu0 %v8023
    %8746 = vmatprep.subr.bf16.mxu0 %v8018
    %8747 = vmatpush2.bf16.msra.mxu0 %v8017
    %8748 = vmatprep.subr.bf16.mxu0 %v8012
    %8749 = vmatpush2.bf16.msra.mxu0 %v8011
    %8750 = vmatprep.subr.bf16.mxu0 %v8006
    %8751 = vmatpush2.bf16.msra.mxu0 %v8005
    %8752 = vmatprep.mubr.bf16.mxu0 %v6670
    %8753 = vmatmul.mubr.bf16.gmra.mxu0 %v6669
    %v8754 = vpop.f32.mrf.mxu0
    %v8755 = vadd.f32 %v8714, %v8754
    %v8756 = vpop.f32.mrf.mxu0
    %v8757 = vadd.f32 %v8716, %v8756
    %v8758 = vpop.f32.mrf.mxu0
    %v8759 = vpop.f32.mrf.mxu0
    %8760 = vdwg.mxu0
    %8761 = vmatprep.subr.bf16.mxu0 %v8096
    %8762 = vmatpush1.bf16.msra.mxu0 %v8095
    %8763 = vmatprep.subr.bf16.mxu0 %v8090
    %8764 = vmatpush1.bf16.msra.mxu0 %v8089
    %8765 = vmatprep.subr.bf16.mxu0 %v8084
    %8766 = vmatpush1.bf16.msra.mxu0 %v8083
    %8767 = vmatprep.subr.bf16.mxu0 %v8078
    %8768 = vmatpush1.bf16.msra.mxu0 %v8077
    %8769 = vmatprep.subr.bf16.mxu0 %v8072
    %8770 = vmatpush1.bf16.msra.mxu0 %v8071
    %8771 = vmatprep.subr.bf16.mxu0 %v8066
    %8772 = vmatpush1.bf16.msra.mxu0 %v8065
    %8773 = vmatprep.subr.bf16.mxu0 %v8060
    %8774 = vmatpush1.bf16.msra.mxu0 %v8059
    %8775 = vmatprep.subr.bf16.mxu0 %v8054
    %8776 = vmatpush1.bf16.msra.mxu0 %v8053
    %8777 = vmatprep.subr.bf16.mxu0 %v8144
    %8778 = vmatpush2.bf16.msra.mxu0 %v8143
    %8779 = vmatprep.subr.bf16.mxu0 %v8138
    %8780 = vmatpush2.bf16.msra.mxu0 %v8137
    %8781 = vmatprep.subr.bf16.mxu0 %v8132
    %8782 = vmatpush2.bf16.msra.mxu0 %v8131
    %8783 = vmatprep.subr.bf16.mxu0 %v8126
    %8784 = vmatpush2.bf16.msra.mxu0 %v8125
    %8785 = vmatprep.subr.bf16.mxu0 %v8120
    %8786 = vmatpush2.bf16.msra.mxu0 %v8119
    %8787 = vmatprep.subr.bf16.mxu0 %v8114
    %8788 = vmatpush2.bf16.msra.mxu0 %v8113
    %8789 = vmatprep.subr.bf16.mxu0 %v8108
    %8790 = vmatpush2.bf16.msra.mxu0 %v8107
    %8791 = vmatprep.subr.bf16.mxu0 %v8102
    %8792 = vmatpush2.bf16.msra.mxu0 %v8101
    %8793 = vmatprep.mubr.bf16.mxu0 %v6672
    %8794 = vmatmul.mubr.bf16.gmra.mxu0 %v6671
    %v8795 = vpop.f32.mrf.mxu0
    %v8796 = vadd.f32 %v8755, %v8795
    %v8797 = vpop.f32.mrf.mxu0
    %v8798 = vadd.f32 %v8757, %v8797
    %v8799 = vpop.f32.mrf.mxu0
    %v8800 = vpop.f32.mrf.mxu0
    %8801 = vdwg.mxu0
    %v8802 = vld [vmem:[#allocation2] sm:$0xff]
    %v8803 = vld [vmem:[#allocation2 + $0x8] sm:$0xff]
    %v8804 = vld [vmem:[#allocation2 + $0x10] sm:$0xff]
    %v8805 = vld [vmem:[#allocation2 + $0x18] sm:$0xff]
    %v8806 = vld [vmem:[#allocation2 + $0x20] sm:$0xff]
    %v8807 = vld [vmem:[#allocation2 + $0x28] sm:$0xff]
    %v8808 = vpack.c.bf16 %v8802, %v8802
    %v8809 = vpack.c.bf16 %v8803, %v8803
    %v8810 = vpack.c.bf16 %v8804, %v8804
    %v8811 = vpack.c.bf16 %v8805, %v8805
    %v8812 = vpack.c.bf16 %v8806, %v8806
    %v8813 = vpack.c.bf16 %v8807, %v8807
    %v8814 = vld [vmem:[#allocation16] sm:$0xff]
    %v8815 = vld [vmem:[#allocation16 + $0x8] sm:$0xff]
    %v8816 = vld [vmem:[#allocation16 + $0x10] sm:$0xff]
    %v8817 = vld [vmem:[#allocation16 + $0x18] sm:$0xff]
    %v8818 = vld [vmem:[#allocation16 + $0x20] sm:$0xff]
    %v8819 = vld [vmem:[#allocation16 + $0x28] sm:$0xff]
    %v8820 = vld [vmem:[#allocation16 + $0x30] sm:$0xff]
    %v8821 = vld [vmem:[#allocation16 + $0x38] sm:$0xff]
    %v8822 = vld [vmem:[#allocation16 + $0x40] sm:$0xff]
    %v8823 = vld [vmem:[#allocation16 + $0x48] sm:$0xff]
    %v8824 = vld [vmem:[#allocation16 + $0x50] sm:$0xff]
    %v8825 = vld [vmem:[#allocation16 + $0x58] sm:$0xff]
    %v8826 = vld [vmem:[#allocation16 + $0x60] sm:$0xff]
    %v8827 = vld [vmem:[#allocation16 + $0x68] sm:$0xff]
    %v8828 = vld [vmem:[#allocation16 + $0x70] sm:$0xff]
    %v8829 = vld [vmem:[#allocation16 + $0x78] sm:$0xff]
    %v8830 = vld [vmem:[#allocation16 + $0x80] sm:$0xff]
    %v8831 = vld [vmem:[#allocation16 + $0x88] sm:$0xff]
    %v8832 = vld [vmem:[#allocation16 + $0x90] sm:$0xff]
    %v8833 = vld [vmem:[#allocation16 + $0x98] sm:$0xff]
    %v8834 = vld [vmem:[#allocation16 + $0xa0] sm:$0xff]
    %v8835 = vld [vmem:[#allocation16 + $0xa8] sm:$0xff]
    %v8836 = vld [vmem:[#allocation16 + $0xb0] sm:$0xff]
    %v8837 = vld [vmem:[#allocation16 + $0xb8] sm:$0xff]
    %v8838 = vld [vmem:[#allocation16 + $0xc0] sm:$0xff]
    %v8839 = vld [vmem:[#allocation16 + $0xc8] sm:$0xff]
    %v8840 = vld [vmem:[#allocation16 + $0xd0] sm:$0xff]
    %v8841 = vld [vmem:[#allocation16 + $0xd8] sm:$0xff]
    %v8842 = vld [vmem:[#allocation16 + $0xe0] sm:$0xff]
    %v8843 = vld [vmem:[#allocation16 + $0xe8] sm:$0xff]
    %v8844 = vld [vmem:[#allocation16 + $0xf0] sm:$0xff]
    %v8845 = vld [vmem:[#allocation16 + $0xf8] sm:$0xff]
    %v8846 = vld [vmem:[#allocation16 + $0x100] sm:$0xff]
    %v8847 = vld [vmem:[#allocation16 + $0x108] sm:$0xff]
    %v8848 = vld [vmem:[#allocation16 + $0x110] sm:$0xff]
    %v8849 = vld [vmem:[#allocation16 + $0x118] sm:$0xff]
    %v8850 = vld [vmem:[#allocation16 + $0x120] sm:$0xff]
    %v8851 = vld [vmem:[#allocation16 + $0x128] sm:$0xff]
    %v8852 = vld [vmem:[#allocation16 + $0x130] sm:$0xff]
    %v8853 = vld [vmem:[#allocation16 + $0x138] sm:$0xff]
    %v8854 = vld [vmem:[#allocation16 + $0x140] sm:$0xff]
    %v8855 = vld [vmem:[#allocation16 + $0x148] sm:$0xff]
    %v8856 = vld [vmem:[#allocation16 + $0x150] sm:$0xff]
    %v8857 = vld [vmem:[#allocation16 + $0x158] sm:$0xff]
    %v8858 = vld [vmem:[#allocation16 + $0x160] sm:$0xff]
    %v8859 = vld [vmem:[#allocation16 + $0x168] sm:$0xff]
    %v8860 = vld [vmem:[#allocation16 + $0x170] sm:$0xff]
    %v8861 = vld [vmem:[#allocation16 + $0x178] sm:$0xff]
    %v8862 = vld [vmem:[#allocation16 + $0x180] sm:$0xff]
    %v8863 = vld [vmem:[#allocation16 + $0x188] sm:$0xff]
    %v8864 = vld [vmem:[#allocation16 + $0x190] sm:$0xff]
    %v8865 = vld [vmem:[#allocation16 + $0x198] sm:$0xff]
    %v8866 = vld [vmem:[#allocation16 + $0x1a0] sm:$0xff]
    %v8867 = vld [vmem:[#allocation16 + $0x1a8] sm:$0xff]
    %v8868 = vld [vmem:[#allocation16 + $0x1b0] sm:$0xff]
    %v8869 = vld [vmem:[#allocation16 + $0x1b8] sm:$0xff]
    %v8870 = vld [vmem:[#allocation16 + $0x1c0] sm:$0xff]
    %v8871 = vld [vmem:[#allocation16 + $0x1c8] sm:$0xff]
    %v8872 = vld [vmem:[#allocation16 + $0x1d0] sm:$0xff]
    %v8873 = vld [vmem:[#allocation16 + $0x1d8] sm:$0xff]
    %v8874 = vld [vmem:[#allocation16 + $0x1e0] sm:$0xff]
    %v8875 = vld [vmem:[#allocation16 + $0x1e8] sm:$0xff]
    %v8876 = vld [vmem:[#allocation16 + $0x1f0] sm:$0xff]
    %v8877 = vld [vmem:[#allocation16 + $0x1f8] sm:$0xff]
    %v8878 = vld [vmem:[#allocation16 + $0x200] sm:$0xff]
    %v8879 = vld [vmem:[#allocation16 + $0x208] sm:$0xff]
    %v8880 = vld [vmem:[#allocation16 + $0x210] sm:$0xff]
    %v8881 = vld [vmem:[#allocation16 + $0x218] sm:$0xff]
    %v8882 = vld [vmem:[#allocation16 + $0x220] sm:$0xff]
    %v8883 = vld [vmem:[#allocation16 + $0x228] sm:$0xff]
    %v8884 = vld [vmem:[#allocation16 + $0x230] sm:$0xff]
    %v8885 = vld [vmem:[#allocation16 + $0x238] sm:$0xff]
    %v8886 = vld [vmem:[#allocation16 + $0x240] sm:$0xff]
    %v8887 = vld [vmem:[#allocation16 + $0x248] sm:$0xff]
    %v8888 = vld [vmem:[#allocation16 + $0x250] sm:$0xff]
    %v8889 = vld [vmem:[#allocation16 + $0x258] sm:$0xff]
    %v8890 = vld [vmem:[#allocation16 + $0x260] sm:$0xff]
    %v8891 = vld [vmem:[#allocation16 + $0x268] sm:$0xff]
    %v8892 = vld [vmem:[#allocation16 + $0x270] sm:$0xff]
    %v8893 = vld [vmem:[#allocation16 + $0x278] sm:$0xff]
    %v8894 = vld [vmem:[#allocation16 + $0x280] sm:$0xff]
    %v8895 = vld [vmem:[#allocation16 + $0x288] sm:$0xff]
    %v8896 = vld [vmem:[#allocation16 + $0x290] sm:$0xff]
    %v8897 = vld [vmem:[#allocation16 + $0x298] sm:$0xff]
    %v8898 = vld [vmem:[#allocation16 + $0x2a0] sm:$0xff]
    %v8899 = vld [vmem:[#allocation16 + $0x2a8] sm:$0xff]
    %v8900 = vld [vmem:[#allocation16 + $0x2b0] sm:$0xff]
    %v8901 = vld [vmem:[#allocation16 + $0x2b8] sm:$0xff]
    %v8902 = vld [vmem:[#allocation16 + $0x2c0] sm:$0xff]
    %v8903 = vld [vmem:[#allocation16 + $0x2c8] sm:$0xff]
    %v8904 = vld [vmem:[#allocation16 + $0x2d0] sm:$0xff]
    %v8905 = vld [vmem:[#allocation16 + $0x2d8] sm:$0xff]
    %v8906 = vld [vmem:[#allocation16 + $0x2e0] sm:$0xff]
    %v8907 = vld [vmem:[#allocation16 + $0x2e8] sm:$0xff]
    %v8908 = vld [vmem:[#allocation16 + $0x2f0] sm:$0xff]
    %v8909 = vld [vmem:[#allocation16 + $0x2f8] sm:$0xff]
    %v8910 = vld [vmem:[#allocation16 + $0x300] sm:$0xff]
    %v8911 = vld [vmem:[#allocation16 + $0x308] sm:$0xff]
    %v8912 = vld [vmem:[#allocation16 + $0x310] sm:$0xff]
    %v8913 = vld [vmem:[#allocation16 + $0x318] sm:$0xff]
    %v8914 = vld [vmem:[#allocation16 + $0x320] sm:$0xff]
    %v8915 = vld [vmem:[#allocation16 + $0x328] sm:$0xff]
    %v8916 = vld [vmem:[#allocation16 + $0x330] sm:$0xff]
    %v8917 = vld [vmem:[#allocation16 + $0x338] sm:$0xff]
    %v8918 = vld [vmem:[#allocation16 + $0x340] sm:$0xff]
    %v8919 = vld [vmem:[#allocation16 + $0x348] sm:$0xff]
    %v8920 = vld [vmem:[#allocation16 + $0x350] sm:$0xff]
    %v8921 = vld [vmem:[#allocation16 + $0x358] sm:$0xff]
    %v8922 = vld [vmem:[#allocation16 + $0x360] sm:$0xff]
    %v8923 = vld [vmem:[#allocation16 + $0x368] sm:$0xff]
    %v8924 = vld [vmem:[#allocation16 + $0x370] sm:$0xff]
    %v8925 = vld [vmem:[#allocation16 + $0x378] sm:$0xff]
    %v8926 = vld [vmem:[#allocation16 + $0x380] sm:$0xff]
    %v8927 = vld [vmem:[#allocation16 + $0x388] sm:$0xff]
    %v8928 = vld [vmem:[#allocation16 + $0x390] sm:$0xff]
    %v8929 = vld [vmem:[#allocation16 + $0x398] sm:$0xff]
    %v8930 = vld [vmem:[#allocation16 + $0x3a0] sm:$0xff]
    %v8931 = vld [vmem:[#allocation16 + $0x3a8] sm:$0xff]
    %v8932 = vld [vmem:[#allocation16 + $0x3b0] sm:$0xff]
    %v8933 = vld [vmem:[#allocation16 + $0x3b8] sm:$0xff]
    %v8934 = vld [vmem:[#allocation16 + $0x3c0] sm:$0xff]
    %v8935 = vld [vmem:[#allocation16 + $0x3c8] sm:$0xff]
    %v8936 = vld [vmem:[#allocation16 + $0x3d0] sm:$0xff]
    %v8937 = vld [vmem:[#allocation16 + $0x3d8] sm:$0xff]
    %v8938 = vld [vmem:[#allocation16 + $0x3e0] sm:$0xff]
    %v8939 = vld [vmem:[#allocation16 + $0x3e8] sm:$0xff]
    %v8940 = vld [vmem:[#allocation16 + $0x3f0] sm:$0xff]
    %v8941 = vld [vmem:[#allocation16 + $0x3f8] sm:$0xff]
    %v8942 = vld [vmem:[#allocation16 + $0x400] sm:$0xff]
    %v8943 = vld [vmem:[#allocation16 + $0x408] sm:$0xff]
    %v8944 = vld [vmem:[#allocation16 + $0x410] sm:$0xff]
    %v8945 = vld [vmem:[#allocation16 + $0x418] sm:$0xff]
    %v8946 = vld [vmem:[#allocation16 + $0x420] sm:$0xff]
    %v8947 = vld [vmem:[#allocation16 + $0x428] sm:$0xff]
    %v8948 = vld [vmem:[#allocation16 + $0x430] sm:$0xff]
    %v8949 = vld [vmem:[#allocation16 + $0x438] sm:$0xff]
    %v8950 = vld [vmem:[#allocation16 + $0x440] sm:$0xff]
    %v8951 = vld [vmem:[#allocation16 + $0x448] sm:$0xff]
    %v8952 = vld [vmem:[#allocation16 + $0x450] sm:$0xff]
    %v8953 = vld [vmem:[#allocation16 + $0x458] sm:$0xff]
    %v8954 = vld [vmem:[#allocation16 + $0x460] sm:$0xff]
    %v8955 = vld [vmem:[#allocation16 + $0x468] sm:$0xff]
    %v8956 = vld [vmem:[#allocation16 + $0x470] sm:$0xff]
    %v8957 = vld [vmem:[#allocation16 + $0x478] sm:$0xff]
    %v8958 = vld [vmem:[#allocation16 + $0x480] sm:$0xff]
    %v8959 = vld [vmem:[#allocation16 + $0x488] sm:$0xff]
    %v8960 = vld [vmem:[#allocation16 + $0x490] sm:$0xff]
    %v8961 = vld [vmem:[#allocation16 + $0x498] sm:$0xff]
    %v8962 = vld [vmem:[#allocation16 + $0x4a0] sm:$0xff]
    %v8963 = vld [vmem:[#allocation16 + $0x4a8] sm:$0xff]
    %v8964 = vld [vmem:[#allocation16 + $0x4b0] sm:$0xff]
    %v8965 = vld [vmem:[#allocation16 + $0x4b8] sm:$0xff]
    %v8966 = vld [vmem:[#allocation16 + $0x4c0] sm:$0xff]
    %v8967 = vld [vmem:[#allocation16 + $0x4c8] sm:$0xff]
    %v8968 = vld [vmem:[#allocation16 + $0x4d0] sm:$0xff]
    %v8969 = vld [vmem:[#allocation16 + $0x4d8] sm:$0xff]
    %v8970 = vld [vmem:[#allocation16 + $0x4e0] sm:$0xff]
    %v8971 = vld [vmem:[#allocation16 + $0x4e8] sm:$0xff]
    %v8972 = vld [vmem:[#allocation16 + $0x4f0] sm:$0xff]
    %v8973 = vld [vmem:[#allocation16 + $0x4f8] sm:$0xff]
    %v8974 = vld [vmem:[#allocation16 + $0x500] sm:$0xff]
    %v8975 = vld [vmem:[#allocation16 + $0x508] sm:$0xff]
    %v8976 = vld [vmem:[#allocation16 + $0x510] sm:$0xff]
    %v8977 = vld [vmem:[#allocation16 + $0x518] sm:$0xff]
    %v8978 = vld [vmem:[#allocation16 + $0x520] sm:$0xff]
    %v8979 = vld [vmem:[#allocation16 + $0x528] sm:$0xff]
    %v8980 = vld [vmem:[#allocation16 + $0x530] sm:$0xff]
    %v8981 = vld [vmem:[#allocation16 + $0x538] sm:$0xff]
    %v8982 = vld [vmem:[#allocation16 + $0x540] sm:$0xff]
    %v8983 = vld [vmem:[#allocation16 + $0x548] sm:$0xff]
    %v8984 = vld [vmem:[#allocation16 + $0x550] sm:$0xff]
    %v8985 = vld [vmem:[#allocation16 + $0x558] sm:$0xff]
    %v8986 = vld [vmem:[#allocation16 + $0x560] sm:$0xff]
    %v8987 = vld [vmem:[#allocation16 + $0x568] sm:$0xff]
    %v8988 = vld [vmem:[#allocation16 + $0x570] sm:$0xff]
    %v8989 = vld [vmem:[#allocation16 + $0x578] sm:$0xff]
    %v8990 = vld [vmem:[#allocation16 + $0x580] sm:$0xff]
    %v8991 = vld [vmem:[#allocation16 + $0x588] sm:$0xff]
    %v8992 = vld [vmem:[#allocation16 + $0x590] sm:$0xff]
    %v8993 = vld [vmem:[#allocation16 + $0x598] sm:$0xff]
    %v8994 = vld [vmem:[#allocation16 + $0x5a0] sm:$0xff]
    %v8995 = vld [vmem:[#allocation16 + $0x5a8] sm:$0xff]
    %v8996 = vld [vmem:[#allocation16 + $0x5b0] sm:$0xff]
    %v8997 = vld [vmem:[#allocation16 + $0x5b8] sm:$0xff]
    %v8998 = vld [vmem:[#allocation16 + $0x5c0] sm:$0xff]
    %v8999 = vld [vmem:[#allocation16 + $0x5c8] sm:$0xff]
    %v9000 = vld [vmem:[#allocation16 + $0x5d0] sm:$0xff]
    %v9001 = vld [vmem:[#allocation16 + $0x5d8] sm:$0xff]
    %v9002 = vld [vmem:[#allocation16 + $0x5e0] sm:$0xff]
    %v9003 = vld [vmem:[#allocation16 + $0x5e8] sm:$0xff]
    %v9004 = vld [vmem:[#allocation16 + $0x5f0] sm:$0xff]
    %v9005 = vld [vmem:[#allocation16 + $0x5f8] sm:$0xff]
    %v9006 = vpack.c.bf16 %v8550, %v8550
    %v9007 = vpack.c.bf16 %v8552, %v8552
    %v9008 = vpack.c.bf16 %v8673, %v8673
    %v9009 = vpack.c.bf16 %v8675, %v8675
    %v9010 = vpack.c.bf16 %v8796, %v8796
    %v9011 = vpack.c.bf16 %v8798, %v8798
    %v9012 = vld [vmem:[#allocation17] sm:$0xff]
    %v9013 = vld [vmem:[#allocation17 + $0x8] sm:$0xff]
    %v9014 = vld [vmem:[#allocation17 + $0x10] sm:$0xff]
    %v9015 = vld [vmem:[#allocation17 + $0x18] sm:$0xff]
    %v9016 = vld [vmem:[#allocation17 + $0x20] sm:$0xff]
    %v9017 = vld [vmem:[#allocation17 + $0x28] sm:$0xff]
    %v9018 = vld [vmem:[#allocation17 + $0x30] sm:$0xff]
    %v9019 = vld [vmem:[#allocation17 + $0x38] sm:$0xff]
    %v9020 = vld [vmem:[#allocation17 + $0x40] sm:$0xff]
    %v9021 = vld [vmem:[#allocation17 + $0x48] sm:$0xff]
    %v9022 = vld [vmem:[#allocation17 + $0x50] sm:$0xff]
    %v9023 = vld [vmem:[#allocation17 + $0x58] sm:$0xff]
    %v9024 = vld [vmem:[#allocation17 + $0x60] sm:$0xff]
    %v9025 = vld [vmem:[#allocation17 + $0x68] sm:$0xff]
    %v9026 = vld [vmem:[#allocation17 + $0x70] sm:$0xff]
    %v9027 = vld [vmem:[#allocation17 + $0x78] sm:$0xff]
    %v9028 = vld [vmem:[#allocation17 + $0x80] sm:$0xff]
    %v9029 = vld [vmem:[#allocation17 + $0x88] sm:$0xff]
    %v9030 = vld [vmem:[#allocation17 + $0x90] sm:$0xff]
    %v9031 = vld [vmem:[#allocation17 + $0x98] sm:$0xff]
    %v9032 = vld [vmem:[#allocation17 + $0xa0] sm:$0xff]
    %v9033 = vld [vmem:[#allocation17 + $0xa8] sm:$0xff]
    %v9034 = vld [vmem:[#allocation17 + $0xb0] sm:$0xff]
    %v9035 = vld [vmem:[#allocation17 + $0xb8] sm:$0xff]
    %v9036 = vld [vmem:[#allocation17 + $0xc0] sm:$0xff]
    %v9037 = vld [vmem:[#allocation17 + $0xc8] sm:$0xff]
    %v9038 = vld [vmem:[#allocation17 + $0xd0] sm:$0xff]
    %v9039 = vld [vmem:[#allocation17 + $0xd8] sm:$0xff]
    %v9040 = vld [vmem:[#allocation17 + $0xe0] sm:$0xff]
    %v9041 = vld [vmem:[#allocation17 + $0xe8] sm:$0xff]
    %v9042 = vld [vmem:[#allocation17 + $0xf0] sm:$0xff]
    %v9043 = vld [vmem:[#allocation17 + $0xf8] sm:$0xff]
    %v9044 = vld [vmem:[#allocation17 + $0x100] sm:$0xff]
    %v9045 = vld [vmem:[#allocation17 + $0x108] sm:$0xff]
    %v9046 = vld [vmem:[#allocation17 + $0x110] sm:$0xff]
    %v9047 = vld [vmem:[#allocation17 + $0x118] sm:$0xff]
    %v9048 = vld [vmem:[#allocation17 + $0x120] sm:$0xff]
    %v9049 = vld [vmem:[#allocation17 + $0x128] sm:$0xff]
    %v9050 = vld [vmem:[#allocation17 + $0x130] sm:$0xff]
    %v9051 = vld [vmem:[#allocation17 + $0x138] sm:$0xff]
    %v9052 = vld [vmem:[#allocation17 + $0x140] sm:$0xff]
    %v9053 = vld [vmem:[#allocation17 + $0x148] sm:$0xff]
    %v9054 = vld [vmem:[#allocation17 + $0x150] sm:$0xff]
    %v9055 = vld [vmem:[#allocation17 + $0x158] sm:$0xff]
    %v9056 = vld [vmem:[#allocation17 + $0x160] sm:$0xff]
    %v9057 = vld [vmem:[#allocation17 + $0x168] sm:$0xff]
    %v9058 = vld [vmem:[#allocation17 + $0x170] sm:$0xff]
    %v9059 = vld [vmem:[#allocation17 + $0x178] sm:$0xff]
    %v9060 = vld [vmem:[#allocation17 + $0x180] sm:$0xff]
    %v9061 = vld [vmem:[#allocation17 + $0x188] sm:$0xff]
    %v9062 = vld [vmem:[#allocation17 + $0x190] sm:$0xff]
    %v9063 = vld [vmem:[#allocation17 + $0x198] sm:$0xff]
    %v9064 = vld [vmem:[#allocation17 + $0x1a0] sm:$0xff]
    %v9065 = vld [vmem:[#allocation17 + $0x1a8] sm:$0xff]
    %v9066 = vld [vmem:[#allocation17 + $0x1b0] sm:$0xff]
    %v9067 = vld [vmem:[#allocation17 + $0x1b8] sm:$0xff]
    %v9068 = vld [vmem:[#allocation17 + $0x1c0] sm:$0xff]
    %v9069 = vld [vmem:[#allocation17 + $0x1c8] sm:$0xff]
    %v9070 = vld [vmem:[#allocation17 + $0x1d0] sm:$0xff]
    %v9071 = vld [vmem:[#allocation17 + $0x1d8] sm:$0xff]
    %v9072 = vld [vmem:[#allocation17 + $0x1e0] sm:$0xff]
    %v9073 = vld [vmem:[#allocation17 + $0x1e8] sm:$0xff]
    %v9074 = vld [vmem:[#allocation17 + $0x1f0] sm:$0xff]
    %v9075 = vld [vmem:[#allocation17 + $0x1f8] sm:$0xff]
    %v9076 = vld [vmem:[#allocation17 + $0x200] sm:$0xff]
    %v9077 = vld [vmem:[#allocation17 + $0x208] sm:$0xff]
    %v9078 = vld [vmem:[#allocation17 + $0x210] sm:$0xff]
    %v9079 = vld [vmem:[#allocation17 + $0x218] sm:$0xff]
    %v9080 = vld [vmem:[#allocation17 + $0x220] sm:$0xff]
    %v9081 = vld [vmem:[#allocation17 + $0x228] sm:$0xff]
    %v9082 = vld [vmem:[#allocation17 + $0x230] sm:$0xff]
    %v9083 = vld [vmem:[#allocation17 + $0x238] sm:$0xff]
    %v9084 = vld [vmem:[#allocation17 + $0x240] sm:$0xff]
    %v9085 = vld [vmem:[#allocation17 + $0x248] sm:$0xff]
    %v9086 = vld [vmem:[#allocation17 + $0x250] sm:$0xff]
    %v9087 = vld [vmem:[#allocation17 + $0x258] sm:$0xff]
    %v9088 = vld [vmem:[#allocation17 + $0x260] sm:$0xff]
    %v9089 = vld [vmem:[#allocation17 + $0x268] sm:$0xff]
    %v9090 = vld [vmem:[#allocation17 + $0x270] sm:$0xff]
    %v9091 = vld [vmem:[#allocation17 + $0x278] sm:$0xff]
    %v9092 = vld [vmem:[#allocation17 + $0x280] sm:$0xff]
    %v9093 = vld [vmem:[#allocation17 + $0x288] sm:$0xff]
    %v9094 = vld [vmem:[#allocation17 + $0x290] sm:$0xff]
    %v9095 = vld [vmem:[#allocation17 + $0x298] sm:$0xff]
    %v9096 = vld [vmem:[#allocation17 + $0x2a0] sm:$0xff]
    %v9097 = vld [vmem:[#allocation17 + $0x2a8] sm:$0xff]
    %v9098 = vld [vmem:[#allocation17 + $0x2b0] sm:$0xff]
    %v9099 = vld [vmem:[#allocation17 + $0x2b8] sm:$0xff]
    %v9100 = vld [vmem:[#allocation17 + $0x2c0] sm:$0xff]
    %v9101 = vld [vmem:[#allocation17 + $0x2c8] sm:$0xff]
    %v9102 = vld [vmem:[#allocation17 + $0x2d0] sm:$0xff]
    %v9103 = vld [vmem:[#allocation17 + $0x2d8] sm:$0xff]
    %v9104 = vld [vmem:[#allocation17 + $0x2e0] sm:$0xff]
    %v9105 = vld [vmem:[#allocation17 + $0x2e8] sm:$0xff]
    %v9106 = vld [vmem:[#allocation17 + $0x2f0] sm:$0xff]
    %v9107 = vld [vmem:[#allocation17 + $0x2f8] sm:$0xff]
    %v9108 = vld [vmem:[#allocation17 + $0x300] sm:$0xff]
    %v9109 = vld [vmem:[#allocation17 + $0x308] sm:$0xff]
    %v9110 = vld [vmem:[#allocation17 + $0x310] sm:$0xff]
    %v9111 = vld [vmem:[#allocation17 + $0x318] sm:$0xff]
    %v9112 = vld [vmem:[#allocation17 + $0x320] sm:$0xff]
    %v9113 = vld [vmem:[#allocation17 + $0x328] sm:$0xff]
    %v9114 = vld [vmem:[#allocation17 + $0x330] sm:$0xff]
    %v9115 = vld [vmem:[#allocation17 + $0x338] sm:$0xff]
    %v9116 = vld [vmem:[#allocation17 + $0x340] sm:$0xff]
    %v9117 = vld [vmem:[#allocation17 + $0x348] sm:$0xff]
    %v9118 = vld [vmem:[#allocation17 + $0x350] sm:$0xff]
    %v9119 = vld [vmem:[#allocation17 + $0x358] sm:$0xff]
    %v9120 = vld [vmem:[#allocation17 + $0x360] sm:$0xff]
    %v9121 = vld [vmem:[#allocation17 + $0x368] sm:$0xff]
    %v9122 = vld [vmem:[#allocation17 + $0x370] sm:$0xff]
    %v9123 = vld [vmem:[#allocation17 + $0x378] sm:$0xff]
    %v9124 = vld [vmem:[#allocation17 + $0x380] sm:$0xff]
    %v9125 = vld [vmem:[#allocation17 + $0x388] sm:$0xff]
    %v9126 = vld [vmem:[#allocation17 + $0x390] sm:$0xff]
    %v9127 = vld [vmem:[#allocation17 + $0x398] sm:$0xff]
    %v9128 = vld [vmem:[#allocation17 + $0x3a0] sm:$0xff]
    %v9129 = vld [vmem:[#allocation17 + $0x3a8] sm:$0xff]
    %v9130 = vld [vmem:[#allocation17 + $0x3b0] sm:$0xff]
    %v9131 = vld [vmem:[#allocation17 + $0x3b8] sm:$0xff]
    %v9132 = vld [vmem:[#allocation17 + $0x3c0] sm:$0xff]
    %v9133 = vld [vmem:[#allocation17 + $0x3c8] sm:$0xff]
    %v9134 = vld [vmem:[#allocation17 + $0x3d0] sm:$0xff]
    %v9135 = vld [vmem:[#allocation17 + $0x3d8] sm:$0xff]
    %v9136 = vld [vmem:[#allocation17 + $0x3e0] sm:$0xff]
    %v9137 = vld [vmem:[#allocation17 + $0x3e8] sm:$0xff]
    %v9138 = vld [vmem:[#allocation17 + $0x3f0] sm:$0xff]
    %v9139 = vld [vmem:[#allocation17 + $0x3f8] sm:$0xff]
    %v9140 = vld [vmem:[#allocation17 + $0x400] sm:$0xff]
    %v9141 = vld [vmem:[#allocation17 + $0x408] sm:$0xff]
    %v9142 = vld [vmem:[#allocation17 + $0x410] sm:$0xff]
    %v9143 = vld [vmem:[#allocation17 + $0x418] sm:$0xff]
    %v9144 = vld [vmem:[#allocation17 + $0x420] sm:$0xff]
    %v9145 = vld [vmem:[#allocation17 + $0x428] sm:$0xff]
    %v9146 = vld [vmem:[#allocation17 + $0x430] sm:$0xff]
    %v9147 = vld [vmem:[#allocation17 + $0x438] sm:$0xff]
    %v9148 = vld [vmem:[#allocation17 + $0x440] sm:$0xff]
    %v9149 = vld [vmem:[#allocation17 + $0x448] sm:$0xff]
    %v9150 = vld [vmem:[#allocation17 + $0x450] sm:$0xff]
    %v9151 = vld [vmem:[#allocation17 + $0x458] sm:$0xff]
    %v9152 = vld [vmem:[#allocation17 + $0x460] sm:$0xff]
    %v9153 = vld [vmem:[#allocation17 + $0x468] sm:$0xff]
    %v9154 = vld [vmem:[#allocation17 + $0x470] sm:$0xff]
    %v9155 = vld [vmem:[#allocation17 + $0x478] sm:$0xff]
    %v9156 = vld [vmem:[#allocation17 + $0x480] sm:$0xff]
    %v9157 = vld [vmem:[#allocation17 + $0x488] sm:$0xff]
    %v9158 = vld [vmem:[#allocation17 + $0x490] sm:$0xff]
    %v9159 = vld [vmem:[#allocation17 + $0x498] sm:$0xff]
    %v9160 = vld [vmem:[#allocation17 + $0x4a0] sm:$0xff]
    %v9161 = vld [vmem:[#allocation17 + $0x4a8] sm:$0xff]
    %v9162 = vld [vmem:[#allocation17 + $0x4b0] sm:$0xff]
    %v9163 = vld [vmem:[#allocation17 + $0x4b8] sm:$0xff]
    %v9164 = vld [vmem:[#allocation17 + $0x4c0] sm:$0xff]
    %v9165 = vld [vmem:[#allocation17 + $0x4c8] sm:$0xff]
    %v9166 = vld [vmem:[#allocation17 + $0x4d0] sm:$0xff]
    %v9167 = vld [vmem:[#allocation17 + $0x4d8] sm:$0xff]
    %v9168 = vld [vmem:[#allocation17 + $0x4e0] sm:$0xff]
    %v9169 = vld [vmem:[#allocation17 + $0x4e8] sm:$0xff]
    %v9170 = vld [vmem:[#allocation17 + $0x4f0] sm:$0xff]
    %v9171 = vld [vmem:[#allocation17 + $0x4f8] sm:$0xff]
    %v9172 = vld [vmem:[#allocation17 + $0x500] sm:$0xff]
    %v9173 = vld [vmem:[#allocation17 + $0x508] sm:$0xff]
    %v9174 = vld [vmem:[#allocation17 + $0x510] sm:$0xff]
    %v9175 = vld [vmem:[#allocation17 + $0x518] sm:$0xff]
    %v9176 = vld [vmem:[#allocation17 + $0x520] sm:$0xff]
    %v9177 = vld [vmem:[#allocation17 + $0x528] sm:$0xff]
    %v9178 = vld [vmem:[#allocation17 + $0x530] sm:$0xff]
    %v9179 = vld [vmem:[#allocation17 + $0x538] sm:$0xff]
    %v9180 = vld [vmem:[#allocation17 + $0x540] sm:$0xff]
    %v9181 = vld [vmem:[#allocation17 + $0x548] sm:$0xff]
    %v9182 = vld [vmem:[#allocation17 + $0x550] sm:$0xff]
    %v9183 = vld [vmem:[#allocation17 + $0x558] sm:$0xff]
    %v9184 = vld [vmem:[#allocation17 + $0x560] sm:$0xff]
    %v9185 = vld [vmem:[#allocation17 + $0x568] sm:$0xff]
    %v9186 = vld [vmem:[#allocation17 + $0x570] sm:$0xff]
    %v9187 = vld [vmem:[#allocation17 + $0x578] sm:$0xff]
    %v9188 = vld [vmem:[#allocation17 + $0x580] sm:$0xff]
    %v9189 = vld [vmem:[#allocation17 + $0x588] sm:$0xff]
    %v9190 = vld [vmem:[#allocation17 + $0x590] sm:$0xff]
    %v9191 = vld [vmem:[#allocation17 + $0x598] sm:$0xff]
    %v9192 = vld [vmem:[#allocation17 + $0x5a0] sm:$0xff]
    %v9193 = vld [vmem:[#allocation17 + $0x5a8] sm:$0xff]
    %v9194 = vld [vmem:[#allocation17 + $0x5b0] sm:$0xff]
    %v9195 = vld [vmem:[#allocation17 + $0x5b8] sm:$0xff]
    %v9196 = vld [vmem:[#allocation17 + $0x5c0] sm:$0xff]
    %v9197 = vld [vmem:[#allocation17 + $0x5c8] sm:$0xff]
    %v9198 = vld [vmem:[#allocation17 + $0x5d0] sm:$0xff]
    %v9199 = vld [vmem:[#allocation17 + $0x5d8] sm:$0xff]
    %v9200 = vld [vmem:[#allocation17 + $0x5e0] sm:$0xff]
    %v9201 = vld [vmem:[#allocation17 + $0x5e8] sm:$0xff]
    %v9202 = vld [vmem:[#allocation17 + $0x5f0] sm:$0xff]
    %v9203 = vld [vmem:[#allocation17 + $0x5f8] sm:$0xff]
    %v9396 = vunpack.c.l.b16 %v9012
    %v9397 = vunpack.c.h.b16 %v9012
    %v9398 = vunpack.c.l.b16 %v9013
    %v9399 = vunpack.c.h.b16 %v9013
    %v9400 = vunpack.c.l.b16 %v9014
    %v9401 = vunpack.c.h.b16 %v9014
    %v9402 = vunpack.c.l.b16 %v9015
    %v9403 = vunpack.c.h.b16 %v9015
    %v9404 = vunpack.c.l.b16 %v9016
    %v9405 = vunpack.c.h.b16 %v9016
    %v9406 = vunpack.c.l.b16 %v9017
    %v9407 = vunpack.c.h.b16 %v9017
    %v9408 = vunpack.c.l.b16 %v9018
    %v9409 = vunpack.c.h.b16 %v9018
    %v9410 = vunpack.c.l.b16 %v9019
    %v9411 = vunpack.c.h.b16 %v9019
    %v9412 = vunpack.c.l.b16 %v9020
    %v9413 = vunpack.c.h.b16 %v9020
    %v9414 = vunpack.c.l.b16 %v9021
    %v9415 = vunpack.c.h.b16 %v9021
    %v9416 = vunpack.c.l.b16 %v9022
    %v9417 = vunpack.c.h.b16 %v9022
    %v9418 = vunpack.c.l.b16 %v9023
    %v9419 = vunpack.c.h.b16 %v9023
    %v9420 = vunpack.c.l.b16 %v9024
    %v9421 = vunpack.c.h.b16 %v9024
    %v9422 = vunpack.c.l.b16 %v9025
    %v9423 = vunpack.c.h.b16 %v9025
    %v9424 = vunpack.c.l.b16 %v9026
    %v9425 = vunpack.c.h.b16 %v9026
    %v9426 = vunpack.c.l.b16 %v9027
    %v9427 = vunpack.c.h.b16 %v9027
    %v9428 = vunpack.c.l.b16 %v9028
    %v9429 = vunpack.c.h.b16 %v9028
    %v9430 = vunpack.c.l.b16 %v9029
    %v9431 = vunpack.c.h.b16 %v9029
    %v9432 = vunpack.c.l.b16 %v9030
    %v9433 = vunpack.c.h.b16 %v9030
    %v9434 = vunpack.c.l.b16 %v9031
    %v9435 = vunpack.c.h.b16 %v9031
    %v9436 = vunpack.c.l.b16 %v9032
    %v9437 = vunpack.c.h.b16 %v9032
    %v9438 = vunpack.c.l.b16 %v9033
    %v9439 = vunpack.c.h.b16 %v9033
    %v9440 = vunpack.c.l.b16 %v9034
    %v9441 = vunpack.c.h.b16 %v9034
    %v9442 = vunpack.c.l.b16 %v9035
    %v9443 = vunpack.c.h.b16 %v9035
    %v9444 = vunpack.c.l.b16 %v9036
    %v9445 = vunpack.c.h.b16 %v9036
    %v9446 = vunpack.c.l.b16 %v9037
    %v9447 = vunpack.c.h.b16 %v9037
    %v9448 = vunpack.c.l.b16 %v9038
    %v9449 = vunpack.c.h.b16 %v9038
    %v9450 = vunpack.c.l.b16 %v9039
    %v9451 = vunpack.c.h.b16 %v9039
    %v9452 = vunpack.c.l.b16 %v9040
    %v9453 = vunpack.c.h.b16 %v9040
    %v9454 = vunpack.c.l.b16 %v9041
    %v9455 = vunpack.c.h.b16 %v9041
    %v9456 = vunpack.c.l.b16 %v9042
    %v9457 = vunpack.c.h.b16 %v9042
    %v9458 = vunpack.c.l.b16 %v9043
    %v9459 = vunpack.c.h.b16 %v9043
    %v9460 = vunpack.c.l.b16 %v9044
    %v9461 = vunpack.c.h.b16 %v9044
    %v9462 = vunpack.c.l.b16 %v9045
    %v9463 = vunpack.c.h.b16 %v9045
    %v9464 = vunpack.c.l.b16 %v9046
    %v9465 = vunpack.c.h.b16 %v9046
    %v9466 = vunpack.c.l.b16 %v9047
    %v9467 = vunpack.c.h.b16 %v9047
    %v9468 = vunpack.c.l.b16 %v9048
    %v9469 = vunpack.c.h.b16 %v9048
    %v9470 = vunpack.c.l.b16 %v9049
    %v9471 = vunpack.c.h.b16 %v9049
    %v9472 = vunpack.c.l.b16 %v9050
    %v9473 = vunpack.c.h.b16 %v9050
    %v9474 = vunpack.c.l.b16 %v9051
    %v9475 = vunpack.c.h.b16 %v9051
    %v9476 = vunpack.c.l.b16 %v9052
    %v9477 = vunpack.c.h.b16 %v9052
    %v9478 = vunpack.c.l.b16 %v9053
    %v9479 = vunpack.c.h.b16 %v9053
    %v9480 = vunpack.c.l.b16 %v9054
    %v9481 = vunpack.c.h.b16 %v9054
    %v9482 = vunpack.c.l.b16 %v9055
    %v9483 = vunpack.c.h.b16 %v9055
    %v9484 = vunpack.c.l.b16 %v9056
    %v9485 = vunpack.c.h.b16 %v9056
    %v9486 = vunpack.c.l.b16 %v9057
    %v9487 = vunpack.c.h.b16 %v9057
    %v9488 = vunpack.c.l.b16 %v9058
    %v9489 = vunpack.c.h.b16 %v9058
    %v9490 = vunpack.c.l.b16 %v9059
    %v9491 = vunpack.c.h.b16 %v9059
    %v9492 = vunpack.c.l.b16 %v9060
    %v9493 = vunpack.c.h.b16 %v9060
    %v9494 = vunpack.c.l.b16 %v9061
    %v9495 = vunpack.c.h.b16 %v9061
    %v9496 = vunpack.c.l.b16 %v9062
    %v9497 = vunpack.c.h.b16 %v9062
    %v9498 = vunpack.c.l.b16 %v9063
    %v9499 = vunpack.c.h.b16 %v9063
    %v9500 = vunpack.c.l.b16 %v9064
    %v9501 = vunpack.c.h.b16 %v9064
    %v9502 = vunpack.c.l.b16 %v9065
    %v9503 = vunpack.c.h.b16 %v9065
    %v9504 = vunpack.c.l.b16 %v9066
    %v9505 = vunpack.c.h.b16 %v9066
    %v9506 = vunpack.c.l.b16 %v9067
    %v9507 = vunpack.c.h.b16 %v9067
    %v9508 = vunpack.c.l.b16 %v9068
    %v9509 = vunpack.c.h.b16 %v9068
    %v9510 = vunpack.c.l.b16 %v9069
    %v9511 = vunpack.c.h.b16 %v9069
    %v9512 = vunpack.c.l.b16 %v9070
    %v9513 = vunpack.c.h.b16 %v9070
    %v9514 = vunpack.c.l.b16 %v9071
    %v9515 = vunpack.c.h.b16 %v9071
    %v9516 = vunpack.c.l.b16 %v9072
    %v9517 = vunpack.c.h.b16 %v9072
    %v9518 = vunpack.c.l.b16 %v9073
    %v9519 = vunpack.c.h.b16 %v9073
    %v9520 = vunpack.c.l.b16 %v9074
    %v9521 = vunpack.c.h.b16 %v9074
    %v9522 = vunpack.c.l.b16 %v9075
    %v9523 = vunpack.c.h.b16 %v9075
    %v9524 = vunpack.c.l.b16 %v9076
    %v9525 = vunpack.c.h.b16 %v9076
    %v9526 = vunpack.c.l.b16 %v9077
    %v9527 = vunpack.c.h.b16 %v9077
    %v9528 = vunpack.c.l.b16 %v9078
    %v9529 = vunpack.c.h.b16 %v9078
    %v9530 = vunpack.c.l.b16 %v9079
    %v9531 = vunpack.c.h.b16 %v9079
    %v9532 = vunpack.c.l.b16 %v9080
    %v9533 = vunpack.c.h.b16 %v9080
    %v9534 = vunpack.c.l.b16 %v9081
    %v9535 = vunpack.c.h.b16 %v9081
    %v9536 = vunpack.c.l.b16 %v9082
    %v9537 = vunpack.c.h.b16 %v9082
    %v9538 = vunpack.c.l.b16 %v9083
    %v9539 = vunpack.c.h.b16 %v9083
    %v9540 = vunpack.c.l.b16 %v9084
    %v9541 = vunpack.c.h.b16 %v9084
    %v9542 = vunpack.c.l.b16 %v9085
    %v9543 = vunpack.c.h.b16 %v9085
    %v9544 = vunpack.c.l.b16 %v9086
    %v9545 = vunpack.c.h.b16 %v9086
    %v9546 = vunpack.c.l.b16 %v9087
    %v9547 = vunpack.c.h.b16 %v9087
    %v9548 = vunpack.c.l.b16 %v9088
    %v9549 = vunpack.c.h.b16 %v9088
    %v9550 = vunpack.c.l.b16 %v9089
    %v9551 = vunpack.c.h.b16 %v9089
    %v9552 = vunpack.c.l.b16 %v9090
    %v9553 = vunpack.c.h.b16 %v9090
    %v9554 = vunpack.c.l.b16 %v9091
    %v9555 = vunpack.c.h.b16 %v9091
    %v9556 = vunpack.c.l.b16 %v9092
    %v9557 = vunpack.c.h.b16 %v9092
    %v9558 = vunpack.c.l.b16 %v9093
    %v9559 = vunpack.c.h.b16 %v9093
    %v9560 = vunpack.c.l.b16 %v9094
    %v9561 = vunpack.c.h.b16 %v9094
    %v9562 = vunpack.c.l.b16 %v9095
    %v9563 = vunpack.c.h.b16 %v9095
    %v9564 = vunpack.c.l.b16 %v9096
    %v9565 = vunpack.c.h.b16 %v9096
    %v9566 = vunpack.c.l.b16 %v9097
    %v9567 = vunpack.c.h.b16 %v9097
    %v9568 = vunpack.c.l.b16 %v9098
    %v9569 = vunpack.c.h.b16 %v9098
    %v9570 = vunpack.c.l.b16 %v9099
    %v9571 = vunpack.c.h.b16 %v9099
    %v9572 = vunpack.c.l.b16 %v9100
    %v9573 = vunpack.c.h.b16 %v9100
    %v9574 = vunpack.c.l.b16 %v9101
    %v9575 = vunpack.c.h.b16 %v9101
    %v9576 = vunpack.c.l.b16 %v9102
    %v9577 = vunpack.c.h.b16 %v9102
    %v9578 = vunpack.c.l.b16 %v9103
    %v9579 = vunpack.c.h.b16 %v9103
    %v9580 = vunpack.c.l.b16 %v9104
    %v9581 = vunpack.c.h.b16 %v9104
    %v9582 = vunpack.c.l.b16 %v9105
    %v9583 = vunpack.c.h.b16 %v9105
    %v9584 = vunpack.c.l.b16 %v9106
    %v9585 = vunpack.c.h.b16 %v9106
    %v9586 = vunpack.c.l.b16 %v9107
    %v9587 = vunpack.c.h.b16 %v9107
    %v9588 = vunpack.c.l.b16 %v9108
    %v9589 = vunpack.c.h.b16 %v9108
    %v9590 = vunpack.c.l.b16 %v9109
    %v9591 = vunpack.c.h.b16 %v9109
    %v9592 = vunpack.c.l.b16 %v9110
    %v9593 = vunpack.c.h.b16 %v9110
    %v9594 = vunpack.c.l.b16 %v9111
    %v9595 = vunpack.c.h.b16 %v9111
    %v9596 = vunpack.c.l.b16 %v9112
    %v9597 = vunpack.c.h.b16 %v9112
    %v9598 = vunpack.c.l.b16 %v9113
    %v9599 = vunpack.c.h.b16 %v9113
    %v9600 = vunpack.c.l.b16 %v9114
    %v9601 = vunpack.c.h.b16 %v9114
    %v9602 = vunpack.c.l.b16 %v9115
    %v9603 = vunpack.c.h.b16 %v9115
    %v9604 = vunpack.c.l.b16 %v9116
    %v9605 = vunpack.c.h.b16 %v9116
    %v9606 = vunpack.c.l.b16 %v9117
    %v9607 = vunpack.c.h.b16 %v9117
    %v9608 = vunpack.c.l.b16 %v9118
    %v9609 = vunpack.c.h.b16 %v9118
    %v9610 = vunpack.c.l.b16 %v9119
    %v9611 = vunpack.c.h.b16 %v9119
    %v9612 = vunpack.c.l.b16 %v9120
    %v9613 = vunpack.c.h.b16 %v9120
    %v9614 = vunpack.c.l.b16 %v9121
    %v9615 = vunpack.c.h.b16 %v9121
    %v9616 = vunpack.c.l.b16 %v9122
    %v9617 = vunpack.c.h.b16 %v9122
    %v9618 = vunpack.c.l.b16 %v9123
    %v9619 = vunpack.c.h.b16 %v9123
    %v9620 = vunpack.c.l.b16 %v9124
    %v9621 = vunpack.c.h.b16 %v9124
    %v9622 = vunpack.c.l.b16 %v9125
    %v9623 = vunpack.c.h.b16 %v9125
    %v9624 = vunpack.c.l.b16 %v9126
    %v9625 = vunpack.c.h.b16 %v9126
    %v9626 = vunpack.c.l.b16 %v9127
    %v9627 = vunpack.c.h.b16 %v9127
    %v9628 = vunpack.c.l.b16 %v9128
    %v9629 = vunpack.c.h.b16 %v9128
    %v9630 = vunpack.c.l.b16 %v9129
    %v9631 = vunpack.c.h.b16 %v9129
    %v9632 = vunpack.c.l.b16 %v9130
    %v9633 = vunpack.c.h.b16 %v9130
    %v9634 = vunpack.c.l.b16 %v9131
    %v9635 = vunpack.c.h.b16 %v9131
    %v9636 = vunpack.c.l.b16 %v9132
    %v9637 = vunpack.c.h.b16 %v9132
    %v9638 = vunpack.c.l.b16 %v9133
    %v9639 = vunpack.c.h.b16 %v9133
    %v9640 = vunpack.c.l.b16 %v9134
    %v9641 = vunpack.c.h.b16 %v9134
    %v9642 = vunpack.c.l.b16 %v9135
    %v9643 = vunpack.c.h.b16 %v9135
    %v9644 = vunpack.c.l.b16 %v9136
    %v9645 = vunpack.c.h.b16 %v9136
    %v9646 = vunpack.c.l.b16 %v9137
    %v9647 = vunpack.c.h.b16 %v9137
    %v9648 = vunpack.c.l.b16 %v9138
    %v9649 = vunpack.c.h.b16 %v9138
    %v9650 = vunpack.c.l.b16 %v9139
    %v9651 = vunpack.c.h.b16 %v9139
    %v9652 = vunpack.c.l.b16 %v9140
    %v9653 = vunpack.c.h.b16 %v9140
    %v9654 = vunpack.c.l.b16 %v9141
    %v9655 = vunpack.c.h.b16 %v9141
    %v9656 = vunpack.c.l.b16 %v9142
    %v9657 = vunpack.c.h.b16 %v9142
    %v9658 = vunpack.c.l.b16 %v9143
    %v9659 = vunpack.c.h.b16 %v9143
    %v9660 = vunpack.c.l.b16 %v9144
    %v9661 = vunpack.c.h.b16 %v9144
    %v9662 = vunpack.c.l.b16 %v9145
    %v9663 = vunpack.c.h.b16 %v9145
    %v9664 = vunpack.c.l.b16 %v9146
    %v9665 = vunpack.c.h.b16 %v9146
    %v9666 = vunpack.c.l.b16 %v9147
    %v9667 = vunpack.c.h.b16 %v9147
    %v9668 = vunpack.c.l.b16 %v9148
    %v9669 = vunpack.c.h.b16 %v9148
    %v9670 = vunpack.c.l.b16 %v9149
    %v9671 = vunpack.c.h.b16 %v9149
    %v9672 = vunpack.c.l.b16 %v9150
    %v9673 = vunpack.c.h.b16 %v9150
    %v9674 = vunpack.c.l.b16 %v9151
    %v9675 = vunpack.c.h.b16 %v9151
    %v9676 = vunpack.c.l.b16 %v9152
    %v9677 = vunpack.c.h.b16 %v9152
    %v9678 = vunpack.c.l.b16 %v9153
    %v9679 = vunpack.c.h.b16 %v9153
    %v9680 = vunpack.c.l.b16 %v9154
    %v9681 = vunpack.c.h.b16 %v9154
    %v9682 = vunpack.c.l.b16 %v9155
    %v9683 = vunpack.c.h.b16 %v9155
    %v9684 = vunpack.c.l.b16 %v9156
    %v9685 = vunpack.c.h.b16 %v9156
    %v9686 = vunpack.c.l.b16 %v9157
    %v9687 = vunpack.c.h.b16 %v9157
    %v9688 = vunpack.c.l.b16 %v9158
    %v9689 = vunpack.c.h.b16 %v9158
    %v9690 = vunpack.c.l.b16 %v9159
    %v9691 = vunpack.c.h.b16 %v9159
    %v9692 = vunpack.c.l.b16 %v9160
    %v9693 = vunpack.c.h.b16 %v9160
    %v9694 = vunpack.c.l.b16 %v9161
    %v9695 = vunpack.c.h.b16 %v9161
    %v9696 = vunpack.c.l.b16 %v9162
    %v9697 = vunpack.c.h.b16 %v9162
    %v9698 = vunpack.c.l.b16 %v9163
    %v9699 = vunpack.c.h.b16 %v9163
    %v9700 = vunpack.c.l.b16 %v9164
    %v9701 = vunpack.c.h.b16 %v9164
    %v9702 = vunpack.c.l.b16 %v9165
    %v9703 = vunpack.c.h.b16 %v9165
    %v9704 = vunpack.c.l.b16 %v9166
    %v9705 = vunpack.c.h.b16 %v9166
    %v9706 = vunpack.c.l.b16 %v9167
    %v9707 = vunpack.c.h.b16 %v9167
    %v9708 = vunpack.c.l.b16 %v9168
    %v9709 = vunpack.c.h.b16 %v9168
    %v9710 = vunpack.c.l.b16 %v9169
    %v9711 = vunpack.c.h.b16 %v9169
    %v9712 = vunpack.c.l.b16 %v9170
    %v9713 = vunpack.c.h.b16 %v9170
    %v9714 = vunpack.c.l.b16 %v9171
    %v9715 = vunpack.c.h.b16 %v9171
    %v9716 = vunpack.c.l.b16 %v9172
    %v9717 = vunpack.c.h.b16 %v9172
    %v9718 = vunpack.c.l.b16 %v9173
    %v9719 = vunpack.c.h.b16 %v9173
    %v9720 = vunpack.c.l.b16 %v9174
    %v9721 = vunpack.c.h.b16 %v9174
    %v9722 = vunpack.c.l.b16 %v9175
    %v9723 = vunpack.c.h.b16 %v9175
    %v9724 = vunpack.c.l.b16 %v9176
    %v9725 = vunpack.c.h.b16 %v9176
    %v9726 = vunpack.c.l.b16 %v9177
    %v9727 = vunpack.c.h.b16 %v9177
    %v9728 = vunpack.c.l.b16 %v9178
    %v9729 = vunpack.c.h.b16 %v9178
    %v9730 = vunpack.c.l.b16 %v9179
    %v9731 = vunpack.c.h.b16 %v9179
    %v9732 = vunpack.c.l.b16 %v9180
    %v9733 = vunpack.c.h.b16 %v9180
    %v9734 = vunpack.c.l.b16 %v9181
    %v9735 = vunpack.c.h.b16 %v9181
    %v9736 = vunpack.c.l.b16 %v9182
    %v9737 = vunpack.c.h.b16 %v9182
    %v9738 = vunpack.c.l.b16 %v9183
    %v9739 = vunpack.c.h.b16 %v9183
    %v9740 = vunpack.c.l.b16 %v9184
    %v9741 = vunpack.c.h.b16 %v9184
    %v9742 = vunpack.c.l.b16 %v9185
    %v9743 = vunpack.c.h.b16 %v9185
    %v9744 = vunpack.c.l.b16 %v9186
    %v9745 = vunpack.c.h.b16 %v9186
    %v9746 = vunpack.c.l.b16 %v9187
    %v9747 = vunpack.c.h.b16 %v9187
    %v9748 = vunpack.c.l.b16 %v9188
    %v9749 = vunpack.c.h.b16 %v9188
    %v9750 = vunpack.c.l.b16 %v9189
    %v9751 = vunpack.c.h.b16 %v9189
    %v9752 = vunpack.c.l.b16 %v9190
    %v9753 = vunpack.c.h.b16 %v9190
    %v9754 = vunpack.c.l.b16 %v9191
    %v9755 = vunpack.c.h.b16 %v9191
    %v9756 = vunpack.c.l.b16 %v9192
    %v9757 = vunpack.c.h.b16 %v9192
    %v9758 = vunpack.c.l.b16 %v9193
    %v9759 = vunpack.c.h.b16 %v9193
    %v9760 = vunpack.c.l.b16 %v9194
    %v9761 = vunpack.c.h.b16 %v9194
    %v9762 = vunpack.c.l.b16 %v9195
    %v9763 = vunpack.c.h.b16 %v9195
    %v9764 = vunpack.c.l.b16 %v9196
    %v9765 = vunpack.c.h.b16 %v9196
    %v9766 = vunpack.c.l.b16 %v9197
    %v9767 = vunpack.c.h.b16 %v9197
    %v9768 = vunpack.c.l.b16 %v9198
    %v9769 = vunpack.c.h.b16 %v9198
    %v9770 = vunpack.c.l.b16 %v9199
    %v9771 = vunpack.c.h.b16 %v9199
    %v9772 = vunpack.c.l.b16 %v9200
    %v9773 = vunpack.c.h.b16 %v9200
    %v9774 = vunpack.c.l.b16 %v9201
    %v9775 = vunpack.c.h.b16 %v9201
    %v9776 = vunpack.c.l.b16 %v9202
    %v9777 = vunpack.c.h.b16 %v9202
    %v9778 = vunpack.c.l.b16 %v9203
    %v9779 = vunpack.c.h.b16 %v9203
    %v9780 = vpack.c.b16 %v9400, %v9396
    %v9781 = vpack.c.b16 %v9401, %v9397
    %v9782 = vpack.c.b16 %v9402, %v9398
    %v9783 = vpack.c.b16 %v9403, %v9399
    %v9784 = vpack.c.b16 %v9408, %v9404
    %v9785 = vpack.c.b16 %v9409, %v9405
    %v9786 = vpack.c.b16 %v9410, %v9406
    %v9787 = vpack.c.b16 %v9411, %v9407
    %v9788 = vpack.c.b16 %v9416, %v9412
    %v9789 = vpack.c.b16 %v9417, %v9413
    %v9790 = vpack.c.b16 %v9418, %v9414
    %v9791 = vpack.c.b16 %v9419, %v9415
    %v9792 = vpack.c.b16 %v9424, %v9420
    %v9793 = vpack.c.b16 %v9425, %v9421
    %v9794 = vpack.c.b16 %v9426, %v9422
    %v9795 = vpack.c.b16 %v9427, %v9423
    %v9796 = vpack.c.b16 %v9432, %v9428
    %v9797 = vpack.c.b16 %v9433, %v9429
    %v9798 = vpack.c.b16 %v9434, %v9430
    %v9799 = vpack.c.b16 %v9435, %v9431
    %v9800 = vpack.c.b16 %v9440, %v9436
    %v9801 = vpack.c.b16 %v9441, %v9437
    %v9802 = vpack.c.b16 %v9442, %v9438
    %v9803 = vpack.c.b16 %v9443, %v9439
    %v9804 = vpack.c.b16 %v9448, %v9444
    %v9805 = vpack.c.b16 %v9449, %v9445
    %v9806 = vpack.c.b16 %v9450, %v9446
    %v9807 = vpack.c.b16 %v9451, %v9447
    %v9808 = vpack.c.b16 %v9456, %v9452
    %v9809 = vpack.c.b16 %v9457, %v9453
    %v9810 = vpack.c.b16 %v9458, %v9454
    %v9811 = vpack.c.b16 %v9459, %v9455
    %v9812 = vpack.c.b16 %v9464, %v9460
    %v9813 = vpack.c.b16 %v9465, %v9461
    %v9814 = vpack.c.b16 %v9466, %v9462
    %v9815 = vpack.c.b16 %v9467, %v9463
    %v9816 = vpack.c.b16 %v9472, %v9468
    %v9817 = vpack.c.b16 %v9473, %v9469
    %v9818 = vpack.c.b16 %v9474, %v9470
    %v9819 = vpack.c.b16 %v9475, %v9471
    %v9820 = vpack.c.b16 %v9480, %v9476
    %v9821 = vpack.c.b16 %v9481, %v9477
    %v9822 = vpack.c.b16 %v9482, %v9478
    %v9823 = vpack.c.b16 %v9483, %v9479
    %v9824 = vpack.c.b16 %v9488, %v9484
    %v9825 = vpack.c.b16 %v9489, %v9485
    %v9826 = vpack.c.b16 %v9490, %v9486
    %v9827 = vpack.c.b16 %v9491, %v9487
    %v9828 = vpack.c.b16 %v9496, %v9492
    %v9829 = vpack.c.b16 %v9497, %v9493
    %v9830 = vpack.c.b16 %v9498, %v9494
    %v9831 = vpack.c.b16 %v9499, %v9495
    %v9832 = vpack.c.b16 %v9504, %v9500
    %v9833 = vpack.c.b16 %v9505, %v9501
    %v9834 = vpack.c.b16 %v9506, %v9502
    %v9835 = vpack.c.b16 %v9507, %v9503
    %v9836 = vpack.c.b16 %v9512, %v9508
    %v9837 = vpack.c.b16 %v9513, %v9509
    %v9838 = vpack.c.b16 %v9514, %v9510
    %v9839 = vpack.c.b16 %v9515, %v9511
    %v9840 = vpack.c.b16 %v9520, %v9516
    %v9841 = vpack.c.b16 %v9521, %v9517
    %v9842 = vpack.c.b16 %v9522, %v9518
    %v9843 = vpack.c.b16 %v9523, %v9519
    %v9844 = vpack.c.b16 %v9528, %v9524
    %v9845 = vpack.c.b16 %v9529, %v9525
    %v9846 = vpack.c.b16 %v9530, %v9526
    %v9847 = vpack.c.b16 %v9531, %v9527
    %v9848 = vpack.c.b16 %v9536, %v9532
    %v9849 = vpack.c.b16 %v9537, %v9533
    %v9850 = vpack.c.b16 %v9538, %v9534
    %v9851 = vpack.c.b16 %v9539, %v9535
    %v9852 = vpack.c.b16 %v9544, %v9540
    %v9853 = vpack.c.b16 %v9545, %v9541
    %v9854 = vpack.c.b16 %v9546, %v9542
    %v9855 = vpack.c.b16 %v9547, %v9543
    %v9856 = vpack.c.b16 %v9552, %v9548
    %v9857 = vpack.c.b16 %v9553, %v9549
    %v9858 = vpack.c.b16 %v9554, %v9550
    %v9859 = vpack.c.b16 %v9555, %v9551
    %v9860 = vpack.c.b16 %v9560, %v9556
    %v9861 = vpack.c.b16 %v9561, %v9557
    %v9862 = vpack.c.b16 %v9562, %v9558
    %v9863 = vpack.c.b16 %v9563, %v9559
    %v9864 = vpack.c.b16 %v9568, %v9564
    %v9865 = vpack.c.b16 %v9569, %v9565
    %v9866 = vpack.c.b16 %v9570, %v9566
    %v9867 = vpack.c.b16 %v9571, %v9567
    %v9868 = vpack.c.b16 %v9576, %v9572
    %v9869 = vpack.c.b16 %v9577, %v9573
    %v9870 = vpack.c.b16 %v9578, %v9574
    %v9871 = vpack.c.b16 %v9579, %v9575
    %v9872 = vpack.c.b16 %v9584, %v9580
    %v9873 = vpack.c.b16 %v9585, %v9581
    %v9874 = vpack.c.b16 %v9586, %v9582
    %v9875 = vpack.c.b16 %v9587, %v9583
    %v9876 = vpack.c.b16 %v9592, %v9588
    %v9877 = vpack.c.b16 %v9593, %v9589
    %v9878 = vpack.c.b16 %v9594, %v9590
    %v9879 = vpack.c.b16 %v9595, %v9591
    %v9880 = vpack.c.b16 %v9600, %v9596
    %v9881 = vpack.c.b16 %v9601, %v9597
    %v9882 = vpack.c.b16 %v9602, %v9598
    %v9883 = vpack.c.b16 %v9603, %v9599
    %v9884 = vpack.c.b16 %v9608, %v9604
    %v9885 = vpack.c.b16 %v9609, %v9605
    %v9886 = vpack.c.b16 %v9610, %v9606
    %v9887 = vpack.c.b16 %v9611, %v9607
    %v9888 = vpack.c.b16 %v9616, %v9612
    %v9889 = vpack.c.b16 %v9617, %v9613
    %v9890 = vpack.c.b16 %v9618, %v9614
    %v9891 = vpack.c.b16 %v9619, %v9615
    %v9892 = vpack.c.b16 %v9624, %v9620
    %v9893 = vpack.c.b16 %v9625, %v9621
    %v9894 = vpack.c.b16 %v9626, %v9622
    %v9895 = vpack.c.b16 %v9627, %v9623
    %v9896 = vpack.c.b16 %v9632, %v9628
    %v9897 = vpack.c.b16 %v9633, %v9629
    %v9898 = vpack.c.b16 %v9634, %v9630
    %v9899 = vpack.c.b16 %v9635, %v9631
    %v9900 = vpack.c.b16 %v9640, %v9636
    %v9901 = vpack.c.b16 %v9641, %v9637
    %v9902 = vpack.c.b16 %v9642, %v9638
    %v9903 = vpack.c.b16 %v9643, %v9639
    %v9904 = vpack.c.b16 %v9648, %v9644
    %v9905 = vpack.c.b16 %v9649, %v9645
    %v9906 = vpack.c.b16 %v9650, %v9646
    %v9907 = vpack.c.b16 %v9651, %v9647
    %v9908 = vpack.c.b16 %v9656, %v9652
    %v9909 = vpack.c.b16 %v9657, %v9653
    %v9910 = vpack.c.b16 %v9658, %v9654
    %v9911 = vpack.c.b16 %v9659, %v9655
    %v9912 = vpack.c.b16 %v9664, %v9660
    %v9913 = vpack.c.b16 %v9665, %v9661
    %v9914 = vpack.c.b16 %v9666, %v9662
    %v9915 = vpack.c.b16 %v9667, %v9663
    %v9916 = vpack.c.b16 %v9672, %v9668
    %v9917 = vpack.c.b16 %v9673, %v9669
    %v9918 = vpack.c.b16 %v9674, %v9670
    %v9919 = vpack.c.b16 %v9675, %v9671
    %v9920 = vpack.c.b16 %v9680, %v9676
    %v9921 = vpack.c.b16 %v9681, %v9677
    %v9922 = vpack.c.b16 %v9682, %v9678
    %v9923 = vpack.c.b16 %v9683, %v9679
    %v9924 = vpack.c.b16 %v9688, %v9684
    %v9925 = vpack.c.b16 %v9689, %v9685
    %v9926 = vpack.c.b16 %v9690, %v9686
    %v9927 = vpack.c.b16 %v9691, %v9687
    %v9928 = vpack.c.b16 %v9696, %v9692
    %v9929 = vpack.c.b16 %v9697, %v9693
    %v9930 = vpack.c.b16 %v9698, %v9694
    %v9931 = vpack.c.b16 %v9699, %v9695
    %v9932 = vpack.c.b16 %v9704, %v9700
    %v9933 = vpack.c.b16 %v9705, %v9701
    %v9934 = vpack.c.b16 %v9706, %v9702
    %v9935 = vpack.c.b16 %v9707, %v9703
    %v9936 = vpack.c.b16 %v9712, %v9708
    %v9937 = vpack.c.b16 %v9713, %v9709
    %v9938 = vpack.c.b16 %v9714, %v9710
    %v9939 = vpack.c.b16 %v9715, %v9711
    %v9940 = vpack.c.b16 %v9720, %v9716
    %v9941 = vpack.c.b16 %v9721, %v9717
    %v9942 = vpack.c.b16 %v9722, %v9718
    %v9943 = vpack.c.b16 %v9723, %v9719
    %v9944 = vpack.c.b16 %v9728, %v9724
    %v9945 = vpack.c.b16 %v9729, %v9725
    %v9946 = vpack.c.b16 %v9730, %v9726
    %v9947 = vpack.c.b16 %v9731, %v9727
    %v9948 = vpack.c.b16 %v9736, %v9732
    %v9949 = vpack.c.b16 %v9737, %v9733
    %v9950 = vpack.c.b16 %v9738, %v9734
    %v9951 = vpack.c.b16 %v9739, %v9735
    %v9952 = vpack.c.b16 %v9744, %v9740
    %v9953 = vpack.c.b16 %v9745, %v9741
    %v9954 = vpack.c.b16 %v9746, %v9742
    %v9955 = vpack.c.b16 %v9747, %v9743
    %v9956 = vpack.c.b16 %v9752, %v9748
    %v9957 = vpack.c.b16 %v9753, %v9749
    %v9958 = vpack.c.b16 %v9754, %v9750
    %v9959 = vpack.c.b16 %v9755, %v9751
    %v9960 = vpack.c.b16 %v9760, %v9756
    %v9961 = vpack.c.b16 %v9761, %v9757
    %v9962 = vpack.c.b16 %v9762, %v9758
    %v9963 = vpack.c.b16 %v9763, %v9759
    %v9964 = vpack.c.b16 %v9768, %v9764
    %v9965 = vpack.c.b16 %v9769, %v9765
    %v9966 = vpack.c.b16 %v9770, %v9766
    %v9967 = vpack.c.b16 %v9771, %v9767
    %v9968 = vpack.c.b16 %v9776, %v9772
    %v9969 = vpack.c.b16 %v9777, %v9773
    %v9970 = vpack.c.b16 %v9778, %v9774
    %v9971 = vpack.c.b16 %v9779, %v9775
    %10164 = vmatprep.subr.bf16.mxu0 %v9809
    %10165 = vmatpush1.bf16.msra.mxu0 %v9808
    %10166 = vmatprep.subr.bf16.mxu0 %v9805
    %10167 = vmatpush1.bf16.msra.mxu0 %v9804
    %10168 = vmatprep.subr.bf16.mxu0 %v9801
    %10169 = vmatpush1.bf16.msra.mxu0 %v9800
    %10170 = vmatprep.subr.bf16.mxu0 %v9797
    %10171 = vmatpush1.bf16.msra.mxu0 %v9796
    %10172 = vmatprep.subr.bf16.mxu0 %v9793
    %10173 = vmatpush1.bf16.msra.mxu0 %v9792
    %10174 = vmatprep.subr.bf16.mxu0 %v9789
    %10175 = vmatpush1.bf16.msra.mxu0 %v9788
    %10176 = vmatprep.subr.bf16.mxu0 %v9785
    %10177 = vmatpush1.bf16.msra.mxu0 %v9784
    %10178 = vmatprep.subr.bf16.mxu0 %v9781
    %10179 = vmatpush1.bf16.msra.mxu0 %v9780
    %10180 = vmatprep.subr.bf16.mxu0 %v9841
    %10181 = vmatpush2.bf16.msra.mxu0 %v9840
    %10182 = vmatprep.subr.bf16.mxu0 %v9837
    %10183 = vmatpush2.bf16.msra.mxu0 %v9836
    %10184 = vmatprep.subr.bf16.mxu0 %v9833
    %10185 = vmatpush2.bf16.msra.mxu0 %v9832
    %10186 = vmatprep.subr.bf16.mxu0 %v9829
    %10187 = vmatpush2.bf16.msra.mxu0 %v9828
    %10188 = vmatprep.subr.bf16.mxu0 %v9825
    %10189 = vmatpush2.bf16.msra.mxu0 %v9824
    %10190 = vmatprep.subr.bf16.mxu0 %v9821
    %10191 = vmatpush2.bf16.msra.mxu0 %v9820
    %10192 = vmatprep.subr.bf16.mxu0 %v9817
    %10193 = vmatpush2.bf16.msra.mxu0 %v9816
    %10194 = vmatprep.subr.bf16.mxu0 %v9813
    %10195 = vmatpush2.bf16.msra.mxu0 %v9812
    %10196 = vmatprep.mubr.bf16.mxu0 %v9007
    %10197 = vmatmul.mubr.bf16.gmra.mxu0 %v9006
    %v10198 = vpop.f32.mrf.mxu0
    %v10199 = vadd.f32 0.0, %v10198
    %v10200 = vpop.f32.mrf.mxu0
    %v10201 = vadd.f32 0.0, %v10200
    %v10202 = vpop.f32.mrf.mxu0
    %v10203 = vpop.f32.mrf.mxu0
    %10204 = vdwg.mxu0
    %10205 = vmatprep.subr.bf16.mxu0 %v9873
    %10206 = vmatpush1.bf16.msra.mxu0 %v9872
    %10207 = vmatprep.subr.bf16.mxu0 %v9869
    %10208 = vmatpush1.bf16.msra.mxu0 %v9868
    %10209 = vmatprep.subr.bf16.mxu0 %v9865
    %10210 = vmatpush1.bf16.msra.mxu0 %v9864
    %10211 = vmatprep.subr.bf16.mxu0 %v9861
    %10212 = vmatpush1.bf16.msra.mxu0 %v9860
    %10213 = vmatprep.subr.bf16.mxu0 %v9857
    %10214 = vmatpush1.bf16.msra.mxu0 %v9856
    %10215 = vmatprep.subr.bf16.mxu0 %v9853
    %10216 = vmatpush1.bf16.msra.mxu0 %v9852
    %10217 = vmatprep.subr.bf16.mxu0 %v9849
    %10218 = vmatpush1.bf16.msra.mxu0 %v9848
    %10219 = vmatprep.subr.bf16.mxu0 %v9845
    %10220 = vmatpush1.bf16.msra.mxu0 %v9844
    %10221 = vmatprep.subr.bf16.mxu0 %v9905
    %10222 = vmatpush2.bf16.msra.mxu0 %v9904
    %10223 = vmatprep.subr.bf16.mxu0 %v9901
    %10224 = vmatpush2.bf16.msra.mxu0 %v9900
    %10225 = vmatprep.subr.bf16.mxu0 %v9897
    %10226 = vmatpush2.bf16.msra.mxu0 %v9896
    %10227 = vmatprep.subr.bf16.mxu0 %v9893
    %10228 = vmatpush2.bf16.msra.mxu0 %v9892
    %10229 = vmatprep.subr.bf16.mxu0 %v9889
    %10230 = vmatpush2.bf16.msra.mxu0 %v9888
    %10231 = vmatprep.subr.bf16.mxu0 %v9885
    %10232 = vmatpush2.bf16.msra.mxu0 %v9884
    %10233 = vmatprep.subr.bf16.mxu0 %v9881
    %10234 = vmatpush2.bf16.msra.mxu0 %v9880
    %10235 = vmatprep.subr.bf16.mxu0 %v9877
    %10236 = vmatpush2.bf16.msra.mxu0 %v9876
    %10237 = vmatprep.mubr.bf16.mxu0 %v9009
    %10238 = vmatmul.mubr.bf16.gmra.mxu0 %v9008
    %v10239 = vpop.f32.mrf.mxu0
    %v10240 = vadd.f32 %v10199, %v10239
    %v10241 = vpop.f32.mrf.mxu0
    %v10242 = vadd.f32 %v10201, %v10241
    %v10243 = vpop.f32.mrf.mxu0
    %v10244 = vpop.f32.mrf.mxu0
    %10245 = vdwg.mxu0
    %10246 = vmatprep.subr.bf16.mxu0 %v9937
    %10247 = vmatpush1.bf16.msra.mxu0 %v9936
    %10248 = vmatprep.subr.bf16.mxu0 %v9933
    %10249 = vmatpush1.bf16.msra.mxu0 %v9932
    %10250 = vmatprep.subr.bf16.mxu0 %v9929
    %10251 = vmatpush1.bf16.msra.mxu0 %v9928
    %10252 = vmatprep.subr.bf16.mxu0 %v9925
    %10253 = vmatpush1.bf16.msra.mxu0 %v9924
    %10254 = vmatprep.subr.bf16.mxu0 %v9921
    %10255 = vmatpush1.bf16.msra.mxu0 %v9920
    %10256 = vmatprep.subr.bf16.mxu0 %v9917
    %10257 = vmatpush1.bf16.msra.mxu0 %v9916
    %10258 = vmatprep.subr.bf16.mxu0 %v9913
    %10259 = vmatpush1.bf16.msra.mxu0 %v9912
    %10260 = vmatprep.subr.bf16.mxu0 %v9909
    %10261 = vmatpush1.bf16.msra.mxu0 %v9908
    %10262 = vmatprep.subr.bf16.mxu0 %v9969
    %10263 = vmatpush2.bf16.msra.mxu0 %v9968
    %10264 = vmatprep.subr.bf16.mxu0 %v9965
    %10265 = vmatpush2.bf16.msra.mxu0 %v9964
    %10266 = vmatprep.subr.bf16.mxu0 %v9961
    %10267 = vmatpush2.bf16.msra.mxu0 %v9960
    %10268 = vmatprep.subr.bf16.mxu0 %v9957
    %10269 = vmatpush2.bf16.msra.mxu0 %v9956
    %10270 = vmatprep.subr.bf16.mxu0 %v9953
    %10271 = vmatpush2.bf16.msra.mxu0 %v9952
    %10272 = vmatprep.subr.bf16.mxu0 %v9949
    %10273 = vmatpush2.bf16.msra.mxu0 %v9948
    %10274 = vmatprep.subr.bf16.mxu0 %v9945
    %10275 = vmatpush2.bf16.msra.mxu0 %v9944
    %10276 = vmatprep.subr.bf16.mxu0 %v9941
    %10277 = vmatpush2.bf16.msra.mxu0 %v9940
    %10278 = vmatprep.mubr.bf16.mxu0 %v9011
    %10279 = vmatmul.mubr.bf16.gmra.mxu0 %v9010
    %v10280 = vpop.f32.mrf.mxu0
    %v10281 = vadd.f32 %v10240, %v10280
    %v10282 = vpop.f32.mrf.mxu0
    %v10283 = vadd.f32 %v10242, %v10282
    %v10284 = vpop.f32.mrf.mxu0
    %v10285 = vpop.f32.mrf.mxu0
    %10286 = vdwg.mxu0
    %10287 = vmatprep.subr.bf16.mxu0 %v9811
    %10288 = vmatpush1.bf16.msra.mxu0 %v9810
    %10289 = vmatprep.subr.bf16.mxu0 %v9807
    %10290 = vmatpush1.bf16.msra.mxu0 %v9806
    %10291 = vmatprep.subr.bf16.mxu0 %v9803
    %10292 = vmatpush1.bf16.msra.mxu0 %v9802
    %10293 = vmatprep.subr.bf16.mxu0 %v9799
    %10294 = vmatpush1.bf16.msra.mxu0 %v9798
    %10295 = vmatprep.subr.bf16.mxu0 %v9795
    %10296 = vmatpush1.bf16.msra.mxu0 %v9794
    %10297 = vmatprep.subr.bf16.mxu0 %v9791
    %10298 = vmatpush1.bf16.msra.mxu0 %v9790
    %10299 = vmatprep.subr.bf16.mxu0 %v9787
    %10300 = vmatpush1.bf16.msra.mxu0 %v9786
    %10301 = vmatprep.subr.bf16.mxu0 %v9783
    %10302 = vmatpush1.bf16.msra.mxu0 %v9782
    %10303 = vmatprep.subr.bf16.mxu0 %v9843
    %10304 = vmatpush2.bf16.msra.mxu0 %v9842
    %10305 = vmatprep.subr.bf16.mxu0 %v9839
    %10306 = vmatpush2.bf16.msra.mxu0 %v9838
    %10307 = vmatprep.subr.bf16.mxu0 %v9835
    %10308 = vmatpush2.bf16.msra.mxu0 %v9834
    %10309 = vmatprep.subr.bf16.mxu0 %v9831
    %10310 = vmatpush2.bf16.msra.mxu0 %v9830
    %10311 = vmatprep.subr.bf16.mxu0 %v9827
    %10312 = vmatpush2.bf16.msra.mxu0 %v9826
    %10313 = vmatprep.subr.bf16.mxu0 %v9823
    %10314 = vmatpush2.bf16.msra.mxu0 %v9822
    %10315 = vmatprep.subr.bf16.mxu0 %v9819
    %10316 = vmatpush2.bf16.msra.mxu0 %v9818
    %10317 = vmatprep.subr.bf16.mxu0 %v9815
    %10318 = vmatpush2.bf16.msra.mxu0 %v9814
    %10319 = vmatprep.mubr.bf16.mxu0 %v9007
    %10320 = vmatmul.mubr.bf16.gmra.mxu0 %v9006
    %v10321 = vpop.f32.mrf.mxu0
    %v10322 = vadd.f32 0.0, %v10321
    %v10323 = vpop.f32.mrf.mxu0
    %v10324 = vadd.f32 0.0, %v10323
    %v10325 = vpop.f32.mrf.mxu0
    %v10326 = vpop.f32.mrf.mxu0
    %10327 = vdwg.mxu0
    %10328 = vmatprep.subr.bf16.mxu0 %v9875
    %10329 = vmatpush1.bf16.msra.mxu0 %v9874
    %10330 = vmatprep.subr.bf16.mxu0 %v9871
    %10331 = vmatpush1.bf16.msra.mxu0 %v9870
    %10332 = vmatprep.subr.bf16.mxu0 %v9867
    %10333 = vmatpush1.bf16.msra.mxu0 %v9866
    %10334 = vmatprep.subr.bf16.mxu0 %v9863
    %10335 = vmatpush1.bf16.msra.mxu0 %v9862
    %10336 = vmatprep.subr.bf16.mxu0 %v9859
    %10337 = vmatpush1.bf16.msra.mxu0 %v9858
    %10338 = vmatprep.subr.bf16.mxu0 %v9855
    %10339 = vmatpush1.bf16.msra.mxu0 %v9854
    %10340 = vmatprep.subr.bf16.mxu0 %v9851
    %10341 = vmatpush1.bf16.msra.mxu0 %v9850
    %10342 = vmatprep.subr.bf16.mxu0 %v9847
    %10343 = vmatpush1.bf16.msra.mxu0 %v9846
    %10344 = vmatprep.subr.bf16.mxu0 %v9907
    %10345 = vmatpush2.bf16.msra.mxu0 %v9906
    %10346 = vmatprep.subr.bf16.mxu0 %v9903
    %10347 = vmatpush2.bf16.msra.mxu0 %v9902
    %10348 = vmatprep.subr.bf16.mxu0 %v9899
    %10349 = vmatpush2.bf16.msra.mxu0 %v9898
    %10350 = vmatprep.subr.bf16.mxu0 %v9895
    %10351 = vmatpush2.bf16.msra.mxu0 %v9894
    %10352 = vmatprep.subr.bf16.mxu0 %v9891
    %10353 = vmatpush2.bf16.msra.mxu0 %v9890
    %10354 = vmatprep.subr.bf16.mxu0 %v9887
    %10355 = vmatpush2.bf16.msra.mxu0 %v9886
    %10356 = vmatprep.subr.bf16.mxu0 %v9883
    %10357 = vmatpush2.bf16.msra.mxu0 %v9882
    %10358 = vmatprep.subr.bf16.mxu0 %v9879
    %10359 = vmatpush2.bf16.msra.mxu0 %v9878
    %10360 = vmatprep.mubr.bf16.mxu0 %v9009
    %10361 = vmatmul.mubr.bf16.gmra.mxu0 %v9008
    %v10362 = vpop.f32.mrf.mxu0
    %v10363 = vadd.f32 %v10322, %v10362
    %v10364 = vpop.f32.mrf.mxu0
    %v10365 = vadd.f32 %v10324, %v10364
    %v10366 = vpop.f32.mrf.mxu0
    %v10367 = vpop.f32.mrf.mxu0
    %10368 = vdwg.mxu0
    %10369 = vmatprep.subr.bf16.mxu0 %v9939
    %10370 = vmatpush1.bf16.msra.mxu0 %v9938
    %10371 = vmatprep.subr.bf16.mxu0 %v9935
    %10372 = vmatpush1.bf16.msra.mxu0 %v9934
    %10373 = vmatprep.subr.bf16.mxu0 %v9931
    %10374 = vmatpush1.bf16.msra.mxu0 %v9930
    %10375 = vmatprep.subr.bf16.mxu0 %v9927
    %10376 = vmatpush1.bf16.msra.mxu0 %v9926
    %10377 = vmatprep.subr.bf16.mxu0 %v9923
    %10378 = vmatpush1.bf16.msra.mxu0 %v9922
    %10379 = vmatprep.subr.bf16.mxu0 %v9919
    %10380 = vmatpush1.bf16.msra.mxu0 %v9918
    %10381 = vmatprep.subr.bf16.mxu0 %v9915
    %10382 = vmatpush1.bf16.msra.mxu0 %v9914
    %10383 = vmatprep.subr.bf16.mxu0 %v9911
    %10384 = vmatpush1.bf16.msra.mxu0 %v9910
    %10385 = vmatprep.subr.bf16.mxu0 %v9971
    %10386 = vmatpush2.bf16.msra.mxu0 %v9970
    %10387 = vmatprep.subr.bf16.mxu0 %v9967
    %10388 = vmatpush2.bf16.msra.mxu0 %v9966
    %10389 = vmatprep.subr.bf16.mxu0 %v9963
    %10390 = vmatpush2.bf16.msra.mxu0 %v9962
    %10391 = vmatprep.subr.bf16.mxu0 %v9959
    %10392 = vmatpush2.bf16.msra.mxu0 %v9958
    %10393 = vmatprep.subr.bf16.mxu0 %v9955
    %10394 = vmatpush2.bf16.msra.mxu0 %v9954
    %10395 = vmatprep.subr.bf16.mxu0 %v9951
    %10396 = vmatpush2.bf16.msra.mxu0 %v9950
    %10397 = vmatprep.subr.bf16.mxu0 %v9947
    %10398 = vmatpush2.bf16.msra.mxu0 %v9946
    %10399 = vmatprep.subr.bf16.mxu0 %v9943
    %10400 = vmatpush2.bf16.msra.mxu0 %v9942
    %10401 = vmatprep.mubr.bf16.mxu0 %v9011
    %10402 = vmatmul.mubr.bf16.gmra.mxu0 %v9010
    %v10403 = vpop.f32.mrf.mxu0
    %v10404 = vadd.f32 %v10363, %v10403
    %v10405 = vpop.f32.mrf.mxu0
    %v10406 = vadd.f32 %v10365, %v10405
    %v10407 = vpop.f32.mrf.mxu0
    %v10408 = vpop.f32.mrf.mxu0
    %10409 = vdwg.mxu0
    %v10602 = vunpack.c.l.b16 %v8814
    %v10603 = vunpack.c.h.b16 %v8814
    %v10604 = vunpack.c.l.b16 %v8815
    %v10605 = vunpack.c.h.b16 %v8815
    %v10606 = vunpack.c.l.b16 %v8816
    %v10607 = vunpack.c.h.b16 %v8816
    %v10608 = vunpack.c.l.b16 %v8817
    %v10609 = vunpack.c.h.b16 %v8817
    %v10610 = vunpack.c.l.b16 %v8818
    %v10611 = vunpack.c.h.b16 %v8818
    %v10612 = vunpack.c.l.b16 %v8819
    %v10613 = vunpack.c.h.b16 %v8819
    %v10614 = vunpack.c.l.b16 %v8820
    %v10615 = vunpack.c.h.b16 %v8820
    %v10616 = vunpack.c.l.b16 %v8821
    %v10617 = vunpack.c.h.b16 %v8821
    %v10618 = vunpack.c.l.b16 %v8822
    %v10619 = vunpack.c.h.b16 %v8822
    %v10620 = vunpack.c.l.b16 %v8823
    %v10621 = vunpack.c.h.b16 %v8823
    %v10622 = vunpack.c.l.b16 %v8824
    %v10623 = vunpack.c.h.b16 %v8824
    %v10624 = vunpack.c.l.b16 %v8825
    %v10625 = vunpack.c.h.b16 %v8825
    %v10626 = vunpack.c.l.b16 %v8826
    %v10627 = vunpack.c.h.b16 %v8826
    %v10628 = vunpack.c.l.b16 %v8827
    %v10629 = vunpack.c.h.b16 %v8827
    %v10630 = vunpack.c.l.b16 %v8828
    %v10631 = vunpack.c.h.b16 %v8828
    %v10632 = vunpack.c.l.b16 %v8829
    %v10633 = vunpack.c.h.b16 %v8829
    %v10634 = vunpack.c.l.b16 %v8830
    %v10635 = vunpack.c.h.b16 %v8830
    %v10636 = vunpack.c.l.b16 %v8831
    %v10637 = vunpack.c.h.b16 %v8831
    %v10638 = vunpack.c.l.b16 %v8832
    %v10639 = vunpack.c.h.b16 %v8832
    %v10640 = vunpack.c.l.b16 %v8833
    %v10641 = vunpack.c.h.b16 %v8833
    %v10642 = vunpack.c.l.b16 %v8834
    %v10643 = vunpack.c.h.b16 %v8834
    %v10644 = vunpack.c.l.b16 %v8835
    %v10645 = vunpack.c.h.b16 %v8835
    %v10646 = vunpack.c.l.b16 %v8836
    %v10647 = vunpack.c.h.b16 %v8836
    %v10648 = vunpack.c.l.b16 %v8837
    %v10649 = vunpack.c.h.b16 %v8837
    %v10650 = vunpack.c.l.b16 %v8838
    %v10651 = vunpack.c.h.b16 %v8838
    %v10652 = vunpack.c.l.b16 %v8839
    %v10653 = vunpack.c.h.b16 %v8839
    %v10654 = vunpack.c.l.b16 %v8840
    %v10655 = vunpack.c.h.b16 %v8840
    %v10656 = vunpack.c.l.b16 %v8841
    %v10657 = vunpack.c.h.b16 %v8841
    %v10658 = vunpack.c.l.b16 %v8842
    %v10659 = vunpack.c.h.b16 %v8842
    %v10660 = vunpack.c.l.b16 %v8843
    %v10661 = vunpack.c.h.b16 %v8843
    %v10662 = vunpack.c.l.b16 %v8844
    %v10663 = vunpack.c.h.b16 %v8844
    %v10664 = vunpack.c.l.b16 %v8845
    %v10665 = vunpack.c.h.b16 %v8845
    %v10666 = vunpack.c.l.b16 %v8846
    %v10667 = vunpack.c.h.b16 %v8846
    %v10668 = vunpack.c.l.b16 %v8847
    %v10669 = vunpack.c.h.b16 %v8847
    %v10670 = vunpack.c.l.b16 %v8848
    %v10671 = vunpack.c.h.b16 %v8848
    %v10672 = vunpack.c.l.b16 %v8849
    %v10673 = vunpack.c.h.b16 %v8849
    %v10674 = vunpack.c.l.b16 %v8850
    %v10675 = vunpack.c.h.b16 %v8850
    %v10676 = vunpack.c.l.b16 %v8851
    %v10677 = vunpack.c.h.b16 %v8851
    %v10678 = vunpack.c.l.b16 %v8852
    %v10679 = vunpack.c.h.b16 %v8852
    %v10680 = vunpack.c.l.b16 %v8853
    %v10681 = vunpack.c.h.b16 %v8853
    %v10682 = vunpack.c.l.b16 %v8854
    %v10683 = vunpack.c.h.b16 %v8854
    %v10684 = vunpack.c.l.b16 %v8855
    %v10685 = vunpack.c.h.b16 %v8855
    %v10686 = vunpack.c.l.b16 %v8856
    %v10687 = vunpack.c.h.b16 %v8856
    %v10688 = vunpack.c.l.b16 %v8857
    %v10689 = vunpack.c.h.b16 %v8857
    %v10690 = vunpack.c.l.b16 %v8858
    %v10691 = vunpack.c.h.b16 %v8858
    %v10692 = vunpack.c.l.b16 %v8859
    %v10693 = vunpack.c.h.b16 %v8859
    %v10694 = vunpack.c.l.b16 %v8860
    %v10695 = vunpack.c.h.b16 %v8860
    %v10696 = vunpack.c.l.b16 %v8861
    %v10697 = vunpack.c.h.b16 %v8861
    %v10698 = vunpack.c.l.b16 %v8862
    %v10699 = vunpack.c.h.b16 %v8862
    %v10700 = vunpack.c.l.b16 %v8863
    %v10701 = vunpack.c.h.b16 %v8863
    %v10702 = vunpack.c.l.b16 %v8864
    %v10703 = vunpack.c.h.b16 %v8864
    %v10704 = vunpack.c.l.b16 %v8865
    %v10705 = vunpack.c.h.b16 %v8865
    %v10706 = vunpack.c.l.b16 %v8866
    %v10707 = vunpack.c.h.b16 %v8866
    %v10708 = vunpack.c.l.b16 %v8867
    %v10709 = vunpack.c.h.b16 %v8867
    %v10710 = vunpack.c.l.b16 %v8868
    %v10711 = vunpack.c.h.b16 %v8868
    %v10712 = vunpack.c.l.b16 %v8869
    %v10713 = vunpack.c.h.b16 %v8869
    %v10714 = vunpack.c.l.b16 %v8870
    %v10715 = vunpack.c.h.b16 %v8870
    %v10716 = vunpack.c.l.b16 %v8871
    %v10717 = vunpack.c.h.b16 %v8871
    %v10718 = vunpack.c.l.b16 %v8872
    %v10719 = vunpack.c.h.b16 %v8872
    %v10720 = vunpack.c.l.b16 %v8873
    %v10721 = vunpack.c.h.b16 %v8873
    %v10722 = vunpack.c.l.b16 %v8874
    %v10723 = vunpack.c.h.b16 %v8874
    %v10724 = vunpack.c.l.b16 %v8875
    %v10725 = vunpack.c.h.b16 %v8875
    %v10726 = vunpack.c.l.b16 %v8876
    %v10727 = vunpack.c.h.b16 %v8876
    %v10728 = vunpack.c.l.b16 %v8877
    %v10729 = vunpack.c.h.b16 %v8877
    %v10730 = vunpack.c.l.b16 %v8878
    %v10731 = vunpack.c.h.b16 %v8878
    %v10732 = vunpack.c.l.b16 %v8879
    %v10733 = vunpack.c.h.b16 %v8879
    %v10734 = vunpack.c.l.b16 %v8880
    %v10735 = vunpack.c.h.b16 %v8880
    %v10736 = vunpack.c.l.b16 %v8881
    %v10737 = vunpack.c.h.b16 %v8881
    %v10738 = vunpack.c.l.b16 %v8882
    %v10739 = vunpack.c.h.b16 %v8882
    %v10740 = vunpack.c.l.b16 %v8883
    %v10741 = vunpack.c.h.b16 %v8883
    %v10742 = vunpack.c.l.b16 %v8884
    %v10743 = vunpack.c.h.b16 %v8884
    %v10744 = vunpack.c.l.b16 %v8885
    %v10745 = vunpack.c.h.b16 %v8885
    %v10746 = vunpack.c.l.b16 %v8886
    %v10747 = vunpack.c.h.b16 %v8886
    %v10748 = vunpack.c.l.b16 %v8887
    %v10749 = vunpack.c.h.b16 %v8887
    %v10750 = vunpack.c.l.b16 %v8888
    %v10751 = vunpack.c.h.b16 %v8888
    %v10752 = vunpack.c.l.b16 %v8889
    %v10753 = vunpack.c.h.b16 %v8889
    %v10754 = vunpack.c.l.b16 %v8890
    %v10755 = vunpack.c.h.b16 %v8890
    %v10756 = vunpack.c.l.b16 %v8891
    %v10757 = vunpack.c.h.b16 %v8891
    %v10758 = vunpack.c.l.b16 %v8892
    %v10759 = vunpack.c.h.b16 %v8892
    %v10760 = vunpack.c.l.b16 %v8893
    %v10761 = vunpack.c.h.b16 %v8893
    %v10762 = vunpack.c.l.b16 %v8894
    %v10763 = vunpack.c.h.b16 %v8894
    %v10764 = vunpack.c.l.b16 %v8895
    %v10765 = vunpack.c.h.b16 %v8895
    %v10766 = vunpack.c.l.b16 %v8896
    %v10767 = vunpack.c.h.b16 %v8896
    %v10768 = vunpack.c.l.b16 %v8897
    %v10769 = vunpack.c.h.b16 %v8897
    %v10770 = vunpack.c.l.b16 %v8898
    %v10771 = vunpack.c.h.b16 %v8898
    %v10772 = vunpack.c.l.b16 %v8899
    %v10773 = vunpack.c.h.b16 %v8899
    %v10774 = vunpack.c.l.b16 %v8900
    %v10775 = vunpack.c.h.b16 %v8900
    %v10776 = vunpack.c.l.b16 %v8901
    %v10777 = vunpack.c.h.b16 %v8901
    %v10778 = vunpack.c.l.b16 %v8902
    %v10779 = vunpack.c.h.b16 %v8902
    %v10780 = vunpack.c.l.b16 %v8903
    %v10781 = vunpack.c.h.b16 %v8903
    %v10782 = vunpack.c.l.b16 %v8904
    %v10783 = vunpack.c.h.b16 %v8904
    %v10784 = vunpack.c.l.b16 %v8905
    %v10785 = vunpack.c.h.b16 %v8905
    %v10786 = vunpack.c.l.b16 %v8906
    %v10787 = vunpack.c.h.b16 %v8906
    %v10788 = vunpack.c.l.b16 %v8907
    %v10789 = vunpack.c.h.b16 %v8907
    %v10790 = vunpack.c.l.b16 %v8908
    %v10791 = vunpack.c.h.b16 %v8908
    %v10792 = vunpack.c.l.b16 %v8909
    %v10793 = vunpack.c.h.b16 %v8909
    %v10794 = vunpack.c.l.b16 %v8910
    %v10795 = vunpack.c.h.b16 %v8910
    %v10796 = vunpack.c.l.b16 %v8911
    %v10797 = vunpack.c.h.b16 %v8911
    %v10798 = vunpack.c.l.b16 %v8912
    %v10799 = vunpack.c.h.b16 %v8912
    %v10800 = vunpack.c.l.b16 %v8913
    %v10801 = vunpack.c.h.b16 %v8913
    %v10802 = vunpack.c.l.b16 %v8914
    %v10803 = vunpack.c.h.b16 %v8914
    %v10804 = vunpack.c.l.b16 %v8915
    %v10805 = vunpack.c.h.b16 %v8915
    %v10806 = vunpack.c.l.b16 %v8916
    %v10807 = vunpack.c.h.b16 %v8916
    %v10808 = vunpack.c.l.b16 %v8917
    %v10809 = vunpack.c.h.b16 %v8917
    %v10810 = vunpack.c.l.b16 %v8918
    %v10811 = vunpack.c.h.b16 %v8918
    %v10812 = vunpack.c.l.b16 %v8919
    %v10813 = vunpack.c.h.b16 %v8919
    %v10814 = vunpack.c.l.b16 %v8920
    %v10815 = vunpack.c.h.b16 %v8920
    %v10816 = vunpack.c.l.b16 %v8921
    %v10817 = vunpack.c.h.b16 %v8921
    %v10818 = vunpack.c.l.b16 %v8922
    %v10819 = vunpack.c.h.b16 %v8922
    %v10820 = vunpack.c.l.b16 %v8923
    %v10821 = vunpack.c.h.b16 %v8923
    %v10822 = vunpack.c.l.b16 %v8924
    %v10823 = vunpack.c.h.b16 %v8924
    %v10824 = vunpack.c.l.b16 %v8925
    %v10825 = vunpack.c.h.b16 %v8925
    %v10826 = vunpack.c.l.b16 %v8926
    %v10827 = vunpack.c.h.b16 %v8926
    %v10828 = vunpack.c.l.b16 %v8927
    %v10829 = vunpack.c.h.b16 %v8927
    %v10830 = vunpack.c.l.b16 %v8928
    %v10831 = vunpack.c.h.b16 %v8928
    %v10832 = vunpack.c.l.b16 %v8929
    %v10833 = vunpack.c.h.b16 %v8929
    %v10834 = vunpack.c.l.b16 %v8930
    %v10835 = vunpack.c.h.b16 %v8930
    %v10836 = vunpack.c.l.b16 %v8931
    %v10837 = vunpack.c.h.b16 %v8931
    %v10838 = vunpack.c.l.b16 %v8932
    %v10839 = vunpack.c.h.b16 %v8932
    %v10840 = vunpack.c.l.b16 %v8933
    %v10841 = vunpack.c.h.b16 %v8933
    %v10842 = vunpack.c.l.b16 %v8934
    %v10843 = vunpack.c.h.b16 %v8934
    %v10844 = vunpack.c.l.b16 %v8935
    %v10845 = vunpack.c.h.b16 %v8935
    %v10846 = vunpack.c.l.b16 %v8936
    %v10847 = vunpack.c.h.b16 %v8936
    %v10848 = vunpack.c.l.b16 %v8937
    %v10849 = vunpack.c.h.b16 %v8937
    %v10850 = vunpack.c.l.b16 %v8938
    %v10851 = vunpack.c.h.b16 %v8938
    %v10852 = vunpack.c.l.b16 %v8939
    %v10853 = vunpack.c.h.b16 %v8939
    %v10854 = vunpack.c.l.b16 %v8940
    %v10855 = vunpack.c.h.b16 %v8940
    %v10856 = vunpack.c.l.b16 %v8941
    %v10857 = vunpack.c.h.b16 %v8941
    %v10858 = vunpack.c.l.b16 %v8942
    %v10859 = vunpack.c.h.b16 %v8942
    %v10860 = vunpack.c.l.b16 %v8943
    %v10861 = vunpack.c.h.b16 %v8943
    %v10862 = vunpack.c.l.b16 %v8944
    %v10863 = vunpack.c.h.b16 %v8944
    %v10864 = vunpack.c.l.b16 %v8945
    %v10865 = vunpack.c.h.b16 %v8945
    %v10866 = vunpack.c.l.b16 %v8946
    %v10867 = vunpack.c.h.b16 %v8946
    %v10868 = vunpack.c.l.b16 %v8947
    %v10869 = vunpack.c.h.b16 %v8947
    %v10870 = vunpack.c.l.b16 %v8948
    %v10871 = vunpack.c.h.b16 %v8948
    %v10872 = vunpack.c.l.b16 %v8949
    %v10873 = vunpack.c.h.b16 %v8949
    %v10874 = vunpack.c.l.b16 %v8950
    %v10875 = vunpack.c.h.b16 %v8950
    %v10876 = vunpack.c.l.b16 %v8951
    %v10877 = vunpack.c.h.b16 %v8951
    %v10878 = vunpack.c.l.b16 %v8952
    %v10879 = vunpack.c.h.b16 %v8952
    %v10880 = vunpack.c.l.b16 %v8953
    %v10881 = vunpack.c.h.b16 %v8953
    %v10882 = vunpack.c.l.b16 %v8954
    %v10883 = vunpack.c.h.b16 %v8954
    %v10884 = vunpack.c.l.b16 %v8955
    %v10885 = vunpack.c.h.b16 %v8955
    %v10886 = vunpack.c.l.b16 %v8956
    %v10887 = vunpack.c.h.b16 %v8956
    %v10888 = vunpack.c.l.b16 %v8957
    %v10889 = vunpack.c.h.b16 %v8957
    %v10890 = vunpack.c.l.b16 %v8958
    %v10891 = vunpack.c.h.b16 %v8958
    %v10892 = vunpack.c.l.b16 %v8959
    %v10893 = vunpack.c.h.b16 %v8959
    %v10894 = vunpack.c.l.b16 %v8960
    %v10895 = vunpack.c.h.b16 %v8960
    %v10896 = vunpack.c.l.b16 %v8961
    %v10897 = vunpack.c.h.b16 %v8961
    %v10898 = vunpack.c.l.b16 %v8962
    %v10899 = vunpack.c.h.b16 %v8962
    %v10900 = vunpack.c.l.b16 %v8963
    %v10901 = vunpack.c.h.b16 %v8963
    %v10902 = vunpack.c.l.b16 %v8964
    %v10903 = vunpack.c.h.b16 %v8964
    %v10904 = vunpack.c.l.b16 %v8965
    %v10905 = vunpack.c.h.b16 %v8965
    %v10906 = vunpack.c.l.b16 %v8966
    %v10907 = vunpack.c.h.b16 %v8966
    %v10908 = vunpack.c.l.b16 %v8967
    %v10909 = vunpack.c.h.b16 %v8967
    %v10910 = vunpack.c.l.b16 %v8968
    %v10911 = vunpack.c.h.b16 %v8968
    %v10912 = vunpack.c.l.b16 %v8969
    %v10913 = vunpack.c.h.b16 %v8969
    %v10914 = vunpack.c.l.b16 %v8970
    %v10915 = vunpack.c.h.b16 %v8970
    %v10916 = vunpack.c.l.b16 %v8971
    %v10917 = vunpack.c.h.b16 %v8971
    %v10918 = vunpack.c.l.b16 %v8972
    %v10919 = vunpack.c.h.b16 %v8972
    %v10920 = vunpack.c.l.b16 %v8973
    %v10921 = vunpack.c.h.b16 %v8973
    %v10922 = vunpack.c.l.b16 %v8974
    %v10923 = vunpack.c.h.b16 %v8974
    %v10924 = vunpack.c.l.b16 %v8975
    %v10925 = vunpack.c.h.b16 %v8975
    %v10926 = vunpack.c.l.b16 %v8976
    %v10927 = vunpack.c.h.b16 %v8976
    %v10928 = vunpack.c.l.b16 %v8977
    %v10929 = vunpack.c.h.b16 %v8977
    %v10930 = vunpack.c.l.b16 %v8978
    %v10931 = vunpack.c.h.b16 %v8978
    %v10932 = vunpack.c.l.b16 %v8979
    %v10933 = vunpack.c.h.b16 %v8979
    %v10934 = vunpack.c.l.b16 %v8980
    %v10935 = vunpack.c.h.b16 %v8980
    %v10936 = vunpack.c.l.b16 %v8981
    %v10937 = vunpack.c.h.b16 %v8981
    %v10938 = vunpack.c.l.b16 %v8982
    %v10939 = vunpack.c.h.b16 %v8982
    %v10940 = vunpack.c.l.b16 %v8983
    %v10941 = vunpack.c.h.b16 %v8983
    %v10942 = vunpack.c.l.b16 %v8984
    %v10943 = vunpack.c.h.b16 %v8984
    %v10944 = vunpack.c.l.b16 %v8985
    %v10945 = vunpack.c.h.b16 %v8985
    %v10946 = vunpack.c.l.b16 %v8986
    %v10947 = vunpack.c.h.b16 %v8986
    %v10948 = vunpack.c.l.b16 %v8987
    %v10949 = vunpack.c.h.b16 %v8987
    %v10950 = vunpack.c.l.b16 %v8988
    %v10951 = vunpack.c.h.b16 %v8988
    %v10952 = vunpack.c.l.b16 %v8989
    %v10953 = vunpack.c.h.b16 %v8989
    %v10954 = vunpack.c.l.b16 %v8990
    %v10955 = vunpack.c.h.b16 %v8990
    %v10956 = vunpack.c.l.b16 %v8991
    %v10957 = vunpack.c.h.b16 %v8991
    %v10958 = vunpack.c.l.b16 %v8992
    %v10959 = vunpack.c.h.b16 %v8992
    %v10960 = vunpack.c.l.b16 %v8993
    %v10961 = vunpack.c.h.b16 %v8993
    %v10962 = vunpack.c.l.b16 %v8994
    %v10963 = vunpack.c.h.b16 %v8994
    %v10964 = vunpack.c.l.b16 %v8995
    %v10965 = vunpack.c.h.b16 %v8995
    %v10966 = vunpack.c.l.b16 %v8996
    %v10967 = vunpack.c.h.b16 %v8996
    %v10968 = vunpack.c.l.b16 %v8997
    %v10969 = vunpack.c.h.b16 %v8997
    %v10970 = vunpack.c.l.b16 %v8998
    %v10971 = vunpack.c.h.b16 %v8998
    %v10972 = vunpack.c.l.b16 %v8999
    %v10973 = vunpack.c.h.b16 %v8999
    %v10974 = vunpack.c.l.b16 %v9000
    %v10975 = vunpack.c.h.b16 %v9000
    %v10976 = vunpack.c.l.b16 %v9001
    %v10977 = vunpack.c.h.b16 %v9001
    %v10978 = vunpack.c.l.b16 %v9002
    %v10979 = vunpack.c.h.b16 %v9002
    %v10980 = vunpack.c.l.b16 %v9003
    %v10981 = vunpack.c.h.b16 %v9003
    %v10982 = vunpack.c.l.b16 %v9004
    %v10983 = vunpack.c.h.b16 %v9004
    %v10984 = vunpack.c.l.b16 %v9005
    %v10985 = vunpack.c.h.b16 %v9005
    %v10986 = vpack.c.b16 %v10606, %v10602
    %v10987 = vpack.c.b16 %v10607, %v10603
    %v10988 = vpack.c.b16 %v10608, %v10604
    %v10989 = vpack.c.b16 %v10609, %v10605
    %v10990 = vpack.c.b16 %v10614, %v10610
    %v10991 = vpack.c.b16 %v10615, %v10611
    %v10992 = vpack.c.b16 %v10616, %v10612
    %v10993 = vpack.c.b16 %v10617, %v10613
    %v10994 = vpack.c.b16 %v10622, %v10618
    %v10995 = vpack.c.b16 %v10623, %v10619
    %v10996 = vpack.c.b16 %v10624, %v10620
    %v10997 = vpack.c.b16 %v10625, %v10621
    %v10998 = vpack.c.b16 %v10630, %v10626
    %v10999 = vpack.c.b16 %v10631, %v10627
    %v11000 = vpack.c.b16 %v10632, %v10628
    %v11001 = vpack.c.b16 %v10633, %v10629
    %v11002 = vpack.c.b16 %v10638, %v10634
    %v11003 = vpack.c.b16 %v10639, %v10635
    %v11004 = vpack.c.b16 %v10640, %v10636
    %v11005 = vpack.c.b16 %v10641, %v10637
    %v11006 = vpack.c.b16 %v10646, %v10642
    %v11007 = vpack.c.b16 %v10647, %v10643
    %v11008 = vpack.c.b16 %v10648, %v10644
    %v11009 = vpack.c.b16 %v10649, %v10645
    %v11010 = vpack.c.b16 %v10654, %v10650
    %v11011 = vpack.c.b16 %v10655, %v10651
    %v11012 = vpack.c.b16 %v10656, %v10652
    %v11013 = vpack.c.b16 %v10657, %v10653
    %v11014 = vpack.c.b16 %v10662, %v10658
    %v11015 = vpack.c.b16 %v10663, %v10659
    %v11016 = vpack.c.b16 %v10664, %v10660
    %v11017 = vpack.c.b16 %v10665, %v10661
    %v11018 = vpack.c.b16 %v10670, %v10666
    %v11019 = vpack.c.b16 %v10671, %v10667
    %v11020 = vpack.c.b16 %v10672, %v10668
    %v11021 = vpack.c.b16 %v10673, %v10669
    %v11022 = vpack.c.b16 %v10678, %v10674
    %v11023 = vpack.c.b16 %v10679, %v10675
    %v11024 = vpack.c.b16 %v10680, %v10676
    %v11025 = vpack.c.b16 %v10681, %v10677
    %v11026 = vpack.c.b16 %v10686, %v10682
    %v11027 = vpack.c.b16 %v10687, %v10683
    %v11028 = vpack.c.b16 %v10688, %v10684
    %v11029 = vpack.c.b16 %v10689, %v10685
    %v11030 = vpack.c.b16 %v10694, %v10690
    %v11031 = vpack.c.b16 %v10695, %v10691
    %v11032 = vpack.c.b16 %v10696, %v10692
    %v11033 = vpack.c.b16 %v10697, %v10693
    %v11034 = vpack.c.b16 %v10702, %v10698
    %v11035 = vpack.c.b16 %v10703, %v10699
    %v11036 = vpack.c.b16 %v10704, %v10700
    %v11037 = vpack.c.b16 %v10705, %v10701
    %v11038 = vpack.c.b16 %v10710, %v10706
    %v11039 = vpack.c.b16 %v10711, %v10707
    %v11040 = vpack.c.b16 %v10712, %v10708
    %v11041 = vpack.c.b16 %v10713, %v10709
    %v11042 = vpack.c.b16 %v10718, %v10714
    %v11043 = vpack.c.b16 %v10719, %v10715
    %v11044 = vpack.c.b16 %v10720, %v10716
    %v11045 = vpack.c.b16 %v10721, %v10717
    %v11046 = vpack.c.b16 %v10726, %v10722
    %v11047 = vpack.c.b16 %v10727, %v10723
    %v11048 = vpack.c.b16 %v10728, %v10724
    %v11049 = vpack.c.b16 %v10729, %v10725
    %v11050 = vpack.c.b16 %v10734, %v10730
    %v11051 = vpack.c.b16 %v10735, %v10731
    %v11052 = vpack.c.b16 %v10736, %v10732
    %v11053 = vpack.c.b16 %v10737, %v10733
    %v11054 = vpack.c.b16 %v10742, %v10738
    %v11055 = vpack.c.b16 %v10743, %v10739
    %v11056 = vpack.c.b16 %v10744, %v10740
    %v11057 = vpack.c.b16 %v10745, %v10741
    %v11058 = vpack.c.b16 %v10750, %v10746
    %v11059 = vpack.c.b16 %v10751, %v10747
    %v11060 = vpack.c.b16 %v10752, %v10748
    %v11061 = vpack.c.b16 %v10753, %v10749
    %v11062 = vpack.c.b16 %v10758, %v10754
    %v11063 = vpack.c.b16 %v10759, %v10755
    %v11064 = vpack.c.b16 %v10760, %v10756
    %v11065 = vpack.c.b16 %v10761, %v10757
    %v11066 = vpack.c.b16 %v10766, %v10762
    %v11067 = vpack.c.b16 %v10767, %v10763
    %v11068 = vpack.c.b16 %v10768, %v10764
    %v11069 = vpack.c.b16 %v10769, %v10765
    %v11070 = vpack.c.b16 %v10774, %v10770
    %v11071 = vpack.c.b16 %v10775, %v10771
    %v11072 = vpack.c.b16 %v10776, %v10772
    %v11073 = vpack.c.b16 %v10777, %v10773
    %v11074 = vpack.c.b16 %v10782, %v10778
    %v11075 = vpack.c.b16 %v10783, %v10779
    %v11076 = vpack.c.b16 %v10784, %v10780
    %v11077 = vpack.c.b16 %v10785, %v10781
    %v11078 = vpack.c.b16 %v10790, %v10786
    %v11079 = vpack.c.b16 %v10791, %v10787
    %v11080 = vpack.c.b16 %v10792, %v10788
    %v11081 = vpack.c.b16 %v10793, %v10789
    %v11082 = vpack.c.b16 %v10798, %v10794
    %v11083 = vpack.c.b16 %v10799, %v10795
    %v11084 = vpack.c.b16 %v10800, %v10796
    %v11085 = vpack.c.b16 %v10801, %v10797
    %v11086 = vpack.c.b16 %v10806, %v10802
    %v11087 = vpack.c.b16 %v10807, %v10803
    %v11088 = vpack.c.b16 %v10808, %v10804
    %v11089 = vpack.c.b16 %v10809, %v10805
    %v11090 = vpack.c.b16 %v10814, %v10810
    %v11091 = vpack.c.b16 %v10815, %v10811
    %v11092 = vpack.c.b16 %v10816, %v10812
    %v11093 = vpack.c.b16 %v10817, %v10813
    %v11094 = vpack.c.b16 %v10822, %v10818
    %v11095 = vpack.c.b16 %v10823, %v10819
    %v11096 = vpack.c.b16 %v10824, %v10820
    %v11097 = vpack.c.b16 %v10825, %v10821
    %v11098 = vpack.c.b16 %v10830, %v10826
    %v11099 = vpack.c.b16 %v10831, %v10827
    %v11100 = vpack.c.b16 %v10832, %v10828
    %v11101 = vpack.c.b16 %v10833, %v10829
    %v11102 = vpack.c.b16 %v10838, %v10834
    %v11103 = vpack.c.b16 %v10839, %v10835
    %v11104 = vpack.c.b16 %v10840, %v10836
    %v11105 = vpack.c.b16 %v10841, %v10837
    %v11106 = vpack.c.b16 %v10846, %v10842
    %v11107 = vpack.c.b16 %v10847, %v10843
    %v11108 = vpack.c.b16 %v10848, %v10844
    %v11109 = vpack.c.b16 %v10849, %v10845
    %v11110 = vpack.c.b16 %v10854, %v10850
    %v11111 = vpack.c.b16 %v10855, %v10851
    %v11112 = vpack.c.b16 %v10856, %v10852
    %v11113 = vpack.c.b16 %v10857, %v10853
    %v11114 = vpack.c.b16 %v10862, %v10858
    %v11115 = vpack.c.b16 %v10863, %v10859
    %v11116 = vpack.c.b16 %v10864, %v10860
    %v11117 = vpack.c.b16 %v10865, %v10861
    %v11118 = vpack.c.b16 %v10870, %v10866
    %v11119 = vpack.c.b16 %v10871, %v10867
    %v11120 = vpack.c.b16 %v10872, %v10868
    %v11121 = vpack.c.b16 %v10873, %v10869
    %v11122 = vpack.c.b16 %v10878, %v10874
    %v11123 = vpack.c.b16 %v10879, %v10875
    %v11124 = vpack.c.b16 %v10880, %v10876
    %v11125 = vpack.c.b16 %v10881, %v10877
    %v11126 = vpack.c.b16 %v10886, %v10882
    %v11127 = vpack.c.b16 %v10887, %v10883
    %v11128 = vpack.c.b16 %v10888, %v10884
    %v11129 = vpack.c.b16 %v10889, %v10885
    %v11130 = vpack.c.b16 %v10894, %v10890
    %v11131 = vpack.c.b16 %v10895, %v10891
    %v11132 = vpack.c.b16 %v10896, %v10892
    %v11133 = vpack.c.b16 %v10897, %v10893
    %v11134 = vpack.c.b16 %v10902, %v10898
    %v11135 = vpack.c.b16 %v10903, %v10899
    %v11136 = vpack.c.b16 %v10904, %v10900
    %v11137 = vpack.c.b16 %v10905, %v10901
    %v11138 = vpack.c.b16 %v10910, %v10906
    %v11139 = vpack.c.b16 %v10911, %v10907
    %v11140 = vpack.c.b16 %v10912, %v10908
    %v11141 = vpack.c.b16 %v10913, %v10909
    %v11142 = vpack.c.b16 %v10918, %v10914
    %v11143 = vpack.c.b16 %v10919, %v10915
    %v11144 = vpack.c.b16 %v10920, %v10916
    %v11145 = vpack.c.b16 %v10921, %v10917
    %v11146 = vpack.c.b16 %v10926, %v10922
    %v11147 = vpack.c.b16 %v10927, %v10923
    %v11148 = vpack.c.b16 %v10928, %v10924
    %v11149 = vpack.c.b16 %v10929, %v10925
    %v11150 = vpack.c.b16 %v10934, %v10930
    %v11151 = vpack.c.b16 %v10935, %v10931
    %v11152 = vpack.c.b16 %v10936, %v10932
    %v11153 = vpack.c.b16 %v10937, %v10933
    %v11154 = vpack.c.b16 %v10942, %v10938
    %v11155 = vpack.c.b16 %v10943, %v10939
    %v11156 = vpack.c.b16 %v10944, %v10940
    %v11157 = vpack.c.b16 %v10945, %v10941
    %v11158 = vpack.c.b16 %v10950, %v10946
    %v11159 = vpack.c.b16 %v10951, %v10947
    %v11160 = vpack.c.b16 %v10952, %v10948
    %v11161 = vpack.c.b16 %v10953, %v10949
    %v11162 = vpack.c.b16 %v10958, %v10954
    %v11163 = vpack.c.b16 %v10959, %v10955
    %v11164 = vpack.c.b16 %v10960, %v10956
    %v11165 = vpack.c.b16 %v10961, %v10957
    %v11166 = vpack.c.b16 %v10966, %v10962
    %v11167 = vpack.c.b16 %v10967, %v10963
    %v11168 = vpack.c.b16 %v10968, %v10964
    %v11169 = vpack.c.b16 %v10969, %v10965
    %v11170 = vpack.c.b16 %v10974, %v10970
    %v11171 = vpack.c.b16 %v10975, %v10971
    %v11172 = vpack.c.b16 %v10976, %v10972
    %v11173 = vpack.c.b16 %v10977, %v10973
    %v11174 = vpack.c.b16 %v10982, %v10978
    %v11175 = vpack.c.b16 %v10983, %v10979
    %v11176 = vpack.c.b16 %v10984, %v10980
    %v11177 = vpack.c.b16 %v10985, %v10981
    %11370 = vmatprep.subr.bf16.mxu0 %v11015
    %11371 = vmatpush1.bf16.msra.mxu0 %v11014
    %11372 = vmatprep.subr.bf16.mxu0 %v11011
    %11373 = vmatpush1.bf16.msra.mxu0 %v11010
    %11374 = vmatprep.subr.bf16.mxu0 %v11007
    %11375 = vmatpush1.bf16.msra.mxu0 %v11006
    %11376 = vmatprep.subr.bf16.mxu0 %v11003
    %11377 = vmatpush1.bf16.msra.mxu0 %v11002
    %11378 = vmatprep.subr.bf16.mxu0 %v10999
    %11379 = vmatpush1.bf16.msra.mxu0 %v10998
    %11380 = vmatprep.subr.bf16.mxu0 %v10995
    %11381 = vmatpush1.bf16.msra.mxu0 %v10994
    %11382 = vmatprep.subr.bf16.mxu0 %v10991
    %11383 = vmatpush1.bf16.msra.mxu0 %v10990
    %11384 = vmatprep.subr.bf16.mxu0 %v10987
    %11385 = vmatpush1.bf16.msra.mxu0 %v10986
    %11386 = vmatprep.subr.bf16.mxu0 %v11047
    %11387 = vmatpush2.bf16.msra.mxu0 %v11046
    %11388 = vmatprep.subr.bf16.mxu0 %v11043
    %11389 = vmatpush2.bf16.msra.mxu0 %v11042
    %11390 = vmatprep.subr.bf16.mxu0 %v11039
    %11391 = vmatpush2.bf16.msra.mxu0 %v11038
    %11392 = vmatprep.subr.bf16.mxu0 %v11035
    %11393 = vmatpush2.bf16.msra.mxu0 %v11034
    %11394 = vmatprep.subr.bf16.mxu0 %v11031
    %11395 = vmatpush2.bf16.msra.mxu0 %v11030
    %11396 = vmatprep.subr.bf16.mxu0 %v11027
    %11397 = vmatpush2.bf16.msra.mxu0 %v11026
    %11398 = vmatprep.subr.bf16.mxu0 %v11023
    %11399 = vmatpush2.bf16.msra.mxu0 %v11022
    %11400 = vmatprep.subr.bf16.mxu0 %v11019
    %11401 = vmatpush2.bf16.msra.mxu0 %v11018
    %11402 = vmatprep.mubr.bf16.mxu0 %v8809
    %11403 = vmatmul.mubr.bf16.gmra.mxu0 %v8808
    %v11404 = vpop.f32.mrf.mxu0
    %v11405 = vadd.f32 %v10281, %v11404
    %v11406 = vpop.f32.mrf.mxu0
    %v11407 = vadd.f32 %v10283, %v11406
    %v11408 = vpop.f32.mrf.mxu0
    %v11409 = vpop.f32.mrf.mxu0
    %11410 = vdwg.mxu0
    %11411 = vmatprep.subr.bf16.mxu0 %v11079
    %11412 = vmatpush1.bf16.msra.mxu0 %v11078
    %11413 = vmatprep.subr.bf16.mxu0 %v11075
    %11414 = vmatpush1.bf16.msra.mxu0 %v11074
    %11415 = vmatprep.subr.bf16.mxu0 %v11071
    %11416 = vmatpush1.bf16.msra.mxu0 %v11070
    %11417 = vmatprep.subr.bf16.mxu0 %v11067
    %11418 = vmatpush1.bf16.msra.mxu0 %v11066
    %11419 = vmatprep.subr.bf16.mxu0 %v11063
    %11420 = vmatpush1.bf16.msra.mxu0 %v11062
    %11421 = vmatprep.subr.bf16.mxu0 %v11059
    %11422 = vmatpush1.bf16.msra.mxu0 %v11058
    %11423 = vmatprep.subr.bf16.mxu0 %v11055
    %11424 = vmatpush1.bf16.msra.mxu0 %v11054
    %11425 = vmatprep.subr.bf16.mxu0 %v11051
    %11426 = vmatpush1.bf16.msra.mxu0 %v11050
    %11427 = vmatprep.subr.bf16.mxu0 %v11111
    %11428 = vmatpush2.bf16.msra.mxu0 %v11110
    %11429 = vmatprep.subr.bf16.mxu0 %v11107
    %11430 = vmatpush2.bf16.msra.mxu0 %v11106
    %11431 = vmatprep.subr.bf16.mxu0 %v11103
    %11432 = vmatpush2.bf16.msra.mxu0 %v11102
    %11433 = vmatprep.subr.bf16.mxu0 %v11099
    %11434 = vmatpush2.bf16.msra.mxu0 %v11098
    %11435 = vmatprep.subr.bf16.mxu0 %v11095
    %11436 = vmatpush2.bf16.msra.mxu0 %v11094
    %11437 = vmatprep.subr.bf16.mxu0 %v11091
    %11438 = vmatpush2.bf16.msra.mxu0 %v11090
    %11439 = vmatprep.subr.bf16.mxu0 %v11087
    %11440 = vmatpush2.bf16.msra.mxu0 %v11086
    %11441 = vmatprep.subr.bf16.mxu0 %v11083
    %11442 = vmatpush2.bf16.msra.mxu0 %v11082
    %11443 = vmatprep.mubr.bf16.mxu0 %v8811
    %11444 = vmatmul.mubr.bf16.gmra.mxu0 %v8810
    %v11445 = vpop.f32.mrf.mxu0
    %v11446 = vadd.f32 %v11405, %v11445
    %v11447 = vpop.f32.mrf.mxu0
    %v11448 = vadd.f32 %v11407, %v11447
    %v11449 = vpop.f32.mrf.mxu0
    %v11450 = vpop.f32.mrf.mxu0
    %11451 = vdwg.mxu0
    %11452 = vmatprep.subr.bf16.mxu0 %v11143
    %11453 = vmatpush1.bf16.msra.mxu0 %v11142
    %11454 = vmatprep.subr.bf16.mxu0 %v11139
    %11455 = vmatpush1.bf16.msra.mxu0 %v11138
    %11456 = vmatprep.subr.bf16.mxu0 %v11135
    %11457 = vmatpush1.bf16.msra.mxu0 %v11134
    %11458 = vmatprep.subr.bf16.mxu0 %v11131
    %11459 = vmatpush1.bf16.msra.mxu0 %v11130
    %11460 = vmatprep.subr.bf16.mxu0 %v11127
    %11461 = vmatpush1.bf16.msra.mxu0 %v11126
    %11462 = vmatprep.subr.bf16.mxu0 %v11123
    %11463 = vmatpush1.bf16.msra.mxu0 %v11122
    %11464 = vmatprep.subr.bf16.mxu0 %v11119
    %11465 = vmatpush1.bf16.msra.mxu0 %v11118
    %11466 = vmatprep.subr.bf16.mxu0 %v11115
    %11467 = vmatpush1.bf16.msra.mxu0 %v11114
    %11468 = vmatprep.subr.bf16.mxu0 %v11175
    %11469 = vmatpush2.bf16.msra.mxu0 %v11174
    %11470 = vmatprep.subr.bf16.mxu0 %v11171
    %11471 = vmatpush2.bf16.msra.mxu0 %v11170
    %11472 = vmatprep.subr.bf16.mxu0 %v11167
    %11473 = vmatpush2.bf16.msra.mxu0 %v11166
    %11474 = vmatprep.subr.bf16.mxu0 %v11163
    %11475 = vmatpush2.bf16.msra.mxu0 %v11162
    %11476 = vmatprep.subr.bf16.mxu0 %v11159
    %11477 = vmatpush2.bf16.msra.mxu0 %v11158
    %11478 = vmatprep.subr.bf16.mxu0 %v11155
    %11479 = vmatpush2.bf16.msra.mxu0 %v11154
    %11480 = vmatprep.subr.bf16.mxu0 %v11151
    %11481 = vmatpush2.bf16.msra.mxu0 %v11150
    %11482 = vmatprep.subr.bf16.mxu0 %v11147
    %11483 = vmatpush2.bf16.msra.mxu0 %v11146
    %11484 = vmatprep.mubr.bf16.mxu0 %v8813
    %11485 = vmatmul.mubr.bf16.gmra.mxu0 %v8812
    %v11486 = vpop.f32.mrf.mxu0
    %v11487 = vadd.f32 %v11446, %v11486
    %v11488 = vpop.f32.mrf.mxu0
    %v11489 = vadd.f32 %v11448, %v11488
    %v11490 = vpop.f32.mrf.mxu0
    %v11491 = vpop.f32.mrf.mxu0
    %11492 = vdwg.mxu0
    %11493 = vmatprep.subr.bf16.mxu0 %v11017
    %11494 = vmatpush1.bf16.msra.mxu0 %v11016
    %11495 = vmatprep.subr.bf16.mxu0 %v11013
    %11496 = vmatpush1.bf16.msra.mxu0 %v11012
    %11497 = vmatprep.subr.bf16.mxu0 %v11009
    %11498 = vmatpush1.bf16.msra.mxu0 %v11008
    %11499 = vmatprep.subr.bf16.mxu0 %v11005
    %11500 = vmatpush1.bf16.msra.mxu0 %v11004
    %11501 = vmatprep.subr.bf16.mxu0 %v11001
    %11502 = vmatpush1.bf16.msra.mxu0 %v11000
    %11503 = vmatprep.subr.bf16.mxu0 %v10997
    %11504 = vmatpush1.bf16.msra.mxu0 %v10996
    %11505 = vmatprep.subr.bf16.mxu0 %v10993
    %11506 = vmatpush1.bf16.msra.mxu0 %v10992
    %11507 = vmatprep.subr.bf16.mxu0 %v10989
    %11508 = vmatpush1.bf16.msra.mxu0 %v10988
    %11509 = vmatprep.subr.bf16.mxu0 %v11049
    %11510 = vmatpush2.bf16.msra.mxu0 %v11048
    %11511 = vmatprep.subr.bf16.mxu0 %v11045
    %11512 = vmatpush2.bf16.msra.mxu0 %v11044
    %11513 = vmatprep.subr.bf16.mxu0 %v11041
    %11514 = vmatpush2.bf16.msra.mxu0 %v11040
    %11515 = vmatprep.subr.bf16.mxu0 %v11037
    %11516 = vmatpush2.bf16.msra.mxu0 %v11036
    %11517 = vmatprep.subr.bf16.mxu0 %v11033
    %11518 = vmatpush2.bf16.msra.mxu0 %v11032
    %11519 = vmatprep.subr.bf16.mxu0 %v11029
    %11520 = vmatpush2.bf16.msra.mxu0 %v11028
    %11521 = vmatprep.subr.bf16.mxu0 %v11025
    %11522 = vmatpush2.bf16.msra.mxu0 %v11024
    %11523 = vmatprep.subr.bf16.mxu0 %v11021
    %11524 = vmatpush2.bf16.msra.mxu0 %v11020
    %11525 = vmatprep.mubr.bf16.mxu0 %v8809
    %11526 = vmatmul.mubr.bf16.gmra.mxu0 %v8808
    %v11527 = vpop.f32.mrf.mxu0
    %v11528 = vadd.f32 %v10404, %v11527
    %v11529 = vpop.f32.mrf.mxu0
    %v11530 = vadd.f32 %v10406, %v11529
    %v11531 = vpop.f32.mrf.mxu0
    %v11532 = vpop.f32.mrf.mxu0
    %11533 = vdwg.mxu0
    %11534 = vmatprep.subr.bf16.mxu0 %v11081
    %11535 = vmatpush1.bf16.msra.mxu0 %v11080
    %11536 = vmatprep.subr.bf16.mxu0 %v11077
    %11537 = vmatpush1.bf16.msra.mxu0 %v11076
    %11538 = vmatprep.subr.bf16.mxu0 %v11073
    %11539 = vmatpush1.bf16.msra.mxu0 %v11072
    %11540 = vmatprep.subr.bf16.mxu0 %v11069
    %11541 = vmatpush1.bf16.msra.mxu0 %v11068
    %11542 = vmatprep.subr.bf16.mxu0 %v11065
    %11543 = vmatpush1.bf16.msra.mxu0 %v11064
    %11544 = vmatprep.subr.bf16.mxu0 %v11061
    %11545 = vmatpush1.bf16.msra.mxu0 %v11060
    %11546 = vmatprep.subr.bf16.mxu0 %v11057
    %11547 = vmatpush1.bf16.msra.mxu0 %v11056
    %11548 = vmatprep.subr.bf16.mxu0 %v11053
    %11549 = vmatpush1.bf16.msra.mxu0 %v11052
    %11550 = vmatprep.subr.bf16.mxu0 %v11113
    %11551 = vmatpush2.bf16.msra.mxu0 %v11112
    %11552 = vmatprep.subr.bf16.mxu0 %v11109
    %11553 = vmatpush2.bf16.msra.mxu0 %v11108
    %11554 = vmatprep.subr.bf16.mxu0 %v11105
    %11555 = vmatpush2.bf16.msra.mxu0 %v11104
    %11556 = vmatprep.subr.bf16.mxu0 %v11101
    %11557 = vmatpush2.bf16.msra.mxu0 %v11100
    %11558 = vmatprep.subr.bf16.mxu0 %v11097
    %11559 = vmatpush2.bf16.msra.mxu0 %v11096
    %11560 = vmatprep.subr.bf16.mxu0 %v11093
    %11561 = vmatpush2.bf16.msra.mxu0 %v11092
    %11562 = vmatprep.subr.bf16.mxu0 %v11089
    %11563 = vmatpush2.bf16.msra.mxu0 %v11088
    %11564 = vmatprep.subr.bf16.mxu0 %v11085
    %11565 = vmatpush2.bf16.msra.mxu0 %v11084
    %11566 = vmatprep.mubr.bf16.mxu0 %v8811
    %11567 = vmatmul.mubr.bf16.gmra.mxu0 %v8810
    %v11568 = vpop.f32.mrf.mxu0
    %v11569 = vadd.f32 %v11528, %v11568
    %v11570 = vpop.f32.mrf.mxu0
    %v11571 = vadd.f32 %v11530, %v11570
    %v11572 = vpop.f32.mrf.mxu0
    %v11573 = vpop.f32.mrf.mxu0
    %11574 = vdwg.mxu0
    %11575 = vmatprep.subr.bf16.mxu0 %v11145
    %11576 = vmatpush1.bf16.msra.mxu0 %v11144
    %11577 = vmatprep.subr.bf16.mxu0 %v11141
    %11578 = vmatpush1.bf16.msra.mxu0 %v11140
    %11579 = vmatprep.subr.bf16.mxu0 %v11137
    %11580 = vmatpush1.bf16.msra.mxu0 %v11136
    %11581 = vmatprep.subr.bf16.mxu0 %v11133
    %11582 = vmatpush1.bf16.msra.mxu0 %v11132
    %11583 = vmatprep.subr.bf16.mxu0 %v11129
    %11584 = vmatpush1.bf16.msra.mxu0 %v11128
    %11585 = vmatprep.subr.bf16.mxu0 %v11125
    %11586 = vmatpush1.bf16.msra.mxu0 %v11124
    %11587 = vmatprep.subr.bf16.mxu0 %v11121
    %11588 = vmatpush1.bf16.msra.mxu0 %v11120
    %11589 = vmatprep.subr.bf16.mxu0 %v11117
    %11590 = vmatpush1.bf16.msra.mxu0 %v11116
    %11591 = vmatprep.subr.bf16.mxu0 %v11177
    %11592 = vmatpush2.bf16.msra.mxu0 %v11176
    %11593 = vmatprep.subr.bf16.mxu0 %v11173
    %11594 = vmatpush2.bf16.msra.mxu0 %v11172
    %11595 = vmatprep.subr.bf16.mxu0 %v11169
    %11596 = vmatpush2.bf16.msra.mxu0 %v11168
    %11597 = vmatprep.subr.bf16.mxu0 %v11165
    %11598 = vmatpush2.bf16.msra.mxu0 %v11164
    %11599 = vmatprep.subr.bf16.mxu0 %v11161
    %11600 = vmatpush2.bf16.msra.mxu0 %v11160
    %11601 = vmatprep.subr.bf16.mxu0 %v11157
    %11602 = vmatpush2.bf16.msra.mxu0 %v11156
    %11603 = vmatprep.subr.bf16.mxu0 %v11153
    %11604 = vmatpush2.bf16.msra.mxu0 %v11152
    %11605 = vmatprep.subr.bf16.mxu0 %v11149
    %11606 = vmatpush2.bf16.msra.mxu0 %v11148
    %11607 = vmatprep.mubr.bf16.mxu0 %v8813
    %11608 = vmatmul.mubr.bf16.gmra.mxu0 %v8812
    %v11609 = vpop.f32.mrf.mxu0
    %v11610 = vadd.f32 %v11569, %v11609
    %v11611 = vpop.f32.mrf.mxu0
    %v11612 = vadd.f32 %v11571, %v11611
    %v11613 = vpop.f32.mrf.mxu0
    %v11614 = vpop.f32.mrf.mxu0
    %11615 = vdwg.mxu0
    %v11616 = vld [vmem:[#allocation19] sm:$0xf]
    %v11618 = vlaneseq
    %v11619 = vshrl.u32 %v11618, 7
    %v11620 = vsub.s32 0, %v11619
    %v11621 = vrot.slane %v11616, %v11620
    %v11622 = vlaneseq
    %v11623 = vshrl.u32 %v11622, 7
    %v11624 = vsub.s32 1, %v11623
    %v11625 = vrot.slane %v11616, %v11624
    %v11626 = vlaneseq
    %v11627 = vshrl.u32 %v11626, 7
    %v11628 = vsub.s32 2, %v11627
    %v11629 = vrot.slane %v11616, %v11628
    %v11630 = vlaneseq
    %v11631 = vshrl.u32 %v11630, 7
    %v11632 = vsub.s32 3, %v11631
    %v11633 = vrot.slane %v11616, %v11632
    %v11638 = vadd.f32 %v11487, %v11621
    %v11639 = vadd.f32 %v11489, %v11625
    %v11640 = vadd.f32 %v11610, %v11629
    %v11641 = vadd.f32 %v11612, %v11633
    %v11642 = vmax.f32 %v11638, 0.0
    %v11643 = vmax.f32 %v11639, 0.0
    %v11644 = vmax.f32 %v11640, 0.0
    %v11645 = vmax.f32 %v11641, 0.0
    %v11646 = vpack.c.bf16 %v11642, %v11642
    %v11647 = vpack.c.bf16 %v11643, %v11643
    %v11648 = vpack.c.bf16 %v11644, %v11644
    %v11649 = vpack.c.bf16 %v11645, %v11645
    %v11650 = vld [vmem:[#allocation20] sm:$0xf]
    %v11651 = vld [vmem:[#allocation20 + $0x4] sm:$0xf]
    %v11652 = vld [vmem:[#allocation20 + $0x8] sm:$0xf]
    %v11653 = vld [vmem:[#allocation20 + $0xc] sm:$0xf]
    %v11654 = vld [vmem:[#allocation20 + $0x10] sm:$0xf]
    %v11655 = vld [vmem:[#allocation20 + $0x14] sm:$0xf]
    %v11656 = vld [vmem:[#allocation20 + $0x18] sm:$0xf]
    %v11657 = vld [vmem:[#allocation20 + $0x1c] sm:$0xf]
    %v11658 = vld [vmem:[#allocation20 + $0x20] sm:$0xf]
    %v11659 = vld [vmem:[#allocation20 + $0x24] sm:$0xf]
    %v11660 = vld [vmem:[#allocation20 + $0x28] sm:$0xf]
    %v11661 = vld [vmem:[#allocation20 + $0x2c] sm:$0xf]
    %v11662 = vld [vmem:[#allocation20 + $0x30] sm:$0xf]
    %v11663 = vld [vmem:[#allocation20 + $0x34] sm:$0xf]
    %v11664 = vld [vmem:[#allocation20 + $0x38] sm:$0xf]
    %v11665 = vld [vmem:[#allocation20 + $0x3c] sm:$0xf]
    %v11666 = vld [vmem:[#allocation20 + $0x40] sm:$0xf]
    %v11667 = vld [vmem:[#allocation20 + $0x44] sm:$0xf]
    %v11668 = vld [vmem:[#allocation20 + $0x48] sm:$0xf]
    %v11669 = vld [vmem:[#allocation20 + $0x4c] sm:$0xf]
    %v11670 = vld [vmem:[#allocation20 + $0x50] sm:$0xf]
    %v11671 = vld [vmem:[#allocation20 + $0x54] sm:$0xf]
    %v11672 = vld [vmem:[#allocation20 + $0x58] sm:$0xf]
    %v11673 = vld [vmem:[#allocation20 + $0x5c] sm:$0xf]
    %v11674 = vld [vmem:[#allocation20 + $0x60] sm:$0xf]
    %v11675 = vld [vmem:[#allocation20 + $0x64] sm:$0xf]
    %v11676 = vld [vmem:[#allocation20 + $0x68] sm:$0xf]
    %v11677 = vld [vmem:[#allocation20 + $0x6c] sm:$0xf]
    %v11678 = vld [vmem:[#allocation20 + $0x70] sm:$0xf]
    %v11679 = vld [vmem:[#allocation20 + $0x74] sm:$0xf]
    %v11680 = vld [vmem:[#allocation20 + $0x78] sm:$0xf]
    %v11681 = vld [vmem:[#allocation20 + $0x7c] sm:$0xf]
    %v11682 = vld [vmem:[#allocation20 + $0x80] sm:$0xf]
    %v11683 = vld [vmem:[#allocation20 + $0x84] sm:$0xf]
    %v11684 = vld [vmem:[#allocation20 + $0x88] sm:$0xf]
    %v11685 = vld [vmem:[#allocation20 + $0x8c] sm:$0xf]
    %v11686 = vld [vmem:[#allocation20 + $0x90] sm:$0xf]
    %v11687 = vld [vmem:[#allocation20 + $0x94] sm:$0xf]
    %v11688 = vld [vmem:[#allocation20 + $0x98] sm:$0xf]
    %v11689 = vld [vmem:[#allocation20 + $0x9c] sm:$0xf]
    %v11690 = vld [vmem:[#allocation20 + $0xa0] sm:$0xf]
    %v11691 = vld [vmem:[#allocation20 + $0xa4] sm:$0xf]
    %v11692 = vld [vmem:[#allocation20 + $0xa8] sm:$0xf]
    %v11693 = vld [vmem:[#allocation20 + $0xac] sm:$0xf]
    %v11694 = vld [vmem:[#allocation20 + $0xb0] sm:$0xf]
    %v11695 = vld [vmem:[#allocation20 + $0xb4] sm:$0xf]
    %v11696 = vld [vmem:[#allocation20 + $0xb8] sm:$0xf]
    %v11697 = vld [vmem:[#allocation20 + $0xbc] sm:$0xf]
    %v11698 = vld [vmem:[#allocation20 + $0xc0] sm:$0xf]
    %v11699 = vld [vmem:[#allocation20 + $0xc4] sm:$0xf]
    %v11700 = vld [vmem:[#allocation20 + $0xc8] sm:$0xf]
    %v11701 = vld [vmem:[#allocation20 + $0xcc] sm:$0xf]
    %v11702 = vld [vmem:[#allocation20 + $0xd0] sm:$0xf]
    %v11703 = vld [vmem:[#allocation20 + $0xd4] sm:$0xf]
    %v11704 = vld [vmem:[#allocation20 + $0xd8] sm:$0xf]
    %v11705 = vld [vmem:[#allocation20 + $0xdc] sm:$0xf]
    %v11706 = vld [vmem:[#allocation20 + $0xe0] sm:$0xf]
    %v11707 = vld [vmem:[#allocation20 + $0xe4] sm:$0xf]
    %v11708 = vld [vmem:[#allocation20 + $0xe8] sm:$0xf]
    %v11709 = vld [vmem:[#allocation20 + $0xec] sm:$0xf]
    %v11710 = vld [vmem:[#allocation20 + $0xf0] sm:$0xf]
    %v11711 = vld [vmem:[#allocation20 + $0xf4] sm:$0xf]
    %v11712 = vld [vmem:[#allocation20 + $0xf8] sm:$0xf]
    %v11713 = vld [vmem:[#allocation20 + $0xfc] sm:$0xf]
    %v11714 = vld [vmem:[#allocation22] sm:$0x1]
    %v11716 = vlaneseq
    %v11717 = vshrl.u32 %v11716, 7
    %v11718 = vsub.s32 0, %v11717
    %v11719 = vrot.slane %v11714, %v11718
    %v11785 = vunpack.c.l.b16 %v11650
    %v11786 = vunpack.c.l.b16 %v11651
    %v11787 = vunpack.c.l.b16 %v11652
    %v11788 = vunpack.c.l.b16 %v11653
    %v11789 = vunpack.c.l.b16 %v11654
    %v11790 = vunpack.c.l.b16 %v11655
    %v11791 = vunpack.c.l.b16 %v11656
    %v11792 = vunpack.c.l.b16 %v11657
    %v11793 = vunpack.c.l.b16 %v11658
    %v11794 = vunpack.c.l.b16 %v11659
    %v11795 = vunpack.c.l.b16 %v11660
    %v11796 = vunpack.c.l.b16 %v11661
    %v11797 = vunpack.c.l.b16 %v11662
    %v11798 = vunpack.c.l.b16 %v11663
    %v11799 = vunpack.c.l.b16 %v11664
    %v11800 = vunpack.c.l.b16 %v11665
    %v11801 = vunpack.c.l.b16 %v11666
    %v11802 = vunpack.c.l.b16 %v11667
    %v11803 = vunpack.c.l.b16 %v11668
    %v11804 = vunpack.c.l.b16 %v11669
    %v11805 = vunpack.c.l.b16 %v11670
    %v11806 = vunpack.c.l.b16 %v11671
    %v11807 = vunpack.c.l.b16 %v11672
    %v11808 = vunpack.c.l.b16 %v11673
    %v11809 = vunpack.c.l.b16 %v11674
    %v11810 = vunpack.c.l.b16 %v11675
    %v11811 = vunpack.c.l.b16 %v11676
    %v11812 = vunpack.c.l.b16 %v11677
    %v11813 = vunpack.c.l.b16 %v11678
    %v11814 = vunpack.c.l.b16 %v11679
    %v11815 = vunpack.c.l.b16 %v11680
    %v11816 = vunpack.c.l.b16 %v11681
    %v11817 = vunpack.c.l.b16 %v11682
    %v11818 = vunpack.c.l.b16 %v11683
    %v11819 = vunpack.c.l.b16 %v11684
    %v11820 = vunpack.c.l.b16 %v11685
    %v11821 = vunpack.c.l.b16 %v11686
    %v11822 = vunpack.c.l.b16 %v11687
    %v11823 = vunpack.c.l.b16 %v11688
    %v11824 = vunpack.c.l.b16 %v11689
    %v11825 = vunpack.c.l.b16 %v11690
    %v11826 = vunpack.c.l.b16 %v11691
    %v11827 = vunpack.c.l.b16 %v11692
    %v11828 = vunpack.c.l.b16 %v11693
    %v11829 = vunpack.c.l.b16 %v11694
    %v11830 = vunpack.c.l.b16 %v11695
    %v11831 = vunpack.c.l.b16 %v11696
    %v11832 = vunpack.c.l.b16 %v11697
    %v11833 = vunpack.c.l.b16 %v11698
    %v11834 = vunpack.c.l.b16 %v11699
    %v11835 = vunpack.c.l.b16 %v11700
    %v11836 = vunpack.c.l.b16 %v11701
    %v11837 = vunpack.c.l.b16 %v11702
    %v11838 = vunpack.c.l.b16 %v11703
    %v11839 = vunpack.c.l.b16 %v11704
    %v11840 = vunpack.c.l.b16 %v11705
    %v11841 = vunpack.c.l.b16 %v11706
    %v11842 = vunpack.c.l.b16 %v11707
    %v11843 = vunpack.c.l.b16 %v11708
    %v11844 = vunpack.c.l.b16 %v11709
    %v11845 = vunpack.c.l.b16 %v11710
    %v11846 = vunpack.c.l.b16 %v11711
    %v11847 = vunpack.c.l.b16 %v11712
    %v11848 = vunpack.c.l.b16 %v11713
    %v11849 = vpack.c.b16 %v11786, %v11785
    %v11850 = vpack.c.b16 %v11788, %v11787
    %v11851 = vpack.c.b16 %v11790, %v11789
    %v11852 = vpack.c.b16 %v11792, %v11791
    %v11853 = vpack.c.b16 %v11794, %v11793
    %v11854 = vpack.c.b16 %v11796, %v11795
    %v11855 = vpack.c.b16 %v11798, %v11797
    %v11856 = vpack.c.b16 %v11800, %v11799
    %v11857 = vpack.c.b16 %v11802, %v11801
    %v11858 = vpack.c.b16 %v11804, %v11803
    %v11859 = vpack.c.b16 %v11806, %v11805
    %v11860 = vpack.c.b16 %v11808, %v11807
    %v11861 = vpack.c.b16 %v11810, %v11809
    %v11862 = vpack.c.b16 %v11812, %v11811
    %v11863 = vpack.c.b16 %v11814, %v11813
    %v11864 = vpack.c.b16 %v11816, %v11815
    %v11865 = vpack.c.b16 %v11818, %v11817
    %v11866 = vpack.c.b16 %v11820, %v11819
    %v11867 = vpack.c.b16 %v11822, %v11821
    %v11868 = vpack.c.b16 %v11824, %v11823
    %v11869 = vpack.c.b16 %v11826, %v11825
    %v11870 = vpack.c.b16 %v11828, %v11827
    %v11871 = vpack.c.b16 %v11830, %v11829
    %v11872 = vpack.c.b16 %v11832, %v11831
    %v11873 = vpack.c.b16 %v11834, %v11833
    %v11874 = vpack.c.b16 %v11836, %v11835
    %v11875 = vpack.c.b16 %v11838, %v11837
    %v11876 = vpack.c.b16 %v11840, %v11839
    %v11877 = vpack.c.b16 %v11842, %v11841
    %v11878 = vpack.c.b16 %v11844, %v11843
    %v11879 = vpack.c.b16 %v11846, %v11845
    %v11880 = vpack.c.b16 %v11848, %v11847
    %11913 = vmatprep.subr.bf16.mxu0 0
    %11914 = vmatpush1.bf16.msra.mxu0 %v11856
    %11915 = vmatprep.subr.bf16.mxu0 0
    %11916 = vmatpush1.bf16.msra.mxu0 %v11855
    %11917 = vmatprep.subr.bf16.mxu0 0
    %11918 = vmatpush1.bf16.msra.mxu0 %v11854
    %11919 = vmatprep.subr.bf16.mxu0 0
    %11920 = vmatpush1.bf16.msra.mxu0 %v11853
    %11921 = vmatprep.subr.bf16.mxu0 0
    %11922 = vmatpush1.bf16.msra.mxu0 %v11852
    %11923 = vmatprep.subr.bf16.mxu0 0
    %11924 = vmatpush1.bf16.msra.mxu0 %v11851
    %11925 = vmatprep.subr.bf16.mxu0 0
    %11926 = vmatpush1.bf16.msra.mxu0 %v11850
    %11927 = vmatprep.subr.bf16.mxu0 0
    %11928 = vmatpush1.bf16.msra.mxu0 %v11849
    %11929 = vmatprep.subr.bf16.mxu0 0
    %11930 = vmatpush2.bf16.msra.mxu0 %v11864
    %11931 = vmatprep.subr.bf16.mxu0 0
    %11932 = vmatpush2.bf16.msra.mxu0 %v11863
    %11933 = vmatprep.subr.bf16.mxu0 0
    %11934 = vmatpush2.bf16.msra.mxu0 %v11862
    %11935 = vmatprep.subr.bf16.mxu0 0
    %11936 = vmatpush2.bf16.msra.mxu0 %v11861
    %11937 = vmatprep.subr.bf16.mxu0 0
    %11938 = vmatpush2.bf16.msra.mxu0 %v11860
    %11939 = vmatprep.subr.bf16.mxu0 0
    %11940 = vmatpush2.bf16.msra.mxu0 %v11859
    %11941 = vmatprep.subr.bf16.mxu0 0
    %11942 = vmatpush2.bf16.msra.mxu0 %v11858
    %11943 = vmatprep.subr.bf16.mxu0 0
    %11944 = vmatpush2.bf16.msra.mxu0 %v11857
    %11945 = vmatprep.mubr.bf16.mxu0 %v11647
    %11946 = vmatmul.mubr.bf16.gmra.mxu0 %v11646
    %v11947 = vpop.f32.mrf.mxu0
    %v11948 = vadd.f32 %v11719, %v11947
    %v11949 = vpop.f32.mrf.mxu0
    %v11950 = vpop.f32.mrf.mxu0
    %v11951 = vpop.f32.mrf.mxu0
    %11952 = vdwg.mxu0
    %11953 = vmatprep.subr.bf16.mxu0 0
    %11954 = vmatpush1.bf16.msra.mxu0 %v11872
    %11955 = vmatprep.subr.bf16.mxu0 0
    %11956 = vmatpush1.bf16.msra.mxu0 %v11871
    %11957 = vmatprep.subr.bf16.mxu0 0
    %11958 = vmatpush1.bf16.msra.mxu0 %v11870
    %11959 = vmatprep.subr.bf16.mxu0 0
    %11960 = vmatpush1.bf16.msra.mxu0 %v11869
    %11961 = vmatprep.subr.bf16.mxu0 0
    %11962 = vmatpush1.bf16.msra.mxu0 %v11868
    %11963 = vmatprep.subr.bf16.mxu0 0
    %11964 = vmatpush1.bf16.msra.mxu0 %v11867
    %11965 = vmatprep.subr.bf16.mxu0 0
    %11966 = vmatpush1.bf16.msra.mxu0 %v11866
    %11967 = vmatprep.subr.bf16.mxu0 0
    %11968 = vmatpush1.bf16.msra.mxu0 %v11865
    %11969 = vmatprep.subr.bf16.mxu0 0
    %11970 = vmatpush2.bf16.msra.mxu0 %v11880
    %11971 = vmatprep.subr.bf16.mxu0 0
    %11972 = vmatpush2.bf16.msra.mxu0 %v11879
    %11973 = vmatprep.subr.bf16.mxu0 0
    %11974 = vmatpush2.bf16.msra.mxu0 %v11878
    %11975 = vmatprep.subr.bf16.mxu0 0
    %11976 = vmatpush2.bf16.msra.mxu0 %v11877
    %11977 = vmatprep.subr.bf16.mxu0 0
    %11978 = vmatpush2.bf16.msra.mxu0 %v11876
    %11979 = vmatprep.subr.bf16.mxu0 0
    %11980 = vmatpush2.bf16.msra.mxu0 %v11875
    %11981 = vmatprep.subr.bf16.mxu0 0
    %11982 = vmatpush2.bf16.msra.mxu0 %v11874
    %11983 = vmatprep.subr.bf16.mxu0 0
    %11984 = vmatpush2.bf16.msra.mxu0 %v11873
    %11985 = vmatprep.mubr.bf16.mxu0 %v11649
    %11986 = vmatmul.mubr.bf16.gmra.mxu0 %v11648
    %v11987 = vpop.f32.mrf.mxu0
    %v11988 = vadd.f32 %v11948, %v11987
    %v11989 = vpop.f32.mrf.mxu0
    %v11990 = vpop.f32.mrf.mxu0
    %v11991 = vpop.f32.mrf.mxu0
    %11992 = vdwg.mxu0
    %v11993 = vmax.f32 %v11988, 0.0
    %v11994 = vpack.c.bf16 %v11993, %v11993
    %v11995 = vld [vmem:[#allocation23] sm:$0xf]
    %v11996 = vld [vmem:[#allocation23 + $0x4] sm:$0xf]
    %v11997 = vld [vmem:[#allocation23 + $0x8] sm:$0xf]
    %v11998 = vld [vmem:[#allocation23 + $0xc] sm:$0xf]
    %v11999 = vld [vmem:[#allocation23 + $0x10] sm:$0xf]
    %v12000 = vld [vmem:[#allocation23 + $0x14] sm:$0xf]
    %v12001 = vld [vmem:[#allocation23 + $0x18] sm:$0xf]
    %v12002 = vld [vmem:[#allocation23 + $0x1c] sm:$0xf]
    %v12003 = vld [vmem:[#allocation23 + $0x20] sm:$0xf]
    %v12004 = vld [vmem:[#allocation23 + $0x24] sm:$0xf]
    %v12005 = vld [vmem:[#allocation23 + $0x28] sm:$0xf]
    %v12006 = vld [vmem:[#allocation23 + $0x2c] sm:$0xf]
    %v12007 = vld [vmem:[#allocation23 + $0x30] sm:$0xf]
    %v12008 = vld [vmem:[#allocation23 + $0x34] sm:$0xf]
    %v12009 = vld [vmem:[#allocation23 + $0x38] sm:$0xf]
    %v12010 = vld [vmem:[#allocation23 + $0x3c] sm:$0xf]
    %v12011 = vld [vmem:[#allocation25] sm:$0x1]
    %v12013 = vlaneseq
    %v12014 = vshrl.u32 %v12013, 7
    %v12015 = vsub.s32 0, %v12014
    %v12016 = vrot.slane %v12011, %v12015
    %v12034 = vunpack.c.l.b16 %v11995
    %v12035 = vunpack.c.l.b16 %v11996
    %v12036 = vunpack.c.l.b16 %v11997
    %v12037 = vunpack.c.l.b16 %v11998
    %v12038 = vunpack.c.l.b16 %v11999
    %v12039 = vunpack.c.l.b16 %v12000
    %v12040 = vunpack.c.l.b16 %v12001
    %v12041 = vunpack.c.l.b16 %v12002
    %v12042 = vunpack.c.l.b16 %v12003
    %v12043 = vunpack.c.l.b16 %v12004
    %v12044 = vunpack.c.l.b16 %v12005
    %v12045 = vunpack.c.l.b16 %v12006
    %v12046 = vunpack.c.l.b16 %v12007
    %v12047 = vunpack.c.l.b16 %v12008
    %v12048 = vunpack.c.l.b16 %v12009
    %v12049 = vunpack.c.l.b16 %v12010
    %v12050 = vpack.c.b16 %v12035, %v12034
    %v12051 = vpack.c.b16 %v12037, %v12036
    %v12052 = vpack.c.b16 %v12039, %v12038
    %v12053 = vpack.c.b16 %v12041, %v12040
    %v12054 = vpack.c.b16 %v12043, %v12042
    %v12055 = vpack.c.b16 %v12045, %v12044
    %v12056 = vpack.c.b16 %v12047, %v12046
    %v12057 = vpack.c.b16 %v12049, %v12048
    %12066 = vmatprep.subr.bf16.mxu0 0
    %12067 = vmatpush1.bf16.msra.mxu0 %v12057
    %12068 = vmatprep.subr.bf16.mxu0 0
    %12069 = vmatpush1.bf16.msra.mxu0 %v12056
    %12070 = vmatprep.subr.bf16.mxu0 0
    %12071 = vmatpush1.bf16.msra.mxu0 %v12055
    %12072 = vmatprep.subr.bf16.mxu0 0
    %12073 = vmatpush1.bf16.msra.mxu0 %v12054
    %12074 = vmatprep.subr.bf16.mxu0 0
    %12075 = vmatpush1.bf16.msra.mxu0 %v12053
    %12076 = vmatprep.subr.bf16.mxu0 0
    %12077 = vmatpush1.bf16.msra.mxu0 %v12052
    %12078 = vmatprep.subr.bf16.mxu0 0
    %12079 = vmatpush1.bf16.msra.mxu0 %v12051
    %12080 = vmatprep.subr.bf16.mxu0 0
    %12081 = vmatpush1.bf16.msra.mxu0 %v12050
    %12082 = vmatprep.subr.bf16.mxu0 0
    %12083 = vmatpush2.bf16.msra.mxu0 0
    %12084 = vmatprep.subr.bf16.mxu0 0
    %12085 = vmatpush2.bf16.msra.mxu0 0
    %12086 = vmatprep.subr.bf16.mxu0 0
    %12087 = vmatpush2.bf16.msra.mxu0 0
    %12088 = vmatprep.subr.bf16.mxu0 0
    %12089 = vmatpush2.bf16.msra.mxu0 0
    %12090 = vmatprep.subr.bf16.mxu0 0
    %12091 = vmatpush2.bf16.msra.mxu0 0
    %12092 = vmatprep.subr.bf16.mxu0 0
    %12093 = vmatpush2.bf16.msra.mxu0 0
    %12094 = vmatprep.subr.bf16.mxu0 0
    %12095 = vmatpush2.bf16.msra.mxu0 0
    %12096 = vmatprep.subr.bf16.mxu0 0
    %12097 = vmatpush2.bf16.msra.mxu0 0
    %12098 = vmatprep.mubr.bf16.mxu0 0
    %12099 = vmatmul.mubr.bf16.gmra.mxu0 %v11994
    %v12100 = vpop.f32.mrf.mxu0
    %v12101 = vadd.f32 %v12016, %v12100
    %v12102 = vpop.f32.mrf.mxu0
    %v12103 = vpop.f32.mrf.mxu0
    %v12104 = vpop.f32.mrf.mxu0
    %12105 = vdwg.mxu0
    %v12106 = vmax.f32 %v12101, 0.0
    %v12107 = vpack.c.bf16 %v12106, %v12106
    %v12108 = vld [vmem:[#allocation26] sm:$0xf]
    %v12109 = vld [vmem:[#allocation26 + $0x4] sm:$0xf]
    %v12110 = vld [vmem:[#allocation26 + $0x8] sm:$0xf]
    %v12111 = vld [vmem:[#allocation26 + $0xc] sm:$0xf]
    %v12112 = vld [vmem:[#allocation26 + $0x10] sm:$0xf]
    %v12113 = vld [vmem:[#allocation26 + $0x14] sm:$0xf]
    %v12114 = vld [vmem:[#allocation26 + $0x18] sm:$0xf]
    %v12115 = vld [vmem:[#allocation26 + $0x1c] sm:$0xf]
    %v12116 = vld [vmem:[#allocation26 + $0x20] sm:$0xf]
    %v12117 = vld [vmem:[#allocation26 + $0x24] sm:$0xf]
    %v12118 = vld [vmem:[#allocation26 + $0x28] sm:$0xf]
    %v12119 = vld [vmem:[#allocation26 + $0x2c] sm:$0xf]
    %v12120 = vld [vmem:[#allocation26 + $0x30] sm:$0xf]
    %v12121 = vld [vmem:[#allocation26 + $0x34] sm:$0xf]
    %v12122 = vld [vmem:[#allocation26 + $0x38] sm:$0xf]
    %v12123 = vld [vmem:[#allocation26 + $0x3c] sm:$0xf]
    %v12124 = vld [vmem:[#allocation28] sm:$0x1]
    %v12126 = vlaneseq
    %v12127 = vshrl.u32 %v12126, 7
    %v12128 = vsub.s32 0, %v12127
    %v12129 = vrot.slane %v12124, %v12128
    %v12147 = vunpack.c.l.b16 %v12108
    %v12148 = vunpack.c.l.b16 %v12109
    %v12149 = vunpack.c.l.b16 %v12110
    %v12150 = vunpack.c.l.b16 %v12111
    %v12151 = vunpack.c.l.b16 %v12112
    %v12152 = vunpack.c.l.b16 %v12113
    %v12153 = vunpack.c.l.b16 %v12114
    %v12154 = vunpack.c.l.b16 %v12115
    %v12155 = vunpack.c.l.b16 %v12116
    %v12156 = vunpack.c.l.b16 %v12117
    %v12157 = vunpack.c.l.b16 %v12118
    %v12158 = vunpack.c.l.b16 %v12119
    %v12159 = vunpack.c.l.b16 %v12120
    %v12160 = vunpack.c.l.b16 %v12121
    %v12161 = vunpack.c.l.b16 %v12122
    %v12162 = vunpack.c.l.b16 %v12123
    %v12163 = vpack.c.b16 %v12148, %v12147
    %v12164 = vpack.c.b16 %v12150, %v12149
    %v12165 = vpack.c.b16 %v12152, %v12151
    %v12166 = vpack.c.b16 %v12154, %v12153
    %v12167 = vpack.c.b16 %v12156, %v12155
    %v12168 = vpack.c.b16 %v12158, %v12157
    %v12169 = vpack.c.b16 %v12160, %v12159
    %v12170 = vpack.c.b16 %v12162, %v12161
    %12179 = vmatprep.subr.bf16.mxu0 0
    %12180 = vmatpush1.bf16.msra.mxu0 %v12170
    %12181 = vmatprep.subr.bf16.mxu0 0
    %12182 = vmatpush1.bf16.msra.mxu0 %v12169
    %12183 = vmatprep.subr.bf16.mxu0 0
    %12184 = vmatpush1.bf16.msra.mxu0 %v12168
    %12185 = vmatprep.subr.bf16.mxu0 0
    %12186 = vmatpush1.bf16.msra.mxu0 %v12167
    %12187 = vmatprep.subr.bf16.mxu0 0
    %12188 = vmatpush1.bf16.msra.mxu0 %v12166
    %12189 = vmatprep.subr.bf16.mxu0 0
    %12190 = vmatpush1.bf16.msra.mxu0 %v12165
    %12191 = vmatprep.subr.bf16.mxu0 0
    %12192 = vmatpush1.bf16.msra.mxu0 %v12164
    %12193 = vmatprep.subr.bf16.mxu0 0
    %12194 = vmatpush1.bf16.msra.mxu0 %v12163
    %12195 = vmatprep.subr.bf16.mxu0 0
    %12196 = vmatpush2.bf16.msra.mxu0 0
    %12197 = vmatprep.subr.bf16.mxu0 0
    %12198 = vmatpush2.bf16.msra.mxu0 0
    %12199 = vmatprep.subr.bf16.mxu0 0
    %12200 = vmatpush2.bf16.msra.mxu0 0
    %12201 = vmatprep.subr.bf16.mxu0 0
    %12202 = vmatpush2.bf16.msra.mxu0 0
    %12203 = vmatprep.subr.bf16.mxu0 0
    %12204 = vmatpush2.bf16.msra.mxu0 0
    %12205 = vmatprep.subr.bf16.mxu0 0
    %12206 = vmatpush2.bf16.msra.mxu0 0
    %12207 = vmatprep.subr.bf16.mxu0 0
    %12208 = vmatpush2.bf16.msra.mxu0 0
    %12209 = vmatprep.subr.bf16.mxu0 0
    %12210 = vmatpush2.bf16.msra.mxu0 0
    %12211 = vmatprep.mubr.bf16.mxu0 0
    %12212 = vmatmul.mubr.bf16.gmra.mxu0 %v12107
    %v12213 = vpop.f32.mrf.mxu0
    %v12214 = vadd.f32 %v12129, %v12213
    %v12215 = vpop.f32.mrf.mxu0
    %v12216 = vpop.f32.mrf.mxu0
    %v12217 = vpop.f32.mrf.mxu0
    %12218 = vdwg.mxu0
    %12219 = vst [vmem:[#allocation29] sm:$0xff] %v12214
    // Predicated region
    $region138: #{tpu_custom_call.1} parent=1 // pred_check
      _
    $region139: #{tpu_custom_call.1} parent=1 // pred_check_branch
      %12221 = sbr.rel (0) target = $region141
    $region140: #{tpu_custom_call.1} parent=1 // pred_region
      %s12223 = ssub.s32 128, 128
      %12224 = vsyncadd [#allocation4], %s12223
      %s12226 = sshll.u32 [#allocation29], 4
      %s12227 = int_to_ptr.vmem [resolvable:$true] %s12226
      %12229 = dma.vmem_to_hbm [thread:$0]  %s12227, 128, %s17, [#allocation4]
    $region141: #{tpu_custom_call.1} parent=1 // pred_fallthru
      _
    // Predicated region
    $region142: #{tpu_custom_call.1} parent=1 // pred_check
      _
    $region143: #{tpu_custom_call.1} parent=1 // pred_check_branch
      %12231 = sbr.rel (0) target = $region145
    $region144: #{tpu_custom_call.1} parent=1 // pred_region
      %12232 = dma.done [#allocation4], 128
    $region145: #{tpu_custom_call.1} parent=1 // pred_fallthru
      _
    %12233 = vsyncpa [#allocation3], 1
    %12234 = vsyncpa [#allocation6], 1
    %12235 = vsyncpa [#allocation9], 1
    %12236 = vsyncpa [#allocation12], 1
    %12237 = vsyncpa [#allocation15], 1
    %12238 = vsyncpa [#allocation18], 1
    %12239 = vsyncpa [#allocation21], 1
    %12240 = vsyncpa [#allocation24], 1
    %12241 = vsyncpa [#allocation27], 1
    %12242 = vsyncpa [#allocation4], 1

</llo_original>
